<compile_context>
chip_gen: v7x
topology: tpu7x:2x2x1
jax: 0.10.0
libtpu: 0.0.40
codegen_flags: <defaults>
</compile_context>

<pallas_src>
import jax
import jax.numpy as jnp
from jax import lax
from jax.experimental import pallas as pl
from jax.experimental.pallas import tpu as pltpu


# --------------------------------------------------------------------------- #
# Kernel
# --------------------------------------------------------------------------- #
def repvgg_se_kernel(x_ref, w9_ref, b_ref, wd_ref, bd_ref, wu_ref, bu_ref,
                     out_ref, acc_ref):
    # x_ref  : (1, (H+2)*(W+2), Cin)  bf16   zero-padded image, spatially flattened
    # w9_ref : (9, Cin, Cout)         bf16   BN-folded 3x3 (1x1 + identity in tap 4)
    # b_ref  : (1, Cout)              f32    folded bias
    # wd/bd/wu/bu : SE squeeze/excite params (f32)
    # out_ref: (1, H, W, Cout)        bf16
    # acc_ref: (H*(W+2) - 2, Cout)    f32    conv accumulator (incl. junk columns)
    H, W, Cout = out_ref.shape[1], out_ref.shape[2], out_ref.shape[3]
    Wp = W + 2
    R = acc_ref.shape[0]
    assert R == H * Wp - 2  # trace-time sanity check

    # ---- fused 3x3 conv: 9 contiguous row-window matmuls, f32 accumulation ----
    # The window for tap (ky, kx) starts at flat offset ky*Wp + kx; because the image
    # is flattened together with its W-padding, each tap is one contiguous sublane
    # window -- no slices across the (8,128) tiling, no reshape relayouts.
    for ky in range(3):
        for kx in range(3):
            tap = x_ref[0, pl.ds(ky * Wp + kx, R), :]            # (R, Cin) bf16
            part = jnp.dot(tap, w9_ref[ky * 3 + kx],
                           preferred_element_type=jnp.float32)   # (R, Cout) f32
            if ky == 0 and kx == 0:
                acc_ref[...] = part + b_ref[...]                 # bias folded into init
            else:
                acc_ref[...] += part

    # ---- SE block: global average pool over the H*W valid pixels ----
    # One full column-sum pass, then subtract the 2*(H-1) junk-column rows that live
    # inside the accumulator (the last row's junk columns fall outside R).
    full = jnp.sum(acc_ref[...], axis=0, keepdims=True)          # (1, Cout)
    junk = jnp.zeros_like(full)
    for i in range(H - 1):
        junk += jnp.sum(acc_ref[pl.ds(i * Wp + W, 2), :], axis=0, keepdims=True)
    pool = (full - junk) * (1.0 / (H * W))                       # (1, Cout)

    hid = jnp.maximum(
        jnp.dot(pool, wd_ref[...], preferred_element_type=jnp.float32) + bd_ref[...],
        0.0)                                                     # (1, Cint)
    g = jnp.dot(hid, wu_ref[...], preferred_element_type=jnp.float32) + bu_ref[...]
    gate = pl.reciprocal(1.0 + jnp.exp(-g), approx=True)         # sigmoid (EUP slot)

    # ---- gate * ReLU fused into the store; junk columns stripped row-by-row ----
    for i in range(H):
        row = acc_ref[pl.ds(i * Wp, W), :]                       # (W, Cout) f32
        out_ref[0, i] = jnp.maximum(row * gate, 0.0).astype(out_ref.dtype)


# --------------------------------------------------------------------------- #
# Parameter construction / folding (eval-mode BatchNorm, exact re-param)
# --------------------------------------------------------------------------- #
def _fold_bn(gamma, beta, mean, var, eps=1e-5):
    scale = gamma / jnp.sqrt(var + eps)
    shift = beta - mean * scale
    return scale, shift


def init_params(key, cin, cout):
    """Per-branch, eval-mode-BN-folded parameters (mirrors the PyTorch module)."""
    assert cout % 16 == 0, "SEBlock internal_neurons = out_channels // 16 must be >= 1"
    cint = cout // 16
    ks = jax.random.split(key, 16)
    # rbr_dense: 3x3 conv (no bias) + BN
    w3 = jax.random.normal(ks[0], (cout, cin, 3, 3), jnp.float32) * 0.05      # torch OIHW
    g3 = 0.9 + 0.2 * jax.random.uniform(ks[1], (cout,), jnp.float32)
    b3 = jax.random.normal(ks[2], (cout,), jnp.float32) * 0.05
    m3 = jax.random.normal(ks[3], (cout,), jnp.float32) * 0.05
    v3 = 0.9 + 0.2 * jax.random.uniform(ks[4], (cout,), jnp.float32)
    s3, sh3 = _fold_bn(g3, b3, m3, v3)
    w3f = jnp.transpose(w3, (2, 3, 1, 0)).reshape(9, cin, cout) * s3[None, None, :]
    # rbr_1x1: 1x1 conv (no bias) + BN
    w1 = jax.random.normal(ks[5], (cout, cin, 1, 1), jnp.float32) * 0.05
    g1 = 0.9 + 0.2 * jax.random.uniform(ks[6], (cout,), jnp.float32)
    b1 = jax.random.normal(ks[7], (cout,), jnp.float32) * 0.05
    m1 = jax.random.normal(ks[8], (cout,), jnp.float32) * 0.05
    v1 = 0.9 + 0.2 * jax.random.uniform(ks[9], (cout,), jnp.float32)
    s1, sh1 = _fold_bn(g1, b1, m1, v1)
    w1f = jnp.transpose(w1[:, :, 0, 0], (1, 0)) * s1[None, :]                 # (Cin, Cout)
    # rbr_identity: BN (only when cin == cout and stride == 1)
    gi = 0.9 + 0.2 * jax.random.uniform(ks[10], (cin,), jnp.float32)
    bi = jax.random.normal(ks[11], (cin,), jnp.float32) * 0.05
    mi = jax.random.normal(ks[12], (cin,), jnp.float32) * 0.05
    vi = 0.9 + 0.2 * jax.random.uniform(ks[13], (cin,), jnp.float32)
    sid, bid = _fold_bn(gi, bi, mi, vi)
    # SE block (1x1 convs with bias == channel dense layers)
    wd = jax.random.normal(ks[14], (cint, cout), jnp.float32) * 0.5           # torch (Cint,Cout,1,1)
    bd = jnp.full((cint,), 0.01, jnp.float32)
    wu = jax.random.normal(ks[15], (cout, cint), jnp.float32) * 0.5           # torch (Cout,Cint,1,1)
    bu = jnp.full((cout,), 0.01, jnp.float32)
    return dict(w3f=w3f, b3=sh3, w1f=w1f, b1=sh1, sid=sid, bid=bid,
                wd=jnp.transpose(wd), bd=bd, wu=jnp.transpose(wu), bu=bu)


def fold_for_kernel(p):
    """RepVGG re-parameterisation: fold the 1x1 branch and the identity BN into the
    centre tap of the (already BN-folded) 3x3 kernel.  Exact for eval-mode BN."""
    cin, cout = p['w1f'].shape
    assert cin == cout, "identity branch requires in_channels == out_channels"
    cint = p['bd'].shape[0]
    w9 = p['w3f'].at[4].add(p['w1f'] + jnp.diag(p['sid']))
    bias = (p['b3'] + p['b1'] + p['bid']).reshape(1, cout)
    return dict(w9=w9.astype(jnp.bfloat16),            # MXU operand in bf16
                bias=bias.astype(jnp.float32),
                wd=p['wd'].astype(jnp.float32), bd=p['bd'].reshape(1, cint).astype(jnp.float32),
                wu=p['wu'].astype(jnp.float32), bu=p['bu'].reshape(1, cout).astype(jnp.float32))


# --------------------------------------------------------------------------- #
# Pallas wrapper (NHWC in -> NHWC bf16 out; no layout round-trips)
# --------------------------------------------------------------------------- #
def repvgg_block_se_forward(x_nhwc, kp):
    N, H, W, Cin = x_nhwc.shape
    Cout = kp['w9'].shape[2]
    Cint = kp['wd'].shape[1]
    Hp, Wp = H + 2, W + 2
    R = H * Wp - 2                               # conv rows incl. junk columns

    # Zero-pad H/W by 1, cast the MXU operand to bf16, flatten the padded spatial
    # dims (contiguous-dim reshape, no copy).
    # TODO(synk): move the halo pad in-kernel (pl.ANY input + make_async_copy into a
    # pre-zeroed VMEM buffer) to drop this extra HBM pass over the input.
    xpad = jnp.pad(x_nhwc.astype(jnp.bfloat16), ((0, 0), (1, 1), (1, 1), (0, 0)))
    xflat = xpad.reshape(N, Hp * Wp, Cin)

    def const_spec(shape):                       # same block every step -> fetched once
        rank = len(shape)
        return pl.BlockSpec(shape, lambda n, _r=rank: (0,) * _r)

    # Explicit VMEM budget (lane-padded estimate), clamped to [32 MiB, 64 MiB] so the
    # same tiling compiles on v7x (64 MiB physical) and v5e/v6e (128 MiB).
    rup = lambda v, m: -(-v // m) * m
    cin_p, cout_p, cint_p = rup(Cin, 128), rup(Cout, 128), rup(Cint, 128)
    vmem_budget = (2 * (Hp * Wp * cin_p * 2)                       # input blocks (bf16)
                   + 2 * (H * rup(W, 8) * cout_p * 2)              # output blocks (bf16)
                   + 2 * (9 * rup(Cin, 16) * cout_p * 2)           # folded weights
                   + 2 * (Cout * cint_p + Cint * cout_p + 3 * cout_p + cint_p) * 4
                   + rup(R, 8) * cout_p * 4                        # f32 accumulator
                   + (4 << 20))                                    # headroom
    vmem_limit = int(max(32 << 20, min(vmem_budget, 64 << 20)))

    return pl.pallas_call(
        repvgg_se_kernel,
        out_shape=jax.ShapeDtypeStruct((N, H, W, Cout), jnp.bfloat16),
        grid=(N,),
        in_specs=[
            pl.BlockSpec((1, Hp * Wp, Cin), lambda n: (n, 0, 0)),   # flattened padded image
            const_spec((9, Cin, Cout)),                             # folded 3x3 weights
            const_spec((1, Cout)),                                  # folded bias
            const_spec((Cout, Cint)),                               # SE down W
            const_spec((1, Cint)),                                  # SE down b
            const_spec((Cint, Cout)),                               # SE up W
            const_spec((1, Cout)),                                  # SE up b
        ],
        out_specs=pl.BlockSpec((1, H, W, Cout), lambda n: (n, 0, 0, 0)),
        scratch_shapes=[pltpu.VMEM((R, Cout), jnp.float32)],
        compiler_params=pltpu.CompilerParams(
            dimension_semantics=("parallel",),                      # batch -> both TCs
            vmem_limit_bytes=vmem_limit),
    )(xflat, kp['w9'], kp['bias'], kp['wd'], kp['bd'], kp['wu'], kp['bu'])


# --------------------------------------------------------------------------- #
# Pure-JAX f32 reference mirroring the original three-branch module (eval BN)
# --------------------------------------------------------------------------- #
def reference_forward_nhwc(x_nhwc, p):
    x = x_nhwc.astype(jnp.float32)
    Cin = x.shape[-1]
    Cout = p['w3f'].shape[2]
    w3 = p['w3f'].reshape(3, 3, Cin, Cout)
    dense = lax.conv_general_dilated(
        x, w3, (1, 1), ((1, 1), (1, 1)),
        dimension_numbers=('NHWC', 'HWIO', 'NHWC'),
        precision=lax.Precision.HIGHEST) + p['b3']
    one = jnp.einsum('nhwc,co->nhwo', x, p['w1f'],
                     precision=lax.Precision.HIGHEST) + p['b1']
    ident = x * p['sid'] + p['bid']
    y = dense + one + ident
    pool = jnp.mean(y, axis=(1, 2))
    hid = jax.nn.relu(pool @ p['wd'] + p['bd'])
    gate = jax.nn.sigmoid(hid @ p['wu'] + p['bu'])
    return jax.nn.relu(y * gate[:, None, None, :])


if __name__ == "__main__":
    key = jax.random.PRNGKey(0)
    k_x, k_p = jax.random.split(key)
    N, C, H, W = 2, 32, 16, 16      # in==out channels, stride=1 -> identity branch active
    x_nchw = jax.random.normal(k_x, (N, C, H, W), jnp.float32)
    params = init_params(k_p, C, C)
    kparams = fold_for_kernel(params)

    # NCHW -> NHWC once, OUTSIDE the kernel path (kernel is NHWC end-to-end).
    x_nhwc = jnp.transpose(x_nchw, (0, 2, 3, 1))

    fwd = jax.jit(repvgg_block_se_forward)
    out = jax.block_until_ready(fwd(x_nhwc, kparams))                  # NHWC bf16
    ref = jax.block_until_ready(reference_forward_nhwc(x_nhwc, params))  # NHWC f32

    assert out.shape == (N, H, W, C)
    assert out.dtype == jnp.bfloat16
    # Tolerance: bf16 MXU operands (f32 accumulation) + bf16 output vs an all-f32
    # reference; with |x|~N(0,1) and effective weights ~0.05-1.1 the worst-case
    # rounding of the fused conv is ~3e-2 and the bf16 output store adds ~1e-2.
    err = float(jnp.max(jnp.abs(out.astype(jnp.float32) - ref)))
    assert err < 8e-2, err
    print("KERNEL_OK")
</pallas_src>

<mosaic_0001>
module attributes {stable_mosaic.version = 11 : i64} {
  func.func @repvgg_se_kernel(%arg0: i32, %arg1: memref<1x324x32xbf16, #tpu.memory_space<vmem>>, %arg2: memref<9x32x32xbf16, #tpu.memory_space<vmem>>, %arg3: memref<1x32xf32, #tpu.memory_space<vmem>>, %arg4: memref<32x2xf32, #tpu.memory_space<vmem>>, %arg5: memref<1x2xf32, #tpu.memory_space<vmem>>, %arg6: memref<2x32xf32, #tpu.memory_space<vmem>>, %arg7: memref<1x32xf32, #tpu.memory_space<vmem>>, %arg8: memref<1x16x16x32xbf16, #tpu.memory_space<vmem>>, %arg9: memref<286x32xf32, #tpu.memory_space<vmem>>) attributes {dimension_semantics = [#tpu.dimension_semantics<parallel>], iteration_bounds = array<i64: 2>, scalar_prefetch = 0 : i64, scratch_operands = 1 : i64, tpu.core_type = #tpu.core_type<tc>, window_params = [{transform_indices = @transform_0, window_bounds = array<i64: 1, 324, 32>}, {pipeline_mode = #tpu.pipeline_mode<synchronous>, transform_indices = @transform_1, window_bounds = array<i64: 9, 32, 32>}, {pipeline_mode = #tpu.pipeline_mode<synchronous>, transform_indices = @transform_2, window_bounds = array<i64: 1, 32>}, {pipeline_mode = #tpu.pipeline_mode<synchronous>, transform_indices = @transform_3, window_bounds = array<i64: 32, 2>}, {pipeline_mode = #tpu.pipeline_mode<synchronous>, transform_indices = @transform_4, window_bounds = array<i64: 1, 2>}, {pipeline_mode = #tpu.pipeline_mode<synchronous>, transform_indices = @transform_5, window_bounds = array<i64: 2, 32>}, {pipeline_mode = #tpu.pipeline_mode<synchronous>, transform_indices = @transform_6, window_bounds = array<i64: 1, 32>}, {transform_indices = @transform_7, window_bounds = array<i64: 1, 16, 16, 32>}]} {
    %c0 = arith.constant 0 : index
    %c0_0 = arith.constant 0 : index
    %c0_1 = arith.constant 0 : index
    %0 = vector.load %arg1[%c0, %c0_0, %c0_1] : memref<1x324x32xbf16, #tpu.memory_space<vmem>>, vector<1x286x32xbf16>
    %1 = vector.shape_cast %0 : vector<1x286x32xbf16> to vector<286x32xbf16>
    %c0_2 = arith.constant 0 : index
    %c0_3 = arith.constant 0 : index
    %c0_4 = arith.constant 0 : index
    %2 = vector.load %arg2[%c0_2, %c0_3, %c0_4] : memref<9x32x32xbf16, #tpu.memory_space<vmem>>, vector<1x32x32xbf16>
    %3 = vector.shape_cast %2 : vector<1x32x32xbf16> to vector<32x32xbf16>
    %cst = arith.constant dense<0.000000e+00> : vector<286x32xf32>
    %4 = tpu.matmul %1, %3, %cst {dimension_numbers = #tpu.dot_dimension_numbers<[1], [0], [0], [1], [0, 0, 1, 1], [], []>} : vector<286x32xbf16>, vector<32x32xbf16>, vector<286x32xf32> -> vector<286x32xf32>
    %c0_5 = arith.constant 0 : index
    %c0_6 = arith.constant 0 : index
    %5 = vector.load %arg3[%c0_5, %c0_6] : memref<1x32xf32, #tpu.memory_space<vmem>>, vector<1x32xf32>
    %6 = vector.broadcast %5 : vector<1x32xf32> to vector<286x32xf32>
    %7 = arith.addf %4, %6 : vector<286x32xf32>
    %c0_7 = arith.constant 0 : index
    %c0_8 = arith.constant 0 : index
    %8 = vector.load %arg9[%c0_7, %c0_8] : memref<286x32xf32, #tpu.memory_space<vmem>>, vector<286x32xf32>
    tpu.vector_store %arg9[%c0_7, %c0_8], %7 {strides = array<i32>} : memref<286x32xf32, #tpu.memory_space<vmem>>, vector<286x32xf32>,
    %c0_9 = arith.constant 0 : index
    %c1 = arith.constant 1 : index
    %c0_10 = arith.constant 0 : index
    %9 = vector.load %arg1[%c0_9, %c1, %c0_10] : memref<1x324x32xbf16, #tpu.memory_space<vmem>>, vector<1x286x32xbf16>
    %10 = vector.shape_cast %9 : vector<1x286x32xbf16> to vector<286x32xbf16>
    %c1_11 = arith.constant 1 : index
    %c0_12 = arith.constant 0 : index
    %c0_13 = arith.constant 0 : index
    %11 = vector.load %arg2[%c1_11, %c0_12, %c0_13] : memref<9x32x32xbf16, #tpu.memory_space<vmem>>, vector<1x32x32xbf16>
    %12 = vector.shape_cast %11 : vector<1x32x32xbf16> to vector<32x32xbf16>
    %cst_14 = arith.constant dense<0.000000e+00> : vector<286x32xf32>
    %13 = tpu.matmul %10, %12, %cst_14 {dimension_numbers = #tpu.dot_dimension_numbers<[1], [0], [0], [1], [0, 0, 1, 1], [], []>} : vector<286x32xbf16>, vector<32x32xbf16>, vector<286x32xf32> -> vector<286x32xf32>
    %c0_15 = arith.constant 0 : index
    %c0_16 = arith.constant 0 : index
    %14 = vector.load %arg9[%c0_15, %c0_16] : memref<286x32xf32, #tpu.memory_space<vmem>>, vector<286x32xf32>
    %15 = arith.addf %14, %13 : vector<286x32xf32>
    %c0_17 = arith.constant 0 : index
    %c0_18 = arith.constant 0 : index
    %16 = vector.load %arg9[%c0_17, %c0_18] : memref<286x32xf32, #tpu.memory_space<vmem>>, vector<286x32xf32>
    tpu.vector_store %arg9[%c0_17, %c0_18], %15 {strides = array<i32>} : memref<286x32xf32, #tpu.memory_space<vmem>>, vector<286x32xf32>,
    %c0_19 = arith.constant 0 : index
    %c2 = arith.constant 2 : index
    %c0_20 = arith.constant 0 : index
    %17 = vector.load %arg1[%c0_19, %c2, %c0_20] : memref<1x324x32xbf16, #tpu.memory_space<vmem>>, vector<1x286x32xbf16>
    %18 = vector.shape_cast %17 : vector<1x286x32xbf16> to vector<286x32xbf16>
    %c2_21 = arith.constant 2 : index
    %c0_22 = arith.constant 0 : index
    %c0_23 = arith.constant 0 : index
    %19 = vector.load %arg2[%c2_21, %c0_22, %c0_23] : memref<9x32x32xbf16, #tpu.memory_space<vmem>>, vector<1x32x32xbf16>
    %20 = vector.shape_cast %19 : vector<1x32x32xbf16> to vector<32x32xbf16>
    %cst_24 = arith.constant dense<0.000000e+00> : vector<286x32xf32>
    %21 = tpu.matmul %18, %20, %cst_24 {dimension_numbers = #tpu.dot_dimension_numbers<[1], [0], [0], [1], [0, 0, 1, 1], [], []>} : vector<286x32xbf16>, vector<32x32xbf16>, vector<286x32xf32> -> vector<286x32xf32>
    %c0_25 = arith.constant 0 : index
    %c0_26 = arith.constant 0 : index
    %22 = vector.load %arg9[%c0_25, %c0_26] : memref<286x32xf32, #tpu.memory_space<vmem>>, vector<286x32xf32>
    %23 = arith.addf %22, %21 : vector<286x32xf32>
    %c0_27 = arith.constant 0 : index
    %c0_28 = arith.constant 0 : index
    %24 = vector.load %arg9[%c0_27, %c0_28] : memref<286x32xf32, #tpu.memory_space<vmem>>, vector<286x32xf32>
    tpu.vector_store %arg9[%c0_27, %c0_28], %23 {strides = array<i32>} : memref<286x32xf32, #tpu.memory_space<vmem>>, vector<286x32xf32>,
    %c0_29 = arith.constant 0 : index
    %c18 = arith.constant 18 : index
    %c0_30 = arith.constant 0 : index
    %25 = vector.load %arg1[%c0_29, %c18, %c0_30] : memref<1x324x32xbf16, #tpu.memory_space<vmem>>, vector<1x286x32xbf16>
    %26 = vector.shape_cast %25 : vector<1x286x32xbf16> to vector<286x32xbf16>
    %c3 = arith.constant 3 : index
    %c0_31 = arith.constant 0 : index
    %c0_32 = arith.constant 0 : index
    %27 = vector.load %arg2[%c3, %c0_31, %c0_32] : memref<9x32x32xbf16, #tpu.memory_space<vmem>>, vector<1x32x32xbf16>
    %28 = vector.shape_cast %27 : vector<1x32x32xbf16> to vector<32x32xbf16>
    %cst_33 = arith.constant dense<0.000000e+00> : vector<286x32xf32>
    %29 = tpu.matmul %26, %28, %cst_33 {dimension_numbers = #tpu.dot_dimension_numbers<[1], [0], [0], [1], [0, 0, 1, 1], [], []>} : vector<286x32xbf16>, vector<32x32xbf16>, vector<286x32xf32> -> vector<286x32xf32>
    %c0_34 = arith.constant 0 : index
    %c0_35 = arith.constant 0 : index
    %30 = vector.load %arg9[%c0_34, %c0_35] : memref<286x32xf32, #tpu.memory_space<vmem>>, vector<286x32xf32>
    %31 = arith.addf %30, %29 : vector<286x32xf32>
    %c0_36 = arith.constant 0 : index
    %c0_37 = arith.constant 0 : index
    %32 = vector.load %arg9[%c0_36, %c0_37] : memref<286x32xf32, #tpu.memory_space<vmem>>, vector<286x32xf32>
    tpu.vector_store %arg9[%c0_36, %c0_37], %31 {strides = array<i32>} : memref<286x32xf32, #tpu.memory_space<vmem>>, vector<286x32xf32>,
    %c0_38 = arith.constant 0 : index
    %c19 = arith.constant 19 : index
    %c0_39 = arith.constant 0 : index
    %33 = vector.load %arg1[%c0_38, %c19, %c0_39] : memref<1x324x32xbf16, #tpu.memory_space<vmem>>, vector<1x286x32xbf16>
    %34 = vector.shape_cast %33 : vector<1x286x32xbf16> to vector<286x32xbf16>
    %c4 = arith.constant 4 : index
    %c0_40 = arith.constant 0 : index
    %c0_41 = arith.constant 0 : index
    %35 = vector.load %arg2[%c4, %c0_40, %c0_41] : memref<9x32x32xbf16, #tpu.memory_space<vmem>>, vector<1x32x32xbf16>
    %36 = vector.shape_cast %35 : vector<1x32x32xbf16> to vector<32x32xbf16>
    %cst_42 = arith.constant dense<0.000000e+00> : vector<286x32xf32>
    %37 = tpu.matmul %34, %36, %cst_42 {dimension_numbers = #tpu.dot_dimension_numbers<[1], [0], [0], [1], [0, 0, 1, 1], [], []>} : vector<286x32xbf16>, vector<32x32xbf16>, vector<286x32xf32> -> vector<286x32xf32>
    %c0_43 = arith.constant 0 : index
    %c0_44 = arith.constant 0 : index
    %38 = vector.load %arg9[%c0_43, %c0_44] : memref<286x32xf32, #tpu.memory_space<vmem>>, vector<286x32xf32>
    %39 = arith.addf %38, %37 : vector<286x32xf32>
    %c0_45 = arith.constant 0 : index
    %c0_46 = arith.constant 0 : index
    %40 = vector.load %arg9[%c0_45, %c0_46] : memref<286x32xf32, #tpu.memory_space<vmem>>, vector<286x32xf32>
    tpu.vector_store %arg9[%c0_45, %c0_46], %39 {strides = array<i32>} : memref<286x32xf32, #tpu.memory_space<vmem>>, vector<286x32xf32>,
    %c0_47 = arith.constant 0 : index
    %c20 = arith.constant 20 : index
    %c0_48 = arith.constant 0 : index
    %41 = vector.load %arg1[%c0_47, %c20, %c0_48] : memref<1x324x32xbf16, #tpu.memory_space<vmem>>, vector<1x286x32xbf16>
    %42 = vector.shape_cast %41 : vector<1x286x32xbf16> to vector<286x32xbf16>
    %c5 = arith.constant 5 : index
    %c0_49 = arith.constant 0 : index
    %c0_50 = arith.constant 0 : index
    %43 = vector.load %arg2[%c5, %c0_49, %c0_50] : memref<9x32x32xbf16, #tpu.memory_space<vmem>>, vector<1x32x32xbf16>
    %44 = vector.shape_cast %43 : vector<1x32x32xbf16> to vector<32x32xbf16>
    %cst_51 = arith.constant dense<0.000000e+00> : vector<286x32xf32>
    %45 = tpu.matmul %42, %44, %cst_51 {dimension_numbers = #tpu.dot_dimension_numbers<[1], [0], [0], [1], [0, 0, 1, 1], [], []>} : vector<286x32xbf16>, vector<32x32xbf16>, vector<286x32xf32> -> vector<286x32xf32>
    %c0_52 = arith.constant 0 : index
    %c0_53 = arith.constant 0 : index
    %46 = vector.load %arg9[%c0_52, %c0_53] : memref<286x32xf32, #tpu.memory_space<vmem>>, vector<286x32xf32>
    %47 = arith.addf %46, %45 : vector<286x32xf32>
    %c0_54 = arith.constant 0 : index
    %c0_55 = arith.constant 0 : index
    %48 = vector.load %arg9[%c0_54, %c0_55] : memref<286x32xf32, #tpu.memory_space<vmem>>, vector<286x32xf32>
    tpu.vector_store %arg9[%c0_54, %c0_55], %47 {strides = array<i32>} : memref<286x32xf32, #tpu.memory_space<vmem>>, vector<286x32xf32>,
    %c0_56 = arith.constant 0 : index
    %c36 = arith.constant 36 : index
    %c0_57 = arith.constant 0 : index
    %49 = vector.load %arg1[%c0_56, %c36, %c0_57] : memref<1x324x32xbf16, #tpu.memory_space<vmem>>, vector<1x286x32xbf16>
    %50 = vector.shape_cast %49 : vector<1x286x32xbf16> to vector<286x32xbf16>
    %c6 = arith.constant 6 : index
    %c0_58 = arith.constant 0 : index
    %c0_59 = arith.constant 0 : index
    %51 = vector.load %arg2[%c6, %c0_58, %c0_59] : memref<9x32x32xbf16, #tpu.memory_space<vmem>>, vector<1x32x32xbf16>
    %52 = vector.shape_cast %51 : vector<1x32x32xbf16> to vector<32x32xbf16>
    %cst_60 = arith.constant dense<0.000000e+00> : vector<286x32xf32>
    %53 = tpu.matmul %50, %52, %cst_60 {dimension_numbers = #tpu.dot_dimension_numbers<[1], [0], [0], [1], [0, 0, 1, 1], [], []>} : vector<286x32xbf16>, vector<32x32xbf16>, vector<286x32xf32> -> vector<286x32xf32>
    %c0_61 = arith.constant 0 : index
    %c0_62 = arith.constant 0 : index
    %54 = vector.load %arg9[%c0_61, %c0_62] : memref<286x32xf32, #tpu.memory_space<vmem>>, vector<286x32xf32>
    %55 = arith.addf %54, %53 : vector<286x32xf32>
    %c0_63 = arith.constant 0 : index
    %c0_64 = arith.constant 0 : index
    %56 = vector.load %arg9[%c0_63, %c0_64] : memref<286x32xf32, #tpu.memory_space<vmem>>, vector<286x32xf32>
    tpu.vector_store %arg9[%c0_63, %c0_64], %55 {strides = array<i32>} : memref<286x32xf32, #tpu.memory_space<vmem>>, vector<286x32xf32>,
    %c0_65 = arith.constant 0 : index
    %c37 = arith.constant 37 : index
    %c0_66 = arith.constant 0 : index
    %57 = vector.load %arg1[%c0_65, %c37, %c0_66] : memref<1x324x32xbf16, #tpu.memory_space<vmem>>, vector<1x286x32xbf16>
    %58 = vector.shape_cast %57 : vector<1x286x32xbf16> to vector<286x32xbf16>
    %c7 = arith.constant 7 : index
    %c0_67 = arith.constant 0 : index
    %c0_68 = arith.constant 0 : index
    %59 = vector.load %arg2[%c7, %c0_67, %c0_68] : memref<9x32x32xbf16, #tpu.memory_space<vmem>>, vector<1x32x32xbf16>
    %60 = vector.shape_cast %59 : vector<1x32x32xbf16> to vector<32x32xbf16>
    %cst_69 = arith.constant dense<0.000000e+00> : vector<286x32xf32>
    %61 = tpu.matmul %58, %60, %cst_69 {dimension_numbers = #tpu.dot_dimension_numbers<[1], [0], [0], [1], [0, 0, 1, 1], [], []>} : vector<286x32xbf16>, vector<32x32xbf16>, vector<286x32xf32> -> vector<286x32xf32>
    %c0_70 = arith.constant 0 : index
    %c0_71 = arith.constant 0 : index
    %62 = vector.load %arg9[%c0_70, %c0_71] : memref<286x32xf32, #tpu.memory_space<vmem>>, vector<286x32xf32>
    %63 = arith.addf %62, %61 : vector<286x32xf32>
    %c0_72 = arith.constant 0 : index
    %c0_73 = arith.constant 0 : index
    %64 = vector.load %arg9[%c0_72, %c0_73] : memref<286x32xf32, #tpu.memory_space<vmem>>, vector<286x32xf32>
    tpu.vector_store %arg9[%c0_72, %c0_73], %63 {strides = array<i32>} : memref<286x32xf32, #tpu.memory_space<vmem>>, vector<286x32xf32>,
    %c0_74 = arith.constant 0 : index
    %c38 = arith.constant 38 : index
    %c0_75 = arith.constant 0 : index
    %65 = vector.load %arg1[%c0_74, %c38, %c0_75] : memref<1x324x32xbf16, #tpu.memory_space<vmem>>, vector<1x286x32xbf16>
    %66 = vector.shape_cast %65 : vector<1x286x32xbf16> to vector<286x32xbf16>
    %c8 = arith.constant 8 : index
    %c0_76 = arith.constant 0 : index
    %c0_77 = arith.constant 0 : index
    %67 = vector.load %arg2[%c8, %c0_76, %c0_77] : memref<9x32x32xbf16, #tpu.memory_space<vmem>>, vector<1x32x32xbf16>
    %68 = vector.shape_cast %67 : vector<1x32x32xbf16> to vector<32x32xbf16>
    %cst_78 = arith.constant dense<0.000000e+00> : vector<286x32xf32>
    %69 = tpu.matmul %66, %68, %cst_78 {dimension_numbers = #tpu.dot_dimension_numbers<[1], [0], [0], [1], [0, 0, 1, 1], [], []>} : vector<286x32xbf16>, vector<32x32xbf16>, vector<286x32xf32> -> vector<286x32xf32>
    %c0_79 = arith.constant 0 : index
    %c0_80 = arith.constant 0 : index
    %70 = vector.load %arg9[%c0_79, %c0_80] : memref<286x32xf32, #tpu.memory_space<vmem>>, vector<286x32xf32>
    %71 = arith.addf %70, %69 : vector<286x32xf32>
    %c0_81 = arith.constant 0 : index
    %c0_82 = arith.constant 0 : index
    %72 = vector.load %arg9[%c0_81, %c0_82] : memref<286x32xf32, #tpu.memory_space<vmem>>, vector<286x32xf32>
    tpu.vector_store %arg9[%c0_81, %c0_82], %71 {strides = array<i32>} : memref<286x32xf32, #tpu.memory_space<vmem>>, vector<286x32xf32>,
    %c0_83 = arith.constant 0 : index
    %c0_84 = arith.constant 0 : index
    %73 = vector.load %arg9[%c0_83, %c0_84] : memref<286x32xf32, #tpu.memory_space<vmem>>, vector<286x32xf32>
    %cst_85 = arith.constant dense<0.000000e+00> : vector<32xf32>
    %74 = vector.multi_reduction <add>, %73, %cst_85 [0] : vector<286x32xf32> to vector<32xf32>
    %75 = vector.shape_cast %74 : vector<32xf32> to vector<1x32xf32>
    %cst_86 = arith.constant 0.000000e+00 : f32
    %76 = vector.broadcast %cst_86 : f32 to vector<1x32xf32>
    %c16 = arith.constant 16 : index
    %c0_87 = arith.constant 0 : index
    %77 = vector.load %arg9[%c16, %c0_87] : memref<286x32xf32, #tpu.memory_space<vmem>>, vector<2x32xf32>
    %cst_88 = arith.constant dense<0.000000e+00> : vector<32xf32>
    %78 = vector.multi_reduction <add>, %77, %cst_88 [0] : vector<2x32xf32> to vector<32xf32>
    %79 = vector.shape_cast %78 : vector<32xf32> to vector<1x32xf32>
    %80 = arith.addf %76, %79 : vector<1x32xf32>
    %c34 = arith.constant 34 : index
    %c0_89 = arith.constant 0 : index
    %81 = vector.load %arg9[%c34, %c0_89] : memref<286x32xf32, #tpu.memory_space<vmem>>, vector<2x32xf32>
    %cst_90 = arith.constant dense<0.000000e+00> : vector<32xf32>
    %82 = vector.multi_reduction <add>, %81, %cst_90 [0] : vector<2x32xf32> to vector<32xf32>
    %83 = vector.shape_cast %82 : vector<32xf32> to vector<1x32xf32>
    %84 = arith.addf %80, %83 : vector<1x32xf32>
    %c52 = arith.constant 52 : index
    %c0_91 = arith.constant 0 : index
    %85 = vector.load %arg9[%c52, %c0_91] : memref<286x32xf32, #tpu.memory_space<vmem>>, vector<2x32xf32>
    %cst_92 = arith.constant dense<0.000000e+00> : vector<32xf32>
    %86 = vector.multi_reduction <add>, %85, %cst_92 [0] : vector<2x32xf32> to vector<32xf32>
    %87 = vector.shape_cast %86 : vector<32xf32> to vector<1x32xf32>
    %88 = arith.addf %84, %87 : vector<1x32xf32>
    %c70 = arith.constant 70 : index
    %c0_93 = arith.constant 0 : index
    %89 = vector.load %arg9[%c70, %c0_93] : memref<286x32xf32, #tpu.memory_space<vmem>>, vector<2x32xf32>
    %cst_94 = arith.constant dense<0.000000e+00> : vector<32xf32>
    %90 = vector.multi_reduction <add>, %89, %cst_94 [0] : vector<2x32xf32> to vector<32xf32>
    %91 = vector.shape_cast %90 : vector<32xf32> to vector<1x32xf32>
    %92 = arith.addf %88, %91 : vector<1x32xf32>
    %c88 = arith.constant 88 : index
    %c0_95 = arith.constant 0 : index
    %93 = vector.load %arg9[%c88, %c0_95] : memref<286x32xf32, #tpu.memory_space<vmem>>, vector<2x32xf32>
    %cst_96 = arith.constant dense<0.000000e+00> : vector<32xf32>
    %94 = vector.multi_reduction <add>, %93, %cst_96 [0] : vector<2x32xf32> to vector<32xf32>
    %95 = vector.shape_cast %94 : vector<32xf32> to vector<1x32xf32>
    %96 = arith.addf %92, %95 : vector<1x32xf32>
    %c106 = arith.constant 106 : index
    %c0_97 = arith.constant 0 : index
    %97 = vector.load %arg9[%c106, %c0_97] : memref<286x32xf32, #tpu.memory_space<vmem>>, vector<2x32xf32>
    %cst_98 = arith.constant dense<0.000000e+00> : vector<32xf32>
    %98 = vector.multi_reduction <add>, %97, %cst_98 [0] : vector<2x32xf32> to vector<32xf32>
    %99 = vector.shape_cast %98 : vector<32xf32> to vector<1x32xf32>
    %100 = arith.addf %96, %99 : vector<1x32xf32>
    %c124 = arith.constant 124 : index
    %c0_99 = arith.constant 0 : index
    %101 = vector.load %arg9[%c124, %c0_99] : memref<286x32xf32, #tpu.memory_space<vmem>>, vector<2x32xf32>
    %cst_100 = arith.constant dense<0.000000e+00> : vector<32xf32>
    %102 = vector.multi_reduction <add>, %101, %cst_100 [0] : vector<2x32xf32> to vector<32xf32>
    %103 = vector.shape_cast %102 : vector<32xf32> to vector<1x32xf32>
    %104 = arith.addf %100, %103 : vector<1x32xf32>
    %c142 = arith.constant 142 : index
    %c0_101 = arith.constant 0 : index
    %105 = vector.load %arg9[%c142, %c0_101] : memref<286x32xf32, #tpu.memory_space<vmem>>, vector<2x32xf32>
    %cst_102 = arith.constant dense<0.000000e+00> : vector<32xf32>
    %106 = vector.multi_reduction <add>, %105, %cst_102 [0] : vector<2x32xf32> to vector<32xf32>
    %107 = vector.shape_cast %106 : vector<32xf32> to vector<1x32xf32>
    %108 = arith.addf %104, %107 : vector<1x32xf32>
    %c160 = arith.constant 160 : index
    %c0_103 = arith.constant 0 : index
    %109 = vector.load %arg9[%c160, %c0_103] : memref<286x32xf32, #tpu.memory_space<vmem>>, vector<2x32xf32>
    %cst_104 = arith.constant dense<0.000000e+00> : vector<32xf32>
    %110 = vector.multi_reduction <add>, %109, %cst_104 [0] : vector<2x32xf32> to vector<32xf32>
    %111 = vector.shape_cast %110 : vector<32xf32> to vector<1x32xf32>
    %112 = arith.addf %108, %111 : vector<1x32xf32>
    %c178 = arith.constant 178 : index
    %c0_105 = arith.constant 0 : index
    %113 = vector.load %arg9[%c178, %c0_105] : memref<286x32xf32, #tpu.memory_space<vmem>>, vector<2x32xf32>
    %cst_106 = arith.constant dense<0.000000e+00> : vector<32xf32>
    %114 = vector.multi_reduction <add>, %113, %cst_106 [0] : vector<2x32xf32> to vector<32xf32>
    %115 = vector.shape_cast %114 : vector<32xf32> to vector<1x32xf32>
    %116 = arith.addf %112, %115 : vector<1x32xf32>
    %c196 = arith.constant 196 : index
    %c0_107 = arith.constant 0 : index
    %117 = vector.load %arg9[%c196, %c0_107] : memref<286x32xf32, #tpu.memory_space<vmem>>, vector<2x32xf32>
    %cst_108 = arith.constant dense<0.000000e+00> : vector<32xf32>
    %118 = vector.multi_reduction <add>, %117, %cst_108 [0] : vector<2x32xf32> to vector<32xf32>
    %119 = vector.shape_cast %118 : vector<32xf32> to vector<1x32xf32>
    %120 = arith.addf %116, %119 : vector<1x32xf32>
    %c214 = arith.constant 214 : index
    %c0_109 = arith.constant 0 : index
    %121 = vector.load %arg9[%c214, %c0_109] : memref<286x32xf32, #tpu.memory_space<vmem>>, vector<2x32xf32>
    %cst_110 = arith.constant dense<0.000000e+00> : vector<32xf32>
    %122 = vector.multi_reduction <add>, %121, %cst_110 [0] : vector<2x32xf32> to vector<32xf32>
    %123 = vector.shape_cast %122 : vector<32xf32> to vector<1x32xf32>
    %124 = arith.addf %120, %123 : vector<1x32xf32>
    %c232 = arith.constant 232 : index
    %c0_111 = arith.constant 0 : index
    %125 = vector.load %arg9[%c232, %c0_111] : memref<286x32xf32, #tpu.memory_space<vmem>>, vector<2x32xf32>
    %cst_112 = arith.constant dense<0.000000e+00> : vector<32xf32>
    %126 = vector.multi_reduction <add>, %125, %cst_112 [0] : vector<2x32xf32> to vector<32xf32>
    %127 = vector.shape_cast %126 : vector<32xf32> to vector<1x32xf32>
    %128 = arith.addf %124, %127 : vector<1x32xf32>
    %c250 = arith.constant 250 : index
    %c0_113 = arith.constant 0 : index
    %129 = vector.load %arg9[%c250, %c0_113] : memref<286x32xf32, #tpu.memory_space<vmem>>, vector<2x32xf32>
    %cst_114 = arith.constant dense<0.000000e+00> : vector<32xf32>
    %130 = vector.multi_reduction <add>, %129, %cst_114 [0] : vector<2x32xf32> to vector<32xf32>
    %131 = vector.shape_cast %130 : vector<32xf32> to vector<1x32xf32>
    %132 = arith.addf %128, %131 : vector<1x32xf32>
    %c268 = arith.constant 268 : index
    %c0_115 = arith.constant 0 : index
    %133 = vector.load %arg9[%c268, %c0_115] : memref<286x32xf32, #tpu.memory_space<vmem>>, vector<2x32xf32>
    %cst_116 = arith.constant dense<0.000000e+00> : vector<32xf32>
    %134 = vector.multi_reduction <add>, %133, %cst_116 [0] : vector<2x32xf32> to vector<32xf32>
    %135 = vector.shape_cast %134 : vector<32xf32> to vector<1x32xf32>
    %136 = arith.addf %132, %135 : vector<1x32xf32>
    %137 = arith.subf %75, %136 : vector<1x32xf32>
    %cst_117 = arith.constant 3.906250e-03 : f32
    %138 = vector.broadcast %cst_117 : f32 to vector<1x32xf32>
    %139 = arith.mulf %137, %138 : vector<1x32xf32>
    %c0_118 = arith.constant 0 : index
    %c0_119 = arith.constant 0 : index
    %140 = vector.load %arg4[%c0_118, %c0_119] : memref<32x2xf32, #tpu.memory_space<vmem>>, vector<32x2xf32>
    %cst_120 = arith.constant dense<0.000000e+00> : vector<1x2xf32>
    %141 = tpu.matmul %139, %140, %cst_120 {dimension_numbers = #tpu.dot_dimension_numbers<[1], [0], [0], [1], [0, 0, 1, 1], [], []>} : vector<1x32xf32>, vector<32x2xf32>, vector<1x2xf32> -> vector<1x2xf32>
    %c0_121 = arith.constant 0 : index
    %c0_122 = arith.constant 0 : index
    %142 = vector.load %arg5[%c0_121, %c0_122] : memref<1x2xf32, #tpu.memory_space<vmem>>, vector<1x2xf32>
    %143 = arith.addf %141, %142 : vector<1x2xf32>
    %cst_123 = arith.constant 0.000000e+00 : f32
    %144 = vector.broadcast %cst_123 : f32 to vector<1x2xf32>
    %145 = arith.maximumf %143, %144 : vector<1x2xf32>
    %c0_124 = arith.constant 0 : index
    %c0_125 = arith.constant 0 : index
    %146 = vector.load %arg6[%c0_124, %c0_125] : memref<2x32xf32, #tpu.memory_space<vmem>>, vector<2x32xf32>
    %cst_126 = arith.constant dense<0.000000e+00> : vector<1x32xf32>
    %147 = tpu.matmul %145, %146, %cst_126 {dimension_numbers = #tpu.dot_dimension_numbers<[1], [0], [0], [1], [0, 0, 1, 1], [], []>} : vector<1x2xf32>, vector<2x32xf32>, vector<1x32xf32> -> vector<1x32xf32>
    %c0_127 = arith.constant 0 : index
    %c0_128 = arith.constant 0 : index
    %148 = vector.load %arg7[%c0_127, %c0_128] : memref<1x32xf32, #tpu.memory_space<vmem>>, vector<1x32xf32>
    %149 = arith.addf %147, %148 : vector<1x32xf32>
    %cst_129 = arith.constant 0.000000e+00 : f32
    %150 = vector.broadcast %cst_129 : f32 to vector<1x32xf32>
    %151 = arith.subf %150, %149 : vector<1x32xf32>
    %152 = math.exp %151 : vector<1x32xf32>
    %cst_130 = arith.constant 1.000000e+00 : f32
    %153 = vector.broadcast %cst_130 : f32 to vector<1x32xf32>
    %154 = arith.addf %153, %152 : vector<1x32xf32>
    %155 = tpu.reciprocal %154 {approx = true} : vector<1x32xf32> -> vector<1x32xf32>
    %c0_131 = arith.constant 0 : index
    %c0_132 = arith.constant 0 : index
    %156 = vector.load %arg9[%c0_131, %c0_132] : memref<286x32xf32, #tpu.memory_space<vmem>>, vector<16x32xf32>
    %157 = vector.broadcast %155 : vector<1x32xf32> to vector<16x32xf32>
    %158 = arith.mulf %156, %157 : vector<16x32xf32>
    %cst_133 = arith.constant 0.000000e+00 : f32
    %159 = vector.broadcast %cst_133 : f32 to vector<16x32xf32>
    %160 = arith.maximumf %158, %159 : vector<16x32xf32>
    %161 = arith.truncf %160 : vector<16x32xf32> to vector<16x32xbf16>
    %c0_134 = arith.constant 0 : index
    %c0_135 = arith.constant 0 : index
    %c0_136 = arith.constant 0 : index
    %c0_137 = arith.constant 0 : index
    %162 = vector.load %arg8[%c0_134, %c0_135, %c0_136, %c0_137] : memref<1x16x16x32xbf16, #tpu.memory_space<vmem>>, vector<1x1x16x32xbf16>
    %163 = vector.shape_cast %162 : vector<1x1x16x32xbf16> to vector<16x32xbf16>
    %164 = vector.shape_cast %161 : vector<16x32xbf16> to vector<1x1x16x32xbf16>
    tpu.vector_store %arg8[%c0_134, %c0_135, %c0_136, %c0_137], %164 {strides = array<i32>} : memref<1x16x16x32xbf16, #tpu.memory_space<vmem>>, vector<1x1x16x32xbf16>,
    %c18_138 = arith.constant 18 : index
    %c0_139 = arith.constant 0 : index
    %165 = vector.load %arg9[%c18_138, %c0_139] : memref<286x32xf32, #tpu.memory_space<vmem>>, vector<16x32xf32>
    %166 = vector.broadcast %155 : vector<1x32xf32> to vector<16x32xf32>
    %167 = arith.mulf %165, %166 : vector<16x32xf32>
    %cst_140 = arith.constant 0.000000e+00 : f32
    %168 = vector.broadcast %cst_140 : f32 to vector<16x32xf32>
    %169 = arith.maximumf %167, %168 : vector<16x32xf32>
    %170 = arith.truncf %169 : vector<16x32xf32> to vector<16x32xbf16>
    %c0_141 = arith.constant 0 : index
    %c1_142 = arith.constant 1 : index
    %c0_143 = arith.constant 0 : index
    %c0_144 = arith.constant 0 : index
    %171 = vector.load %arg8[%c0_141, %c1_142, %c0_143, %c0_144] : memref<1x16x16x32xbf16, #tpu.memory_space<vmem>>, vector<1x1x16x32xbf16>
    %172 = vector.shape_cast %171 : vector<1x1x16x32xbf16> to vector<16x32xbf16>
    %173 = vector.shape_cast %170 : vector<16x32xbf16> to vector<1x1x16x32xbf16>
    tpu.vector_store %arg8[%c0_141, %c1_142, %c0_143, %c0_144], %173 {strides = array<i32>} : memref<1x16x16x32xbf16, #tpu.memory_space<vmem>>, vector<1x1x16x32xbf16>,
    %c36_145 = arith.constant 36 : index
    %c0_146 = arith.constant 0 : index
    %174 = vector.load %arg9[%c36_145, %c0_146] : memref<286x32xf32, #tpu.memory_space<vmem>>, vector<16x32xf32>
    %175 = vector.broadcast %155 : vector<1x32xf32> to vector<16x32xf32>
    %176 = arith.mulf %174, %175 : vector<16x32xf32>
    %cst_147 = arith.constant 0.000000e+00 : f32
    %177 = vector.broadcast %cst_147 : f32 to vector<16x32xf32>
    %178 = arith.maximumf %176, %177 : vector<16x32xf32>
    %179 = arith.truncf %178 : vector<16x32xf32> to vector<16x32xbf16>
    %c0_148 = arith.constant 0 : index
    %c2_149 = arith.constant 2 : index
    %c0_150 = arith.constant 0 : index
    %c0_151 = arith.constant 0 : index
    %180 = vector.load %arg8[%c0_148, %c2_149, %c0_150, %c0_151] : memref<1x16x16x32xbf16, #tpu.memory_space<vmem>>, vector<1x1x16x32xbf16>
    %181 = vector.shape_cast %180 : vector<1x1x16x32xbf16> to vector<16x32xbf16>
    %182 = vector.shape_cast %179 : vector<16x32xbf16> to vector<1x1x16x32xbf16>
    tpu.vector_store %arg8[%c0_148, %c2_149, %c0_150, %c0_151], %182 {strides = array<i32>} : memref<1x16x16x32xbf16, #tpu.memory_space<vmem>>, vector<1x1x16x32xbf16>,
    %c54 = arith.constant 54 : index
    %c0_152 = arith.constant 0 : index
    %183 = vector.load %arg9[%c54, %c0_152] : memref<286x32xf32, #tpu.memory_space<vmem>>, vector<16x32xf32>
    %184 = vector.broadcast %155 : vector<1x32xf32> to vector<16x32xf32>
    %185 = arith.mulf %183, %184 : vector<16x32xf32>
    %cst_153 = arith.constant 0.000000e+00 : f32
    %186 = vector.broadcast %cst_153 : f32 to vector<16x32xf32>
    %187 = arith.maximumf %185, %186 : vector<16x32xf32>
    %188 = arith.truncf %187 : vector<16x32xf32> to vector<16x32xbf16>
    %c0_154 = arith.constant 0 : index
    %c3_155 = arith.constant 3 : index
    %c0_156 = arith.constant 0 : index
    %c0_157 = arith.constant 0 : index
    %189 = vector.load %arg8[%c0_154, %c3_155, %c0_156, %c0_157] : memref<1x16x16x32xbf16, #tpu.memory_space<vmem>>, vector<1x1x16x32xbf16>
    %190 = vector.shape_cast %189 : vector<1x1x16x32xbf16> to vector<16x32xbf16>
    %191 = vector.shape_cast %188 : vector<16x32xbf16> to vector<1x1x16x32xbf16>
    tpu.vector_store %arg8[%c0_154, %c3_155, %c0_156, %c0_157], %191 {strides = array<i32>} : memref<1x16x16x32xbf16, #tpu.memory_space<vmem>>, vector<1x1x16x32xbf16>,
    %c72 = arith.constant 72 : index
    %c0_158 = arith.constant 0 : index
    %192 = vector.load %arg9[%c72, %c0_158] : memref<286x32xf32, #tpu.memory_space<vmem>>, vector<16x32xf32>
    %193 = vector.broadcast %155 : vector<1x32xf32> to vector<16x32xf32>
    %194 = arith.mulf %192, %193 : vector<16x32xf32>
    %cst_159 = arith.constant 0.000000e+00 : f32
    %195 = vector.broadcast %cst_159 : f32 to vector<16x32xf32>
    %196 = arith.maximumf %194, %195 : vector<16x32xf32>
    %197 = arith.truncf %196 : vector<16x32xf32> to vector<16x32xbf16>
    %c0_160 = arith.constant 0 : index
    %c4_161 = arith.constant 4 : index
    %c0_162 = arith.constant 0 : index
    %c0_163 = arith.constant 0 : index
    %198 = vector.load %arg8[%c0_160, %c4_161, %c0_162, %c0_163] : memref<1x16x16x32xbf16, #tpu.memory_space<vmem>>, vector<1x1x16x32xbf16>
    %199 = vector.shape_cast %198 : vector<1x1x16x32xbf16> to vector<16x32xbf16>
    %200 = vector.shape_cast %197 : vector<16x32xbf16> to vector<1x1x16x32xbf16>
    tpu.vector_store %arg8[%c0_160, %c4_161, %c0_162, %c0_163], %200 {strides = array<i32>} : memref<1x16x16x32xbf16, #tpu.memory_space<vmem>>, vector<1x1x16x32xbf16>,
    %c90 = arith.constant 90 : index
    %c0_164 = arith.constant 0 : index
    %201 = vector.load %arg9[%c90, %c0_164] : memref<286x32xf32, #tpu.memory_space<vmem>>, vector<16x32xf32>
    %202 = vector.broadcast %155 : vector<1x32xf32> to vector<16x32xf32>
    %203 = arith.mulf %201, %202 : vector<16x32xf32>
    %cst_165 = arith.constant 0.000000e+00 : f32
    %204 = vector.broadcast %cst_165 : f32 to vector<16x32xf32>
    %205 = arith.maximumf %203, %204 : vector<16x32xf32>
    %206 = arith.truncf %205 : vector<16x32xf32> to vector<16x32xbf16>
    %c0_166 = arith.constant 0 : index
    %c5_167 = arith.constant 5 : index
    %c0_168 = arith.constant 0 : index
    %c0_169 = arith.constant 0 : index
    %207 = vector.load %arg8[%c0_166, %c5_167, %c0_168, %c0_169] : memref<1x16x16x32xbf16, #tpu.memory_space<vmem>>, vector<1x1x16x32xbf16>
    %208 = vector.shape_cast %207 : vector<1x1x16x32xbf16> to vector<16x32xbf16>
    %209 = vector.shape_cast %206 : vector<16x32xbf16> to vector<1x1x16x32xbf16>
    tpu.vector_store %arg8[%c0_166, %c5_167, %c0_168, %c0_169], %209 {strides = array<i32>} : memref<1x16x16x32xbf16, #tpu.memory_space<vmem>>, vector<1x1x16x32xbf16>,
    %c108 = arith.constant 108 : index
    %c0_170 = arith.constant 0 : index
    %210 = vector.load %arg9[%c108, %c0_170] : memref<286x32xf32, #tpu.memory_space<vmem>>, vector<16x32xf32>
    %211 = vector.broadcast %155 : vector<1x32xf32> to vector<16x32xf32>
    %212 = arith.mulf %210, %211 : vector<16x32xf32>
    %cst_171 = arith.constant 0.000000e+00 : f32
    %213 = vector.broadcast %cst_171 : f32 to vector<16x32xf32>
    %214 = arith.maximumf %212, %213 : vector<16x32xf32>
    %215 = arith.truncf %214 : vector<16x32xf32> to vector<16x32xbf16>
    %c0_172 = arith.constant 0 : index
    %c6_173 = arith.constant 6 : index
    %c0_174 = arith.constant 0 : index
    %c0_175 = arith.constant 0 : index
    %216 = vector.load %arg8[%c0_172, %c6_173, %c0_174, %c0_175] : memref<1x16x16x32xbf16, #tpu.memory_space<vmem>>, vector<1x1x16x32xbf16>
    %217 = vector.shape_cast %216 : vector<1x1x16x32xbf16> to vector<16x32xbf16>
    %218 = vector.shape_cast %215 : vector<16x32xbf16> to vector<1x1x16x32xbf16>
    tpu.vector_store %arg8[%c0_172, %c6_173, %c0_174, %c0_175], %218 {strides = array<i32>} : memref<1x16x16x32xbf16, #tpu.memory_space<vmem>>, vector<1x1x16x32xbf16>,
    %c126 = arith.constant 126 : index
    %c0_176 = arith.constant 0 : index
    %219 = vector.load %arg9[%c126, %c0_176] : memref<286x32xf32, #tpu.memory_space<vmem>>, vector<16x32xf32>
    %220 = vector.broadcast %155 : vector<1x32xf32> to vector<16x32xf32>
    %221 = arith.mulf %219, %220 : vector<16x32xf32>
    %cst_177 = arith.constant 0.000000e+00 : f32
    %222 = vector.broadcast %cst_177 : f32 to vector<16x32xf32>
    %223 = arith.maximumf %221, %222 : vector<16x32xf32>
    %224 = arith.truncf %223 : vector<16x32xf32> to vector<16x32xbf16>
    %c0_178 = arith.constant 0 : index
    %c7_179 = arith.constant 7 : index
    %c0_180 = arith.constant 0 : index
    %c0_181 = arith.constant 0 : index
    %225 = vector.load %arg8[%c0_178, %c7_179, %c0_180, %c0_181] : memref<1x16x16x32xbf16, #tpu.memory_space<vmem>>, vector<1x1x16x32xbf16>
    %226 = vector.shape_cast %225 : vector<1x1x16x32xbf16> to vector<16x32xbf16>
    %227 = vector.shape_cast %224 : vector<16x32xbf16> to vector<1x1x16x32xbf16>
    tpu.vector_store %arg8[%c0_178, %c7_179, %c0_180, %c0_181], %227 {strides = array<i32>} : memref<1x16x16x32xbf16, #tpu.memory_space<vmem>>, vector<1x1x16x32xbf16>,
    %c144 = arith.constant 144 : index
    %c0_182 = arith.constant 0 : index
    %228 = vector.load %arg9[%c144, %c0_182] : memref<286x32xf32, #tpu.memory_space<vmem>>, vector<16x32xf32>
    %229 = vector.broadcast %155 : vector<1x32xf32> to vector<16x32xf32>
    %230 = arith.mulf %228, %229 : vector<16x32xf32>
    %cst_183 = arith.constant 0.000000e+00 : f32
    %231 = vector.broadcast %cst_183 : f32 to vector<16x32xf32>
    %232 = arith.maximumf %230, %231 : vector<16x32xf32>
    %233 = arith.truncf %232 : vector<16x32xf32> to vector<16x32xbf16>
    %c0_184 = arith.constant 0 : index
    %c8_185 = arith.constant 8 : index
    %c0_186 = arith.constant 0 : index
    %c0_187 = arith.constant 0 : index
    %234 = vector.load %arg8[%c0_184, %c8_185, %c0_186, %c0_187] : memref<1x16x16x32xbf16, #tpu.memory_space<vmem>>, vector<1x1x16x32xbf16>
    %235 = vector.shape_cast %234 : vector<1x1x16x32xbf16> to vector<16x32xbf16>
    %236 = vector.shape_cast %233 : vector<16x32xbf16> to vector<1x1x16x32xbf16>
    tpu.vector_store %arg8[%c0_184, %c8_185, %c0_186, %c0_187], %236 {strides = array<i32>} : memref<1x16x16x32xbf16, #tpu.memory_space<vmem>>, vector<1x1x16x32xbf16>,
    %c162 = arith.constant 162 : index
    %c0_188 = arith.constant 0 : index
    %237 = vector.load %arg9[%c162, %c0_188] : memref<286x32xf32, #tpu.memory_space<vmem>>, vector<16x32xf32>
    %238 = vector.broadcast %155 : vector<1x32xf32> to vector<16x32xf32>
    %239 = arith.mulf %237, %238 : vector<16x32xf32>
    %cst_189 = arith.constant 0.000000e+00 : f32
    %240 = vector.broadcast %cst_189 : f32 to vector<16x32xf32>
    %241 = arith.maximumf %239, %240 : vector<16x32xf32>
    %242 = arith.truncf %241 : vector<16x32xf32> to vector<16x32xbf16>
    %c0_190 = arith.constant 0 : index
    %c9 = arith.constant 9 : index
    %c0_191 = arith.constant 0 : index
    %c0_192 = arith.constant 0 : index
    %243 = vector.load %arg8[%c0_190, %c9, %c0_191, %c0_192] : memref<1x16x16x32xbf16, #tpu.memory_space<vmem>>, vector<1x1x16x32xbf16>
    %244 = vector.shape_cast %243 : vector<1x1x16x32xbf16> to vector<16x32xbf16>
    %245 = vector.shape_cast %242 : vector<16x32xbf16> to vector<1x1x16x32xbf16>
    tpu.vector_store %arg8[%c0_190, %c9, %c0_191, %c0_192], %245 {strides = array<i32>} : memref<1x16x16x32xbf16, #tpu.memory_space<vmem>>, vector<1x1x16x32xbf16>,
    %c180 = arith.constant 180 : index
    %c0_193 = arith.constant 0 : index
    %246 = vector.load %arg9[%c180, %c0_193] : memref<286x32xf32, #tpu.memory_space<vmem>>, vector<16x32xf32>
    %247 = vector.broadcast %155 : vector<1x32xf32> to vector<16x32xf32>
    %248 = arith.mulf %246, %247 : vector<16x32xf32>
    %cst_194 = arith.constant 0.000000e+00 : f32
    %249 = vector.broadcast %cst_194 : f32 to vector<16x32xf32>
    %250 = arith.maximumf %248, %249 : vector<16x32xf32>
    %251 = arith.truncf %250 : vector<16x32xf32> to vector<16x32xbf16>
    %c0_195 = arith.constant 0 : index
    %c10 = arith.constant 10 : index
    %c0_196 = arith.constant 0 : index
    %c0_197 = arith.constant 0 : index
    %252 = vector.load %arg8[%c0_195, %c10, %c0_196, %c0_197] : memref<1x16x16x32xbf16, #tpu.memory_space<vmem>>, vector<1x1x16x32xbf16>
    %253 = vector.shape_cast %252 : vector<1x1x16x32xbf16> to vector<16x32xbf16>
    %254 = vector.shape_cast %251 : vector<16x32xbf16> to vector<1x1x16x32xbf16>
    tpu.vector_store %arg8[%c0_195, %c10, %c0_196, %c0_197], %254 {strides = array<i32>} : memref<1x16x16x32xbf16, #tpu.memory_space<vmem>>, vector<1x1x16x32xbf16>,
    %c198 = arith.constant 198 : index
    %c0_198 = arith.constant 0 : index
    %255 = vector.load %arg9[%c198, %c0_198] : memref<286x32xf32, #tpu.memory_space<vmem>>, vector<16x32xf32>
    %256 = vector.broadcast %155 : vector<1x32xf32> to vector<16x32xf32>
    %257 = arith.mulf %255, %256 : vector<16x32xf32>
    %cst_199 = arith.constant 0.000000e+00 : f32
    %258 = vector.broadcast %cst_199 : f32 to vector<16x32xf32>
    %259 = arith.maximumf %257, %258 : vector<16x32xf32>
    %260 = arith.truncf %259 : vector<16x32xf32> to vector<16x32xbf16>
    %c0_200 = arith.constant 0 : index
    %c11 = arith.constant 11 : index
    %c0_201 = arith.constant 0 : index
    %c0_202 = arith.constant 0 : index
    %261 = vector.load %arg8[%c0_200, %c11, %c0_201, %c0_202] : memref<1x16x16x32xbf16, #tpu.memory_space<vmem>>, vector<1x1x16x32xbf16>
    %262 = vector.shape_cast %261 : vector<1x1x16x32xbf16> to vector<16x32xbf16>
    %263 = vector.shape_cast %260 : vector<16x32xbf16> to vector<1x1x16x32xbf16>
    tpu.vector_store %arg8[%c0_200, %c11, %c0_201, %c0_202], %263 {strides = array<i32>} : memref<1x16x16x32xbf16, #tpu.memory_space<vmem>>, vector<1x1x16x32xbf16>,
    %c216 = arith.constant 216 : index
    %c0_203 = arith.constant 0 : index
    %264 = vector.load %arg9[%c216, %c0_203] : memref<286x32xf32, #tpu.memory_space<vmem>>, vector<16x32xf32>
    %265 = vector.broadcast %155 : vector<1x32xf32> to vector<16x32xf32>
    %266 = arith.mulf %264, %265 : vector<16x32xf32>
    %cst_204 = arith.constant 0.000000e+00 : f32
    %267 = vector.broadcast %cst_204 : f32 to vector<16x32xf32>
    %268 = arith.maximumf %266, %267 : vector<16x32xf32>
    %269 = arith.truncf %268 : vector<16x32xf32> to vector<16x32xbf16>
    %c0_205 = arith.constant 0 : index
    %c12 = arith.constant 12 : index
    %c0_206 = arith.constant 0 : index
    %c0_207 = arith.constant 0 : index
    %270 = vector.load %arg8[%c0_205, %c12, %c0_206, %c0_207] : memref<1x16x16x32xbf16, #tpu.memory_space<vmem>>, vector<1x1x16x32xbf16>
    %271 = vector.shape_cast %270 : vector<1x1x16x32xbf16> to vector<16x32xbf16>
    %272 = vector.shape_cast %269 : vector<16x32xbf16> to vector<1x1x16x32xbf16>
    tpu.vector_store %arg8[%c0_205, %c12, %c0_206, %c0_207], %272 {strides = array<i32>} : memref<1x16x16x32xbf16, #tpu.memory_space<vmem>>, vector<1x1x16x32xbf16>,
    %c234 = arith.constant 234 : index
    %c0_208 = arith.constant 0 : index
    %273 = vector.load %arg9[%c234, %c0_208] : memref<286x32xf32, #tpu.memory_space<vmem>>, vector<16x32xf32>
    %274 = vector.broadcast %155 : vector<1x32xf32> to vector<16x32xf32>
    %275 = arith.mulf %273, %274 : vector<16x32xf32>
    %cst_209 = arith.constant 0.000000e+00 : f32
    %276 = vector.broadcast %cst_209 : f32 to vector<16x32xf32>
    %277 = arith.maximumf %275, %276 : vector<16x32xf32>
    %278 = arith.truncf %277 : vector<16x32xf32> to vector<16x32xbf16>
    %c0_210 = arith.constant 0 : index
    %c13 = arith.constant 13 : index
    %c0_211 = arith.constant 0 : index
    %c0_212 = arith.constant 0 : index
    %279 = vector.load %arg8[%c0_210, %c13, %c0_211, %c0_212] : memref<1x16x16x32xbf16, #tpu.memory_space<vmem>>, vector<1x1x16x32xbf16>
    %280 = vector.shape_cast %279 : vector<1x1x16x32xbf16> to vector<16x32xbf16>
    %281 = vector.shape_cast %278 : vector<16x32xbf16> to vector<1x1x16x32xbf16>
    tpu.vector_store %arg8[%c0_210, %c13, %c0_211, %c0_212], %281 {strides = array<i32>} : memref<1x16x16x32xbf16, #tpu.memory_space<vmem>>, vector<1x1x16x32xbf16>,
    %c252 = arith.constant 252 : index
    %c0_213 = arith.constant 0 : index
    %282 = vector.load %arg9[%c252, %c0_213] : memref<286x32xf32, #tpu.memory_space<vmem>>, vector<16x32xf32>
    %283 = vector.broadcast %155 : vector<1x32xf32> to vector<16x32xf32>
    %284 = arith.mulf %282, %283 : vector<16x32xf32>
    %cst_214 = arith.constant 0.000000e+00 : f32
    %285 = vector.broadcast %cst_214 : f32 to vector<16x32xf32>
    %286 = arith.maximumf %284, %285 : vector<16x32xf32>
    %287 = arith.truncf %286 : vector<16x32xf32> to vector<16x32xbf16>
    %c0_215 = arith.constant 0 : index
    %c14 = arith.constant 14 : index
    %c0_216 = arith.constant 0 : index
    %c0_217 = arith.constant 0 : index
    %288 = vector.load %arg8[%c0_215, %c14, %c0_216, %c0_217] : memref<1x16x16x32xbf16, #tpu.memory_space<vmem>>, vector<1x1x16x32xbf16>
    %289 = vector.shape_cast %288 : vector<1x1x16x32xbf16> to vector<16x32xbf16>
    %290 = vector.shape_cast %287 : vector<16x32xbf16> to vector<1x1x16x32xbf16>
    tpu.vector_store %arg8[%c0_215, %c14, %c0_216, %c0_217], %290 {strides = array<i32>} : memref<1x16x16x32xbf16, #tpu.memory_space<vmem>>, vector<1x1x16x32xbf16>,
    %c270 = arith.constant 270 : index
    %c0_218 = arith.constant 0 : index
    %291 = vector.load %arg9[%c270, %c0_218] : memref<286x32xf32, #tpu.memory_space<vmem>>, vector<16x32xf32>
    %292 = vector.broadcast %155 : vector<1x32xf32> to vector<16x32xf32>
    %293 = arith.mulf %291, %292 : vector<16x32xf32>
    %cst_219 = arith.constant 0.000000e+00 : f32
    %294 = vector.broadcast %cst_219 : f32 to vector<16x32xf32>
    %295 = arith.maximumf %293, %294 : vector<16x32xf32>
    %296 = arith.truncf %295 : vector<16x32xf32> to vector<16x32xbf16>
    %c0_220 = arith.constant 0 : index
    %c15 = arith.constant 15 : index
    %c0_221 = arith.constant 0 : index
    %c0_222 = arith.constant 0 : index
    %297 = vector.load %arg8[%c0_220, %c15, %c0_221, %c0_222] : memref<1x16x16x32xbf16, #tpu.memory_space<vmem>>, vector<1x1x16x32xbf16>
    %298 = vector.shape_cast %297 : vector<1x1x16x32xbf16> to vector<16x32xbf16>
    %299 = vector.shape_cast %296 : vector<16x32xbf16> to vector<1x1x16x32xbf16>
    tpu.vector_store %arg8[%c0_220, %c15, %c0_221, %c0_222], %299 {strides = array<i32>} : memref<1x16x16x32xbf16, #tpu.memory_space<vmem>>, vector<1x1x16x32xbf16>,
    return
  }
  func.func @transform_0(%arg0: i32) -> (i32, i32, i32) {
    %c0_i32 = arith.constant 0 : i32
    %c0_i32_0 = arith.constant 0 : i32
    %c0_i32_1 = arith.constant 0 : i32
    return %arg0, %c0_i32, %c0_i32_0 : i32, i32, i32
  }
  func.func @transform_1(%arg0: i32) -> (i32, i32, i32) {
    %c0_i32 = arith.constant 0 : i32
    %c0_i32_0 = arith.constant 0 : i32
    %c0_i32_1 = arith.constant 0 : i32
    %c0_i32_2 = arith.constant 0 : i32
    return %c0_i32, %c0_i32_0, %c0_i32_1 : i32, i32, i32
  }
  func.func @transform_2(%arg0: i32) -> (i32, i32) {
    %c0_i32 = arith.constant 0 : i32
    %c0_i32_0 = arith.constant 0 : i32
    %c0_i32_1 = arith.constant 0 : i32
    return %c0_i32, %c0_i32_0 : i32, i32
  }
  func.func @transform_3(%arg0: i32) -> (i32, i32) {
    %c0_i32 = arith.constant 0 : i32
    %c0_i32_0 = arith.constant 0 : i32
    %c0_i32_1 = arith.constant 0 : i32
    return %c0_i32, %c0_i32_0 : i32, i32
  }
  func.func @transform_4(%arg0: i32) -> (i32, i32) {
    %c0_i32 = arith.constant 0 : i32
    %c0_i32_0 = arith.constant 0 : i32
    %c0_i32_1 = arith.constant 0 : i32
    return %c0_i32, %c0_i32_0 : i32, i32
  }
  func.func @transform_5(%arg0: i32) -> (i32, i32) {
    %c0_i32 = arith.constant 0 : i32
    %c0_i32_0 = arith.constant 0 : i32
    %c0_i32_1 = arith.constant 0 : i32
    return %c0_i32, %c0_i32_0 : i32, i32
  }
  func.func @transform_6(%arg0: i32) -> (i32, i32) {
    %c0_i32 = arith.constant 0 : i32
    %c0_i32_0 = arith.constant 0 : i32
    %c0_i32_1 = arith.constant 0 : i32
    return %c0_i32, %c0_i32_0 : i32, i32
  }
  func.func @transform_7(%arg0: i32) -> (i32, i32, i32, i32) {
    %c0_i32 = arith.constant 0 : i32
    %c0_i32_0 = arith.constant 0 : i32
    %c0_i32_1 = arith.constant 0 : i32
    %c0_i32_2 = arith.constant 0 : i32
    return %arg0, %c0_i32, %c0_i32_0, %c0_i32_1 : i32, i32, i32, i32
  }
}

</mosaic_0001>

<llo_original>
// kernel: repvgg_block_se_forward.1
$region0: #{repvgg_block_se_forward.1}
  #allocation0 [shape = 'u32[]', space=smem, size = 0x4, offset = 0x4, fixed_abs, tag = 'smem constant byte address 0x4 - core index']
  #allocation1 [shape = 'u32[144,128]{1,0:T(1,128)}', space=vmem, size = 0x12000, scoped, tag = 'internal scratch']
  #allocation2 [shape = 'f32[286,32]{1,0:T(8,128)}', space=vmem, size = 0x24000, scoped, tag = 'scratch operand']
  %s0 = inlined_call_operand.vmem [shape: bf16[2,324,32], index: 0, kind: input, shape index: {}]
  %s1 = inlined_call_operand.vmem [shape: bf16[9,32,32], index: 1, kind: input, shape index: {}]
  %s2 = inlined_call_operand.vmem [shape: f32[1,32], index: 2, kind: input, shape index: {}]
  %s3 = inlined_call_operand.vmem [shape: f32[32,2], index: 3, kind: input, shape index: {}]
  %s4 = inlined_call_operand.vmem [shape: f32[1,2], index: 4, kind: input, shape index: {}]
  %s5 = inlined_call_operand.vmem [shape: f32[2,32], index: 5, kind: input, shape index: {}]
  %s6 = inlined_call_operand.vmem [shape: f32[1,32], index: 6, kind: input, shape index: {}]
  %s7 = inlined_call_operand.hbm [shape: bf16[2,16,16,32], index: 7, kind: output, shape index: {}]
  %s8 = sld [smem:[#allocation0]]
  $region61: #{repvgg_block_se_forward.1} parent=0
    _
  %s10 = ssub.s32 1, %s8
  %s11 = scalar_select 0, %s10, %s8
  $region1: #{repvgg_block_se_forward.1} parent=0
    #allocation3 [shape = 'u8[131072]{0}', space=vmem, size = 0x20000, scoped, tag = 'output window, operand 0']
    #allocation4 [shape = 's32[2]{0}', space=sflag, size = 0x8, scoped, tag = 'scoped memory for repvgg_block_se_forward.1']
    %12 = vsyncpa [#allocation4], 0
    %s13 = scalar_lea.sflag [#allocation4], 1
    %14 = vsyncpa %s13, 0
    loop: start=0, step=1, limit=4
    $region2: #{repvgg_block_se_forward.1} parent=1 // loop_pre_header
      _
    $region3: #{repvgg_block_se_forward.1} parent=1 // loop_header
      %s16 = sphi 0, %s20
      %p17 = scmp.ge.s32.totalorder %s16, 4
      %s26 = sphi 0, %s28
      %s29 = sphi 0, %s26
      %s30 = sphi 0, %s29
      %s46 = sphi 0, %s30
      %s50 = sphi 0, %s50
      %s52 = sphi 0, %s50
      %s53 = sphi 0, %s52
      %s67 = sphi 0, %s53
      %s71 = sphi 0, %s71
      %s73 = sphi 0, %s71
      %s74 = sphi 0, %s73
      %s88 = sphi 0, %s74
      %s92 = sphi 0, %s92
      %s94 = sphi 0, %s92
      %s95 = sphi 0, %s94
      %s109 = sphi 0, %s95
      %s113 = sphi 0, %s113
      %s115 = sphi 0, %s113
      %s116 = sphi 0, %s115
      %s130 = sphi 0, %s116
      %s134 = sphi 0, %s134
      %s136 = sphi 0, %s134
      %s137 = sphi 0, %s136
      %s151 = sphi 0, %s137
      %s155 = sphi 0, %s155
      %s157 = sphi 0, %s155
      %s158 = sphi 0, %s157
      %s172 = sphi 0, %s158
      %s178 = sphi 0, %s180
      %s181 = sphi 0, %s178
      %s182 = sphi 0, %s181
      %s198 = sphi 0, %s182
    $region4: #{repvgg_block_se_forward.1} parent=1 // loop_header_branch
      %19 = sbr.rel (%p17) target = $region8
    $region5: #{repvgg_block_se_forward.1} parent=1 // loop_body
      %s21 = ssub.s32 %s16, 1
      %s22 = ssub.s32 %s16, 2
      %s23 = sadd.s32 %s16, 1
      %s24 = ssub.s32 %s16, %s23
      %p25 = scmp.eq.s32.totalorder %s24, 0
      %s27 = sadd.s32 %s26, 1
      %s28 = scalar_select %p25, %s26, %s27
      %p31 = pneg %p25
      %p32 = scmp.eq.s32.totalorder %s16, 1
      %p33 = por %p31, %p32
      %p34 = scmp.ne.s32.totalorder %s26, %s29
      %p35 = scmp.eq.s32.totalorder %s16, 0
      %p36 = por %p34, %p35
      %p37 = scmp.ne.s32.totalorder %s26, %s29
      %p38 = scmp.eq.s32.totalorder %s21, 1
      %p39 = por %p37, %p38
      %p40 = scmp.ne.s32.totalorder %s29, %s30
      %p41 = scmp.eq.s32.totalorder %s21, 0
      %p42 = por %p40, %p41
      %p43 = scmp.ne.s32.totalorder %s29, %s30
      %p44 = scmp.eq.s32.totalorder %s22, 1
      %p45 = por %p43, %p44
      %p47 = scmp.ne.s32.totalorder %s30, %s46
      %p48 = scmp.eq.s32.totalorder %s22, 0
      %p49 = por %p47, %p48
      %s51 = sadd.s32 %s50, 1
      %p54 = scmp.eq.s32.totalorder %s16, 1
      %p55 = scmp.ne.s32.totalorder %s50, %s52
      %p56 = scmp.eq.s32.totalorder %s16, 0
      %p57 = por %p55, %p56
      %p58 = scmp.ne.s32.totalorder %s50, %s52
      %p59 = scmp.eq.s32.totalorder %s21, 1
      %p60 = por %p58, %p59
      %p61 = scmp.ne.s32.totalorder %s52, %s53
      %p62 = scmp.eq.s32.totalorder %s21, 0
      %p63 = por %p61, %p62
      %p64 = scmp.ne.s32.totalorder %s52, %s53
      %p65 = scmp.eq.s32.totalorder %s22, 1
      %p66 = por %p64, %p65
      %p68 = scmp.ne.s32.totalorder %s53, %s67
      %p69 = scmp.eq.s32.totalorder %s22, 0
      %p70 = por %p68, %p69
      %s72 = sadd.s32 %s71, 1
      %p75 = scmp.eq.s32.totalorder %s16, 1
      %p76 = scmp.ne.s32.totalorder %s71, %s73
      %p77 = scmp.eq.s32.totalorder %s16, 0
      %p78 = por %p76, %p77
      %p79 = scmp.ne.s32.totalorder %s71, %s73
      %p80 = scmp.eq.s32.totalorder %s21, 1
      %p81 = por %p79, %p80
      %p82 = scmp.ne.s32.totalorder %s73, %s74
      %p83 = scmp.eq.s32.totalorder %s21, 0
      %p84 = por %p82, %p83
      %p85 = scmp.ne.s32.totalorder %s73, %s74
      %p86 = scmp.eq.s32.totalorder %s22, 1
      %p87 = por %p85, %p86
      %p89 = scmp.ne.s32.totalorder %s74, %s88
      %p90 = scmp.eq.s32.totalorder %s22, 0
      %p91 = por %p89, %p90
      %s93 = sadd.s32 %s92, 1
      %p96 = scmp.eq.s32.totalorder %s16, 1
      %p97 = scmp.ne.s32.totalorder %s92, %s94
      %p98 = scmp.eq.s32.totalorder %s16, 0
      %p99 = por %p97, %p98
      %p100 = scmp.ne.s32.totalorder %s92, %s94
      %p101 = scmp.eq.s32.totalorder %s21, 1
      %p102 = por %p100, %p101
      %p103 = scmp.ne.s32.totalorder %s94, %s95
      %p104 = scmp.eq.s32.totalorder %s21, 0
      %p105 = por %p103, %p104
      %p106 = scmp.ne.s32.totalorder %s94, %s95
      %p107 = scmp.eq.s32.totalorder %s22, 1
      %p108 = por %p106, %p107
      %p110 = scmp.ne.s32.totalorder %s95, %s109
      %p111 = scmp.eq.s32.totalorder %s22, 0
      %p112 = por %p110, %p111
      %s114 = sadd.s32 %s113, 1
      %p117 = scmp.eq.s32.totalorder %s16, 1
      %p118 = scmp.ne.s32.totalorder %s113, %s115
      %p119 = scmp.eq.s32.totalorder %s16, 0
      %p120 = por %p118, %p119
      %p121 = scmp.ne.s32.totalorder %s113, %s115
      %p122 = scmp.eq.s32.totalorder %s21, 1
      %p123 = por %p121, %p122
      %p124 = scmp.ne.s32.totalorder %s115, %s116
      %p125 = scmp.eq.s32.totalorder %s21, 0
      %p126 = por %p124, %p125
      %p127 = scmp.ne.s32.totalorder %s115, %s116
      %p128 = scmp.eq.s32.totalorder %s22, 1
      %p129 = por %p127, %p128
      %p131 = scmp.ne.s32.totalorder %s116, %s130
      %p132 = scmp.eq.s32.totalorder %s22, 0
      %p133 = por %p131, %p132
      %s135 = sadd.s32 %s134, 1
      %p138 = scmp.eq.s32.totalorder %s16, 1
      %p139 = scmp.ne.s32.totalorder %s134, %s136
      %p140 = scmp.eq.s32.totalorder %s16, 0
      %p141 = por %p139, %p140
      %p142 = scmp.ne.s32.totalorder %s134, %s136
      %p143 = scmp.eq.s32.totalorder %s21, 1
      %p144 = por %p142, %p143
      %p145 = scmp.ne.s32.totalorder %s136, %s137
      %p146 = scmp.eq.s32.totalorder %s21, 0
      %p147 = por %p145, %p146
      %p148 = scmp.ne.s32.totalorder %s136, %s137
      %p149 = scmp.eq.s32.totalorder %s22, 1
      %p150 = por %p148, %p149
      %p152 = scmp.ne.s32.totalorder %s137, %s151
      %p153 = scmp.eq.s32.totalorder %s22, 0
      %p154 = por %p152, %p153
      %s156 = sadd.s32 %s155, 1
      %p159 = scmp.eq.s32.totalorder %s16, 1
      %p160 = scmp.ne.s32.totalorder %s155, %s157
      %p161 = scmp.eq.s32.totalorder %s16, 0
      %p162 = por %p160, %p161
      %p163 = scmp.ne.s32.totalorder %s155, %s157
      %p164 = scmp.eq.s32.totalorder %s21, 1
      %p165 = por %p163, %p164
      %p166 = scmp.ne.s32.totalorder %s157, %s158
      %p167 = scmp.eq.s32.totalorder %s21, 0
      %p168 = por %p166, %p167
      %p169 = scmp.ne.s32.totalorder %s157, %s158
      %p170 = scmp.eq.s32.totalorder %s22, 1
      %p171 = por %p169, %p170
      %p173 = scmp.ne.s32.totalorder %s158, %s172
      %p174 = scmp.eq.s32.totalorder %s22, 0
      %p175 = por %p173, %p174
      %s176 = ssub.s32 %s16, %s23
      %p177 = scmp.eq.s32.totalorder %s176, 0
      %s179 = sadd.s32 %s178, 1
      %s180 = scalar_select %p177, %s178, %s179
      %p183 = pneg %p177
      %p184 = scmp.eq.s32.totalorder %s16, 1
      %p185 = por %p183, %p184
      %p186 = scmp.ne.s32.totalorder %s178, %s181
      %p187 = scmp.eq.s32.totalorder %s16, 0
      %p188 = por %p186, %p187
      %p189 = scmp.ne.s32.totalorder %s178, %s181
      %p190 = scmp.eq.s32.totalorder %s21, 1
      %p191 = por %p189, %p190
      %p192 = scmp.ne.s32.totalorder %s181, %s182
      %p193 = scmp.eq.s32.totalorder %s21, 0
      %p194 = por %p192, %p193
      %p195 = scmp.ne.s32.totalorder %s181, %s182
      %p196 = scmp.eq.s32.totalorder %s22, 1
      %p197 = por %p195, %p196
      %p199 = scmp.ne.s32.totalorder %s182, %s198
      %p200 = scmp.eq.s32.totalorder %s22, 0
      %p201 = por %p199, %p200
      %p202 = scmp.le.s32.totalorder 1, %s16
      %p203 = scmp.lt.s32.totalorder %s16, 3
      %p204 = pnand %p202, %p203
      %p205 = pneg %p204
      // Predicated region
      $region9: #{repvgg_block_se_forward.1} parent=5 // pred_check
        _
      $region10: #{repvgg_block_se_forward.1} parent=5 // pred_check_branch
        %207 = sbr.rel (%p204) target = $region12
      $region11: #{repvgg_block_se_forward.1} parent=5 // pred_region
        %s208 = ssub.s32 %s16, 1
        // Predicated region
        $region13: #{repvgg_block_se_forward.1} parent=11 // pred_check
          %p209 = pneg %p63
        $region14: #{repvgg_block_se_forward.1} parent=11 // pred_check_branch
          %211 = sbr.rel (%p209) target = $region16
        $region15: #{repvgg_block_se_forward.1} parent=11 // pred_region
          _
        $region16: #{repvgg_block_se_forward.1} parent=11 // pred_fallthru
          _
        // Predicated region
        $region17: #{repvgg_block_se_forward.1} parent=11 // pred_check
          %p212 = pneg %p84
        $region18: #{repvgg_block_se_forward.1} parent=11 // pred_check_branch
          %214 = sbr.rel (%p212) target = $region20
        $region19: #{repvgg_block_se_forward.1} parent=11 // pred_region
          _
        $region20: #{repvgg_block_se_forward.1} parent=11 // pred_fallthru
          _
        // Predicated region
        $region21: #{repvgg_block_se_forward.1} parent=11 // pred_check
          %p215 = pneg %p105
        $region22: #{repvgg_block_se_forward.1} parent=11 // pred_check_branch
          %217 = sbr.rel (%p215) target = $region24
        $region23: #{repvgg_block_se_forward.1} parent=11 // pred_region
          _
        $region24: #{repvgg_block_se_forward.1} parent=11 // pred_fallthru
          _
        // Predicated region
        $region25: #{repvgg_block_se_forward.1} parent=11 // pred_check
          %p218 = pneg %p126
        $region26: #{repvgg_block_se_forward.1} parent=11 // pred_check_branch
          %220 = sbr.rel (%p218) target = $region28
        $region27: #{repvgg_block_se_forward.1} parent=11 // pred_region
          _
        $region28: #{repvgg_block_se_forward.1} parent=11 // pred_fallthru
          _
        // Predicated region
        $region29: #{repvgg_block_se_forward.1} parent=11 // pred_check
          %p221 = pneg %p147
        $region30: #{repvgg_block_se_forward.1} parent=11 // pred_check_branch
          %223 = sbr.rel (%p221) target = $region32
        $region31: #{repvgg_block_se_forward.1} parent=11 // pred_region
          _
        $region32: #{repvgg_block_se_forward.1} parent=11 // pred_fallthru
          _
        // Predicated region
        $region33: #{repvgg_block_se_forward.1} parent=11 // pred_check
          %p224 = pneg %p168
        $region34: #{repvgg_block_se_forward.1} parent=11 // pred_check_branch
          %226 = sbr.rel (%p224) target = $region36
        $region35: #{repvgg_block_se_forward.1} parent=11 // pred_region
          _
        $region36: #{repvgg_block_se_forward.1} parent=11 // pred_fallthru
          _
      $region12: #{repvgg_block_se_forward.1} parent=5 // pred_fallthru
        _
      %p227 = scmp.lt.s32.totalorder %s16, 2
      // Predicated region
      $region37: #{repvgg_block_se_forward.1} parent=5 // pred_check
        %p228 = pneg %p227
      $region38: #{repvgg_block_se_forward.1} parent=5 // pred_check_branch
        %230 = sbr.rel (%p228) target = $region40
      $region39: #{repvgg_block_se_forward.1} parent=5 // pred_region
        // Predicated region
        $region41: #{repvgg_block_se_forward.1} parent=39 // pred_check
          %p231 = pneg %p36
        $region42: #{repvgg_block_se_forward.1} parent=39 // pred_check_branch
          %233 = sbr.rel (%p231) target = $region44
        $region43: #{repvgg_block_se_forward.1} parent=39 // pred_region
          %p234 = scmp.lt.s32.totalorder %s16, 1
          %s235 = scalar_select %p234, %s16, 1
          %s236 = smul.addr %s235, 41
          %s237 = smul.addr %s236, 4
          %s238 = scalar_lea.vmem %s0, %s237
        $region44: #{repvgg_block_se_forward.1} parent=39 // pred_fallthru
          _
      $region40: #{repvgg_block_se_forward.1} parent=5 // pred_fallthru
        _
      %p239 = scmp.le.s32.totalorder 1, %s16
      %p240 = scmp.lt.s32.totalorder %s16, 3
      %p241 = pnand %p239, %p240
      %p242 = pneg %p241
      // Predicated region
      $region45: #{repvgg_block_se_forward.1} parent=5 // pred_check
        _
      $region46: #{repvgg_block_se_forward.1} parent=5 // pred_check_branch
        %244 = sbr.rel (%p241) target = $region48
      $region47: #{repvgg_block_se_forward.1} parent=5 // pred_region
        %s245 = ssub.s32 %s16, 1
        %p246 = scmp.lt.s32.totalorder %s21, 1
        %s247 = scalar_select %p246, %s21, 1
        %s248 = smul.addr %s247, 41
        %s249 = smul.addr %s248, 4
        %s250 = scalar_lea.vmem %s0, %s249
        %p251 = pneg %p42
        %p252 = pneg %p39
        %p253 = pneg %p63
        %p254 = pneg %p60
        %p255 = pneg %p84
        %p256 = pneg %p81
        %p257 = pneg %p105
        %p258 = pneg %p102
        %p259 = pneg %p126
        %p260 = pneg %p123
        %p261 = pneg %p147
        %p262 = pneg %p144
        %p263 = pneg %p168
        %p264 = pneg %p165
        %p265 = pneg %p194
        %p266 = pneg %p191
        %s267 = sand.u32 %s181, 1
        %s268 = scalar_lea.sflag [#allocation4], %s267
        %s269 = sand.u32 %s181, 1
        %s270 = smul.addr %s269, 128
        %s271 = scalar_lea.vmem [#allocation3], %s270
        %p272 = scmp.lt.s32.totalorder %s21, 1
        %s273 = scalar_select %p272, %s21, 1
        %s274 = smul.addr %s273, 41
        %s275 = smul.addr %s274, 4
        %s276 = scalar_lea.vmem %s0, %s275
        %v278 = vld [vmem:[%s276] sm:$0xf]
        %v279 = vld [vmem:[%s276 + $0x4] sm:$0xf]
        %v280 = vld [vmem:[%s276 + $0x8] sm:$0xf]
        %v281 = vld [vmem:[%s276 + $0xc] sm:$0xf]
        %v282 = vld [vmem:[%s276 + $0x10] sm:$0xf]
        %v283 = vld [vmem:[%s276 + $0x14] sm:$0xf]
        %v284 = vld [vmem:[%s276 + $0x18] sm:$0xf]
        %v285 = vld [vmem:[%s276 + $0x1c] sm:$0xf]
        %v286 = vld [vmem:[%s276 + $0x20] sm:$0xf]
        %v287 = vld [vmem:[%s276 + $0x24] sm:$0xf]
        %v288 = vld [vmem:[%s276 + $0x28] sm:$0xf]
        %v289 = vld [vmem:[%s276 + $0x2c] sm:$0xf]
        %v290 = vld [vmem:[%s276 + $0x30] sm:$0xf]
        %v291 = vld [vmem:[%s276 + $0x34] sm:$0xf]
        %v292 = vld [vmem:[%s276 + $0x38] sm:$0xf]
        %v293 = vld [vmem:[%s276 + $0x3c] sm:$0xf]
        %v294 = vld [vmem:[%s276 + $0x40] sm:$0xf]
        %v295 = vld [vmem:[%s276 + $0x44] sm:$0xf]
        %v296 = vld [vmem:[%s276 + $0x48] sm:$0xf]
        %v297 = vld [vmem:[%s276 + $0x4c] sm:$0xf]
        %v298 = vld [vmem:[%s276 + $0x50] sm:$0xf]
        %v299 = vld [vmem:[%s276 + $0x54] sm:$0xf]
        %v300 = vld [vmem:[%s276 + $0x58] sm:$0xf]
        %v301 = vld [vmem:[%s276 + $0x5c] sm:$0xf]
        %v302 = vld [vmem:[%s276 + $0x60] sm:$0xf]
        %v303 = vld [vmem:[%s276 + $0x64] sm:$0xf]
        %v304 = vld [vmem:[%s276 + $0x68] sm:$0xf]
        %v305 = vld [vmem:[%s276 + $0x6c] sm:$0xf]
        %v306 = vld [vmem:[%s276 + $0x70] sm:$0xf]
        %v307 = vld [vmem:[%s276 + $0x74] sm:$0xf]
        %v308 = vld [vmem:[%s276 + $0x78] sm:$0xf]
        %v309 = vld [vmem:[%s276 + $0x7c] sm:$0xf]
        %v310 = vld [vmem:[%s276 + $0x80] sm:$0xf]
        %v311 = vld [vmem:[%s276 + $0x84] sm:$0xf]
        %v312 = vld [vmem:[%s276 + $0x88] sm:$0xf]
        %v313 = vld [vmem:[%s276 + $0x8c] sm:$0x7]
        %v314 = vld [vmem:[%s1] sm:$0xf]
        %v315 = vld [vmem:[%s1 + $0x4] sm:$0xf]
        %v316 = vld [vmem:[%s1 + $0x8] sm:$0xf]
        %v317 = vld [vmem:[%s1 + $0xc] sm:$0xf]
        %v318 = vld [vmem:[%s2] sm:$0x1]
        %v320 = vlaneseq
        %v321 = vshrl.u32 %v320, 7
        %v322 = vsub.s32 0, %v321
        %v323 = vrot.slane %v318, %v322
        %v361 = vunpack.c.l.b16 %v278
        %v362 = vunpack.c.l.b16 %v279
        %v363 = vunpack.c.l.b16 %v280
        %v364 = vunpack.c.l.b16 %v281
        %v365 = vunpack.c.l.b16 %v282
        %v366 = vunpack.c.l.b16 %v283
        %v367 = vunpack.c.l.b16 %v284
        %v368 = vunpack.c.l.b16 %v285
        %v369 = vunpack.c.l.b16 %v286
        %v370 = vunpack.c.l.b16 %v287
        %v371 = vunpack.c.l.b16 %v288
        %v372 = vunpack.c.l.b16 %v289
        %v373 = vunpack.c.l.b16 %v290
        %v374 = vunpack.c.l.b16 %v291
        %v375 = vunpack.c.l.b16 %v292
        %v376 = vunpack.c.l.b16 %v293
        %v377 = vunpack.c.l.b16 %v294
        %v378 = vunpack.c.l.b16 %v295
        %v379 = vunpack.c.l.b16 %v296
        %v380 = vunpack.c.l.b16 %v297
        %v381 = vunpack.c.l.b16 %v298
        %v382 = vunpack.c.l.b16 %v299
        %v383 = vunpack.c.l.b16 %v300
        %v384 = vunpack.c.l.b16 %v301
        %v385 = vunpack.c.l.b16 %v302
        %v386 = vunpack.c.l.b16 %v303
        %v387 = vunpack.c.l.b16 %v304
        %v388 = vunpack.c.l.b16 %v305
        %v389 = vunpack.c.l.b16 %v306
        %v390 = vunpack.c.l.b16 %v307
        %v391 = vunpack.c.l.b16 %v308
        %v392 = vunpack.c.l.b16 %v309
        %v393 = vunpack.c.l.b16 %v310
        %v394 = vunpack.c.l.b16 %v311
        %v395 = vunpack.c.l.b16 %v312
        %v396 = vunpack.c.l.b16 %v313
        %v397 = vpack.c.b16 %v362, %v361
        %v398 = vpack.c.b16 %v364, %v363
        %v399 = vpack.c.b16 %v366, %v365
        %v400 = vpack.c.b16 %v368, %v367
        %v401 = vpack.c.b16 %v370, %v369
        %v402 = vpack.c.b16 %v372, %v371
        %v403 = vpack.c.b16 %v374, %v373
        %v404 = vpack.c.b16 %v376, %v375
        %v405 = vpack.c.b16 %v378, %v377
        %v406 = vpack.c.b16 %v380, %v379
        %v407 = vpack.c.b16 %v382, %v381
        %v408 = vpack.c.b16 %v384, %v383
        %v409 = vpack.c.b16 %v386, %v385
        %v410 = vpack.c.b16 %v388, %v387
        %v411 = vpack.c.b16 %v390, %v389
        %v412 = vpack.c.b16 %v392, %v391
        %v413 = vpack.c.b16 %v394, %v393
        %v414 = vpack.c.b16 %v396, %v395
        %v419 = vunpack.c.l.b16 %v314
        %v420 = vunpack.c.l.b16 %v315
        %v421 = vunpack.c.l.b16 %v316
        %v422 = vunpack.c.l.b16 %v317
        %v423 = vpack.c.b16 %v420, %v419
        %v424 = vpack.c.b16 %v422, %v421
        %vm427 = vcmask 261120
        %v429 = vsel %vm427, %v397, 0
        %v432 = vsel %vm427, %v398, 0
        %v435 = vsel %vm427, %v399, 0
        %v438 = vsel %vm427, %v400, 0
        %v441 = vsel %vm427, %v401, 0
        %v444 = vsel %vm427, %v402, 0
        %v447 = vsel %vm427, %v403, 0
        %v450 = vsel %vm427, %v404, 0
        %v453 = vsel %vm427, %v405, 0
        %v456 = vsel %vm427, %v406, 0
        %v459 = vsel %vm427, %v407, 0
        %v462 = vsel %vm427, %v408, 0
        %v465 = vsel %vm427, %v409, 0
        %v468 = vsel %vm427, %v410, 0
        %v471 = vsel %vm427, %v411, 0
        %v474 = vsel %vm427, %v412, 0
        %v477 = vsel %vm427, %v413, 0
        %v480 = vsel %vm427, %v414, 0
        %482 = vmatprep.subr.bf16.mxu0 0
        %483 = vmatpush1.bf16.msra.mxu0 %v423
        %484 = vmatprep.subr.bf16.mxu0 0
        %485 = vmatpush1.bf16.msra.mxu0 %v424
        %486 = vmatprep.subr.bf16.mxu0 0
        %487 = vmatpush1.bf16.msra.mxu0 0
        %488 = vmatprep.subr.bf16.mxu0 0
        %489 = vmatpush1.bf16.msra.mxu0 0
        %490 = vmatprep.subr.bf16.mxu0 0
        %491 = vmatpush1.bf16.msra.mxu0 0
        %492 = vmatprep.subr.bf16.mxu0 0
        %493 = vmatpush1.bf16.msra.mxu0 0
        %494 = vmatprep.subr.bf16.mxu0 0
        %495 = vmatpush1.bf16.msra.mxu0 0
        %496 = vmatprep.subr.bf16.mxu0 0
        %497 = vmatpush1.bf16.msra.mxu0 0
        %498 = vmatprep.subr.bf16.mxu0 0
        %499 = vmatpush1.bf16.msra.mxu0 0
        %500 = vmatprep.subr.bf16.mxu0 0
        %501 = vmatpush1.bf16.msra.mxu0 0
        %502 = vmatprep.subr.bf16.mxu0 0
        %503 = vmatpush1.bf16.msra.mxu0 0
        %504 = vmatprep.subr.bf16.mxu0 0
        %505 = vmatpush1.bf16.msra.mxu0 0
        %506 = vmatprep.subr.bf16.mxu0 0
        %507 = vmatpush1.bf16.msra.mxu0 0
        %508 = vmatprep.subr.bf16.mxu0 0
        %509 = vmatpush1.bf16.msra.mxu0 0
        %510 = vmatprep.subr.bf16.mxu0 0
        %511 = vmatpush1.bf16.msra.mxu0 0
        %512 = vmatprep.subr.bf16.mxu0 0
        %513 = vmatpush1.bf16.msra.mxu0 0
        %514 = vmatprep.mubr.bf16.mxu0 0
        %515 = vmatmul.mubr.bf16.gmra.mrb[0].mxu0 %v429
        %v516 = vpop.f32.mrb[0].mxu0
        %v517 = vadd.f32 %v323, %v516
        %v518 = vpop.f32.mrb[0].mxu0
        %v519 = vpop.f32.mrb[0].mxu0
        %v520 = vadd.f32 %v323, %v519
        %v521 = vpop.f32.mrb[0].mxu0
        %522 = vmatprep.mubr.bf16.mxu0 0
        %523 = vmatmul.mubr.bf16.gmra.mrb[0].mxu0 %v432
        %v524 = vpop.f32.mrb[0].mxu0
        %v525 = vadd.f32 %v323, %v524
        %v526 = vpop.f32.mrb[0].mxu0
        %v527 = vpop.f32.mrb[0].mxu0
        %v528 = vadd.f32 %v323, %v527
        %v529 = vpop.f32.mrb[0].mxu0
        %530 = vmatprep.mubr.bf16.mxu0 0
        %531 = vmatmul.mubr.bf16.gmra.mrb[0].mxu0 %v435
        %v532 = vpop.f32.mrb[0].mxu0
        %v533 = vadd.f32 %v323, %v532
        %v534 = vpop.f32.mrb[0].mxu0
        %v535 = vpop.f32.mrb[0].mxu0
        %v536 = vadd.f32 %v323, %v535
        %v537 = vpop.f32.mrb[0].mxu0
        %538 = vmatprep.mubr.bf16.mxu0 0
        %539 = vmatmul.mubr.bf16.gmra.mrb[0].mxu0 %v438
        %v540 = vpop.f32.mrb[0].mxu0
        %v541 = vadd.f32 %v323, %v540
        %v542 = vpop.f32.mrb[0].mxu0
        %v543 = vpop.f32.mrb[0].mxu0
        %v544 = vadd.f32 %v323, %v543
        %v545 = vpop.f32.mrb[0].mxu0
        %546 = vmatprep.mubr.bf16.mxu0 0
        %547 = vmatmul.mubr.bf16.gmra.mrb[0].mxu0 %v441
        %v548 = vpop.f32.mrb[0].mxu0
        %v549 = vadd.f32 %v323, %v548
        %v550 = vpop.f32.mrb[0].mxu0
        %v551 = vpop.f32.mrb[0].mxu0
        %v552 = vadd.f32 %v323, %v551
        %v553 = vpop.f32.mrb[0].mxu0
        %554 = vmatprep.mubr.bf16.mxu0 0
        %555 = vmatmul.mubr.bf16.gmra.mrb[0].mxu0 %v444
        %v556 = vpop.f32.mrb[0].mxu0
        %v557 = vadd.f32 %v323, %v556
        %v558 = vpop.f32.mrb[0].mxu0
        %v559 = vpop.f32.mrb[0].mxu0
        %v560 = vadd.f32 %v323, %v559
        %v561 = vpop.f32.mrb[0].mxu0
        %562 = vmatprep.mubr.bf16.mxu0 0
        %563 = vmatmul.mubr.bf16.gmra.mrb[0].mxu0 %v447
        %v564 = vpop.f32.mrb[0].mxu0
        %v565 = vadd.f32 %v323, %v564
        %v566 = vpop.f32.mrb[0].mxu0
        %v567 = vpop.f32.mrb[0].mxu0
        %v568 = vadd.f32 %v323, %v567
        %v569 = vpop.f32.mrb[0].mxu0
        %570 = vmatprep.mubr.bf16.mxu0 0
        %571 = vmatmul.mubr.bf16.gmra.mrb[0].mxu0 %v450
        %v572 = vpop.f32.mrb[0].mxu0
        %v573 = vadd.f32 %v323, %v572
        %v574 = vpop.f32.mrb[0].mxu0
        %v575 = vpop.f32.mrb[0].mxu0
        %v576 = vadd.f32 %v323, %v575
        %v577 = vpop.f32.mrb[0].mxu0
        %578 = vmatprep.mubr.bf16.mxu0 0
        %579 = vmatmul.mubr.bf16.gmra.mrb[0].mxu0 %v453
        %v580 = vpop.f32.mrb[0].mxu0
        %v581 = vadd.f32 %v323, %v580
        %v582 = vpop.f32.mrb[0].mxu0
        %v583 = vpop.f32.mrb[0].mxu0
        %v584 = vadd.f32 %v323, %v583
        %v585 = vpop.f32.mrb[0].mxu0
        %586 = vmatprep.mubr.bf16.mxu0 0
        %587 = vmatmul.mubr.bf16.gmra.mrb[0].mxu0 %v456
        %v588 = vpop.f32.mrb[0].mxu0
        %v589 = vadd.f32 %v323, %v588
        %v590 = vpop.f32.mrb[0].mxu0
        %v591 = vpop.f32.mrb[0].mxu0
        %v592 = vadd.f32 %v323, %v591
        %v593 = vpop.f32.mrb[0].mxu0
        %594 = vmatprep.mubr.bf16.mxu0 0
        %595 = vmatmul.mubr.bf16.gmra.mrb[0].mxu0 %v459
        %v596 = vpop.f32.mrb[0].mxu0
        %v597 = vadd.f32 %v323, %v596
        %v598 = vpop.f32.mrb[0].mxu0
        %v599 = vpop.f32.mrb[0].mxu0
        %v600 = vadd.f32 %v323, %v599
        %v601 = vpop.f32.mrb[0].mxu0
        %602 = vmatprep.mubr.bf16.mxu0 0
        %603 = vmatmul.mubr.bf16.gmra.mrb[0].mxu0 %v462
        %v604 = vpop.f32.mrb[0].mxu0
        %v605 = vadd.f32 %v323, %v604
        %v606 = vpop.f32.mrb[0].mxu0
        %v607 = vpop.f32.mrb[0].mxu0
        %v608 = vadd.f32 %v323, %v607
        %v609 = vpop.f32.mrb[0].mxu0
        %610 = vmatprep.mubr.bf16.mxu0 0
        %611 = vmatmul.mubr.bf16.gmra.mrb[0].mxu0 %v465
        %v612 = vpop.f32.mrb[0].mxu0
        %v613 = vadd.f32 %v323, %v612
        %v614 = vpop.f32.mrb[0].mxu0
        %v615 = vpop.f32.mrb[0].mxu0
        %v616 = vadd.f32 %v323, %v615
        %v617 = vpop.f32.mrb[0].mxu0
        %618 = vmatprep.mubr.bf16.mxu0 0
        %619 = vmatmul.mubr.bf16.gmra.mrb[0].mxu0 %v468
        %v620 = vpop.f32.mrb[0].mxu0
        %v621 = vadd.f32 %v323, %v620
        %v622 = vpop.f32.mrb[0].mxu0
        %v623 = vpop.f32.mrb[0].mxu0
        %v624 = vadd.f32 %v323, %v623
        %v625 = vpop.f32.mrb[0].mxu0
        %626 = vmatprep.mubr.bf16.mxu0 0
        %627 = vmatmul.mubr.bf16.gmra.mrb[0].mxu0 %v471
        %v628 = vpop.f32.mrb[0].mxu0
        %v629 = vadd.f32 %v323, %v628
        %v630 = vpop.f32.mrb[0].mxu0
        %v631 = vpop.f32.mrb[0].mxu0
        %v632 = vadd.f32 %v323, %v631
        %v633 = vpop.f32.mrb[0].mxu0
        %634 = vmatprep.mubr.bf16.mxu0 0
        %635 = vmatmul.mubr.bf16.gmra.mrb[0].mxu0 %v474
        %v636 = vpop.f32.mrb[0].mxu0
        %v637 = vadd.f32 %v323, %v636
        %v638 = vpop.f32.mrb[0].mxu0
        %v639 = vpop.f32.mrb[0].mxu0
        %v640 = vadd.f32 %v323, %v639
        %v641 = vpop.f32.mrb[0].mxu0
        %642 = vmatprep.mubr.bf16.mxu0 0
        %643 = vmatmul.mubr.bf16.gmra.mrb[0].mxu0 %v477
        %v644 = vpop.f32.mrb[0].mxu0
        %v645 = vadd.f32 %v323, %v644
        %v646 = vpop.f32.mrb[0].mxu0
        %v647 = vpop.f32.mrb[0].mxu0
        %v648 = vadd.f32 %v323, %v647
        %v649 = vpop.f32.mrb[0].mxu0
        %650 = vmatprep.mubr.bf16.mxu0 0
        %651 = vmatmul.mubr.bf16.gmra.mrb[0].mxu0 %v480
        %v652 = vpop.f32.mrb[0].mxu0
        %v653 = vadd.f32 %v323, %v652
        %v654 = vpop.f32.mrb[0].mxu0
        %v655 = vpop.f32.mrb[0].mxu0
        %v656 = vadd.f32 %v323, %v655
        %v657 = vpop.f32.mrb[0].mxu0
        %658 = vdwg.mxu0
        %659 = vst.msk [vmem:[#allocation2] sm:$0xff] %vm427, %v517
        %660 = vst.msk [vmem:[#allocation2 + $0x8] sm:$0xff] %vm427, %v520
        %661 = vst.msk [vmem:[#allocation2 + $0x10] sm:$0xff] %vm427, %v525
        %662 = vst.msk [vmem:[#allocation2 + $0x18] sm:$0xff] %vm427, %v528
        %663 = vst.msk [vmem:[#allocation2 + $0x20] sm:$0xff] %vm427, %v533
        %664 = vst.msk [vmem:[#allocation2 + $0x28] sm:$0xff] %vm427, %v536
        %665 = vst.msk [vmem:[#allocation2 + $0x30] sm:$0xff] %vm427, %v541
        %666 = vst.msk [vmem:[#allocation2 + $0x38] sm:$0xff] %vm427, %v544
        %667 = vst.msk [vmem:[#allocation2 + $0x40] sm:$0xff] %vm427, %v549
        %668 = vst.msk [vmem:[#allocation2 + $0x48] sm:$0xff] %vm427, %v552
        %669 = vst.msk [vmem:[#allocation2 + $0x50] sm:$0xff] %vm427, %v557
        %670 = vst.msk [vmem:[#allocation2 + $0x58] sm:$0xff] %vm427, %v560
        %671 = vst.msk [vmem:[#allocation2 + $0x60] sm:$0xff] %vm427, %v565
        %672 = vst.msk [vmem:[#allocation2 + $0x68] sm:$0xff] %vm427, %v568
        %673 = vst.msk [vmem:[#allocation2 + $0x70] sm:$0xff] %vm427, %v573
        %674 = vst.msk [vmem:[#allocation2 + $0x78] sm:$0xff] %vm427, %v576
        %675 = vst.msk [vmem:[#allocation2 + $0x80] sm:$0xff] %vm427, %v581
        %676 = vst.msk [vmem:[#allocation2 + $0x88] sm:$0xff] %vm427, %v584
        %677 = vst.msk [vmem:[#allocation2 + $0x90] sm:$0xff] %vm427, %v589
        %678 = vst.msk [vmem:[#allocation2 + $0x98] sm:$0xff] %vm427, %v592
        %679 = vst.msk [vmem:[#allocation2 + $0xa0] sm:$0xff] %vm427, %v597
        %680 = vst.msk [vmem:[#allocation2 + $0xa8] sm:$0xff] %vm427, %v600
        %681 = vst.msk [vmem:[#allocation2 + $0xb0] sm:$0xff] %vm427, %v605
        %682 = vst.msk [vmem:[#allocation2 + $0xb8] sm:$0xff] %vm427, %v608
        %683 = vst.msk [vmem:[#allocation2 + $0xc0] sm:$0xff] %vm427, %v613
        %684 = vst.msk [vmem:[#allocation2 + $0xc8] sm:$0xff] %vm427, %v616
        %685 = vst.msk [vmem:[#allocation2 + $0xd0] sm:$0xff] %vm427, %v621
        %686 = vst.msk [vmem:[#allocation2 + $0xd8] sm:$0xff] %vm427, %v624
        %687 = vst.msk [vmem:[#allocation2 + $0xe0] sm:$0xff] %vm427, %v629
        %688 = vst.msk [vmem:[#allocation2 + $0xe8] sm:$0xff] %vm427, %v632
        %689 = vst.msk [vmem:[#allocation2 + $0xf0] sm:$0xff] %vm427, %v637
        %690 = vst.msk [vmem:[#allocation2 + $0xf8] sm:$0xff] %vm427, %v640
        %691 = vst.msk [vmem:[#allocation2 + $0x100] sm:$0xff] %vm427, %v645
        %692 = vst.msk [vmem:[#allocation2 + $0x108] sm:$0xff] %vm427, %v648
        %693 = vst.msk [vmem:[#allocation2 + $0x110] sm:$0xff] %vm427, %v653
        %vm694 = vcmask 259072
        %695 = vst.msk [vmem:[#allocation2 + $0x118] sm:$0x3f] %vm694, %v656
        %v696 = vld [vmem:[%s276] sm:$0xf]
        %v697 = vld [vmem:[%s276 + $0x4] sm:$0xf]
        %v698 = vld [vmem:[%s276 + $0x8] sm:$0xf]
        %v699 = vld [vmem:[%s276 + $0xc] sm:$0xf]
        %v700 = vld [vmem:[%s276 + $0x10] sm:$0xf]
        %v701 = vld [vmem:[%s276 + $0x14] sm:$0xf]
        %v702 = vld [vmem:[%s276 + $0x18] sm:$0xf]
        %v703 = vld [vmem:[%s276 + $0x1c] sm:$0xf]
        %v704 = vld [vmem:[%s276 + $0x20] sm:$0xf]
        %v705 = vld [vmem:[%s276 + $0x24] sm:$0xf]
        %v706 = vld [vmem:[%s276 + $0x28] sm:$0xf]
        %v707 = vld [vmem:[%s276 + $0x2c] sm:$0xf]
        %v708 = vld [vmem:[%s276 + $0x30] sm:$0xf]
        %v709 = vld [vmem:[%s276 + $0x34] sm:$0xf]
        %v710 = vld [vmem:[%s276 + $0x38] sm:$0xf]
        %v711 = vld [vmem:[%s276 + $0x3c] sm:$0xf]
        %v712 = vld [vmem:[%s276 + $0x40] sm:$0xf]
        %v713 = vld [vmem:[%s276 + $0x44] sm:$0xf]
        %v714 = vld [vmem:[%s276 + $0x48] sm:$0xf]
        %v715 = vld [vmem:[%s276 + $0x4c] sm:$0xf]
        %v716 = vld [vmem:[%s276 + $0x50] sm:$0xf]
        %v717 = vld [vmem:[%s276 + $0x54] sm:$0xf]
        %v718 = vld [vmem:[%s276 + $0x58] sm:$0xf]
        %v719 = vld [vmem:[%s276 + $0x5c] sm:$0xf]
        %v720 = vld [vmem:[%s276 + $0x60] sm:$0xf]
        %v721 = vld [vmem:[%s276 + $0x64] sm:$0xf]
        %v722 = vld [vmem:[%s276 + $0x68] sm:$0xf]
        %v723 = vld [vmem:[%s276 + $0x6c] sm:$0xf]
        %v724 = vld [vmem:[%s276 + $0x70] sm:$0xf]
        %v725 = vld [vmem:[%s276 + $0x74] sm:$0xf]
        %v726 = vld [vmem:[%s276 + $0x78] sm:$0xf]
        %v727 = vld [vmem:[%s276 + $0x7c] sm:$0xf]
        %v728 = vld [vmem:[%s276 + $0x80] sm:$0xf]
        %v729 = vld [vmem:[%s276 + $0x84] sm:$0xf]
        %v730 = vld [vmem:[%s276 + $0x88] sm:$0xf]
        %v731 = vld [vmem:[%s276 + $0x8c] sm:$0xf]
        %s732 = scalar_lea.vmem %s1, 16
        %v733 = vld [vmem:[%s732] sm:$0xf]
        %v734 = vld [vmem:[%s732 + $0x4] sm:$0xf]
        %v735 = vld [vmem:[%s732 + $0x8] sm:$0xf]
        %v736 = vld [vmem:[%s732 + $0xc] sm:$0xf]
        %v773 = vunpack.c.l.b16 %v696
        %v774 = vunpack.c.l.b16 %v697
        %v775 = vunpack.c.l.b16 %v698
        %v776 = vunpack.c.l.b16 %v699
        %v777 = vunpack.c.l.b16 %v700
        %v778 = vunpack.c.l.b16 %v701
        %v779 = vunpack.c.l.b16 %v702
        %v780 = vunpack.c.l.b16 %v703
        %v781 = vunpack.c.l.b16 %v704
        %v782 = vunpack.c.l.b16 %v705
        %v783 = vunpack.c.l.b16 %v706
        %v784 = vunpack.c.l.b16 %v707
        %v785 = vunpack.c.l.b16 %v708
        %v786 = vunpack.c.l.b16 %v709
        %v787 = vunpack.c.l.b16 %v710
        %v788 = vunpack.c.l.b16 %v711
        %v789 = vunpack.c.l.b16 %v712
        %v790 = vunpack.c.l.b16 %v713
        %v791 = vunpack.c.l.b16 %v714
        %v792 = vunpack.c.l.b16 %v715
        %v793 = vunpack.c.l.b16 %v716
        %v794 = vunpack.c.l.b16 %v717
        %v795 = vunpack.c.l.b16 %v718
        %v796 = vunpack.c.l.b16 %v719
        %v797 = vunpack.c.l.b16 %v720
        %v798 = vunpack.c.l.b16 %v721
        %v799 = vunpack.c.l.b16 %v722
        %v800 = vunpack.c.l.b16 %v723
        %v801 = vunpack.c.l.b16 %v724
        %v802 = vunpack.c.l.b16 %v725
        %v803 = vunpack.c.l.b16 %v726
        %v804 = vunpack.c.l.b16 %v727
        %v805 = vunpack.c.l.b16 %v728
        %v806 = vunpack.c.l.b16 %v729
        %v807 = vunpack.c.l.b16 %v730
        %v808 = vunpack.c.l.b16 %v731
        %v809 = vpack.c.b16 %v774, %v773
        %v810 = vpack.c.b16 %v776, %v775
        %v811 = vpack.c.b16 %v778, %v777
        %v812 = vpack.c.b16 %v780, %v779
        %v813 = vpack.c.b16 %v782, %v781
        %v814 = vpack.c.b16 %v784, %v783
        %v815 = vpack.c.b16 %v786, %v785
        %v816 = vpack.c.b16 %v788, %v787
        %v817 = vpack.c.b16 %v790, %v789
        %v818 = vpack.c.b16 %v792, %v791
        %v819 = vpack.c.b16 %v794, %v793
        %v820 = vpack.c.b16 %v796, %v795
        %v821 = vpack.c.b16 %v798, %v797
        %v822 = vpack.c.b16 %v800, %v799
        %v823 = vpack.c.b16 %v802, %v801
        %v824 = vpack.c.b16 %v804, %v803
        %v825 = vpack.c.b16 %v806, %v805
        %v826 = vpack.c.b16 %v808, %v807
        %vm827 = vsmask.f32 7424
        %v829 = vshrl.u32 %v809, 16
        %v831 = vshll.u32 %v809, 16
        %v833 = vrot.slane %v831, 1
        %v834 = vor.u32 %v829, %v833
        %v836 = vshll.u32 %v810, 16
        %v838 = vrot.slane %v836, 1
        %v839 = vsel %vm827, %v834, %v838
        %v840 = vshrl.u32 %v810, 16
        %v842 = vor.u32 %v840, %v838
        %v844 = vshll.u32 %v811, 16
        %v846 = vrot.slane %v844, 1
        %v847 = vsel %vm827, %v842, %v846
        %v848 = vshrl.u32 %v811, 16
        %v850 = vor.u32 %v848, %v846
        %v852 = vshll.u32 %v812, 16
        %v854 = vrot.slane %v852, 1
        %v855 = vsel %vm827, %v850, %v854
        %v856 = vshrl.u32 %v812, 16
        %v858 = vor.u32 %v856, %v854
        %v860 = vshll.u32 %v813, 16
        %v862 = vrot.slane %v860, 1
        %v863 = vsel %vm827, %v858, %v862
        %v864 = vshrl.u32 %v813, 16
        %v866 = vor.u32 %v864, %v862
        %v868 = vshll.u32 %v814, 16
        %v870 = vrot.slane %v868, 1
        %v871 = vsel %vm827, %v866, %v870
        %v872 = vshrl.u32 %v814, 16
        %v874 = vor.u32 %v872, %v870
        %v876 = vshll.u32 %v815, 16
        %v878 = vrot.slane %v876, 1
        %v879 = vsel %vm827, %v874, %v878
        %v880 = vshrl.u32 %v815, 16
        %v882 = vor.u32 %v880, %v878
        %v884 = vshll.u32 %v816, 16
        %v886 = vrot.slane %v884, 1
        %v887 = vsel %vm827, %v882, %v886
        %v888 = vshrl.u32 %v816, 16
        %v890 = vor.u32 %v888, %v886
        %v892 = vshll.u32 %v817, 16
        %v894 = vrot.slane %v892, 1
        %v895 = vsel %vm827, %v890, %v894
        %v896 = vshrl.u32 %v817, 16
        %v898 = vor.u32 %v896, %v894
        %v900 = vshll.u32 %v818, 16
        %v902 = vrot.slane %v900, 1
        %v903 = vsel %vm827, %v898, %v902
        %v904 = vshrl.u32 %v818, 16
        %v906 = vor.u32 %v904, %v902
        %v908 = vshll.u32 %v819, 16
        %v910 = vrot.slane %v908, 1
        %v911 = vsel %vm827, %v906, %v910
        %v912 = vshrl.u32 %v819, 16
        %v914 = vor.u32 %v912, %v910
        %v916 = vshll.u32 %v820, 16
        %v918 = vrot.slane %v916, 1
        %v919 = vsel %vm827, %v914, %v918
        %v920 = vshrl.u32 %v820, 16
        %v922 = vor.u32 %v920, %v918
        %v924 = vshll.u32 %v821, 16
        %v926 = vrot.slane %v924, 1
        %v927 = vsel %vm827, %v922, %v926
        %v928 = vshrl.u32 %v821, 16
        %v930 = vor.u32 %v928, %v926
        %v932 = vshll.u32 %v822, 16
        %v934 = vrot.slane %v932, 1
        %v935 = vsel %vm827, %v930, %v934
        %v936 = vshrl.u32 %v822, 16
        %v938 = vor.u32 %v936, %v934
        %v940 = vshll.u32 %v823, 16
        %v942 = vrot.slane %v940, 1
        %v943 = vsel %vm827, %v938, %v942
        %v944 = vshrl.u32 %v823, 16
        %v946 = vor.u32 %v944, %v942
        %v948 = vshll.u32 %v824, 16
        %v950 = vrot.slane %v948, 1
        %v951 = vsel %vm827, %v946, %v950
        %v952 = vshrl.u32 %v824, 16
        %v954 = vor.u32 %v952, %v950
        %v956 = vshll.u32 %v825, 16
        %v958 = vrot.slane %v956, 1
        %v959 = vsel %vm827, %v954, %v958
        %v960 = vshrl.u32 %v825, 16
        %v962 = vor.u32 %v960, %v958
        %v964 = vshll.u32 %v826, 16
        %v966 = vrot.slane %v964, 1
        %v967 = vsel %vm827, %v962, %v966
        %v968 = vshrl.u32 %v826, 16
        %v970 = vor.u32 %v968, %v966
        %v975 = vunpack.c.l.b16 %v733
        %v976 = vunpack.c.l.b16 %v734
        %v977 = vunpack.c.l.b16 %v735
        %v978 = vunpack.c.l.b16 %v736
        %v979 = vpack.c.b16 %v976, %v975
        %v980 = vpack.c.b16 %v978, %v977
        %v984 = vsel %vm427, %v839, 0
        %v987 = vsel %vm427, %v847, 0
        %v990 = vsel %vm427, %v855, 0
        %v993 = vsel %vm427, %v863, 0
        %v996 = vsel %vm427, %v871, 0
        %v999 = vsel %vm427, %v879, 0
        %v1002 = vsel %vm427, %v887, 0
        %v1005 = vsel %vm427, %v895, 0
        %v1008 = vsel %vm427, %v903, 0
        %v1011 = vsel %vm427, %v911, 0
        %v1014 = vsel %vm427, %v919, 0
        %v1017 = vsel %vm427, %v927, 0
        %v1020 = vsel %vm427, %v935, 0
        %v1023 = vsel %vm427, %v943, 0
        %v1026 = vsel %vm427, %v951, 0
        %v1029 = vsel %vm427, %v959, 0
        %v1032 = vsel %vm427, %v967, 0
        %v1035 = vsel %vm427, %v970, 0
        %1037 = vmatprep.subr.bf16.mxu0 0
        %1038 = vmatpush1.bf16.msra.mxu0 %v979
        %1039 = vmatprep.subr.bf16.mxu0 0
        %1040 = vmatpush1.bf16.msra.mxu0 %v980
        %1041 = vmatprep.subr.bf16.mxu0 0
        %1042 = vmatpush1.bf16.msra.mxu0 0
        %1043 = vmatprep.subr.bf16.mxu0 0
        %1044 = vmatpush1.bf16.msra.mxu0 0
        %1045 = vmatprep.subr.bf16.mxu0 0
        %1046 = vmatpush1.bf16.msra.mxu0 0
        %1047 = vmatprep.subr.bf16.mxu0 0
        %1048 = vmatpush1.bf16.msra.mxu0 0
        %1049 = vmatprep.subr.bf16.mxu0 0
        %1050 = vmatpush1.bf16.msra.mxu0 0
        %1051 = vmatprep.subr.bf16.mxu0 0
        %1052 = vmatpush1.bf16.msra.mxu0 0
        %1053 = vmatprep.subr.bf16.mxu0 0
        %1054 = vmatpush1.bf16.msra.mxu0 0
        %1055 = vmatprep.subr.bf16.mxu0 0
        %1056 = vmatpush1.bf16.msra.mxu0 0
        %1057 = vmatprep.subr.bf16.mxu0 0
        %1058 = vmatpush1.bf16.msra.mxu0 0
        %1059 = vmatprep.subr.bf16.mxu0 0
        %1060 = vmatpush1.bf16.msra.mxu0 0
        %1061 = vmatprep.subr.bf16.mxu0 0
        %1062 = vmatpush1.bf16.msra.mxu0 0
        %1063 = vmatprep.subr.bf16.mxu0 0
        %1064 = vmatpush1.bf16.msra.mxu0 0
        %1065 = vmatprep.subr.bf16.mxu0 0
        %1066 = vmatpush1.bf16.msra.mxu0 0
        %1067 = vmatprep.subr.bf16.mxu0 0
        %1068 = vmatpush1.bf16.msra.mxu0 0
        %1069 = vmatprep.mubr.bf16.mxu0 0
        %1070 = vmatmul.mubr.bf16.gmra.mrb[0].mxu0 %v984
        %v1071 = vpop.f32.mrb[0].mxu0
        %v1072 = vadd.f32 0.0, %v1071
        %v1073 = vpop.f32.mrb[0].mxu0
        %v1074 = vpop.f32.mrb[0].mxu0
        %v1075 = vadd.f32 0.0, %v1074
        %v1076 = vpop.f32.mrb[0].mxu0
        %1077 = vmatprep.mubr.bf16.mxu0 0
        %1078 = vmatmul.mubr.bf16.gmra.mrb[0].mxu0 %v987
        %v1079 = vpop.f32.mrb[0].mxu0
        %v1080 = vadd.f32 0.0, %v1079
        %v1081 = vpop.f32.mrb[0].mxu0
        %v1082 = vpop.f32.mrb[0].mxu0
        %v1083 = vadd.f32 0.0, %v1082
        %v1084 = vpop.f32.mrb[0].mxu0
        %1085 = vmatprep.mubr.bf16.mxu0 0
        %1086 = vmatmul.mubr.bf16.gmra.mrb[0].mxu0 %v990
        %v1087 = vpop.f32.mrb[0].mxu0
        %v1088 = vadd.f32 0.0, %v1087
        %v1089 = vpop.f32.mrb[0].mxu0
        %v1090 = vpop.f32.mrb[0].mxu0
        %v1091 = vadd.f32 0.0, %v1090
        %v1092 = vpop.f32.mrb[0].mxu0
        %1093 = vmatprep.mubr.bf16.mxu0 0
        %1094 = vmatmul.mubr.bf16.gmra.mrb[0].mxu0 %v993
        %v1095 = vpop.f32.mrb[0].mxu0
        %v1096 = vadd.f32 0.0, %v1095
        %v1097 = vpop.f32.mrb[0].mxu0
        %v1098 = vpop.f32.mrb[0].mxu0
        %v1099 = vadd.f32 0.0, %v1098
        %v1100 = vpop.f32.mrb[0].mxu0
        %1101 = vmatprep.mubr.bf16.mxu0 0
        %1102 = vmatmul.mubr.bf16.gmra.mrb[0].mxu0 %v996
        %v1103 = vpop.f32.mrb[0].mxu0
        %v1104 = vadd.f32 0.0, %v1103
        %v1105 = vpop.f32.mrb[0].mxu0
        %v1106 = vpop.f32.mrb[0].mxu0
        %v1107 = vadd.f32 0.0, %v1106
        %v1108 = vpop.f32.mrb[0].mxu0
        %1109 = vmatprep.mubr.bf16.mxu0 0
        %1110 = vmatmul.mubr.bf16.gmra.mrb[0].mxu0 %v999
        %v1111 = vpop.f32.mrb[0].mxu0
        %v1112 = vadd.f32 0.0, %v1111
        %v1113 = vpop.f32.mrb[0].mxu0
        %v1114 = vpop.f32.mrb[0].mxu0
        %v1115 = vadd.f32 0.0, %v1114
        %v1116 = vpop.f32.mrb[0].mxu0
        %1117 = vmatprep.mubr.bf16.mxu0 0
        %1118 = vmatmul.mubr.bf16.gmra.mrb[0].mxu0 %v1002
        %v1119 = vpop.f32.mrb[0].mxu0
        %v1120 = vadd.f32 0.0, %v1119
        %v1121 = vpop.f32.mrb[0].mxu0
        %v1122 = vpop.f32.mrb[0].mxu0
        %v1123 = vadd.f32 0.0, %v1122
        %v1124 = vpop.f32.mrb[0].mxu0
        %1125 = vmatprep.mubr.bf16.mxu0 0
        %1126 = vmatmul.mubr.bf16.gmra.mrb[0].mxu0 %v1005
        %v1127 = vpop.f32.mrb[0].mxu0
        %v1128 = vadd.f32 0.0, %v1127
        %v1129 = vpop.f32.mrb[0].mxu0
        %v1130 = vpop.f32.mrb[0].mxu0
        %v1131 = vadd.f32 0.0, %v1130
        %v1132 = vpop.f32.mrb[0].mxu0
        %1133 = vmatprep.mubr.bf16.mxu0 0
        %1134 = vmatmul.mubr.bf16.gmra.mrb[0].mxu0 %v1008
        %v1135 = vpop.f32.mrb[0].mxu0
        %v1136 = vadd.f32 0.0, %v1135
        %v1137 = vpop.f32.mrb[0].mxu0
        %v1138 = vpop.f32.mrb[0].mxu0
        %v1139 = vadd.f32 0.0, %v1138
        %v1140 = vpop.f32.mrb[0].mxu0
        %1141 = vmatprep.mubr.bf16.mxu0 0
        %1142 = vmatmul.mubr.bf16.gmra.mrb[0].mxu0 %v1011
        %v1143 = vpop.f32.mrb[0].mxu0
        %v1144 = vadd.f32 0.0, %v1143
        %v1145 = vpop.f32.mrb[0].mxu0
        %v1146 = vpop.f32.mrb[0].mxu0
        %v1147 = vadd.f32 0.0, %v1146
        %v1148 = vpop.f32.mrb[0].mxu0
        %1149 = vmatprep.mubr.bf16.mxu0 0
        %1150 = vmatmul.mubr.bf16.gmra.mrb[0].mxu0 %v1014
        %v1151 = vpop.f32.mrb[0].mxu0
        %v1152 = vadd.f32 0.0, %v1151
        %v1153 = vpop.f32.mrb[0].mxu0
        %v1154 = vpop.f32.mrb[0].mxu0
        %v1155 = vadd.f32 0.0, %v1154
        %v1156 = vpop.f32.mrb[0].mxu0
        %1157 = vmatprep.mubr.bf16.mxu0 0
        %1158 = vmatmul.mubr.bf16.gmra.mrb[0].mxu0 %v1017
        %v1159 = vpop.f32.mrb[0].mxu0
        %v1160 = vadd.f32 0.0, %v1159
        %v1161 = vpop.f32.mrb[0].mxu0
        %v1162 = vpop.f32.mrb[0].mxu0
        %v1163 = vadd.f32 0.0, %v1162
        %v1164 = vpop.f32.mrb[0].mxu0
        %1165 = vmatprep.mubr.bf16.mxu0 0
        %1166 = vmatmul.mubr.bf16.gmra.mrb[0].mxu0 %v1020
        %v1167 = vpop.f32.mrb[0].mxu0
        %v1168 = vadd.f32 0.0, %v1167
        %v1169 = vpop.f32.mrb[0].mxu0
        %v1170 = vpop.f32.mrb[0].mxu0
        %v1171 = vadd.f32 0.0, %v1170
        %v1172 = vpop.f32.mrb[0].mxu0
        %1173 = vmatprep.mubr.bf16.mxu0 0
        %1174 = vmatmul.mubr.bf16.gmra.mrb[0].mxu0 %v1023
        %v1175 = vpop.f32.mrb[0].mxu0
        %v1176 = vadd.f32 0.0, %v1175
        %v1177 = vpop.f32.mrb[0].mxu0
        %v1178 = vpop.f32.mrb[0].mxu0
        %v1179 = vadd.f32 0.0, %v1178
        %v1180 = vpop.f32.mrb[0].mxu0
        %1181 = vmatprep.mubr.bf16.mxu0 0
        %1182 = vmatmul.mubr.bf16.gmra.mrb[0].mxu0 %v1026
        %v1183 = vpop.f32.mrb[0].mxu0
        %v1184 = vadd.f32 0.0, %v1183
        %v1185 = vpop.f32.mrb[0].mxu0
        %v1186 = vpop.f32.mrb[0].mxu0
        %v1187 = vadd.f32 0.0, %v1186
        %v1188 = vpop.f32.mrb[0].mxu0
        %1189 = vmatprep.mubr.bf16.mxu0 0
        %1190 = vmatmul.mubr.bf16.gmra.mrb[0].mxu0 %v1029
        %v1191 = vpop.f32.mrb[0].mxu0
        %v1192 = vadd.f32 0.0, %v1191
        %v1193 = vpop.f32.mrb[0].mxu0
        %v1194 = vpop.f32.mrb[0].mxu0
        %v1195 = vadd.f32 0.0, %v1194
        %v1196 = vpop.f32.mrb[0].mxu0
        %1197 = vmatprep.mubr.bf16.mxu0 0
        %1198 = vmatmul.mubr.bf16.gmra.mrb[0].mxu0 %v1032
        %v1199 = vpop.f32.mrb[0].mxu0
        %v1200 = vadd.f32 0.0, %v1199
        %v1201 = vpop.f32.mrb[0].mxu0
        %v1202 = vpop.f32.mrb[0].mxu0
        %v1203 = vadd.f32 0.0, %v1202
        %v1204 = vpop.f32.mrb[0].mxu0
        %1205 = vmatprep.mubr.bf16.mxu0 0
        %1206 = vmatmul.mubr.bf16.gmra.mrb[0].mxu0 %v1035
        %v1207 = vpop.f32.mrb[0].mxu0
        %v1208 = vadd.f32 0.0, %v1207
        %v1209 = vpop.f32.mrb[0].mxu0
        %v1210 = vpop.f32.mrb[0].mxu0
        %v1211 = vadd.f32 0.0, %v1210
        %v1212 = vpop.f32.mrb[0].mxu0
        %1213 = vdwg.mxu0
        %v1214 = vld [vmem:[#allocation2] sm:$0xff]
        %v1215 = vld [vmem:[#allocation2 + $0x8] sm:$0xff]
        %v1216 = vld [vmem:[#allocation2 + $0x10] sm:$0xff]
        %v1217 = vld [vmem:[#allocation2 + $0x18] sm:$0xff]
        %v1218 = vld [vmem:[#allocation2 + $0x20] sm:$0xff]
        %v1219 = vld [vmem:[#allocation2 + $0x28] sm:$0xff]
        %v1220 = vld [vmem:[#allocation2 + $0x30] sm:$0xff]
        %v1221 = vld [vmem:[#allocation2 + $0x38] sm:$0xff]
        %v1222 = vld [vmem:[#allocation2 + $0x40] sm:$0xff]
        %v1223 = vld [vmem:[#allocation2 + $0x48] sm:$0xff]
        %v1224 = vld [vmem:[#allocation2 + $0x50] sm:$0xff]
        %v1225 = vld [vmem:[#allocation2 + $0x58] sm:$0xff]
        %v1226 = vld [vmem:[#allocation2 + $0x60] sm:$0xff]
        %v1227 = vld [vmem:[#allocation2 + $0x68] sm:$0xff]
        %v1228 = vld [vmem:[#allocation2 + $0x70] sm:$0xff]
        %v1229 = vld [vmem:[#allocation2 + $0x78] sm:$0xff]
        %v1230 = vld [vmem:[#allocation2 + $0x80] sm:$0xff]
        %v1231 = vld [vmem:[#allocation2 + $0x88] sm:$0xff]
        %v1232 = vld [vmem:[#allocation2 + $0x90] sm:$0xff]
        %v1233 = vld [vmem:[#allocation2 + $0x98] sm:$0xff]
        %v1234 = vld [vmem:[#allocation2 + $0xa0] sm:$0xff]
        %v1235 = vld [vmem:[#allocation2 + $0xa8] sm:$0xff]
        %v1236 = vld [vmem:[#allocation2 + $0xb0] sm:$0xff]
        %v1237 = vld [vmem:[#allocation2 + $0xb8] sm:$0xff]
        %v1238 = vld [vmem:[#allocation2 + $0xc0] sm:$0xff]
        %v1239 = vld [vmem:[#allocation2 + $0xc8] sm:$0xff]
        %v1240 = vld [vmem:[#allocation2 + $0xd0] sm:$0xff]
        %v1241 = vld [vmem:[#allocation2 + $0xd8] sm:$0xff]
        %v1242 = vld [vmem:[#allocation2 + $0xe0] sm:$0xff]
        %v1243 = vld [vmem:[#allocation2 + $0xe8] sm:$0xff]
        %v1244 = vld [vmem:[#allocation2 + $0xf0] sm:$0xff]
        %v1245 = vld [vmem:[#allocation2 + $0xf8] sm:$0xff]
        %v1246 = vld [vmem:[#allocation2 + $0x100] sm:$0xff]
        %v1247 = vld [vmem:[#allocation2 + $0x108] sm:$0xff]
        %v1248 = vld [vmem:[#allocation2 + $0x110] sm:$0xff]
        %v1249 = vld [vmem:[#allocation2 + $0x118] sm:$0x3f]
        %v1250 = vadd.f32 %v1214, %v1072
        %v1251 = vadd.f32 %v1215, %v1075
        %v1252 = vadd.f32 %v1216, %v1080
        %v1253 = vadd.f32 %v1217, %v1083
        %v1254 = vadd.f32 %v1218, %v1088
        %v1255 = vadd.f32 %v1219, %v1091
        %v1256 = vadd.f32 %v1220, %v1096
        %v1257 = vadd.f32 %v1221, %v1099
        %v1258 = vadd.f32 %v1222, %v1104
        %v1259 = vadd.f32 %v1223, %v1107
        %v1260 = vadd.f32 %v1224, %v1112
        %v1261 = vadd.f32 %v1225, %v1115
        %v1262 = vadd.f32 %v1226, %v1120
        %v1263 = vadd.f32 %v1227, %v1123
        %v1264 = vadd.f32 %v1228, %v1128
        %v1265 = vadd.f32 %v1229, %v1131
        %v1266 = vadd.f32 %v1230, %v1136
        %v1267 = vadd.f32 %v1231, %v1139
        %v1268 = vadd.f32 %v1232, %v1144
        %v1269 = vadd.f32 %v1233, %v1147
        %v1270 = vadd.f32 %v1234, %v1152
        %v1271 = vadd.f32 %v1235, %v1155
        %v1272 = vadd.f32 %v1236, %v1160
        %v1273 = vadd.f32 %v1237, %v1163
        %v1274 = vadd.f32 %v1238, %v1168
        %v1275 = vadd.f32 %v1239, %v1171
        %v1276 = vadd.f32 %v1240, %v1176
        %v1277 = vadd.f32 %v1241, %v1179
        %v1278 = vadd.f32 %v1242, %v1184
        %v1279 = vadd.f32 %v1243, %v1187
        %v1280 = vadd.f32 %v1244, %v1192
        %v1281 = vadd.f32 %v1245, %v1195
        %v1282 = vadd.f32 %v1246, %v1200
        %v1283 = vadd.f32 %v1247, %v1203
        %v1284 = vadd.f32 %v1248, %v1208
        %v1285 = vadd.f32 %v1249, %v1211
        %1286 = vst.msk [vmem:[#allocation2] sm:$0xff] %vm427, %v1250
        %1287 = vst.msk [vmem:[#allocation2 + $0x8] sm:$0xff] %vm427, %v1251
        %1288 = vst.msk [vmem:[#allocation2 + $0x10] sm:$0xff] %vm427, %v1252
        %1289 = vst.msk [vmem:[#allocation2 + $0x18] sm:$0xff] %vm427, %v1253
        %1290 = vst.msk [vmem:[#allocation2 + $0x20] sm:$0xff] %vm427, %v1254
        %1291 = vst.msk [vmem:[#allocation2 + $0x28] sm:$0xff] %vm427, %v1255
        %1292 = vst.msk [vmem:[#allocation2 + $0x30] sm:$0xff] %vm427, %v1256
        %1293 = vst.msk [vmem:[#allocation2 + $0x38] sm:$0xff] %vm427, %v1257
        %1294 = vst.msk [vmem:[#allocation2 + $0x40] sm:$0xff] %vm427, %v1258
        %1295 = vst.msk [vmem:[#allocation2 + $0x48] sm:$0xff] %vm427, %v1259
        %1296 = vst.msk [vmem:[#allocation2 + $0x50] sm:$0xff] %vm427, %v1260
        %1297 = vst.msk [vmem:[#allocation2 + $0x58] sm:$0xff] %vm427, %v1261
        %1298 = vst.msk [vmem:[#allocation2 + $0x60] sm:$0xff] %vm427, %v1262
        %1299 = vst.msk [vmem:[#allocation2 + $0x68] sm:$0xff] %vm427, %v1263
        %1300 = vst.msk [vmem:[#allocation2 + $0x70] sm:$0xff] %vm427, %v1264
        %1301 = vst.msk [vmem:[#allocation2 + $0x78] sm:$0xff] %vm427, %v1265
        %1302 = vst.msk [vmem:[#allocation2 + $0x80] sm:$0xff] %vm427, %v1266
        %1303 = vst.msk [vmem:[#allocation2 + $0x88] sm:$0xff] %vm427, %v1267
        %1304 = vst.msk [vmem:[#allocation2 + $0x90] sm:$0xff] %vm427, %v1268
        %1305 = vst.msk [vmem:[#allocation2 + $0x98] sm:$0xff] %vm427, %v1269
        %1306 = vst.msk [vmem:[#allocation2 + $0xa0] sm:$0xff] %vm427, %v1270
        %1307 = vst.msk [vmem:[#allocation2 + $0xa8] sm:$0xff] %vm427, %v1271
        %1308 = vst.msk [vmem:[#allocation2 + $0xb0] sm:$0xff] %vm427, %v1272
        %1309 = vst.msk [vmem:[#allocation2 + $0xb8] sm:$0xff] %vm427, %v1273
        %1310 = vst.msk [vmem:[#allocation2 + $0xc0] sm:$0xff] %vm427, %v1274
        %1311 = vst.msk [vmem:[#allocation2 + $0xc8] sm:$0xff] %vm427, %v1275
        %1312 = vst.msk [vmem:[#allocation2 + $0xd0] sm:$0xff] %vm427, %v1276
        %1313 = vst.msk [vmem:[#allocation2 + $0xd8] sm:$0xff] %vm427, %v1277
        %1314 = vst.msk [vmem:[#allocation2 + $0xe0] sm:$0xff] %vm427, %v1278
        %1315 = vst.msk [vmem:[#allocation2 + $0xe8] sm:$0xff] %vm427, %v1279
        %1316 = vst.msk [vmem:[#allocation2 + $0xf0] sm:$0xff] %vm427, %v1280
        %1317 = vst.msk [vmem:[#allocation2 + $0xf8] sm:$0xff] %vm427, %v1281
        %1318 = vst.msk [vmem:[#allocation2 + $0x100] sm:$0xff] %vm427, %v1282
        %1319 = vst.msk [vmem:[#allocation2 + $0x108] sm:$0xff] %vm427, %v1283
        %1320 = vst.msk [vmem:[#allocation2 + $0x110] sm:$0xff] %vm427, %v1284
        %1321 = vst.msk [vmem:[#allocation2 + $0x118] sm:$0x3f] %vm694, %v1285
        %v1322 = vld [vmem:[%s276] sm:$0xe]
        %v1323 = vld [vmem:[%s276 + $0x4] sm:$0xf]
        %v1324 = vld [vmem:[%s276 + $0x8] sm:$0xf]
        %v1325 = vld [vmem:[%s276 + $0xc] sm:$0xf]
        %v1326 = vld [vmem:[%s276 + $0x10] sm:$0xf]
        %v1327 = vld [vmem:[%s276 + $0x14] sm:$0xf]
        %v1328 = vld [vmem:[%s276 + $0x18] sm:$0xf]
        %v1329 = vld [vmem:[%s276 + $0x1c] sm:$0xf]
        %v1330 = vld [vmem:[%s276 + $0x20] sm:$0xf]
        %v1331 = vld [vmem:[%s276 + $0x24] sm:$0xf]
        %v1332 = vld [vmem:[%s276 + $0x28] sm:$0xf]
        %v1333 = vld [vmem:[%s276 + $0x2c] sm:$0xf]
        %v1334 = vld [vmem:[%s276 + $0x30] sm:$0xf]
        %v1335 = vld [vmem:[%s276 + $0x34] sm:$0xf]
        %v1336 = vld [vmem:[%s276 + $0x38] sm:$0xf]
        %v1337 = vld [vmem:[%s276 + $0x3c] sm:$0xf]
        %v1338 = vld [vmem:[%s276 + $0x40] sm:$0xf]
        %v1339 = vld [vmem:[%s276 + $0x44] sm:$0xf]
        %v1340 = vld [vmem:[%s276 + $0x48] sm:$0xf]
        %v1341 = vld [vmem:[%s276 + $0x4c] sm:$0xf]
        %v1342 = vld [vmem:[%s276 + $0x50] sm:$0xf]
        %v1343 = vld [vmem:[%s276 + $0x54] sm:$0xf]
        %v1344 = vld [vmem:[%s276 + $0x58] sm:$0xf]
        %v1345 = vld [vmem:[%s276 + $0x5c] sm:$0xf]
        %v1346 = vld [vmem:[%s276 + $0x60] sm:$0xf]
        %v1347 = vld [vmem:[%s276 + $0x64] sm:$0xf]
        %v1348 = vld [vmem:[%s276 + $0x68] sm:$0xf]
        %v1349 = vld [vmem:[%s276 + $0x6c] sm:$0xf]
        %v1350 = vld [vmem:[%s276 + $0x70] sm:$0xf]
        %v1351 = vld [vmem:[%s276 + $0x74] sm:$0xf]
        %v1352 = vld [vmem:[%s276 + $0x78] sm:$0xf]
        %v1353 = vld [vmem:[%s276 + $0x7c] sm:$0xf]
        %v1354 = vld [vmem:[%s276 + $0x80] sm:$0xf]
        %v1355 = vld [vmem:[%s276 + $0x84] sm:$0xf]
        %v1356 = vld [vmem:[%s276 + $0x88] sm:$0xf]
        %v1357 = vld [vmem:[%s276 + $0x8c] sm:$0xf]
        %s1358 = scalar_lea.vmem %s1, 32
        %v1359 = vld [vmem:[%s1358] sm:$0xf]
        %v1360 = vld [vmem:[%s1358 + $0x4] sm:$0xf]
        %v1361 = vld [vmem:[%s1358 + $0x8] sm:$0xf]
        %v1362 = vld [vmem:[%s1358 + $0xc] sm:$0xf]
        %v1399 = vunpack.c.l.b16 %v1322
        %v1400 = vunpack.c.l.b16 %v1323
        %v1401 = vunpack.c.l.b16 %v1324
        %v1402 = vunpack.c.l.b16 %v1325
        %v1403 = vunpack.c.l.b16 %v1326
        %v1404 = vunpack.c.l.b16 %v1327
        %v1405 = vunpack.c.l.b16 %v1328
        %v1406 = vunpack.c.l.b16 %v1329
        %v1407 = vunpack.c.l.b16 %v1330
        %v1408 = vunpack.c.l.b16 %v1331
        %v1409 = vunpack.c.l.b16 %v1332
        %v1410 = vunpack.c.l.b16 %v1333
        %v1411 = vunpack.c.l.b16 %v1334
        %v1412 = vunpack.c.l.b16 %v1335
        %v1413 = vunpack.c.l.b16 %v1336
        %v1414 = vunpack.c.l.b16 %v1337
        %v1415 = vunpack.c.l.b16 %v1338
        %v1416 = vunpack.c.l.b16 %v1339
        %v1417 = vunpack.c.l.b16 %v1340
        %v1418 = vunpack.c.l.b16 %v1341
        %v1419 = vunpack.c.l.b16 %v1342
        %v1420 = vunpack.c.l.b16 %v1343
        %v1421 = vunpack.c.l.b16 %v1344
        %v1422 = vunpack.c.l.b16 %v1345
        %v1423 = vunpack.c.l.b16 %v1346
        %v1424 = vunpack.c.l.b16 %v1347
        %v1425 = vunpack.c.l.b16 %v1348
        %v1426 = vunpack.c.l.b16 %v1349
        %v1427 = vunpack.c.l.b16 %v1350
        %v1428 = vunpack.c.l.b16 %v1351
        %v1429 = vunpack.c.l.b16 %v1352
        %v1430 = vunpack.c.l.b16 %v1353
        %v1431 = vunpack.c.l.b16 %v1354
        %v1432 = vunpack.c.l.b16 %v1355
        %v1433 = vunpack.c.l.b16 %v1356
        %v1434 = vunpack.c.l.b16 %v1357
        %v1435 = vpack.c.b16 %v1400, %v1399
        %v1436 = vpack.c.b16 %v1402, %v1401
        %v1437 = vpack.c.b16 %v1404, %v1403
        %v1438 = vpack.c.b16 %v1406, %v1405
        %v1439 = vpack.c.b16 %v1408, %v1407
        %v1440 = vpack.c.b16 %v1410, %v1409
        %v1441 = vpack.c.b16 %v1412, %v1411
        %v1442 = vpack.c.b16 %v1414, %v1413
        %v1443 = vpack.c.b16 %v1416, %v1415
        %v1444 = vpack.c.b16 %v1418, %v1417
        %v1445 = vpack.c.b16 %v1420, %v1419
        %v1446 = vpack.c.b16 %v1422, %v1421
        %v1447 = vpack.c.b16 %v1424, %v1423
        %v1448 = vpack.c.b16 %v1426, %v1425
        %v1449 = vpack.c.b16 %v1428, %v1427
        %v1450 = vpack.c.b16 %v1430, %v1429
        %v1451 = vpack.c.b16 %v1432, %v1431
        %v1452 = vpack.c.b16 %v1434, %v1433
        %vm1453 = vcmask 1046528
        %v1454 = vrot.slane %v1435, 1
        %v1455 = vrot.slane %v1436, 1
        %v1456 = vsel %vm1453, %v1454, %v1455
        %v1457 = vrot.slane %v1437, 1
        %v1458 = vsel %vm1453, %v1455, %v1457
        %v1459 = vrot.slane %v1438, 1
        %v1460 = vsel %vm1453, %v1457, %v1459
        %v1461 = vrot.slane %v1439, 1
        %v1462 = vsel %vm1453, %v1459, %v1461
        %v1463 = vrot.slane %v1440, 1
        %v1464 = vsel %vm1453, %v1461, %v1463
        %v1465 = vrot.slane %v1441, 1
        %v1466 = vsel %vm1453, %v1463, %v1465
        %v1467 = vrot.slane %v1442, 1
        %v1468 = vsel %vm1453, %v1465, %v1467
        %v1469 = vrot.slane %v1443, 1
        %v1470 = vsel %vm1453, %v1467, %v1469
        %v1471 = vrot.slane %v1444, 1
        %v1472 = vsel %vm1453, %v1469, %v1471
        %v1473 = vrot.slane %v1445, 1
        %v1474 = vsel %vm1453, %v1471, %v1473
        %v1475 = vrot.slane %v1446, 1
        %v1476 = vsel %vm1453, %v1473, %v1475
        %v1477 = vrot.slane %v1447, 1
        %v1478 = vsel %vm1453, %v1475, %v1477
        %v1479 = vrot.slane %v1448, 1
        %v1480 = vsel %vm1453, %v1477, %v1479
        %v1481 = vrot.slane %v1449, 1
        %v1482 = vsel %vm1453, %v1479, %v1481
        %v1483 = vrot.slane %v1450, 1
        %v1484 = vsel %vm1453, %v1481, %v1483
        %v1485 = vrot.slane %v1451, 1
        %v1486 = vsel %vm1453, %v1483, %v1485
        %v1487 = vrot.slane %v1452, 1
        %v1488 = vsel %vm1453, %v1485, %v1487
        %v1493 = vunpack.c.l.b16 %v1359
        %v1494 = vunpack.c.l.b16 %v1360
        %v1495 = vunpack.c.l.b16 %v1361
        %v1496 = vunpack.c.l.b16 %v1362
        %v1497 = vpack.c.b16 %v1494, %v1493
        %v1498 = vpack.c.b16 %v1496, %v1495
        %v1502 = vsel %vm427, %v1456, 0
        %v1505 = vsel %vm427, %v1458, 0
        %v1508 = vsel %vm427, %v1460, 0
        %v1511 = vsel %vm427, %v1462, 0
        %v1514 = vsel %vm427, %v1464, 0
        %v1517 = vsel %vm427, %v1466, 0
        %v1520 = vsel %vm427, %v1468, 0
        %v1523 = vsel %vm427, %v1470, 0
        %v1526 = vsel %vm427, %v1472, 0
        %v1529 = vsel %vm427, %v1474, 0
        %v1532 = vsel %vm427, %v1476, 0
        %v1535 = vsel %vm427, %v1478, 0
        %v1538 = vsel %vm427, %v1480, 0
        %v1541 = vsel %vm427, %v1482, 0
        %v1544 = vsel %vm427, %v1484, 0
        %v1547 = vsel %vm427, %v1486, 0
        %v1550 = vsel %vm427, %v1488, 0
        %v1553 = vsel %vm427, %v1487, 0
        %1555 = vmatprep.subr.bf16.mxu0 0
        %1556 = vmatpush1.bf16.msra.mxu0 %v1497
        %1557 = vmatprep.subr.bf16.mxu0 0
        %1558 = vmatpush1.bf16.msra.mxu0 %v1498
        %1559 = vmatprep.subr.bf16.mxu0 0
        %1560 = vmatpush1.bf16.msra.mxu0 0
        %1561 = vmatprep.subr.bf16.mxu0 0
        %1562 = vmatpush1.bf16.msra.mxu0 0
        %1563 = vmatprep.subr.bf16.mxu0 0
        %1564 = vmatpush1.bf16.msra.mxu0 0
        %1565 = vmatprep.subr.bf16.mxu0 0
        %1566 = vmatpush1.bf16.msra.mxu0 0
        %1567 = vmatprep.subr.bf16.mxu0 0
        %1568 = vmatpush1.bf16.msra.mxu0 0
        %1569 = vmatprep.subr.bf16.mxu0 0
        %1570 = vmatpush1.bf16.msra.mxu0 0
        %1571 = vmatprep.subr.bf16.mxu0 0
        %1572 = vmatpush1.bf16.msra.mxu0 0
        %1573 = vmatprep.subr.bf16.mxu0 0
        %1574 = vmatpush1.bf16.msra.mxu0 0
        %1575 = vmatprep.subr.bf16.mxu0 0
        %1576 = vmatpush1.bf16.msra.mxu0 0
        %1577 = vmatprep.subr.bf16.mxu0 0
        %1578 = vmatpush1.bf16.msra.mxu0 0
        %1579 = vmatprep.subr.bf16.mxu0 0
        %1580 = vmatpush1.bf16.msra.mxu0 0
        %1581 = vmatprep.subr.bf16.mxu0 0
        %1582 = vmatpush1.bf16.msra.mxu0 0
        %1583 = vmatprep.subr.bf16.mxu0 0
        %1584 = vmatpush1.bf16.msra.mxu0 0
        %1585 = vmatprep.subr.bf16.mxu0 0
        %1586 = vmatpush1.bf16.msra.mxu0 0
        %1587 = vmatprep.mubr.bf16.mxu0 0
        %1588 = vmatmul.mubr.bf16.gmra.mrb[0].mxu0 %v1502
        %v1589 = vpop.f32.mrb[0].mxu0
        %v1590 = vadd.f32 0.0, %v1589
        %v1591 = vpop.f32.mrb[0].mxu0
        %v1592 = vpop.f32.mrb[0].mxu0
        %v1593 = vadd.f32 0.0, %v1592
        %v1594 = vpop.f32.mrb[0].mxu0
        %1595 = vmatprep.mubr.bf16.mxu0 0
        %1596 = vmatmul.mubr.bf16.gmra.mrb[0].mxu0 %v1505
        %v1597 = vpop.f32.mrb[0].mxu0
        %v1598 = vadd.f32 0.0, %v1597
        %v1599 = vpop.f32.mrb[0].mxu0
        %v1600 = vpop.f32.mrb[0].mxu0
        %v1601 = vadd.f32 0.0, %v1600
        %v1602 = vpop.f32.mrb[0].mxu0
        %1603 = vmatprep.mubr.bf16.mxu0 0
        %1604 = vmatmul.mubr.bf16.gmra.mrb[0].mxu0 %v1508
        %v1605 = vpop.f32.mrb[0].mxu0
        %v1606 = vadd.f32 0.0, %v1605
        %v1607 = vpop.f32.mrb[0].mxu0
        %v1608 = vpop.f32.mrb[0].mxu0
        %v1609 = vadd.f32 0.0, %v1608
        %v1610 = vpop.f32.mrb[0].mxu0
        %1611 = vmatprep.mubr.bf16.mxu0 0
        %1612 = vmatmul.mubr.bf16.gmra.mrb[0].mxu0 %v1511
        %v1613 = vpop.f32.mrb[0].mxu0
        %v1614 = vadd.f32 0.0, %v1613
        %v1615 = vpop.f32.mrb[0].mxu0
        %v1616 = vpop.f32.mrb[0].mxu0
        %v1617 = vadd.f32 0.0, %v1616
        %v1618 = vpop.f32.mrb[0].mxu0
        %1619 = vmatprep.mubr.bf16.mxu0 0
        %1620 = vmatmul.mubr.bf16.gmra.mrb[0].mxu0 %v1514
        %v1621 = vpop.f32.mrb[0].mxu0
        %v1622 = vadd.f32 0.0, %v1621
        %v1623 = vpop.f32.mrb[0].mxu0
        %v1624 = vpop.f32.mrb[0].mxu0
        %v1625 = vadd.f32 0.0, %v1624
        %v1626 = vpop.f32.mrb[0].mxu0
        %1627 = vmatprep.mubr.bf16.mxu0 0
        %1628 = vmatmul.mubr.bf16.gmra.mrb[0].mxu0 %v1517
        %v1629 = vpop.f32.mrb[0].mxu0
        %v1630 = vadd.f32 0.0, %v1629
        %v1631 = vpop.f32.mrb[0].mxu0
        %v1632 = vpop.f32.mrb[0].mxu0
        %v1633 = vadd.f32 0.0, %v1632
        %v1634 = vpop.f32.mrb[0].mxu0
        %1635 = vmatprep.mubr.bf16.mxu0 0
        %1636 = vmatmul.mubr.bf16.gmra.mrb[0].mxu0 %v1520
        %v1637 = vpop.f32.mrb[0].mxu0
        %v1638 = vadd.f32 0.0, %v1637
        %v1639 = vpop.f32.mrb[0].mxu0
        %v1640 = vpop.f32.mrb[0].mxu0
        %v1641 = vadd.f32 0.0, %v1640
        %v1642 = vpop.f32.mrb[0].mxu0
        %1643 = vmatprep.mubr.bf16.mxu0 0
        %1644 = vmatmul.mubr.bf16.gmra.mrb[0].mxu0 %v1523
        %v1645 = vpop.f32.mrb[0].mxu0
        %v1646 = vadd.f32 0.0, %v1645
        %v1647 = vpop.f32.mrb[0].mxu0
        %v1648 = vpop.f32.mrb[0].mxu0
        %v1649 = vadd.f32 0.0, %v1648
        %v1650 = vpop.f32.mrb[0].mxu0
        %1651 = vmatprep.mubr.bf16.mxu0 0
        %1652 = vmatmul.mubr.bf16.gmra.mrb[0].mxu0 %v1526
        %v1653 = vpop.f32.mrb[0].mxu0
        %v1654 = vadd.f32 0.0, %v1653
        %v1655 = vpop.f32.mrb[0].mxu0
        %v1656 = vpop.f32.mrb[0].mxu0
        %v1657 = vadd.f32 0.0, %v1656
        %v1658 = vpop.f32.mrb[0].mxu0
        %1659 = vmatprep.mubr.bf16.mxu0 0
        %1660 = vmatmul.mubr.bf16.gmra.mrb[0].mxu0 %v1529
        %v1661 = vpop.f32.mrb[0].mxu0
        %v1662 = vadd.f32 0.0, %v1661
        %v1663 = vpop.f32.mrb[0].mxu0
        %v1664 = vpop.f32.mrb[0].mxu0
        %v1665 = vadd.f32 0.0, %v1664
        %v1666 = vpop.f32.mrb[0].mxu0
        %1667 = vmatprep.mubr.bf16.mxu0 0
        %1668 = vmatmul.mubr.bf16.gmra.mrb[0].mxu0 %v1532
        %v1669 = vpop.f32.mrb[0].mxu0
        %v1670 = vadd.f32 0.0, %v1669
        %v1671 = vpop.f32.mrb[0].mxu0
        %v1672 = vpop.f32.mrb[0].mxu0
        %v1673 = vadd.f32 0.0, %v1672
        %v1674 = vpop.f32.mrb[0].mxu0
        %1675 = vmatprep.mubr.bf16.mxu0 0
        %1676 = vmatmul.mubr.bf16.gmra.mrb[0].mxu0 %v1535
        %v1677 = vpop.f32.mrb[0].mxu0
        %v1678 = vadd.f32 0.0, %v1677
        %v1679 = vpop.f32.mrb[0].mxu0
        %v1680 = vpop.f32.mrb[0].mxu0
        %v1681 = vadd.f32 0.0, %v1680
        %v1682 = vpop.f32.mrb[0].mxu0
        %1683 = vmatprep.mubr.bf16.mxu0 0
        %1684 = vmatmul.mubr.bf16.gmra.mrb[0].mxu0 %v1538
        %v1685 = vpop.f32.mrb[0].mxu0
        %v1686 = vadd.f32 0.0, %v1685
        %v1687 = vpop.f32.mrb[0].mxu0
        %v1688 = vpop.f32.mrb[0].mxu0
        %v1689 = vadd.f32 0.0, %v1688
        %v1690 = vpop.f32.mrb[0].mxu0
        %1691 = vmatprep.mubr.bf16.mxu0 0
        %1692 = vmatmul.mubr.bf16.gmra.mrb[0].mxu0 %v1541
        %v1693 = vpop.f32.mrb[0].mxu0
        %v1694 = vadd.f32 0.0, %v1693
        %v1695 = vpop.f32.mrb[0].mxu0
        %v1696 = vpop.f32.mrb[0].mxu0
        %v1697 = vadd.f32 0.0, %v1696
        %v1698 = vpop.f32.mrb[0].mxu0
        %1699 = vmatprep.mubr.bf16.mxu0 0
        %1700 = vmatmul.mubr.bf16.gmra.mrb[0].mxu0 %v1544
        %v1701 = vpop.f32.mrb[0].mxu0
        %v1702 = vadd.f32 0.0, %v1701
        %v1703 = vpop.f32.mrb[0].mxu0
        %v1704 = vpop.f32.mrb[0].mxu0
        %v1705 = vadd.f32 0.0, %v1704
        %v1706 = vpop.f32.mrb[0].mxu0
        %1707 = vmatprep.mubr.bf16.mxu0 0
        %1708 = vmatmul.mubr.bf16.gmra.mrb[0].mxu0 %v1547
        %v1709 = vpop.f32.mrb[0].mxu0
        %v1710 = vadd.f32 0.0, %v1709
        %v1711 = vpop.f32.mrb[0].mxu0
        %v1712 = vpop.f32.mrb[0].mxu0
        %v1713 = vadd.f32 0.0, %v1712
        %v1714 = vpop.f32.mrb[0].mxu0
        %1715 = vmatprep.mubr.bf16.mxu0 0
        %1716 = vmatmul.mubr.bf16.gmra.mrb[0].mxu0 %v1550
        %v1717 = vpop.f32.mrb[0].mxu0
        %v1718 = vadd.f32 0.0, %v1717
        %v1719 = vpop.f32.mrb[0].mxu0
        %v1720 = vpop.f32.mrb[0].mxu0
        %v1721 = vadd.f32 0.0, %v1720
        %v1722 = vpop.f32.mrb[0].mxu0
        %1723 = vmatprep.mubr.bf16.mxu0 0
        %1724 = vmatmul.mubr.bf16.gmra.mrb[0].mxu0 %v1553
        %v1725 = vpop.f32.mrb[0].mxu0
        %v1726 = vadd.f32 0.0, %v1725
        %v1727 = vpop.f32.mrb[0].mxu0
        %v1728 = vpop.f32.mrb[0].mxu0
        %v1729 = vadd.f32 0.0, %v1728
        %v1730 = vpop.f32.mrb[0].mxu0
        %1731 = vdwg.mxu0
        %v1732 = vld [vmem:[#allocation2] sm:$0xff]
        %v1733 = vld [vmem:[#allocation2 + $0x8] sm:$0xff]
        %v1734 = vld [vmem:[#allocation2 + $0x10] sm:$0xff]
        %v1735 = vld [vmem:[#allocation2 + $0x18] sm:$0xff]
        %v1736 = vld [vmem:[#allocation2 + $0x20] sm:$0xff]
        %v1737 = vld [vmem:[#allocation2 + $0x28] sm:$0xff]
        %v1738 = vld [vmem:[#allocation2 + $0x30] sm:$0xff]
        %v1739 = vld [vmem:[#allocation2 + $0x38] sm:$0xff]
        %v1740 = vld [vmem:[#allocation2 + $0x40] sm:$0xff]
        %v1741 = vld [vmem:[#allocation2 + $0x48] sm:$0xff]
        %v1742 = vld [vmem:[#allocation2 + $0x50] sm:$0xff]
        %v1743 = vld [vmem:[#allocation2 + $0x58] sm:$0xff]
        %v1744 = vld [vmem:[#allocation2 + $0x60] sm:$0xff]
        %v1745 = vld [vmem:[#allocation2 + $0x68] sm:$0xff]
        %v1746 = vld [vmem:[#allocation2 + $0x70] sm:$0xff]
        %v1747 = vld [vmem:[#allocation2 + $0x78] sm:$0xff]
        %v1748 = vld [vmem:[#allocation2 + $0x80] sm:$0xff]
        %v1749 = vld [vmem:[#allocation2 + $0x88] sm:$0xff]
        %v1750 = vld [vmem:[#allocation2 + $0x90] sm:$0xff]
        %v1751 = vld [vmem:[#allocation2 + $0x98] sm:$0xff]
        %v1752 = vld [vmem:[#allocation2 + $0xa0] sm:$0xff]
        %v1753 = vld [vmem:[#allocation2 + $0xa8] sm:$0xff]
        %v1754 = vld [vmem:[#allocation2 + $0xb0] sm:$0xff]
        %v1755 = vld [vmem:[#allocation2 + $0xb8] sm:$0xff]
        %v1756 = vld [vmem:[#allocation2 + $0xc0] sm:$0xff]
        %v1757 = vld [vmem:[#allocation2 + $0xc8] sm:$0xff]
        %v1758 = vld [vmem:[#allocation2 + $0xd0] sm:$0xff]
        %v1759 = vld [vmem:[#allocation2 + $0xd8] sm:$0xff]
        %v1760 = vld [vmem:[#allocation2 + $0xe0] sm:$0xff]
        %v1761 = vld [vmem:[#allocation2 + $0xe8] sm:$0xff]
        %v1762 = vld [vmem:[#allocation2 + $0xf0] sm:$0xff]
        %v1763 = vld [vmem:[#allocation2 + $0xf8] sm:$0xff]
        %v1764 = vld [vmem:[#allocation2 + $0x100] sm:$0xff]
        %v1765 = vld [vmem:[#allocation2 + $0x108] sm:$0xff]
        %v1766 = vld [vmem:[#allocation2 + $0x110] sm:$0xff]
        %v1767 = vld [vmem:[#allocation2 + $0x118] sm:$0x3f]
        %v1768 = vadd.f32 %v1732, %v1590
        %v1769 = vadd.f32 %v1733, %v1593
        %v1770 = vadd.f32 %v1734, %v1598
        %v1771 = vadd.f32 %v1735, %v1601
        %v1772 = vadd.f32 %v1736, %v1606
        %v1773 = vadd.f32 %v1737, %v1609
        %v1774 = vadd.f32 %v1738, %v1614
        %v1775 = vadd.f32 %v1739, %v1617
        %v1776 = vadd.f32 %v1740, %v1622
        %v1777 = vadd.f32 %v1741, %v1625
        %v1778 = vadd.f32 %v1742, %v1630
        %v1779 = vadd.f32 %v1743, %v1633
        %v1780 = vadd.f32 %v1744, %v1638
        %v1781 = vadd.f32 %v1745, %v1641
        %v1782 = vadd.f32 %v1746, %v1646
        %v1783 = vadd.f32 %v1747, %v1649
        %v1784 = vadd.f32 %v1748, %v1654
        %v1785 = vadd.f32 %v1749, %v1657
        %v1786 = vadd.f32 %v1750, %v1662
        %v1787 = vadd.f32 %v1751, %v1665
        %v1788 = vadd.f32 %v1752, %v1670
        %v1789 = vadd.f32 %v1753, %v1673
        %v1790 = vadd.f32 %v1754, %v1678
        %v1791 = vadd.f32 %v1755, %v1681
        %v1792 = vadd.f32 %v1756, %v1686
        %v1793 = vadd.f32 %v1757, %v1689
        %v1794 = vadd.f32 %v1758, %v1694
        %v1795 = vadd.f32 %v1759, %v1697
        %v1796 = vadd.f32 %v1760, %v1702
        %v1797 = vadd.f32 %v1761, %v1705
        %v1798 = vadd.f32 %v1762, %v1710
        %v1799 = vadd.f32 %v1763, %v1713
        %v1800 = vadd.f32 %v1764, %v1718
        %v1801 = vadd.f32 %v1765, %v1721
        %v1802 = vadd.f32 %v1766, %v1726
        %v1803 = vadd.f32 %v1767, %v1729
        %1804 = vst.msk [vmem:[#allocation2] sm:$0xff] %vm427, %v1768
        %1805 = vst.msk [vmem:[#allocation2 + $0x8] sm:$0xff] %vm427, %v1769
        %1806 = vst.msk [vmem:[#allocation2 + $0x10] sm:$0xff] %vm427, %v1770
        %1807 = vst.msk [vmem:[#allocation2 + $0x18] sm:$0xff] %vm427, %v1771
        %1808 = vst.msk [vmem:[#allocation2 + $0x20] sm:$0xff] %vm427, %v1772
        %1809 = vst.msk [vmem:[#allocation2 + $0x28] sm:$0xff] %vm427, %v1773
        %1810 = vst.msk [vmem:[#allocation2 + $0x30] sm:$0xff] %vm427, %v1774
        %1811 = vst.msk [vmem:[#allocation2 + $0x38] sm:$0xff] %vm427, %v1775
        %1812 = vst.msk [vmem:[#allocation2 + $0x40] sm:$0xff] %vm427, %v1776
        %1813 = vst.msk [vmem:[#allocation2 + $0x48] sm:$0xff] %vm427, %v1777
        %1814 = vst.msk [vmem:[#allocation2 + $0x50] sm:$0xff] %vm427, %v1778
        %1815 = vst.msk [vmem:[#allocation2 + $0x58] sm:$0xff] %vm427, %v1779
        %1816 = vst.msk [vmem:[#allocation2 + $0x60] sm:$0xff] %vm427, %v1780
        %1817 = vst.msk [vmem:[#allocation2 + $0x68] sm:$0xff] %vm427, %v1781
        %1818 = vst.msk [vmem:[#allocation2 + $0x70] sm:$0xff] %vm427, %v1782
        %1819 = vst.msk [vmem:[#allocation2 + $0x78] sm:$0xff] %vm427, %v1783
        %1820 = vst.msk [vmem:[#allocation2 + $0x80] sm:$0xff] %vm427, %v1784
        %1821 = vst.msk [vmem:[#allocation2 + $0x88] sm:$0xff] %vm427, %v1785
        %1822 = vst.msk [vmem:[#allocation2 + $0x90] sm:$0xff] %vm427, %v1786
        %1823 = vst.msk [vmem:[#allocation2 + $0x98] sm:$0xff] %vm427, %v1787
        %1824 = vst.msk [vmem:[#allocation2 + $0xa0] sm:$0xff] %vm427, %v1788
        %1825 = vst.msk [vmem:[#allocation2 + $0xa8] sm:$0xff] %vm427, %v1789
        %1826 = vst.msk [vmem:[#allocation2 + $0xb0] sm:$0xff] %vm427, %v1790
        %1827 = vst.msk [vmem:[#allocation2 + $0xb8] sm:$0xff] %vm427, %v1791
        %1828 = vst.msk [vmem:[#allocation2 + $0xc0] sm:$0xff] %vm427, %v1792
        %1829 = vst.msk [vmem:[#allocation2 + $0xc8] sm:$0xff] %vm427, %v1793
        %1830 = vst.msk [vmem:[#allocation2 + $0xd0] sm:$0xff] %vm427, %v1794
        %1831 = vst.msk [vmem:[#allocation2 + $0xd8] sm:$0xff] %vm427, %v1795
        %1832 = vst.msk [vmem:[#allocation2 + $0xe0] sm:$0xff] %vm427, %v1796
        %1833 = vst.msk [vmem:[#allocation2 + $0xe8] sm:$0xff] %vm427, %v1797
        %1834 = vst.msk [vmem:[#allocation2 + $0xf0] sm:$0xff] %vm427, %v1798
        %1835 = vst.msk [vmem:[#allocation2 + $0xf8] sm:$0xff] %vm427, %v1799
        %1836 = vst.msk [vmem:[#allocation2 + $0x100] sm:$0xff] %vm427, %v1800
        %1837 = vst.msk [vmem:[#allocation2 + $0x108] sm:$0xff] %vm427, %v1801
        %1838 = vst.msk [vmem:[#allocation2 + $0x110] sm:$0xff] %vm427, %v1802
        %1839 = vst.msk [vmem:[#allocation2 + $0x118] sm:$0x3f] %vm694, %v1803
        %v1840 = vld [vmem:[%s276 + $0x8] sm:$0xe]
        %v1841 = vld [vmem:[%s276 + $0xc] sm:$0xf]
        %v1842 = vld [vmem:[%s276 + $0x10] sm:$0xf]
        %v1843 = vld [vmem:[%s276 + $0x14] sm:$0xf]
        %v1844 = vld [vmem:[%s276 + $0x18] sm:$0xf]
        %v1845 = vld [vmem:[%s276 + $0x1c] sm:$0xf]
        %v1846 = vld [vmem:[%s276 + $0x20] sm:$0xf]
        %v1847 = vld [vmem:[%s276 + $0x24] sm:$0xf]
        %v1848 = vld [vmem:[%s276 + $0x28] sm:$0xf]
        %v1849 = vld [vmem:[%s276 + $0x2c] sm:$0xf]
        %v1850 = vld [vmem:[%s276 + $0x30] sm:$0xf]
        %v1851 = vld [vmem:[%s276 + $0x34] sm:$0xf]
        %v1852 = vld [vmem:[%s276 + $0x38] sm:$0xf]
        %v1853 = vld [vmem:[%s276 + $0x3c] sm:$0xf]
        %v1854 = vld [vmem:[%s276 + $0x40] sm:$0xf]
        %v1855 = vld [vmem:[%s276 + $0x44] sm:$0xf]
        %v1856 = vld [vmem:[%s276 + $0x48] sm:$0xf]
        %v1857 = vld [vmem:[%s276 + $0x4c] sm:$0xf]
        %v1858 = vld [vmem:[%s276 + $0x50] sm:$0xf]
        %v1859 = vld [vmem:[%s276 + $0x54] sm:$0xf]
        %v1860 = vld [vmem:[%s276 + $0x58] sm:$0xf]
        %v1861 = vld [vmem:[%s276 + $0x5c] sm:$0xf]
        %v1862 = vld [vmem:[%s276 + $0x60] sm:$0xf]
        %v1863 = vld [vmem:[%s276 + $0x64] sm:$0xf]
        %v1864 = vld [vmem:[%s276 + $0x68] sm:$0xf]
        %v1865 = vld [vmem:[%s276 + $0x6c] sm:$0xf]
        %v1866 = vld [vmem:[%s276 + $0x70] sm:$0xf]
        %v1867 = vld [vmem:[%s276 + $0x74] sm:$0xf]
        %v1868 = vld [vmem:[%s276 + $0x78] sm:$0xf]
        %v1869 = vld [vmem:[%s276 + $0x7c] sm:$0xf]
        %v1870 = vld [vmem:[%s276 + $0x80] sm:$0xf]
        %v1871 = vld [vmem:[%s276 + $0x84] sm:$0xf]
        %v1872 = vld [vmem:[%s276 + $0x88] sm:$0xf]
        %v1873 = vld [vmem:[%s276 + $0x8c] sm:$0xf]
        %v1874 = vld [vmem:[%s276 + $0x90] sm:$0xf]
        %v1875 = vld [vmem:[%s276 + $0x94] sm:$0xf]
        %s1876 = scalar_lea.vmem %s1, 48
        %v1877 = vld [vmem:[%s1876] sm:$0xf]
        %v1878 = vld [vmem:[%s1876 + $0x4] sm:$0xf]
        %v1879 = vld [vmem:[%s1876 + $0x8] sm:$0xf]
        %v1880 = vld [vmem:[%s1876 + $0xc] sm:$0xf]
        %v1917 = vunpack.c.l.b16 %v1840
        %v1918 = vunpack.c.l.b16 %v1841
        %v1919 = vunpack.c.l.b16 %v1842
        %v1920 = vunpack.c.l.b16 %v1843
        %v1921 = vunpack.c.l.b16 %v1844
        %v1922 = vunpack.c.l.b16 %v1845
        %v1923 = vunpack.c.l.b16 %v1846
        %v1924 = vunpack.c.l.b16 %v1847
        %v1925 = vunpack.c.l.b16 %v1848
        %v1926 = vunpack.c.l.b16 %v1849
        %v1927 = vunpack.c.l.b16 %v1850
        %v1928 = vunpack.c.l.b16 %v1851
        %v1929 = vunpack.c.l.b16 %v1852
        %v1930 = vunpack.c.l.b16 %v1853
        %v1931 = vunpack.c.l.b16 %v1854
        %v1932 = vunpack.c.l.b16 %v1855
        %v1933 = vunpack.c.l.b16 %v1856
        %v1934 = vunpack.c.l.b16 %v1857
        %v1935 = vunpack.c.l.b16 %v1858
        %v1936 = vunpack.c.l.b16 %v1859
        %v1937 = vunpack.c.l.b16 %v1860
        %v1938 = vunpack.c.l.b16 %v1861
        %v1939 = vunpack.c.l.b16 %v1862
        %v1940 = vunpack.c.l.b16 %v1863
        %v1941 = vunpack.c.l.b16 %v1864
        %v1942 = vunpack.c.l.b16 %v1865
        %v1943 = vunpack.c.l.b16 %v1866
        %v1944 = vunpack.c.l.b16 %v1867
        %v1945 = vunpack.c.l.b16 %v1868
        %v1946 = vunpack.c.l.b16 %v1869
        %v1947 = vunpack.c.l.b16 %v1870
        %v1948 = vunpack.c.l.b16 %v1871
        %v1949 = vunpack.c.l.b16 %v1872
        %v1950 = vunpack.c.l.b16 %v1873
        %v1951 = vunpack.c.l.b16 %v1874
        %v1952 = vunpack.c.l.b16 %v1875
        %v1953 = vpack.c.b16 %v1918, %v1917
        %v1954 = vpack.c.b16 %v1920, %v1919
        %v1955 = vpack.c.b16 %v1922, %v1921
        %v1956 = vpack.c.b16 %v1924, %v1923
        %v1957 = vpack.c.b16 %v1926, %v1925
        %v1958 = vpack.c.b16 %v1928, %v1927
        %v1959 = vpack.c.b16 %v1930, %v1929
        %v1960 = vpack.c.b16 %v1932, %v1931
        %v1961 = vpack.c.b16 %v1934, %v1933
        %v1962 = vpack.c.b16 %v1936, %v1935
        %v1963 = vpack.c.b16 %v1938, %v1937
        %v1964 = vpack.c.b16 %v1940, %v1939
        %v1965 = vpack.c.b16 %v1942, %v1941
        %v1966 = vpack.c.b16 %v1944, %v1943
        %v1967 = vpack.c.b16 %v1946, %v1945
        %v1968 = vpack.c.b16 %v1948, %v1947
        %v1969 = vpack.c.b16 %v1950, %v1949
        %v1970 = vpack.c.b16 %v1952, %v1951
        %v1971 = vrot.slane %v1953, 1
        %v1972 = vrot.slane %v1954, 1
        %v1973 = vsel %vm1453, %v1971, %v1972
        %v1974 = vrot.slane %v1955, 1
        %v1975 = vsel %vm1453, %v1972, %v1974
        %v1976 = vrot.slane %v1956, 1
        %v1977 = vsel %vm1453, %v1974, %v1976
        %v1978 = vrot.slane %v1957, 1
        %v1979 = vsel %vm1453, %v1976, %v1978
        %v1980 = vrot.slane %v1958, 1
        %v1981 = vsel %vm1453, %v1978, %v1980
        %v1982 = vrot.slane %v1959, 1
        %v1983 = vsel %vm1453, %v1980, %v1982
        %v1984 = vrot.slane %v1960, 1
        %v1985 = vsel %vm1453, %v1982, %v1984
        %v1986 = vrot.slane %v1961, 1
        %v1987 = vsel %vm1453, %v1984, %v1986
        %v1988 = vrot.slane %v1962, 1
        %v1989 = vsel %vm1453, %v1986, %v1988
        %v1990 = vrot.slane %v1963, 1
        %v1991 = vsel %vm1453, %v1988, %v1990
        %v1992 = vrot.slane %v1964, 1
        %v1993 = vsel %vm1453, %v1990, %v1992
        %v1994 = vrot.slane %v1965, 1
        %v1995 = vsel %vm1453, %v1992, %v1994
        %v1996 = vrot.slane %v1966, 1
        %v1997 = vsel %vm1453, %v1994, %v1996
        %v1998 = vrot.slane %v1967, 1
        %v1999 = vsel %vm1453, %v1996, %v1998
        %v2000 = vrot.slane %v1968, 1
        %v2001 = vsel %vm1453, %v1998, %v2000
        %v2002 = vrot.slane %v1969, 1
        %v2003 = vsel %vm1453, %v2000, %v2002
        %v2004 = vrot.slane %v1970, 1
        %v2005 = vsel %vm1453, %v2002, %v2004
        %v2010 = vunpack.c.l.b16 %v1877
        %v2011 = vunpack.c.l.b16 %v1878
        %v2012 = vunpack.c.l.b16 %v1879
        %v2013 = vunpack.c.l.b16 %v1880
        %v2014 = vpack.c.b16 %v2011, %v2010
        %v2015 = vpack.c.b16 %v2013, %v2012
        %v2019 = vsel %vm427, %v1973, 0
        %v2022 = vsel %vm427, %v1975, 0
        %v2025 = vsel %vm427, %v1977, 0
        %v2028 = vsel %vm427, %v1979, 0
        %v2031 = vsel %vm427, %v1981, 0
        %v2034 = vsel %vm427, %v1983, 0
        %v2037 = vsel %vm427, %v1985, 0
        %v2040 = vsel %vm427, %v1987, 0
        %v2043 = vsel %vm427, %v1989, 0
        %v2046 = vsel %vm427, %v1991, 0
        %v2049 = vsel %vm427, %v1993, 0
        %v2052 = vsel %vm427, %v1995, 0
        %v2055 = vsel %vm427, %v1997, 0
        %v2058 = vsel %vm427, %v1999, 0
        %v2061 = vsel %vm427, %v2001, 0
        %v2064 = vsel %vm427, %v2003, 0
        %v2067 = vsel %vm427, %v2005, 0
        %v2070 = vsel %vm427, %v2004, 0
        %2072 = vmatprep.subr.bf16.mxu0 0
        %2073 = vmatpush1.bf16.msra.mxu0 %v2014
        %2074 = vmatprep.subr.bf16.mxu0 0
        %2075 = vmatpush1.bf16.msra.mxu0 %v2015
        %2076 = vmatprep.subr.bf16.mxu0 0
        %2077 = vmatpush1.bf16.msra.mxu0 0
        %2078 = vmatprep.subr.bf16.mxu0 0
        %2079 = vmatpush1.bf16.msra.mxu0 0
        %2080 = vmatprep.subr.bf16.mxu0 0
        %2081 = vmatpush1.bf16.msra.mxu0 0
        %2082 = vmatprep.subr.bf16.mxu0 0
        %2083 = vmatpush1.bf16.msra.mxu0 0
        %2084 = vmatprep.subr.bf16.mxu0 0
        %2085 = vmatpush1.bf16.msra.mxu0 0
        %2086 = vmatprep.subr.bf16.mxu0 0
        %2087 = vmatpush1.bf16.msra.mxu0 0
        %2088 = vmatprep.subr.bf16.mxu0 0
        %2089 = vmatpush1.bf16.msra.mxu0 0
        %2090 = vmatprep.subr.bf16.mxu0 0
        %2091 = vmatpush1.bf16.msra.mxu0 0
        %2092 = vmatprep.subr.bf16.mxu0 0
        %2093 = vmatpush1.bf16.msra.mxu0 0
        %2094 = vmatprep.subr.bf16.mxu0 0
        %2095 = vmatpush1.bf16.msra.mxu0 0
        %2096 = vmatprep.subr.bf16.mxu0 0
        %2097 = vmatpush1.bf16.msra.mxu0 0
        %2098 = vmatprep.subr.bf16.mxu0 0
        %2099 = vmatpush1.bf16.msra.mxu0 0
        %2100 = vmatprep.subr.bf16.mxu0 0
        %2101 = vmatpush1.bf16.msra.mxu0 0
        %2102 = vmatprep.subr.bf16.mxu0 0
        %2103 = vmatpush1.bf16.msra.mxu0 0
        %2104 = vmatprep.mubr.bf16.mxu0 0
        %2105 = vmatmul.mubr.bf16.gmra.mrb[0].mxu0 %v2019
        %v2106 = vpop.f32.mrb[0].mxu0
        %v2107 = vadd.f32 0.0, %v2106
        %v2108 = vpop.f32.mrb[0].mxu0
        %v2109 = vpop.f32.mrb[0].mxu0
        %v2110 = vadd.f32 0.0, %v2109
        %v2111 = vpop.f32.mrb[0].mxu0
        %2112 = vmatprep.mubr.bf16.mxu0 0
        %2113 = vmatmul.mubr.bf16.gmra.mrb[0].mxu0 %v2022
        %v2114 = vpop.f32.mrb[0].mxu0
        %v2115 = vadd.f32 0.0, %v2114
        %v2116 = vpop.f32.mrb[0].mxu0
        %v2117 = vpop.f32.mrb[0].mxu0
        %v2118 = vadd.f32 0.0, %v2117
        %v2119 = vpop.f32.mrb[0].mxu0
        %2120 = vmatprep.mubr.bf16.mxu0 0
        %2121 = vmatmul.mubr.bf16.gmra.mrb[0].mxu0 %v2025
        %v2122 = vpop.f32.mrb[0].mxu0
        %v2123 = vadd.f32 0.0, %v2122
        %v2124 = vpop.f32.mrb[0].mxu0
        %v2125 = vpop.f32.mrb[0].mxu0
        %v2126 = vadd.f32 0.0, %v2125
        %v2127 = vpop.f32.mrb[0].mxu0
        %2128 = vmatprep.mubr.bf16.mxu0 0
        %2129 = vmatmul.mubr.bf16.gmra.mrb[0].mxu0 %v2028
        %v2130 = vpop.f32.mrb[0].mxu0
        %v2131 = vadd.f32 0.0, %v2130
        %v2132 = vpop.f32.mrb[0].mxu0
        %v2133 = vpop.f32.mrb[0].mxu0
        %v2134 = vadd.f32 0.0, %v2133
        %v2135 = vpop.f32.mrb[0].mxu0
        %2136 = vmatprep.mubr.bf16.mxu0 0
        %2137 = vmatmul.mubr.bf16.gmra.mrb[0].mxu0 %v2031
        %v2138 = vpop.f32.mrb[0].mxu0
        %v2139 = vadd.f32 0.0, %v2138
        %v2140 = vpop.f32.mrb[0].mxu0
        %v2141 = vpop.f32.mrb[0].mxu0
        %v2142 = vadd.f32 0.0, %v2141
        %v2143 = vpop.f32.mrb[0].mxu0
        %2144 = vmatprep.mubr.bf16.mxu0 0
        %2145 = vmatmul.mubr.bf16.gmra.mrb[0].mxu0 %v2034
        %v2146 = vpop.f32.mrb[0].mxu0
        %v2147 = vadd.f32 0.0, %v2146
        %v2148 = vpop.f32.mrb[0].mxu0
        %v2149 = vpop.f32.mrb[0].mxu0
        %v2150 = vadd.f32 0.0, %v2149
        %v2151 = vpop.f32.mrb[0].mxu0
        %2152 = vmatprep.mubr.bf16.mxu0 0
        %2153 = vmatmul.mubr.bf16.gmra.mrb[0].mxu0 %v2037
        %v2154 = vpop.f32.mrb[0].mxu0
        %v2155 = vadd.f32 0.0, %v2154
        %v2156 = vpop.f32.mrb[0].mxu0
        %v2157 = vpop.f32.mrb[0].mxu0
        %v2158 = vadd.f32 0.0, %v2157
        %v2159 = vpop.f32.mrb[0].mxu0
        %2160 = vmatprep.mubr.bf16.mxu0 0
        %2161 = vmatmul.mubr.bf16.gmra.mrb[0].mxu0 %v2040
        %v2162 = vpop.f32.mrb[0].mxu0
        %v2163 = vadd.f32 0.0, %v2162
        %v2164 = vpop.f32.mrb[0].mxu0
        %v2165 = vpop.f32.mrb[0].mxu0
        %v2166 = vadd.f32 0.0, %v2165
        %v2167 = vpop.f32.mrb[0].mxu0
        %2168 = vmatprep.mubr.bf16.mxu0 0
        %2169 = vmatmul.mubr.bf16.gmra.mrb[0].mxu0 %v2043
        %v2170 = vpop.f32.mrb[0].mxu0
        %v2171 = vadd.f32 0.0, %v2170
        %v2172 = vpop.f32.mrb[0].mxu0
        %v2173 = vpop.f32.mrb[0].mxu0
        %v2174 = vadd.f32 0.0, %v2173
        %v2175 = vpop.f32.mrb[0].mxu0
        %2176 = vmatprep.mubr.bf16.mxu0 0
        %2177 = vmatmul.mubr.bf16.gmra.mrb[0].mxu0 %v2046
        %v2178 = vpop.f32.mrb[0].mxu0
        %v2179 = vadd.f32 0.0, %v2178
        %v2180 = vpop.f32.mrb[0].mxu0
        %v2181 = vpop.f32.mrb[0].mxu0
        %v2182 = vadd.f32 0.0, %v2181
        %v2183 = vpop.f32.mrb[0].mxu0
        %2184 = vmatprep.mubr.bf16.mxu0 0
        %2185 = vmatmul.mubr.bf16.gmra.mrb[0].mxu0 %v2049
        %v2186 = vpop.f32.mrb[0].mxu0
        %v2187 = vadd.f32 0.0, %v2186
        %v2188 = vpop.f32.mrb[0].mxu0
        %v2189 = vpop.f32.mrb[0].mxu0
        %v2190 = vadd.f32 0.0, %v2189
        %v2191 = vpop.f32.mrb[0].mxu0
        %2192 = vmatprep.mubr.bf16.mxu0 0
        %2193 = vmatmul.mubr.bf16.gmra.mrb[0].mxu0 %v2052
        %v2194 = vpop.f32.mrb[0].mxu0
        %v2195 = vadd.f32 0.0, %v2194
        %v2196 = vpop.f32.mrb[0].mxu0
        %v2197 = vpop.f32.mrb[0].mxu0
        %v2198 = vadd.f32 0.0, %v2197
        %v2199 = vpop.f32.mrb[0].mxu0
        %2200 = vmatprep.mubr.bf16.mxu0 0
        %2201 = vmatmul.mubr.bf16.gmra.mrb[0].mxu0 %v2055
        %v2202 = vpop.f32.mrb[0].mxu0
        %v2203 = vadd.f32 0.0, %v2202
        %v2204 = vpop.f32.mrb[0].mxu0
        %v2205 = vpop.f32.mrb[0].mxu0
        %v2206 = vadd.f32 0.0, %v2205
        %v2207 = vpop.f32.mrb[0].mxu0
        %2208 = vmatprep.mubr.bf16.mxu0 0
        %2209 = vmatmul.mubr.bf16.gmra.mrb[0].mxu0 %v2058
        %v2210 = vpop.f32.mrb[0].mxu0
        %v2211 = vadd.f32 0.0, %v2210
        %v2212 = vpop.f32.mrb[0].mxu0
        %v2213 = vpop.f32.mrb[0].mxu0
        %v2214 = vadd.f32 0.0, %v2213
        %v2215 = vpop.f32.mrb[0].mxu0
        %2216 = vmatprep.mubr.bf16.mxu0 0
        %2217 = vmatmul.mubr.bf16.gmra.mrb[0].mxu0 %v2061
        %v2218 = vpop.f32.mrb[0].mxu0
        %v2219 = vadd.f32 0.0, %v2218
        %v2220 = vpop.f32.mrb[0].mxu0
        %v2221 = vpop.f32.mrb[0].mxu0
        %v2222 = vadd.f32 0.0, %v2221
        %v2223 = vpop.f32.mrb[0].mxu0
        %2224 = vmatprep.mubr.bf16.mxu0 0
        %2225 = vmatmul.mubr.bf16.gmra.mrb[0].mxu0 %v2064
        %v2226 = vpop.f32.mrb[0].mxu0
        %v2227 = vadd.f32 0.0, %v2226
        %v2228 = vpop.f32.mrb[0].mxu0
        %v2229 = vpop.f32.mrb[0].mxu0
        %v2230 = vadd.f32 0.0, %v2229
        %v2231 = vpop.f32.mrb[0].mxu0
        %2232 = vmatprep.mubr.bf16.mxu0 0
        %2233 = vmatmul.mubr.bf16.gmra.mrb[0].mxu0 %v2067
        %v2234 = vpop.f32.mrb[0].mxu0
        %v2235 = vadd.f32 0.0, %v2234
        %v2236 = vpop.f32.mrb[0].mxu0
        %v2237 = vpop.f32.mrb[0].mxu0
        %v2238 = vadd.f32 0.0, %v2237
        %v2239 = vpop.f32.mrb[0].mxu0
        %2240 = vmatprep.mubr.bf16.mxu0 0
        %2241 = vmatmul.mubr.bf16.gmra.mrb[0].mxu0 %v2070
        %v2242 = vpop.f32.mrb[0].mxu0
        %v2243 = vadd.f32 0.0, %v2242
        %v2244 = vpop.f32.mrb[0].mxu0
        %v2245 = vpop.f32.mrb[0].mxu0
        %v2246 = vadd.f32 0.0, %v2245
        %v2247 = vpop.f32.mrb[0].mxu0
        %2248 = vdwg.mxu0
        %v2249 = vld [vmem:[#allocation2] sm:$0xff]
        %v2250 = vld [vmem:[#allocation2 + $0x8] sm:$0xff]
        %v2251 = vld [vmem:[#allocation2 + $0x10] sm:$0xff]
        %v2252 = vld [vmem:[#allocation2 + $0x18] sm:$0xff]
        %v2253 = vld [vmem:[#allocation2 + $0x20] sm:$0xff]
        %v2254 = vld [vmem:[#allocation2 + $0x28] sm:$0xff]
        %v2255 = vld [vmem:[#allocation2 + $0x30] sm:$0xff]
        %v2256 = vld [vmem:[#allocation2 + $0x38] sm:$0xff]
        %v2257 = vld [vmem:[#allocation2 + $0x40] sm:$0xff]
        %v2258 = vld [vmem:[#allocation2 + $0x48] sm:$0xff]
        %v2259 = vld [vmem:[#allocation2 + $0x50] sm:$0xff]
        %v2260 = vld [vmem:[#allocation2 + $0x58] sm:$0xff]
        %v2261 = vld [vmem:[#allocation2 + $0x60] sm:$0xff]
        %v2262 = vld [vmem:[#allocation2 + $0x68] sm:$0xff]
        %v2263 = vld [vmem:[#allocation2 + $0x70] sm:$0xff]
        %v2264 = vld [vmem:[#allocation2 + $0x78] sm:$0xff]
        %v2265 = vld [vmem:[#allocation2 + $0x80] sm:$0xff]
        %v2266 = vld [vmem:[#allocation2 + $0x88] sm:$0xff]
        %v2267 = vld [vmem:[#allocation2 + $0x90] sm:$0xff]
        %v2268 = vld [vmem:[#allocation2 + $0x98] sm:$0xff]
        %v2269 = vld [vmem:[#allocation2 + $0xa0] sm:$0xff]
        %v2270 = vld [vmem:[#allocation2 + $0xa8] sm:$0xff]
        %v2271 = vld [vmem:[#allocation2 + $0xb0] sm:$0xff]
        %v2272 = vld [vmem:[#allocation2 + $0xb8] sm:$0xff]
        %v2273 = vld [vmem:[#allocation2 + $0xc0] sm:$0xff]
        %v2274 = vld [vmem:[#allocation2 + $0xc8] sm:$0xff]
        %v2275 = vld [vmem:[#allocation2 + $0xd0] sm:$0xff]
        %v2276 = vld [vmem:[#allocation2 + $0xd8] sm:$0xff]
        %v2277 = vld [vmem:[#allocation2 + $0xe0] sm:$0xff]
        %v2278 = vld [vmem:[#allocation2 + $0xe8] sm:$0xff]
        %v2279 = vld [vmem:[#allocation2 + $0xf0] sm:$0xff]
        %v2280 = vld [vmem:[#allocation2 + $0xf8] sm:$0xff]
        %v2281 = vld [vmem:[#allocation2 + $0x100] sm:$0xff]
        %v2282 = vld [vmem:[#allocation2 + $0x108] sm:$0xff]
        %v2283 = vld [vmem:[#allocation2 + $0x110] sm:$0xff]
        %v2284 = vld [vmem:[#allocation2 + $0x118] sm:$0x3f]
        %v2285 = vadd.f32 %v2249, %v2107
        %v2286 = vadd.f32 %v2250, %v2110
        %v2287 = vadd.f32 %v2251, %v2115
        %v2288 = vadd.f32 %v2252, %v2118
        %v2289 = vadd.f32 %v2253, %v2123
        %v2290 = vadd.f32 %v2254, %v2126
        %v2291 = vadd.f32 %v2255, %v2131
        %v2292 = vadd.f32 %v2256, %v2134
        %v2293 = vadd.f32 %v2257, %v2139
        %v2294 = vadd.f32 %v2258, %v2142
        %v2295 = vadd.f32 %v2259, %v2147
        %v2296 = vadd.f32 %v2260, %v2150
        %v2297 = vadd.f32 %v2261, %v2155
        %v2298 = vadd.f32 %v2262, %v2158
        %v2299 = vadd.f32 %v2263, %v2163
        %v2300 = vadd.f32 %v2264, %v2166
        %v2301 = vadd.f32 %v2265, %v2171
        %v2302 = vadd.f32 %v2266, %v2174
        %v2303 = vadd.f32 %v2267, %v2179
        %v2304 = vadd.f32 %v2268, %v2182
        %v2305 = vadd.f32 %v2269, %v2187
        %v2306 = vadd.f32 %v2270, %v2190
        %v2307 = vadd.f32 %v2271, %v2195
        %v2308 = vadd.f32 %v2272, %v2198
        %v2309 = vadd.f32 %v2273, %v2203
        %v2310 = vadd.f32 %v2274, %v2206
        %v2311 = vadd.f32 %v2275, %v2211
        %v2312 = vadd.f32 %v2276, %v2214
        %v2313 = vadd.f32 %v2277, %v2219
        %v2314 = vadd.f32 %v2278, %v2222
        %v2315 = vadd.f32 %v2279, %v2227
        %v2316 = vadd.f32 %v2280, %v2230
        %v2317 = vadd.f32 %v2281, %v2235
        %v2318 = vadd.f32 %v2282, %v2238
        %v2319 = vadd.f32 %v2283, %v2243
        %v2320 = vadd.f32 %v2284, %v2246
        %2321 = vst.msk [vmem:[#allocation2] sm:$0xff] %vm427, %v2285
        %2322 = vst.msk [vmem:[#allocation2 + $0x8] sm:$0xff] %vm427, %v2286
        %2323 = vst.msk [vmem:[#allocation2 + $0x10] sm:$0xff] %vm427, %v2287
        %2324 = vst.msk [vmem:[#allocation2 + $0x18] sm:$0xff] %vm427, %v2288
        %2325 = vst.msk [vmem:[#allocation2 + $0x20] sm:$0xff] %vm427, %v2289
        %2326 = vst.msk [vmem:[#allocation2 + $0x28] sm:$0xff] %vm427, %v2290
        %2327 = vst.msk [vmem:[#allocation2 + $0x30] sm:$0xff] %vm427, %v2291
        %2328 = vst.msk [vmem:[#allocation2 + $0x38] sm:$0xff] %vm427, %v2292
        %2329 = vst.msk [vmem:[#allocation2 + $0x40] sm:$0xff] %vm427, %v2293
        %2330 = vst.msk [vmem:[#allocation2 + $0x48] sm:$0xff] %vm427, %v2294
        %2331 = vst.msk [vmem:[#allocation2 + $0x50] sm:$0xff] %vm427, %v2295
        %2332 = vst.msk [vmem:[#allocation2 + $0x58] sm:$0xff] %vm427, %v2296
        %2333 = vst.msk [vmem:[#allocation2 + $0x60] sm:$0xff] %vm427, %v2297
        %2334 = vst.msk [vmem:[#allocation2 + $0x68] sm:$0xff] %vm427, %v2298
        %2335 = vst.msk [vmem:[#allocation2 + $0x70] sm:$0xff] %vm427, %v2299
        %2336 = vst.msk [vmem:[#allocation2 + $0x78] sm:$0xff] %vm427, %v2300
        %2337 = vst.msk [vmem:[#allocation2 + $0x80] sm:$0xff] %vm427, %v2301
        %2338 = vst.msk [vmem:[#allocation2 + $0x88] sm:$0xff] %vm427, %v2302
        %2339 = vst.msk [vmem:[#allocation2 + $0x90] sm:$0xff] %vm427, %v2303
        %2340 = vst.msk [vmem:[#allocation2 + $0x98] sm:$0xff] %vm427, %v2304
        %2341 = vst.msk [vmem:[#allocation2 + $0xa0] sm:$0xff] %vm427, %v2305
        %2342 = vst.msk [vmem:[#allocation2 + $0xa8] sm:$0xff] %vm427, %v2306
        %2343 = vst.msk [vmem:[#allocation2 + $0xb0] sm:$0xff] %vm427, %v2307
        %2344 = vst.msk [vmem:[#allocation2 + $0xb8] sm:$0xff] %vm427, %v2308
        %2345 = vst.msk [vmem:[#allocation2 + $0xc0] sm:$0xff] %vm427, %v2309
        %2346 = vst.msk [vmem:[#allocation2 + $0xc8] sm:$0xff] %vm427, %v2310
        %2347 = vst.msk [vmem:[#allocation2 + $0xd0] sm:$0xff] %vm427, %v2311
        %2348 = vst.msk [vmem:[#allocation2 + $0xd8] sm:$0xff] %vm427, %v2312
        %2349 = vst.msk [vmem:[#allocation2 + $0xe0] sm:$0xff] %vm427, %v2313
        %2350 = vst.msk [vmem:[#allocation2 + $0xe8] sm:$0xff] %vm427, %v2314
        %2351 = vst.msk [vmem:[#allocation2 + $0xf0] sm:$0xff] %vm427, %v2315
        %2352 = vst.msk [vmem:[#allocation2 + $0xf8] sm:$0xff] %vm427, %v2316
        %2353 = vst.msk [vmem:[#allocation2 + $0x100] sm:$0xff] %vm427, %v2317
        %2354 = vst.msk [vmem:[#allocation2 + $0x108] sm:$0xff] %vm427, %v2318
        %2355 = vst.msk [vmem:[#allocation2 + $0x110] sm:$0xff] %vm427, %v2319
        %2356 = vst.msk [vmem:[#allocation2 + $0x118] sm:$0x3f] %vm694, %v2320
        %v2357 = vld [vmem:[%s276 + $0x8] sm:$0xe]
        %v2358 = vld [vmem:[%s276 + $0xc] sm:$0xf]
        %v2359 = vld [vmem:[%s276 + $0x10] sm:$0xf]
        %v2360 = vld [vmem:[%s276 + $0x14] sm:$0xf]
        %v2361 = vld [vmem:[%s276 + $0x18] sm:$0xf]
        %v2362 = vld [vmem:[%s276 + $0x1c] sm:$0xf]
        %v2363 = vld [vmem:[%s276 + $0x20] sm:$0xf]
        %v2364 = vld [vmem:[%s276 + $0x24] sm:$0xf]
        %v2365 = vld [vmem:[%s276 + $0x28] sm:$0xf]
        %v2366 = vld [vmem:[%s276 + $0x2c] sm:$0xf]
        %v2367 = vld [vmem:[%s276 + $0x30] sm:$0xf]
        %v2368 = vld [vmem:[%s276 + $0x34] sm:$0xf]
        %v2369 = vld [vmem:[%s276 + $0x38] sm:$0xf]
        %v2370 = vld [vmem:[%s276 + $0x3c] sm:$0xf]
        %v2371 = vld [vmem:[%s276 + $0x40] sm:$0xf]
        %v2372 = vld [vmem:[%s276 + $0x44] sm:$0xf]
        %v2373 = vld [vmem:[%s276 + $0x48] sm:$0xf]
        %v2374 = vld [vmem:[%s276 + $0x4c] sm:$0xf]
        %v2375 = vld [vmem:[%s276 + $0x50] sm:$0xf]
        %v2376 = vld [vmem:[%s276 + $0x54] sm:$0xf]
        %v2377 = vld [vmem:[%s276 + $0x58] sm:$0xf]
        %v2378 = vld [vmem:[%s276 + $0x5c] sm:$0xf]
        %v2379 = vld [vmem:[%s276 + $0x60] sm:$0xf]
        %v2380 = vld [vmem:[%s276 + $0x64] sm:$0xf]
        %v2381 = vld [vmem:[%s276 + $0x68] sm:$0xf]
        %v2382 = vld [vmem:[%s276 + $0x6c] sm:$0xf]
        %v2383 = vld [vmem:[%s276 + $0x70] sm:$0xf]
        %v2384 = vld [vmem:[%s276 + $0x74] sm:$0xf]
        %v2385 = vld [vmem:[%s276 + $0x78] sm:$0xf]
        %v2386 = vld [vmem:[%s276 + $0x7c] sm:$0xf]
        %v2387 = vld [vmem:[%s276 + $0x80] sm:$0xf]
        %v2388 = vld [vmem:[%s276 + $0x84] sm:$0xf]
        %v2389 = vld [vmem:[%s276 + $0x88] sm:$0xf]
        %v2390 = vld [vmem:[%s276 + $0x8c] sm:$0xf]
        %v2391 = vld [vmem:[%s276 + $0x90] sm:$0xf]
        %v2392 = vld [vmem:[%s276 + $0x94] sm:$0xf]
        %v2393 = vld [vmem:[%s276 + $0x98] sm:$0x1]
        %s2394 = scalar_lea.vmem %s1, 64
        %v2395 = vld [vmem:[%s2394] sm:$0xf]
        %v2396 = vld [vmem:[%s2394 + $0x4] sm:$0xf]
        %v2397 = vld [vmem:[%s2394 + $0x8] sm:$0xf]
        %v2398 = vld [vmem:[%s2394 + $0xc] sm:$0xf]
        %v2436 = vunpack.c.l.b16 %v2357
        %v2437 = vunpack.c.l.b16 %v2358
        %v2438 = vunpack.c.l.b16 %v2359
        %v2439 = vunpack.c.l.b16 %v2360
        %v2440 = vunpack.c.l.b16 %v2361
        %v2441 = vunpack.c.l.b16 %v2362
        %v2442 = vunpack.c.l.b16 %v2363
        %v2443 = vunpack.c.l.b16 %v2364
        %v2444 = vunpack.c.l.b16 %v2365
        %v2445 = vunpack.c.l.b16 %v2366
        %v2446 = vunpack.c.l.b16 %v2367
        %v2447 = vunpack.c.l.b16 %v2368
        %v2448 = vunpack.c.l.b16 %v2369
        %v2449 = vunpack.c.l.b16 %v2370
        %v2450 = vunpack.c.l.b16 %v2371
        %v2451 = vunpack.c.l.b16 %v2372
        %v2452 = vunpack.c.l.b16 %v2373
        %v2453 = vunpack.c.l.b16 %v2374
        %v2454 = vunpack.c.l.b16 %v2375
        %v2455 = vunpack.c.l.b16 %v2376
        %v2456 = vunpack.c.l.b16 %v2377
        %v2457 = vunpack.c.l.b16 %v2378
        %v2458 = vunpack.c.l.b16 %v2379
        %v2459 = vunpack.c.l.b16 %v2380
        %v2460 = vunpack.c.l.b16 %v2381
        %v2461 = vunpack.c.l.b16 %v2382
        %v2462 = vunpack.c.l.b16 %v2383
        %v2463 = vunpack.c.l.b16 %v2384
        %v2464 = vunpack.c.l.b16 %v2385
        %v2465 = vunpack.c.l.b16 %v2386
        %v2466 = vunpack.c.l.b16 %v2387
        %v2467 = vunpack.c.l.b16 %v2388
        %v2468 = vunpack.c.l.b16 %v2389
        %v2469 = vunpack.c.l.b16 %v2390
        %v2470 = vunpack.c.l.b16 %v2391
        %v2471 = vunpack.c.l.b16 %v2392
        %v2472 = vunpack.c.l.b16 %v2393
        %v2473 = vpack.c.b16 %v2437, %v2436
        %v2474 = vpack.c.b16 %v2439, %v2438
        %v2475 = vpack.c.b16 %v2441, %v2440
        %v2476 = vpack.c.b16 %v2443, %v2442
        %v2477 = vpack.c.b16 %v2445, %v2444
        %v2478 = vpack.c.b16 %v2447, %v2446
        %v2479 = vpack.c.b16 %v2449, %v2448
        %v2480 = vpack.c.b16 %v2451, %v2450
        %v2481 = vpack.c.b16 %v2453, %v2452
        %v2482 = vpack.c.b16 %v2455, %v2454
        %v2483 = vpack.c.b16 %v2457, %v2456
        %v2484 = vpack.c.b16 %v2459, %v2458
        %v2485 = vpack.c.b16 %v2461, %v2460
        %v2486 = vpack.c.b16 %v2463, %v2462
        %v2487 = vpack.c.b16 %v2465, %v2464
        %v2488 = vpack.c.b16 %v2467, %v2466
        %v2489 = vpack.c.b16 %v2469, %v2468
        %v2490 = vpack.c.b16 %v2471, %v2470
        %v2491 = vpack.c.b16 %v2472, %v2472
        %vm2492 = vsmask.f32 6400
        %v2494 = vshrl.u32 %v2473, 16
        %v2496 = vrot.slane %v2494, 1
        %v2497 = vshll.u32 %v2473, 16
        %v2499 = vrot.slane %v2497, 2
        %v2500 = vor.u32 %v2496, %v2499
        %v2502 = vshrl.u32 %v2474, 16
        %v2504 = vrot.slane %v2502, 1
        %v2505 = vshll.u32 %v2474, 16
        %v2507 = vrot.slane %v2505, 2
        %v2508 = vor.u32 %v2504, %v2507
        %v2509 = vsel %vm2492, %v2500, %v2508
        %v2511 = vshrl.u32 %v2475, 16
        %v2513 = vrot.slane %v2511, 1
        %v2514 = vshll.u32 %v2475, 16
        %v2516 = vrot.slane %v2514, 2
        %v2517 = vor.u32 %v2513, %v2516
        %v2518 = vsel %vm2492, %v2508, %v2517
        %v2520 = vshrl.u32 %v2476, 16
        %v2522 = vrot.slane %v2520, 1
        %v2523 = vshll.u32 %v2476, 16
        %v2525 = vrot.slane %v2523, 2
        %v2526 = vor.u32 %v2522, %v2525
        %v2527 = vsel %vm2492, %v2517, %v2526
        %v2529 = vshrl.u32 %v2477, 16
        %v2531 = vrot.slane %v2529, 1
        %v2532 = vshll.u32 %v2477, 16
        %v2534 = vrot.slane %v2532, 2
        %v2535 = vor.u32 %v2531, %v2534
        %v2536 = vsel %vm2492, %v2526, %v2535
        %v2538 = vshrl.u32 %v2478, 16
        %v2540 = vrot.slane %v2538, 1
        %v2541 = vshll.u32 %v2478, 16
        %v2543 = vrot.slane %v2541, 2
        %v2544 = vor.u32 %v2540, %v2543
        %v2545 = vsel %vm2492, %v2535, %v2544
        %v2547 = vshrl.u32 %v2479, 16
        %v2549 = vrot.slane %v2547, 1
        %v2550 = vshll.u32 %v2479, 16
        %v2552 = vrot.slane %v2550, 2
        %v2553 = vor.u32 %v2549, %v2552
        %v2554 = vsel %vm2492, %v2544, %v2553
        %v2556 = vshrl.u32 %v2480, 16
        %v2558 = vrot.slane %v2556, 1
        %v2559 = vshll.u32 %v2480, 16
        %v2561 = vrot.slane %v2559, 2
        %v2562 = vor.u32 %v2558, %v2561
        %v2563 = vsel %vm2492, %v2553, %v2562
        %v2565 = vshrl.u32 %v2481, 16
        %v2567 = vrot.slane %v2565, 1
        %v2568 = vshll.u32 %v2481, 16
        %v2570 = vrot.slane %v2568, 2
        %v2571 = vor.u32 %v2567, %v2570
        %v2572 = vsel %vm2492, %v2562, %v2571
        %v2574 = vshrl.u32 %v2482, 16
        %v2576 = vrot.slane %v2574, 1
        %v2577 = vshll.u32 %v2482, 16
        %v2579 = vrot.slane %v2577, 2
        %v2580 = vor.u32 %v2576, %v2579
        %v2581 = vsel %vm2492, %v2571, %v2580
        %v2583 = vshrl.u32 %v2483, 16
        %v2585 = vrot.slane %v2583, 1
        %v2586 = vshll.u32 %v2483, 16
        %v2588 = vrot.slane %v2586, 2
        %v2589 = vor.u32 %v2585, %v2588
        %v2590 = vsel %vm2492, %v2580, %v2589
        %v2592 = vshrl.u32 %v2484, 16
        %v2594 = vrot.slane %v2592, 1
        %v2595 = vshll.u32 %v2484, 16
        %v2597 = vrot.slane %v2595, 2
        %v2598 = vor.u32 %v2594, %v2597
        %v2599 = vsel %vm2492, %v2589, %v2598
        %v2601 = vshrl.u32 %v2485, 16
        %v2603 = vrot.slane %v2601, 1
        %v2604 = vshll.u32 %v2485, 16
        %v2606 = vrot.slane %v2604, 2
        %v2607 = vor.u32 %v2603, %v2606
        %v2608 = vsel %vm2492, %v2598, %v2607
        %v2610 = vshrl.u32 %v2486, 16
        %v2612 = vrot.slane %v2610, 1
        %v2613 = vshll.u32 %v2486, 16
        %v2615 = vrot.slane %v2613, 2
        %v2616 = vor.u32 %v2612, %v2615
        %v2617 = vsel %vm2492, %v2607, %v2616
        %v2619 = vshrl.u32 %v2487, 16
        %v2621 = vrot.slane %v2619, 1
        %v2622 = vshll.u32 %v2487, 16
        %v2624 = vrot.slane %v2622, 2
        %v2625 = vor.u32 %v2621, %v2624
        %v2626 = vsel %vm2492, %v2616, %v2625
        %v2628 = vshrl.u32 %v2488, 16
        %v2630 = vrot.slane %v2628, 1
        %v2631 = vshll.u32 %v2488, 16
        %v2633 = vrot.slane %v2631, 2
        %v2634 = vor.u32 %v2630, %v2633
        %v2635 = vsel %vm2492, %v2625, %v2634
        %v2637 = vshrl.u32 %v2489, 16
        %v2639 = vrot.slane %v2637, 1
        %v2640 = vshll.u32 %v2489, 16
        %v2642 = vrot.slane %v2640, 2
        %v2643 = vor.u32 %v2639, %v2642
        %v2644 = vsel %vm2492, %v2634, %v2643
        %v2646 = vshrl.u32 %v2490, 16
        %v2648 = vrot.slane %v2646, 1
        %v2649 = vshll.u32 %v2490, 16
        %v2651 = vrot.slane %v2649, 2
        %v2652 = vor.u32 %v2648, %v2651
        %v2653 = vsel %vm2492, %v2643, %v2652
        %v2655 = vshll.u32 %v2491, 16
        %v2657 = vrot.slane %v2655, 2
        %v2658 = vsel %vm2492, %v2652, %v2657
        %v2663 = vunpack.c.l.b16 %v2395
        %v2664 = vunpack.c.l.b16 %v2396
        %v2665 = vunpack.c.l.b16 %v2397
        %v2666 = vunpack.c.l.b16 %v2398
        %v2667 = vpack.c.b16 %v2664, %v2663
        %v2668 = vpack.c.b16 %v2666, %v2665
        %v2672 = vsel %vm427, %v2509, 0
        %v2675 = vsel %vm427, %v2518, 0
        %v2678 = vsel %vm427, %v2527, 0
        %v2681 = vsel %vm427, %v2536, 0
        %v2684 = vsel %vm427, %v2545, 0
        %v2687 = vsel %vm427, %v2554, 0
        %v2690 = vsel %vm427, %v2563, 0
        %v2693 = vsel %vm427, %v2572, 0
        %v2696 = vsel %vm427, %v2581, 0
        %v2699 = vsel %vm427, %v2590, 0
        %v2702 = vsel %vm427, %v2599, 0
        %v2705 = vsel %vm427, %v2608, 0
        %v2708 = vsel %vm427, %v2617, 0
        %v2711 = vsel %vm427, %v2626, 0
        %v2714 = vsel %vm427, %v2635, 0
        %v2717 = vsel %vm427, %v2644, 0
        %v2720 = vsel %vm427, %v2653, 0
        %v2723 = vsel %vm427, %v2658, 0
        %2725 = vmatprep.subr.bf16.mxu0 0
        %2726 = vmatpush1.bf16.msra.mxu0 %v2667
        %2727 = vmatprep.subr.bf16.mxu0 0
        %2728 = vmatpush1.bf16.msra.mxu0 %v2668
        %2729 = vmatprep.subr.bf16.mxu0 0
        %2730 = vmatpush1.bf16.msra.mxu0 0
        %2731 = vmatprep.subr.bf16.mxu0 0
        %2732 = vmatpush1.bf16.msra.mxu0 0
        %2733 = vmatprep.subr.bf16.mxu0 0
        %2734 = vmatpush1.bf16.msra.mxu0 0
        %2735 = vmatprep.subr.bf16.mxu0 0
        %2736 = vmatpush1.bf16.msra.mxu0 0
        %2737 = vmatprep.subr.bf16.mxu0 0
        %2738 = vmatpush1.bf16.msra.mxu0 0
        %2739 = vmatprep.subr.bf16.mxu0 0
        %2740 = vmatpush1.bf16.msra.mxu0 0
        %2741 = vmatprep.subr.bf16.mxu0 0
        %2742 = vmatpush1.bf16.msra.mxu0 0
        %2743 = vmatprep.subr.bf16.mxu0 0
        %2744 = vmatpush1.bf16.msra.mxu0 0
        %2745 = vmatprep.subr.bf16.mxu0 0
        %2746 = vmatpush1.bf16.msra.mxu0 0
        %2747 = vmatprep.subr.bf16.mxu0 0
        %2748 = vmatpush1.bf16.msra.mxu0 0
        %2749 = vmatprep.subr.bf16.mxu0 0
        %2750 = vmatpush1.bf16.msra.mxu0 0
        %2751 = vmatprep.subr.bf16.mxu0 0
        %2752 = vmatpush1.bf16.msra.mxu0 0
        %2753 = vmatprep.subr.bf16.mxu0 0
        %2754 = vmatpush1.bf16.msra.mxu0 0
        %2755 = vmatprep.subr.bf16.mxu0 0
        %2756 = vmatpush1.bf16.msra.mxu0 0
        %2757 = vmatprep.mubr.bf16.mxu0 0
        %2758 = vmatmul.mubr.bf16.gmra.mrb[0].mxu0 %v2672
        %v2759 = vpop.f32.mrb[0].mxu0
        %v2760 = vadd.f32 0.0, %v2759
        %v2761 = vpop.f32.mrb[0].mxu0
        %v2762 = vpop.f32.mrb[0].mxu0
        %v2763 = vadd.f32 0.0, %v2762
        %v2764 = vpop.f32.mrb[0].mxu0
        %2765 = vmatprep.mubr.bf16.mxu0 0
        %2766 = vmatmul.mubr.bf16.gmra.mrb[0].mxu0 %v2675
        %v2767 = vpop.f32.mrb[0].mxu0
        %v2768 = vadd.f32 0.0, %v2767
        %v2769 = vpop.f32.mrb[0].mxu0
        %v2770 = vpop.f32.mrb[0].mxu0
        %v2771 = vadd.f32 0.0, %v2770
        %v2772 = vpop.f32.mrb[0].mxu0
        %2773 = vmatprep.mubr.bf16.mxu0 0
        %2774 = vmatmul.mubr.bf16.gmra.mrb[0].mxu0 %v2678
        %v2775 = vpop.f32.mrb[0].mxu0
        %v2776 = vadd.f32 0.0, %v2775
        %v2777 = vpop.f32.mrb[0].mxu0
        %v2778 = vpop.f32.mrb[0].mxu0
        %v2779 = vadd.f32 0.0, %v2778
        %v2780 = vpop.f32.mrb[0].mxu0
        %2781 = vmatprep.mubr.bf16.mxu0 0
        %2782 = vmatmul.mubr.bf16.gmra.mrb[0].mxu0 %v2681
        %v2783 = vpop.f32.mrb[0].mxu0
        %v2784 = vadd.f32 0.0, %v2783
        %v2785 = vpop.f32.mrb[0].mxu0
        %v2786 = vpop.f32.mrb[0].mxu0
        %v2787 = vadd.f32 0.0, %v2786
        %v2788 = vpop.f32.mrb[0].mxu0
        %2789 = vmatprep.mubr.bf16.mxu0 0
        %2790 = vmatmul.mubr.bf16.gmra.mrb[0].mxu0 %v2684
        %v2791 = vpop.f32.mrb[0].mxu0
        %v2792 = vadd.f32 0.0, %v2791
        %v2793 = vpop.f32.mrb[0].mxu0
        %v2794 = vpop.f32.mrb[0].mxu0
        %v2795 = vadd.f32 0.0, %v2794
        %v2796 = vpop.f32.mrb[0].mxu0
        %2797 = vmatprep.mubr.bf16.mxu0 0
        %2798 = vmatmul.mubr.bf16.gmra.mrb[0].mxu0 %v2687
        %v2799 = vpop.f32.mrb[0].mxu0
        %v2800 = vadd.f32 0.0, %v2799
        %v2801 = vpop.f32.mrb[0].mxu0
        %v2802 = vpop.f32.mrb[0].mxu0
        %v2803 = vadd.f32 0.0, %v2802
        %v2804 = vpop.f32.mrb[0].mxu0
        %2805 = vmatprep.mubr.bf16.mxu0 0
        %2806 = vmatmul.mubr.bf16.gmra.mrb[0].mxu0 %v2690
        %v2807 = vpop.f32.mrb[0].mxu0
        %v2808 = vadd.f32 0.0, %v2807
        %v2809 = vpop.f32.mrb[0].mxu0
        %v2810 = vpop.f32.mrb[0].mxu0
        %v2811 = vadd.f32 0.0, %v2810
        %v2812 = vpop.f32.mrb[0].mxu0
        %2813 = vmatprep.mubr.bf16.mxu0 0
        %2814 = vmatmul.mubr.bf16.gmra.mrb[0].mxu0 %v2693
        %v2815 = vpop.f32.mrb[0].mxu0
        %v2816 = vadd.f32 0.0, %v2815
        %v2817 = vpop.f32.mrb[0].mxu0
        %v2818 = vpop.f32.mrb[0].mxu0
        %v2819 = vadd.f32 0.0, %v2818
        %v2820 = vpop.f32.mrb[0].mxu0
        %2821 = vmatprep.mubr.bf16.mxu0 0
        %2822 = vmatmul.mubr.bf16.gmra.mrb[0].mxu0 %v2696
        %v2823 = vpop.f32.mrb[0].mxu0
        %v2824 = vadd.f32 0.0, %v2823
        %v2825 = vpop.f32.mrb[0].mxu0
        %v2826 = vpop.f32.mrb[0].mxu0
        %v2827 = vadd.f32 0.0, %v2826
        %v2828 = vpop.f32.mrb[0].mxu0
        %2829 = vmatprep.mubr.bf16.mxu0 0
        %2830 = vmatmul.mubr.bf16.gmra.mrb[0].mxu0 %v2699
        %v2831 = vpop.f32.mrb[0].mxu0
        %v2832 = vadd.f32 0.0, %v2831
        %v2833 = vpop.f32.mrb[0].mxu0
        %v2834 = vpop.f32.mrb[0].mxu0
        %v2835 = vadd.f32 0.0, %v2834
        %v2836 = vpop.f32.mrb[0].mxu0
        %2837 = vmatprep.mubr.bf16.mxu0 0
        %2838 = vmatmul.mubr.bf16.gmra.mrb[0].mxu0 %v2702
        %v2839 = vpop.f32.mrb[0].mxu0
        %v2840 = vadd.f32 0.0, %v2839
        %v2841 = vpop.f32.mrb[0].mxu0
        %v2842 = vpop.f32.mrb[0].mxu0
        %v2843 = vadd.f32 0.0, %v2842
        %v2844 = vpop.f32.mrb[0].mxu0
        %2845 = vmatprep.mubr.bf16.mxu0 0
        %2846 = vmatmul.mubr.bf16.gmra.mrb[0].mxu0 %v2705
        %v2847 = vpop.f32.mrb[0].mxu0
        %v2848 = vadd.f32 0.0, %v2847
        %v2849 = vpop.f32.mrb[0].mxu0
        %v2850 = vpop.f32.mrb[0].mxu0
        %v2851 = vadd.f32 0.0, %v2850
        %v2852 = vpop.f32.mrb[0].mxu0
        %2853 = vmatprep.mubr.bf16.mxu0 0
        %2854 = vmatmul.mubr.bf16.gmra.mrb[0].mxu0 %v2708
        %v2855 = vpop.f32.mrb[0].mxu0
        %v2856 = vadd.f32 0.0, %v2855
        %v2857 = vpop.f32.mrb[0].mxu0
        %v2858 = vpop.f32.mrb[0].mxu0
        %v2859 = vadd.f32 0.0, %v2858
        %v2860 = vpop.f32.mrb[0].mxu0
        %2861 = vmatprep.mubr.bf16.mxu0 0
        %2862 = vmatmul.mubr.bf16.gmra.mrb[0].mxu0 %v2711
        %v2863 = vpop.f32.mrb[0].mxu0
        %v2864 = vadd.f32 0.0, %v2863
        %v2865 = vpop.f32.mrb[0].mxu0
        %v2866 = vpop.f32.mrb[0].mxu0
        %v2867 = vadd.f32 0.0, %v2866
        %v2868 = vpop.f32.mrb[0].mxu0
        %2869 = vmatprep.mubr.bf16.mxu0 0
        %2870 = vmatmul.mubr.bf16.gmra.mrb[0].mxu0 %v2714
        %v2871 = vpop.f32.mrb[0].mxu0
        %v2872 = vadd.f32 0.0, %v2871
        %v2873 = vpop.f32.mrb[0].mxu0
        %v2874 = vpop.f32.mrb[0].mxu0
        %v2875 = vadd.f32 0.0, %v2874
        %v2876 = vpop.f32.mrb[0].mxu0
        %2877 = vmatprep.mubr.bf16.mxu0 0
        %2878 = vmatmul.mubr.bf16.gmra.mrb[0].mxu0 %v2717
        %v2879 = vpop.f32.mrb[0].mxu0
        %v2880 = vadd.f32 0.0, %v2879
        %v2881 = vpop.f32.mrb[0].mxu0
        %v2882 = vpop.f32.mrb[0].mxu0
        %v2883 = vadd.f32 0.0, %v2882
        %v2884 = vpop.f32.mrb[0].mxu0
        %2885 = vmatprep.mubr.bf16.mxu0 0
        %2886 = vmatmul.mubr.bf16.gmra.mrb[0].mxu0 %v2720
        %v2887 = vpop.f32.mrb[0].mxu0
        %v2888 = vadd.f32 0.0, %v2887
        %v2889 = vpop.f32.mrb[0].mxu0
        %v2890 = vpop.f32.mrb[0].mxu0
        %v2891 = vadd.f32 0.0, %v2890
        %v2892 = vpop.f32.mrb[0].mxu0
        %2893 = vmatprep.mubr.bf16.mxu0 0
        %2894 = vmatmul.mubr.bf16.gmra.mrb[0].mxu0 %v2723
        %v2895 = vpop.f32.mrb[0].mxu0
        %v2896 = vadd.f32 0.0, %v2895
        %v2897 = vpop.f32.mrb[0].mxu0
        %v2898 = vpop.f32.mrb[0].mxu0
        %v2899 = vadd.f32 0.0, %v2898
        %v2900 = vpop.f32.mrb[0].mxu0
        %2901 = vdwg.mxu0
        %v2902 = vld [vmem:[#allocation2] sm:$0xff]
        %v2903 = vld [vmem:[#allocation2 + $0x8] sm:$0xff]
        %v2904 = vld [vmem:[#allocation2 + $0x10] sm:$0xff]
        %v2905 = vld [vmem:[#allocation2 + $0x18] sm:$0xff]
        %v2906 = vld [vmem:[#allocation2 + $0x20] sm:$0xff]
        %v2907 = vld [vmem:[#allocation2 + $0x28] sm:$0xff]
        %v2908 = vld [vmem:[#allocation2 + $0x30] sm:$0xff]
        %v2909 = vld [vmem:[#allocation2 + $0x38] sm:$0xff]
        %v2910 = vld [vmem:[#allocation2 + $0x40] sm:$0xff]
        %v2911 = vld [vmem:[#allocation2 + $0x48] sm:$0xff]
        %v2912 = vld [vmem:[#allocation2 + $0x50] sm:$0xff]
        %v2913 = vld [vmem:[#allocation2 + $0x58] sm:$0xff]
        %v2914 = vld [vmem:[#allocation2 + $0x60] sm:$0xff]
        %v2915 = vld [vmem:[#allocation2 + $0x68] sm:$0xff]
        %v2916 = vld [vmem:[#allocation2 + $0x70] sm:$0xff]
        %v2917 = vld [vmem:[#allocation2 + $0x78] sm:$0xff]
        %v2918 = vld [vmem:[#allocation2 + $0x80] sm:$0xff]
        %v2919 = vld [vmem:[#allocation2 + $0x88] sm:$0xff]
        %v2920 = vld [vmem:[#allocation2 + $0x90] sm:$0xff]
        %v2921 = vld [vmem:[#allocation2 + $0x98] sm:$0xff]
        %v2922 = vld [vmem:[#allocation2 + $0xa0] sm:$0xff]
        %v2923 = vld [vmem:[#allocation2 + $0xa8] sm:$0xff]
        %v2924 = vld [vmem:[#allocation2 + $0xb0] sm:$0xff]
        %v2925 = vld [vmem:[#allocation2 + $0xb8] sm:$0xff]
        %v2926 = vld [vmem:[#allocation2 + $0xc0] sm:$0xff]
        %v2927 = vld [vmem:[#allocation2 + $0xc8] sm:$0xff]
        %v2928 = vld [vmem:[#allocation2 + $0xd0] sm:$0xff]
        %v2929 = vld [vmem:[#allocation2 + $0xd8] sm:$0xff]
        %v2930 = vld [vmem:[#allocation2 + $0xe0] sm:$0xff]
        %v2931 = vld [vmem:[#allocation2 + $0xe8] sm:$0xff]
        %v2932 = vld [vmem:[#allocation2 + $0xf0] sm:$0xff]
        %v2933 = vld [vmem:[#allocation2 + $0xf8] sm:$0xff]
        %v2934 = vld [vmem:[#allocation2 + $0x100] sm:$0xff]
        %v2935 = vld [vmem:[#allocation2 + $0x108] sm:$0xff]
        %v2936 = vld [vmem:[#allocation2 + $0x110] sm:$0xff]
        %v2937 = vld [vmem:[#allocation2 + $0x118] sm:$0x3f]
        %v2938 = vadd.f32 %v2902, %v2760
        %v2939 = vadd.f32 %v2903, %v2763
        %v2940 = vadd.f32 %v2904, %v2768
        %v2941 = vadd.f32 %v2905, %v2771
        %v2942 = vadd.f32 %v2906, %v2776
        %v2943 = vadd.f32 %v2907, %v2779
        %v2944 = vadd.f32 %v2908, %v2784
        %v2945 = vadd.f32 %v2909, %v2787
        %v2946 = vadd.f32 %v2910, %v2792
        %v2947 = vadd.f32 %v2911, %v2795
        %v2948 = vadd.f32 %v2912, %v2800
        %v2949 = vadd.f32 %v2913, %v2803
        %v2950 = vadd.f32 %v2914, %v2808
        %v2951 = vadd.f32 %v2915, %v2811
        %v2952 = vadd.f32 %v2916, %v2816
        %v2953 = vadd.f32 %v2917, %v2819
        %v2954 = vadd.f32 %v2918, %v2824
        %v2955 = vadd.f32 %v2919, %v2827
        %v2956 = vadd.f32 %v2920, %v2832
        %v2957 = vadd.f32 %v2921, %v2835
        %v2958 = vadd.f32 %v2922, %v2840
        %v2959 = vadd.f32 %v2923, %v2843
        %v2960 = vadd.f32 %v2924, %v2848
        %v2961 = vadd.f32 %v2925, %v2851
        %v2962 = vadd.f32 %v2926, %v2856
        %v2963 = vadd.f32 %v2927, %v2859
        %v2964 = vadd.f32 %v2928, %v2864
        %v2965 = vadd.f32 %v2929, %v2867
        %v2966 = vadd.f32 %v2930, %v2872
        %v2967 = vadd.f32 %v2931, %v2875
        %v2968 = vadd.f32 %v2932, %v2880
        %v2969 = vadd.f32 %v2933, %v2883
        %v2970 = vadd.f32 %v2934, %v2888
        %v2971 = vadd.f32 %v2935, %v2891
        %v2972 = vadd.f32 %v2936, %v2896
        %v2973 = vadd.f32 %v2937, %v2899
        %2974 = vst.msk [vmem:[#allocation2] sm:$0xff] %vm427, %v2938
        %2975 = vst.msk [vmem:[#allocation2 + $0x8] sm:$0xff] %vm427, %v2939
        %2976 = vst.msk [vmem:[#allocation2 + $0x10] sm:$0xff] %vm427, %v2940
        %2977 = vst.msk [vmem:[#allocation2 + $0x18] sm:$0xff] %vm427, %v2941
        %2978 = vst.msk [vmem:[#allocation2 + $0x20] sm:$0xff] %vm427, %v2942
        %2979 = vst.msk [vmem:[#allocation2 + $0x28] sm:$0xff] %vm427, %v2943
        %2980 = vst.msk [vmem:[#allocation2 + $0x30] sm:$0xff] %vm427, %v2944
        %2981 = vst.msk [vmem:[#allocation2 + $0x38] sm:$0xff] %vm427, %v2945
        %2982 = vst.msk [vmem:[#allocation2 + $0x40] sm:$0xff] %vm427, %v2946
        %2983 = vst.msk [vmem:[#allocation2 + $0x48] sm:$0xff] %vm427, %v2947
        %2984 = vst.msk [vmem:[#allocation2 + $0x50] sm:$0xff] %vm427, %v2948
        %2985 = vst.msk [vmem:[#allocation2 + $0x58] sm:$0xff] %vm427, %v2949
        %2986 = vst.msk [vmem:[#allocation2 + $0x60] sm:$0xff] %vm427, %v2950
        %2987 = vst.msk [vmem:[#allocation2 + $0x68] sm:$0xff] %vm427, %v2951
        %2988 = vst.msk [vmem:[#allocation2 + $0x70] sm:$0xff] %vm427, %v2952
        %2989 = vst.msk [vmem:[#allocation2 + $0x78] sm:$0xff] %vm427, %v2953
        %2990 = vst.msk [vmem:[#allocation2 + $0x80] sm:$0xff] %vm427, %v2954
        %2991 = vst.msk [vmem:[#allocation2 + $0x88] sm:$0xff] %vm427, %v2955
        %2992 = vst.msk [vmem:[#allocation2 + $0x90] sm:$0xff] %vm427, %v2956
        %2993 = vst.msk [vmem:[#allocation2 + $0x98] sm:$0xff] %vm427, %v2957
        %2994 = vst.msk [vmem:[#allocation2 + $0xa0] sm:$0xff] %vm427, %v2958
        %2995 = vst.msk [vmem:[#allocation2 + $0xa8] sm:$0xff] %vm427, %v2959
        %2996 = vst.msk [vmem:[#allocation2 + $0xb0] sm:$0xff] %vm427, %v2960
        %2997 = vst.msk [vmem:[#allocation2 + $0xb8] sm:$0xff] %vm427, %v2961
        %2998 = vst.msk [vmem:[#allocation2 + $0xc0] sm:$0xff] %vm427, %v2962
        %2999 = vst.msk [vmem:[#allocation2 + $0xc8] sm:$0xff] %vm427, %v2963
        %3000 = vst.msk [vmem:[#allocation2 + $0xd0] sm:$0xff] %vm427, %v2964
        %3001 = vst.msk [vmem:[#allocation2 + $0xd8] sm:$0xff] %vm427, %v2965
        %3002 = vst.msk [vmem:[#allocation2 + $0xe0] sm:$0xff] %vm427, %v2966
        %3003 = vst.msk [vmem:[#allocation2 + $0xe8] sm:$0xff] %vm427, %v2967
        %3004 = vst.msk [vmem:[#allocation2 + $0xf0] sm:$0xff] %vm427, %v2968
        %3005 = vst.msk [vmem:[#allocation2 + $0xf8] sm:$0xff] %vm427, %v2969
        %3006 = vst.msk [vmem:[#allocation2 + $0x100] sm:$0xff] %vm427, %v2970
        %3007 = vst.msk [vmem:[#allocation2 + $0x108] sm:$0xff] %vm427, %v2971
        %3008 = vst.msk [vmem:[#allocation2 + $0x110] sm:$0xff] %vm427, %v2972
        %3009 = vst.msk [vmem:[#allocation2 + $0x118] sm:$0x3f] %vm694, %v2973
        %v3010 = vld [vmem:[%s276 + $0x8] sm:$0xc]
        %v3011 = vld [vmem:[%s276 + $0xc] sm:$0xf]
        %v3012 = vld [vmem:[%s276 + $0x10] sm:$0xf]
        %v3013 = vld [vmem:[%s276 + $0x14] sm:$0xf]
        %v3014 = vld [vmem:[%s276 + $0x18] sm:$0xf]
        %v3015 = vld [vmem:[%s276 + $0x1c] sm:$0xf]
        %v3016 = vld [vmem:[%s276 + $0x20] sm:$0xf]
        %v3017 = vld [vmem:[%s276 + $0x24] sm:$0xf]
        %v3018 = vld [vmem:[%s276 + $0x28] sm:$0xf]
        %v3019 = vld [vmem:[%s276 + $0x2c] sm:$0xf]
        %v3020 = vld [vmem:[%s276 + $0x30] sm:$0xf]
        %v3021 = vld [vmem:[%s276 + $0x34] sm:$0xf]
        %v3022 = vld [vmem:[%s276 + $0x38] sm:$0xf]
        %v3023 = vld [vmem:[%s276 + $0x3c] sm:$0xf]
        %v3024 = vld [vmem:[%s276 + $0x40] sm:$0xf]
        %v3025 = vld [vmem:[%s276 + $0x44] sm:$0xf]
        %v3026 = vld [vmem:[%s276 + $0x48] sm:$0xf]
        %v3027 = vld [vmem:[%s276 + $0x4c] sm:$0xf]
        %v3028 = vld [vmem:[%s276 + $0x50] sm:$0xf]
        %v3029 = vld [vmem:[%s276 + $0x54] sm:$0xf]
        %v3030 = vld [vmem:[%s276 + $0x58] sm:$0xf]
        %v3031 = vld [vmem:[%s276 + $0x5c] sm:$0xf]
        %v3032 = vld [vmem:[%s276 + $0x60] sm:$0xf]
        %v3033 = vld [vmem:[%s276 + $0x64] sm:$0xf]
        %v3034 = vld [vmem:[%s276 + $0x68] sm:$0xf]
        %v3035 = vld [vmem:[%s276 + $0x6c] sm:$0xf]
        %v3036 = vld [vmem:[%s276 + $0x70] sm:$0xf]
        %v3037 = vld [vmem:[%s276 + $0x74] sm:$0xf]
        %v3038 = vld [vmem:[%s276 + $0x78] sm:$0xf]
        %v3039 = vld [vmem:[%s276 + $0x7c] sm:$0xf]
        %v3040 = vld [vmem:[%s276 + $0x80] sm:$0xf]
        %v3041 = vld [vmem:[%s276 + $0x84] sm:$0xf]
        %v3042 = vld [vmem:[%s276 + $0x88] sm:$0xf]
        %v3043 = vld [vmem:[%s276 + $0x8c] sm:$0xf]
        %v3044 = vld [vmem:[%s276 + $0x90] sm:$0xf]
        %v3045 = vld [vmem:[%s276 + $0x94] sm:$0xf]
        %v3046 = vld [vmem:[%s276 + $0x98] sm:$0x1]
        %s3047 = scalar_lea.vmem %s1, 80
        %v3048 = vld [vmem:[%s3047] sm:$0xf]
        %v3049 = vld [vmem:[%s3047 + $0x4] sm:$0xf]
        %v3050 = vld [vmem:[%s3047 + $0x8] sm:$0xf]
        %v3051 = vld [vmem:[%s3047 + $0xc] sm:$0xf]
        %v3089 = vunpack.c.l.b16 %v3010
        %v3090 = vunpack.c.l.b16 %v3011
        %v3091 = vunpack.c.l.b16 %v3012
        %v3092 = vunpack.c.l.b16 %v3013
        %v3093 = vunpack.c.l.b16 %v3014
        %v3094 = vunpack.c.l.b16 %v3015
        %v3095 = vunpack.c.l.b16 %v3016
        %v3096 = vunpack.c.l.b16 %v3017
        %v3097 = vunpack.c.l.b16 %v3018
        %v3098 = vunpack.c.l.b16 %v3019
        %v3099 = vunpack.c.l.b16 %v3020
        %v3100 = vunpack.c.l.b16 %v3021
        %v3101 = vunpack.c.l.b16 %v3022
        %v3102 = vunpack.c.l.b16 %v3023
        %v3103 = vunpack.c.l.b16 %v3024
        %v3104 = vunpack.c.l.b16 %v3025
        %v3105 = vunpack.c.l.b16 %v3026
        %v3106 = vunpack.c.l.b16 %v3027
        %v3107 = vunpack.c.l.b16 %v3028
        %v3108 = vunpack.c.l.b16 %v3029
        %v3109 = vunpack.c.l.b16 %v3030
        %v3110 = vunpack.c.l.b16 %v3031
        %v3111 = vunpack.c.l.b16 %v3032
        %v3112 = vunpack.c.l.b16 %v3033
        %v3113 = vunpack.c.l.b16 %v3034
        %v3114 = vunpack.c.l.b16 %v3035
        %v3115 = vunpack.c.l.b16 %v3036
        %v3116 = vunpack.c.l.b16 %v3037
        %v3117 = vunpack.c.l.b16 %v3038
        %v3118 = vunpack.c.l.b16 %v3039
        %v3119 = vunpack.c.l.b16 %v3040
        %v3120 = vunpack.c.l.b16 %v3041
        %v3121 = vunpack.c.l.b16 %v3042
        %v3122 = vunpack.c.l.b16 %v3043
        %v3123 = vunpack.c.l.b16 %v3044
        %v3124 = vunpack.c.l.b16 %v3045
        %v3125 = vunpack.c.l.b16 %v3046
        %v3126 = vpack.c.b16 %v3090, %v3089
        %v3127 = vpack.c.b16 %v3092, %v3091
        %v3128 = vpack.c.b16 %v3094, %v3093
        %v3129 = vpack.c.b16 %v3096, %v3095
        %v3130 = vpack.c.b16 %v3098, %v3097
        %v3131 = vpack.c.b16 %v3100, %v3099
        %v3132 = vpack.c.b16 %v3102, %v3101
        %v3133 = vpack.c.b16 %v3104, %v3103
        %v3134 = vpack.c.b16 %v3106, %v3105
        %v3135 = vpack.c.b16 %v3108, %v3107
        %v3136 = vpack.c.b16 %v3110, %v3109
        %v3137 = vpack.c.b16 %v3112, %v3111
        %v3138 = vpack.c.b16 %v3114, %v3113
        %v3139 = vpack.c.b16 %v3116, %v3115
        %v3140 = vpack.c.b16 %v3118, %v3117
        %v3141 = vpack.c.b16 %v3120, %v3119
        %v3142 = vpack.c.b16 %v3122, %v3121
        %v3143 = vpack.c.b16 %v3124, %v3123
        %v3144 = vpack.c.b16 %v3125, %v3125
        %vm3145 = vcmask 1045504
        %v3146 = vrot.slane %v3126, 2
        %v3147 = vrot.slane %v3127, 2
        %v3148 = vsel %vm3145, %v3146, %v3147
        %v3149 = vrot.slane %v3128, 2
        %v3150 = vsel %vm3145, %v3147, %v3149
        %v3151 = vrot.slane %v3129, 2
        %v3152 = vsel %vm3145, %v3149, %v3151
        %v3153 = vrot.slane %v3130, 2
        %v3154 = vsel %vm3145, %v3151, %v3153
        %v3155 = vrot.slane %v3131, 2
        %v3156 = vsel %vm3145, %v3153, %v3155
        %v3157 = vrot.slane %v3132, 2
        %v3158 = vsel %vm3145, %v3155, %v3157
        %v3159 = vrot.slane %v3133, 2
        %v3160 = vsel %vm3145, %v3157, %v3159
        %v3161 = vrot.slane %v3134, 2
        %v3162 = vsel %vm3145, %v3159, %v3161
        %v3163 = vrot.slane %v3135, 2
        %v3164 = vsel %vm3145, %v3161, %v3163
        %v3165 = vrot.slane %v3136, 2
        %v3166 = vsel %vm3145, %v3163, %v3165
        %v3167 = vrot.slane %v3137, 2
        %v3168 = vsel %vm3145, %v3165, %v3167
        %v3169 = vrot.slane %v3138, 2
        %v3170 = vsel %vm3145, %v3167, %v3169
        %v3171 = vrot.slane %v3139, 2
        %v3172 = vsel %vm3145, %v3169, %v3171
        %v3173 = vrot.slane %v3140, 2
        %v3174 = vsel %vm3145, %v3171, %v3173
        %v3175 = vrot.slane %v3141, 2
        %v3176 = vsel %vm3145, %v3173, %v3175
        %v3177 = vrot.slane %v3142, 2
        %v3178 = vsel %vm3145, %v3175, %v3177
        %v3179 = vrot.slane %v3143, 2
        %v3180 = vsel %vm3145, %v3177, %v3179
        %v3181 = vrot.slane %v3144, 2
        %v3182 = vsel %vm3145, %v3179, %v3181
        %v3187 = vunpack.c.l.b16 %v3048
        %v3188 = vunpack.c.l.b16 %v3049
        %v3189 = vunpack.c.l.b16 %v3050
        %v3190 = vunpack.c.l.b16 %v3051
        %v3191 = vpack.c.b16 %v3188, %v3187
        %v3192 = vpack.c.b16 %v3190, %v3189
        %v3196 = vsel %vm427, %v3148, 0
        %v3199 = vsel %vm427, %v3150, 0
        %v3202 = vsel %vm427, %v3152, 0
        %v3205 = vsel %vm427, %v3154, 0
        %v3208 = vsel %vm427, %v3156, 0
        %v3211 = vsel %vm427, %v3158, 0
        %v3214 = vsel %vm427, %v3160, 0
        %v3217 = vsel %vm427, %v3162, 0
        %v3220 = vsel %vm427, %v3164, 0
        %v3223 = vsel %vm427, %v3166, 0
        %v3226 = vsel %vm427, %v3168, 0
        %v3229 = vsel %vm427, %v3170, 0
        %v3232 = vsel %vm427, %v3172, 0
        %v3235 = vsel %vm427, %v3174, 0
        %v3238 = vsel %vm427, %v3176, 0
        %v3241 = vsel %vm427, %v3178, 0
        %v3244 = vsel %vm427, %v3180, 0
        %v3247 = vsel %vm427, %v3182, 0
        %3249 = vmatprep.subr.bf16.mxu0 0
        %3250 = vmatpush1.bf16.msra.mxu0 %v3191
        %3251 = vmatprep.subr.bf16.mxu0 0
        %3252 = vmatpush1.bf16.msra.mxu0 %v3192
        %3253 = vmatprep.subr.bf16.mxu0 0
        %3254 = vmatpush1.bf16.msra.mxu0 0
        %3255 = vmatprep.subr.bf16.mxu0 0
        %3256 = vmatpush1.bf16.msra.mxu0 0
        %3257 = vmatprep.subr.bf16.mxu0 0
        %3258 = vmatpush1.bf16.msra.mxu0 0
        %3259 = vmatprep.subr.bf16.mxu0 0
        %3260 = vmatpush1.bf16.msra.mxu0 0
        %3261 = vmatprep.subr.bf16.mxu0 0
        %3262 = vmatpush1.bf16.msra.mxu0 0
        %3263 = vmatprep.subr.bf16.mxu0 0
        %3264 = vmatpush1.bf16.msra.mxu0 0
        %3265 = vmatprep.subr.bf16.mxu0 0
        %3266 = vmatpush1.bf16.msra.mxu0 0
        %3267 = vmatprep.subr.bf16.mxu0 0
        %3268 = vmatpush1.bf16.msra.mxu0 0
        %3269 = vmatprep.subr.bf16.mxu0 0
        %3270 = vmatpush1.bf16.msra.mxu0 0
        %3271 = vmatprep.subr.bf16.mxu0 0
        %3272 = vmatpush1.bf16.msra.mxu0 0
        %3273 = vmatprep.subr.bf16.mxu0 0
        %3274 = vmatpush1.bf16.msra.mxu0 0
        %3275 = vmatprep.subr.bf16.mxu0 0
        %3276 = vmatpush1.bf16.msra.mxu0 0
        %3277 = vmatprep.subr.bf16.mxu0 0
        %3278 = vmatpush1.bf16.msra.mxu0 0
        %3279 = vmatprep.subr.bf16.mxu0 0
        %3280 = vmatpush1.bf16.msra.mxu0 0
        %3281 = vmatprep.mubr.bf16.mxu0 0
        %3282 = vmatmul.mubr.bf16.gmra.mrb[0].mxu0 %v3196
        %v3283 = vpop.f32.mrb[0].mxu0
        %v3284 = vadd.f32 0.0, %v3283
        %v3285 = vpop.f32.mrb[0].mxu0
        %v3286 = vpop.f32.mrb[0].mxu0
        %v3287 = vadd.f32 0.0, %v3286
        %v3288 = vpop.f32.mrb[0].mxu0
        %3289 = vmatprep.mubr.bf16.mxu0 0
        %3290 = vmatmul.mubr.bf16.gmra.mrb[0].mxu0 %v3199
        %v3291 = vpop.f32.mrb[0].mxu0
        %v3292 = vadd.f32 0.0, %v3291
        %v3293 = vpop.f32.mrb[0].mxu0
        %v3294 = vpop.f32.mrb[0].mxu0
        %v3295 = vadd.f32 0.0, %v3294
        %v3296 = vpop.f32.mrb[0].mxu0
        %3297 = vmatprep.mubr.bf16.mxu0 0
        %3298 = vmatmul.mubr.bf16.gmra.mrb[0].mxu0 %v3202
        %v3299 = vpop.f32.mrb[0].mxu0
        %v3300 = vadd.f32 0.0, %v3299
        %v3301 = vpop.f32.mrb[0].mxu0
        %v3302 = vpop.f32.mrb[0].mxu0
        %v3303 = vadd.f32 0.0, %v3302
        %v3304 = vpop.f32.mrb[0].mxu0
        %3305 = vmatprep.mubr.bf16.mxu0 0
        %3306 = vmatmul.mubr.bf16.gmra.mrb[0].mxu0 %v3205
        %v3307 = vpop.f32.mrb[0].mxu0
        %v3308 = vadd.f32 0.0, %v3307
        %v3309 = vpop.f32.mrb[0].mxu0
        %v3310 = vpop.f32.mrb[0].mxu0
        %v3311 = vadd.f32 0.0, %v3310
        %v3312 = vpop.f32.mrb[0].mxu0
        %3313 = vmatprep.mubr.bf16.mxu0 0
        %3314 = vmatmul.mubr.bf16.gmra.mrb[0].mxu0 %v3208
        %v3315 = vpop.f32.mrb[0].mxu0
        %v3316 = vadd.f32 0.0, %v3315
        %v3317 = vpop.f32.mrb[0].mxu0
        %v3318 = vpop.f32.mrb[0].mxu0
        %v3319 = vadd.f32 0.0, %v3318
        %v3320 = vpop.f32.mrb[0].mxu0
        %3321 = vmatprep.mubr.bf16.mxu0 0
        %3322 = vmatmul.mubr.bf16.gmra.mrb[0].mxu0 %v3211
        %v3323 = vpop.f32.mrb[0].mxu0
        %v3324 = vadd.f32 0.0, %v3323
        %v3325 = vpop.f32.mrb[0].mxu0
        %v3326 = vpop.f32.mrb[0].mxu0
        %v3327 = vadd.f32 0.0, %v3326
        %v3328 = vpop.f32.mrb[0].mxu0
        %3329 = vmatprep.mubr.bf16.mxu0 0
        %3330 = vmatmul.mubr.bf16.gmra.mrb[0].mxu0 %v3214
        %v3331 = vpop.f32.mrb[0].mxu0
        %v3332 = vadd.f32 0.0, %v3331
        %v3333 = vpop.f32.mrb[0].mxu0
        %v3334 = vpop.f32.mrb[0].mxu0
        %v3335 = vadd.f32 0.0, %v3334
        %v3336 = vpop.f32.mrb[0].mxu0
        %3337 = vmatprep.mubr.bf16.mxu0 0
        %3338 = vmatmul.mubr.bf16.gmra.mrb[0].mxu0 %v3217
        %v3339 = vpop.f32.mrb[0].mxu0
        %v3340 = vadd.f32 0.0, %v3339
        %v3341 = vpop.f32.mrb[0].mxu0
        %v3342 = vpop.f32.mrb[0].mxu0
        %v3343 = vadd.f32 0.0, %v3342
        %v3344 = vpop.f32.mrb[0].mxu0
        %3345 = vmatprep.mubr.bf16.mxu0 0
        %3346 = vmatmul.mubr.bf16.gmra.mrb[0].mxu0 %v3220
        %v3347 = vpop.f32.mrb[0].mxu0
        %v3348 = vadd.f32 0.0, %v3347
        %v3349 = vpop.f32.mrb[0].mxu0
        %v3350 = vpop.f32.mrb[0].mxu0
        %v3351 = vadd.f32 0.0, %v3350
        %v3352 = vpop.f32.mrb[0].mxu0
        %3353 = vmatprep.mubr.bf16.mxu0 0
        %3354 = vmatmul.mubr.bf16.gmra.mrb[0].mxu0 %v3223
        %v3355 = vpop.f32.mrb[0].mxu0
        %v3356 = vadd.f32 0.0, %v3355
        %v3357 = vpop.f32.mrb[0].mxu0
        %v3358 = vpop.f32.mrb[0].mxu0
        %v3359 = vadd.f32 0.0, %v3358
        %v3360 = vpop.f32.mrb[0].mxu0
        %3361 = vmatprep.mubr.bf16.mxu0 0
        %3362 = vmatmul.mubr.bf16.gmra.mrb[0].mxu0 %v3226
        %v3363 = vpop.f32.mrb[0].mxu0
        %v3364 = vadd.f32 0.0, %v3363
        %v3365 = vpop.f32.mrb[0].mxu0
        %v3366 = vpop.f32.mrb[0].mxu0
        %v3367 = vadd.f32 0.0, %v3366
        %v3368 = vpop.f32.mrb[0].mxu0
        %3369 = vmatprep.mubr.bf16.mxu0 0
        %3370 = vmatmul.mubr.bf16.gmra.mrb[0].mxu0 %v3229
        %v3371 = vpop.f32.mrb[0].mxu0
        %v3372 = vadd.f32 0.0, %v3371
        %v3373 = vpop.f32.mrb[0].mxu0
        %v3374 = vpop.f32.mrb[0].mxu0
        %v3375 = vadd.f32 0.0, %v3374
        %v3376 = vpop.f32.mrb[0].mxu0
        %3377 = vmatprep.mubr.bf16.mxu0 0
        %3378 = vmatmul.mubr.bf16.gmra.mrb[0].mxu0 %v3232
        %v3379 = vpop.f32.mrb[0].mxu0
        %v3380 = vadd.f32 0.0, %v3379
        %v3381 = vpop.f32.mrb[0].mxu0
        %v3382 = vpop.f32.mrb[0].mxu0
        %v3383 = vadd.f32 0.0, %v3382
        %v3384 = vpop.f32.mrb[0].mxu0
        %3385 = vmatprep.mubr.bf16.mxu0 0
        %3386 = vmatmul.mubr.bf16.gmra.mrb[0].mxu0 %v3235
        %v3387 = vpop.f32.mrb[0].mxu0
        %v3388 = vadd.f32 0.0, %v3387
        %v3389 = vpop.f32.mrb[0].mxu0
        %v3390 = vpop.f32.mrb[0].mxu0
        %v3391 = vadd.f32 0.0, %v3390
        %v3392 = vpop.f32.mrb[0].mxu0
        %3393 = vmatprep.mubr.bf16.mxu0 0
        %3394 = vmatmul.mubr.bf16.gmra.mrb[0].mxu0 %v3238
        %v3395 = vpop.f32.mrb[0].mxu0
        %v3396 = vadd.f32 0.0, %v3395
        %v3397 = vpop.f32.mrb[0].mxu0
        %v3398 = vpop.f32.mrb[0].mxu0
        %v3399 = vadd.f32 0.0, %v3398
        %v3400 = vpop.f32.mrb[0].mxu0
        %3401 = vmatprep.mubr.bf16.mxu0 0
        %3402 = vmatmul.mubr.bf16.gmra.mrb[0].mxu0 %v3241
        %v3403 = vpop.f32.mrb[0].mxu0
        %v3404 = vadd.f32 0.0, %v3403
        %v3405 = vpop.f32.mrb[0].mxu0
        %v3406 = vpop.f32.mrb[0].mxu0
        %v3407 = vadd.f32 0.0, %v3406
        %v3408 = vpop.f32.mrb[0].mxu0
        %3409 = vmatprep.mubr.bf16.mxu0 0
        %3410 = vmatmul.mubr.bf16.gmra.mrb[0].mxu0 %v3244
        %v3411 = vpop.f32.mrb[0].mxu0
        %v3412 = vadd.f32 0.0, %v3411
        %v3413 = vpop.f32.mrb[0].mxu0
        %v3414 = vpop.f32.mrb[0].mxu0
        %v3415 = vadd.f32 0.0, %v3414
        %v3416 = vpop.f32.mrb[0].mxu0
        %3417 = vmatprep.mubr.bf16.mxu0 0
        %3418 = vmatmul.mubr.bf16.gmra.mrb[0].mxu0 %v3247
        %v3419 = vpop.f32.mrb[0].mxu0
        %v3420 = vadd.f32 0.0, %v3419
        %v3421 = vpop.f32.mrb[0].mxu0
        %v3422 = vpop.f32.mrb[0].mxu0
        %v3423 = vadd.f32 0.0, %v3422
        %v3424 = vpop.f32.mrb[0].mxu0
        %3425 = vdwg.mxu0
        %v3426 = vld [vmem:[#allocation2] sm:$0xff]
        %v3427 = vld [vmem:[#allocation2 + $0x8] sm:$0xff]
        %v3428 = vld [vmem:[#allocation2 + $0x10] sm:$0xff]
        %v3429 = vld [vmem:[#allocation2 + $0x18] sm:$0xff]
        %v3430 = vld [vmem:[#allocation2 + $0x20] sm:$0xff]
        %v3431 = vld [vmem:[#allocation2 + $0x28] sm:$0xff]
        %v3432 = vld [vmem:[#allocation2 + $0x30] sm:$0xff]
        %v3433 = vld [vmem:[#allocation2 + $0x38] sm:$0xff]
        %v3434 = vld [vmem:[#allocation2 + $0x40] sm:$0xff]
        %v3435 = vld [vmem:[#allocation2 + $0x48] sm:$0xff]
        %v3436 = vld [vmem:[#allocation2 + $0x50] sm:$0xff]
        %v3437 = vld [vmem:[#allocation2 + $0x58] sm:$0xff]
        %v3438 = vld [vmem:[#allocation2 + $0x60] sm:$0xff]
        %v3439 = vld [vmem:[#allocation2 + $0x68] sm:$0xff]
        %v3440 = vld [vmem:[#allocation2 + $0x70] sm:$0xff]
        %v3441 = vld [vmem:[#allocation2 + $0x78] sm:$0xff]
        %v3442 = vld [vmem:[#allocation2 + $0x80] sm:$0xff]
        %v3443 = vld [vmem:[#allocation2 + $0x88] sm:$0xff]
        %v3444 = vld [vmem:[#allocation2 + $0x90] sm:$0xff]
        %v3445 = vld [vmem:[#allocation2 + $0x98] sm:$0xff]
        %v3446 = vld [vmem:[#allocation2 + $0xa0] sm:$0xff]
        %v3447 = vld [vmem:[#allocation2 + $0xa8] sm:$0xff]
        %v3448 = vld [vmem:[#allocation2 + $0xb0] sm:$0xff]
        %v3449 = vld [vmem:[#allocation2 + $0xb8] sm:$0xff]
        %v3450 = vld [vmem:[#allocation2 + $0xc0] sm:$0xff]
        %v3451 = vld [vmem:[#allocation2 + $0xc8] sm:$0xff]
        %v3452 = vld [vmem:[#allocation2 + $0xd0] sm:$0xff]
        %v3453 = vld [vmem:[#allocation2 + $0xd8] sm:$0xff]
        %v3454 = vld [vmem:[#allocation2 + $0xe0] sm:$0xff]
        %v3455 = vld [vmem:[#allocation2 + $0xe8] sm:$0xff]
        %v3456 = vld [vmem:[#allocation2 + $0xf0] sm:$0xff]
        %v3457 = vld [vmem:[#allocation2 + $0xf8] sm:$0xff]
        %v3458 = vld [vmem:[#allocation2 + $0x100] sm:$0xff]
        %v3459 = vld [vmem:[#allocation2 + $0x108] sm:$0xff]
        %v3460 = vld [vmem:[#allocation2 + $0x110] sm:$0xff]
        %v3461 = vld [vmem:[#allocation2 + $0x118] sm:$0x3f]
        %v3462 = vadd.f32 %v3426, %v3284
        %v3463 = vadd.f32 %v3427, %v3287
        %v3464 = vadd.f32 %v3428, %v3292
        %v3465 = vadd.f32 %v3429, %v3295
        %v3466 = vadd.f32 %v3430, %v3300
        %v3467 = vadd.f32 %v3431, %v3303
        %v3468 = vadd.f32 %v3432, %v3308
        %v3469 = vadd.f32 %v3433, %v3311
        %v3470 = vadd.f32 %v3434, %v3316
        %v3471 = vadd.f32 %v3435, %v3319
        %v3472 = vadd.f32 %v3436, %v3324
        %v3473 = vadd.f32 %v3437, %v3327
        %v3474 = vadd.f32 %v3438, %v3332
        %v3475 = vadd.f32 %v3439, %v3335
        %v3476 = vadd.f32 %v3440, %v3340
        %v3477 = vadd.f32 %v3441, %v3343
        %v3478 = vadd.f32 %v3442, %v3348
        %v3479 = vadd.f32 %v3443, %v3351
        %v3480 = vadd.f32 %v3444, %v3356
        %v3481 = vadd.f32 %v3445, %v3359
        %v3482 = vadd.f32 %v3446, %v3364
        %v3483 = vadd.f32 %v3447, %v3367
        %v3484 = vadd.f32 %v3448, %v3372
        %v3485 = vadd.f32 %v3449, %v3375
        %v3486 = vadd.f32 %v3450, %v3380
        %v3487 = vadd.f32 %v3451, %v3383
        %v3488 = vadd.f32 %v3452, %v3388
        %v3489 = vadd.f32 %v3453, %v3391
        %v3490 = vadd.f32 %v3454, %v3396
        %v3491 = vadd.f32 %v3455, %v3399
        %v3492 = vadd.f32 %v3456, %v3404
        %v3493 = vadd.f32 %v3457, %v3407
        %v3494 = vadd.f32 %v3458, %v3412
        %v3495 = vadd.f32 %v3459, %v3415
        %v3496 = vadd.f32 %v3460, %v3420
        %v3497 = vadd.f32 %v3461, %v3423
        %3498 = vst.msk [vmem:[#allocation2] sm:$0xff] %vm427, %v3462
        %3499 = vst.msk [vmem:[#allocation2 + $0x8] sm:$0xff] %vm427, %v3463
        %3500 = vst.msk [vmem:[#allocation2 + $0x10] sm:$0xff] %vm427, %v3464
        %3501 = vst.msk [vmem:[#allocation2 + $0x18] sm:$0xff] %vm427, %v3465
        %3502 = vst.msk [vmem:[#allocation2 + $0x20] sm:$0xff] %vm427, %v3466
        %3503 = vst.msk [vmem:[#allocation2 + $0x28] sm:$0xff] %vm427, %v3467
        %3504 = vst.msk [vmem:[#allocation2 + $0x30] sm:$0xff] %vm427, %v3468
        %3505 = vst.msk [vmem:[#allocation2 + $0x38] sm:$0xff] %vm427, %v3469
        %3506 = vst.msk [vmem:[#allocation2 + $0x40] sm:$0xff] %vm427, %v3470
        %3507 = vst.msk [vmem:[#allocation2 + $0x48] sm:$0xff] %vm427, %v3471
        %3508 = vst.msk [vmem:[#allocation2 + $0x50] sm:$0xff] %vm427, %v3472
        %3509 = vst.msk [vmem:[#allocation2 + $0x58] sm:$0xff] %vm427, %v3473
        %3510 = vst.msk [vmem:[#allocation2 + $0x60] sm:$0xff] %vm427, %v3474
        %3511 = vst.msk [vmem:[#allocation2 + $0x68] sm:$0xff] %vm427, %v3475
        %3512 = vst.msk [vmem:[#allocation2 + $0x70] sm:$0xff] %vm427, %v3476
        %3513 = vst.msk [vmem:[#allocation2 + $0x78] sm:$0xff] %vm427, %v3477
        %3514 = vst.msk [vmem:[#allocation2 + $0x80] sm:$0xff] %vm427, %v3478
        %3515 = vst.msk [vmem:[#allocation2 + $0x88] sm:$0xff] %vm427, %v3479
        %3516 = vst.msk [vmem:[#allocation2 + $0x90] sm:$0xff] %vm427, %v3480
        %3517 = vst.msk [vmem:[#allocation2 + $0x98] sm:$0xff] %vm427, %v3481
        %3518 = vst.msk [vmem:[#allocation2 + $0xa0] sm:$0xff] %vm427, %v3482
        %3519 = vst.msk [vmem:[#allocation2 + $0xa8] sm:$0xff] %vm427, %v3483
        %3520 = vst.msk [vmem:[#allocation2 + $0xb0] sm:$0xff] %vm427, %v3484
        %3521 = vst.msk [vmem:[#allocation2 + $0xb8] sm:$0xff] %vm427, %v3485
        %3522 = vst.msk [vmem:[#allocation2 + $0xc0] sm:$0xff] %vm427, %v3486
        %3523 = vst.msk [vmem:[#allocation2 + $0xc8] sm:$0xff] %vm427, %v3487
        %3524 = vst.msk [vmem:[#allocation2 + $0xd0] sm:$0xff] %vm427, %v3488
        %3525 = vst.msk [vmem:[#allocation2 + $0xd8] sm:$0xff] %vm427, %v3489
        %3526 = vst.msk [vmem:[#allocation2 + $0xe0] sm:$0xff] %vm427, %v3490
        %3527 = vst.msk [vmem:[#allocation2 + $0xe8] sm:$0xff] %vm427, %v3491
        %3528 = vst.msk [vmem:[#allocation2 + $0xf0] sm:$0xff] %vm427, %v3492
        %3529 = vst.msk [vmem:[#allocation2 + $0xf8] sm:$0xff] %vm427, %v3493
        %3530 = vst.msk [vmem:[#allocation2 + $0x100] sm:$0xff] %vm427, %v3494
        %3531 = vst.msk [vmem:[#allocation2 + $0x108] sm:$0xff] %vm427, %v3495
        %3532 = vst.msk [vmem:[#allocation2 + $0x110] sm:$0xff] %vm427, %v3496
        %3533 = vst.msk [vmem:[#allocation2 + $0x118] sm:$0x3f] %vm694, %v3497
        %v3534 = vld [vmem:[%s276 + $0x10] sm:$0xc]
        %v3535 = vld [vmem:[%s276 + $0x14] sm:$0xf]
        %v3536 = vld [vmem:[%s276 + $0x18] sm:$0xf]
        %v3537 = vld [vmem:[%s276 + $0x1c] sm:$0xf]
        %v3538 = vld [vmem:[%s276 + $0x20] sm:$0xf]
        %v3539 = vld [vmem:[%s276 + $0x24] sm:$0xf]
        %v3540 = vld [vmem:[%s276 + $0x28] sm:$0xf]
        %v3541 = vld [vmem:[%s276 + $0x2c] sm:$0xf]
        %v3542 = vld [vmem:[%s276 + $0x30] sm:$0xf]
        %v3543 = vld [vmem:[%s276 + $0x34] sm:$0xf]
        %v3544 = vld [vmem:[%s276 + $0x38] sm:$0xf]
        %v3545 = vld [vmem:[%s276 + $0x3c] sm:$0xf]
        %v3546 = vld [vmem:[%s276 + $0x40] sm:$0xf]
        %v3547 = vld [vmem:[%s276 + $0x44] sm:$0xf]
        %v3548 = vld [vmem:[%s276 + $0x48] sm:$0xf]
        %v3549 = vld [vmem:[%s276 + $0x4c] sm:$0xf]
        %v3550 = vld [vmem:[%s276 + $0x50] sm:$0xf]
        %v3551 = vld [vmem:[%s276 + $0x54] sm:$0xf]
        %v3552 = vld [vmem:[%s276 + $0x58] sm:$0xf]
        %v3553 = vld [vmem:[%s276 + $0x5c] sm:$0xf]
        %v3554 = vld [vmem:[%s276 + $0x60] sm:$0xf]
        %v3555 = vld [vmem:[%s276 + $0x64] sm:$0xf]
        %v3556 = vld [vmem:[%s276 + $0x68] sm:$0xf]
        %v3557 = vld [vmem:[%s276 + $0x6c] sm:$0xf]
        %v3558 = vld [vmem:[%s276 + $0x70] sm:$0xf]
        %v3559 = vld [vmem:[%s276 + $0x74] sm:$0xf]
        %v3560 = vld [vmem:[%s276 + $0x78] sm:$0xf]
        %v3561 = vld [vmem:[%s276 + $0x7c] sm:$0xf]
        %v3562 = vld [vmem:[%s276 + $0x80] sm:$0xf]
        %v3563 = vld [vmem:[%s276 + $0x84] sm:$0xf]
        %v3564 = vld [vmem:[%s276 + $0x88] sm:$0xf]
        %v3565 = vld [vmem:[%s276 + $0x8c] sm:$0xf]
        %v3566 = vld [vmem:[%s276 + $0x90] sm:$0xf]
        %v3567 = vld [vmem:[%s276 + $0x94] sm:$0xf]
        %v3568 = vld [vmem:[%s276 + $0x98] sm:$0xf]
        %v3569 = vld [vmem:[%s276 + $0x9c] sm:$0xf]
        %v3570 = vld [vmem:[%s276 + $0xa0] sm:$0x1]
        %s3571 = scalar_lea.vmem %s1, 96
        %v3572 = vld [vmem:[%s3571] sm:$0xf]
        %v3573 = vld [vmem:[%s3571 + $0x4] sm:$0xf]
        %v3574 = vld [vmem:[%s3571 + $0x8] sm:$0xf]
        %v3575 = vld [vmem:[%s3571 + $0xc] sm:$0xf]
        %v3613 = vunpack.c.l.b16 %v3534
        %v3614 = vunpack.c.l.b16 %v3535
        %v3615 = vunpack.c.l.b16 %v3536
        %v3616 = vunpack.c.l.b16 %v3537
        %v3617 = vunpack.c.l.b16 %v3538
        %v3618 = vunpack.c.l.b16 %v3539
        %v3619 = vunpack.c.l.b16 %v3540
        %v3620 = vunpack.c.l.b16 %v3541
        %v3621 = vunpack.c.l.b16 %v3542
        %v3622 = vunpack.c.l.b16 %v3543
        %v3623 = vunpack.c.l.b16 %v3544
        %v3624 = vunpack.c.l.b16 %v3545
        %v3625 = vunpack.c.l.b16 %v3546
        %v3626 = vunpack.c.l.b16 %v3547
        %v3627 = vunpack.c.l.b16 %v3548
        %v3628 = vunpack.c.l.b16 %v3549
        %v3629 = vunpack.c.l.b16 %v3550
        %v3630 = vunpack.c.l.b16 %v3551
        %v3631 = vunpack.c.l.b16 %v3552
        %v3632 = vunpack.c.l.b16 %v3553
        %v3633 = vunpack.c.l.b16 %v3554
        %v3634 = vunpack.c.l.b16 %v3555
        %v3635 = vunpack.c.l.b16 %v3556
        %v3636 = vunpack.c.l.b16 %v3557
        %v3637 = vunpack.c.l.b16 %v3558
        %v3638 = vunpack.c.l.b16 %v3559
        %v3639 = vunpack.c.l.b16 %v3560
        %v3640 = vunpack.c.l.b16 %v3561
        %v3641 = vunpack.c.l.b16 %v3562
        %v3642 = vunpack.c.l.b16 %v3563
        %v3643 = vunpack.c.l.b16 %v3564
        %v3644 = vunpack.c.l.b16 %v3565
        %v3645 = vunpack.c.l.b16 %v3566
        %v3646 = vunpack.c.l.b16 %v3567
        %v3647 = vunpack.c.l.b16 %v3568
        %v3648 = vunpack.c.l.b16 %v3569
        %v3649 = vunpack.c.l.b16 %v3570
        %v3650 = vpack.c.b16 %v3614, %v3613
        %v3651 = vpack.c.b16 %v3616, %v3615
        %v3652 = vpack.c.b16 %v3618, %v3617
        %v3653 = vpack.c.b16 %v3620, %v3619
        %v3654 = vpack.c.b16 %v3622, %v3621
        %v3655 = vpack.c.b16 %v3624, %v3623
        %v3656 = vpack.c.b16 %v3626, %v3625
        %v3657 = vpack.c.b16 %v3628, %v3627
        %v3658 = vpack.c.b16 %v3630, %v3629
        %v3659 = vpack.c.b16 %v3632, %v3631
        %v3660 = vpack.c.b16 %v3634, %v3633
        %v3661 = vpack.c.b16 %v3636, %v3635
        %v3662 = vpack.c.b16 %v3638, %v3637
        %v3663 = vpack.c.b16 %v3640, %v3639
        %v3664 = vpack.c.b16 %v3642, %v3641
        %v3665 = vpack.c.b16 %v3644, %v3643
        %v3666 = vpack.c.b16 %v3646, %v3645
        %v3667 = vpack.c.b16 %v3648, %v3647
        %v3668 = vpack.c.b16 %v3649, %v3649
        %v3669 = vrot.slane %v3650, 2
        %v3670 = vrot.slane %v3651, 2
        %v3671 = vsel %vm3145, %v3669, %v3670
        %v3672 = vrot.slane %v3652, 2
        %v3673 = vsel %vm3145, %v3670, %v3672
        %v3674 = vrot.slane %v3653, 2
        %v3675 = vsel %vm3145, %v3672, %v3674
        %v3676 = vrot.slane %v3654, 2
        %v3677 = vsel %vm3145, %v3674, %v3676
        %v3678 = vrot.slane %v3655, 2
        %v3679 = vsel %vm3145, %v3676, %v3678
        %v3680 = vrot.slane %v3656, 2
        %v3681 = vsel %vm3145, %v3678, %v3680
        %v3682 = vrot.slane %v3657, 2
        %v3683 = vsel %vm3145, %v3680, %v3682
        %v3684 = vrot.slane %v3658, 2
        %v3685 = vsel %vm3145, %v3682, %v3684
        %v3686 = vrot.slane %v3659, 2
        %v3687 = vsel %vm3145, %v3684, %v3686
        %v3688 = vrot.slane %v3660, 2
        %v3689 = vsel %vm3145, %v3686, %v3688
        %v3690 = vrot.slane %v3661, 2
        %v3691 = vsel %vm3145, %v3688, %v3690
        %v3692 = vrot.slane %v3662, 2
        %v3693 = vsel %vm3145, %v3690, %v3692
        %v3694 = vrot.slane %v3663, 2
        %v3695 = vsel %vm3145, %v3692, %v3694
        %v3696 = vrot.slane %v3664, 2
        %v3697 = vsel %vm3145, %v3694, %v3696
        %v3698 = vrot.slane %v3665, 2
        %v3699 = vsel %vm3145, %v3696, %v3698
        %v3700 = vrot.slane %v3666, 2
        %v3701 = vsel %vm3145, %v3698, %v3700
        %v3702 = vrot.slane %v3667, 2
        %v3703 = vsel %vm3145, %v3700, %v3702
        %v3704 = vrot.slane %v3668, 2
        %v3705 = vsel %vm3145, %v3702, %v3704
        %v3710 = vunpack.c.l.b16 %v3572
        %v3711 = vunpack.c.l.b16 %v3573
        %v3712 = vunpack.c.l.b16 %v3574
        %v3713 = vunpack.c.l.b16 %v3575
        %v3714 = vpack.c.b16 %v3711, %v3710
        %v3715 = vpack.c.b16 %v3713, %v3712
        %v3719 = vsel %vm427, %v3671, 0
        %v3722 = vsel %vm427, %v3673, 0
        %v3725 = vsel %vm427, %v3675, 0
        %v3728 = vsel %vm427, %v3677, 0
        %v3731 = vsel %vm427, %v3679, 0
        %v3734 = vsel %vm427, %v3681, 0
        %v3737 = vsel %vm427, %v3683, 0
        %v3740 = vsel %vm427, %v3685, 0
        %v3743 = vsel %vm427, %v3687, 0
        %v3746 = vsel %vm427, %v3689, 0
        %v3749 = vsel %vm427, %v3691, 0
        %v3752 = vsel %vm427, %v3693, 0
        %v3755 = vsel %vm427, %v3695, 0
        %v3758 = vsel %vm427, %v3697, 0
        %v3761 = vsel %vm427, %v3699, 0
        %v3764 = vsel %vm427, %v3701, 0
        %v3767 = vsel %vm427, %v3703, 0
        %v3770 = vsel %vm427, %v3705, 0
        %3772 = vmatprep.subr.bf16.mxu0 0
        %3773 = vmatpush1.bf16.msra.mxu0 %v3714
        %3774 = vmatprep.subr.bf16.mxu0 0
        %3775 = vmatpush1.bf16.msra.mxu0 %v3715
        %3776 = vmatprep.subr.bf16.mxu0 0
        %3777 = vmatpush1.bf16.msra.mxu0 0
        %3778 = vmatprep.subr.bf16.mxu0 0
        %3779 = vmatpush1.bf16.msra.mxu0 0
        %3780 = vmatprep.subr.bf16.mxu0 0
        %3781 = vmatpush1.bf16.msra.mxu0 0
        %3782 = vmatprep.subr.bf16.mxu0 0
        %3783 = vmatpush1.bf16.msra.mxu0 0
        %3784 = vmatprep.subr.bf16.mxu0 0
        %3785 = vmatpush1.bf16.msra.mxu0 0
        %3786 = vmatprep.subr.bf16.mxu0 0
        %3787 = vmatpush1.bf16.msra.mxu0 0
        %3788 = vmatprep.subr.bf16.mxu0 0
        %3789 = vmatpush1.bf16.msra.mxu0 0
        %3790 = vmatprep.subr.bf16.mxu0 0
        %3791 = vmatpush1.bf16.msra.mxu0 0
        %3792 = vmatprep.subr.bf16.mxu0 0
        %3793 = vmatpush1.bf16.msra.mxu0 0
        %3794 = vmatprep.subr.bf16.mxu0 0
        %3795 = vmatpush1.bf16.msra.mxu0 0
        %3796 = vmatprep.subr.bf16.mxu0 0
        %3797 = vmatpush1.bf16.msra.mxu0 0
        %3798 = vmatprep.subr.bf16.mxu0 0
        %3799 = vmatpush1.bf16.msra.mxu0 0
        %3800 = vmatprep.subr.bf16.mxu0 0
        %3801 = vmatpush1.bf16.msra.mxu0 0
        %3802 = vmatprep.subr.bf16.mxu0 0
        %3803 = vmatpush1.bf16.msra.mxu0 0
        %3804 = vmatprep.mubr.bf16.mxu0 0
        %3805 = vmatmul.mubr.bf16.gmra.mrb[0].mxu0 %v3719
        %v3806 = vpop.f32.mrb[0].mxu0
        %v3807 = vadd.f32 0.0, %v3806
        %v3808 = vpop.f32.mrb[0].mxu0
        %v3809 = vpop.f32.mrb[0].mxu0
        %v3810 = vadd.f32 0.0, %v3809
        %v3811 = vpop.f32.mrb[0].mxu0
        %3812 = vmatprep.mubr.bf16.mxu0 0
        %3813 = vmatmul.mubr.bf16.gmra.mrb[0].mxu0 %v3722
        %v3814 = vpop.f32.mrb[0].mxu0
        %v3815 = vadd.f32 0.0, %v3814
        %v3816 = vpop.f32.mrb[0].mxu0
        %v3817 = vpop.f32.mrb[0].mxu0
        %v3818 = vadd.f32 0.0, %v3817
        %v3819 = vpop.f32.mrb[0].mxu0
        %3820 = vmatprep.mubr.bf16.mxu0 0
        %3821 = vmatmul.mubr.bf16.gmra.mrb[0].mxu0 %v3725
        %v3822 = vpop.f32.mrb[0].mxu0
        %v3823 = vadd.f32 0.0, %v3822
        %v3824 = vpop.f32.mrb[0].mxu0
        %v3825 = vpop.f32.mrb[0].mxu0
        %v3826 = vadd.f32 0.0, %v3825
        %v3827 = vpop.f32.mrb[0].mxu0
        %3828 = vmatprep.mubr.bf16.mxu0 0
        %3829 = vmatmul.mubr.bf16.gmra.mrb[0].mxu0 %v3728
        %v3830 = vpop.f32.mrb[0].mxu0
        %v3831 = vadd.f32 0.0, %v3830
        %v3832 = vpop.f32.mrb[0].mxu0
        %v3833 = vpop.f32.mrb[0].mxu0
        %v3834 = vadd.f32 0.0, %v3833
        %v3835 = vpop.f32.mrb[0].mxu0
        %3836 = vmatprep.mubr.bf16.mxu0 0
        %3837 = vmatmul.mubr.bf16.gmra.mrb[0].mxu0 %v3731
        %v3838 = vpop.f32.mrb[0].mxu0
        %v3839 = vadd.f32 0.0, %v3838
        %v3840 = vpop.f32.mrb[0].mxu0
        %v3841 = vpop.f32.mrb[0].mxu0
        %v3842 = vadd.f32 0.0, %v3841
        %v3843 = vpop.f32.mrb[0].mxu0
        %3844 = vmatprep.mubr.bf16.mxu0 0
        %3845 = vmatmul.mubr.bf16.gmra.mrb[0].mxu0 %v3734
        %v3846 = vpop.f32.mrb[0].mxu0
        %v3847 = vadd.f32 0.0, %v3846
        %v3848 = vpop.f32.mrb[0].mxu0
        %v3849 = vpop.f32.mrb[0].mxu0
        %v3850 = vadd.f32 0.0, %v3849
        %v3851 = vpop.f32.mrb[0].mxu0
        %3852 = vmatprep.mubr.bf16.mxu0 0
        %3853 = vmatmul.mubr.bf16.gmra.mrb[0].mxu0 %v3737
        %v3854 = vpop.f32.mrb[0].mxu0
        %v3855 = vadd.f32 0.0, %v3854
        %v3856 = vpop.f32.mrb[0].mxu0
        %v3857 = vpop.f32.mrb[0].mxu0
        %v3858 = vadd.f32 0.0, %v3857
        %v3859 = vpop.f32.mrb[0].mxu0
        %3860 = vmatprep.mubr.bf16.mxu0 0
        %3861 = vmatmul.mubr.bf16.gmra.mrb[0].mxu0 %v3740
        %v3862 = vpop.f32.mrb[0].mxu0
        %v3863 = vadd.f32 0.0, %v3862
        %v3864 = vpop.f32.mrb[0].mxu0
        %v3865 = vpop.f32.mrb[0].mxu0
        %v3866 = vadd.f32 0.0, %v3865
        %v3867 = vpop.f32.mrb[0].mxu0
        %3868 = vmatprep.mubr.bf16.mxu0 0
        %3869 = vmatmul.mubr.bf16.gmra.mrb[0].mxu0 %v3743
        %v3870 = vpop.f32.mrb[0].mxu0
        %v3871 = vadd.f32 0.0, %v3870
        %v3872 = vpop.f32.mrb[0].mxu0
        %v3873 = vpop.f32.mrb[0].mxu0
        %v3874 = vadd.f32 0.0, %v3873
        %v3875 = vpop.f32.mrb[0].mxu0
        %3876 = vmatprep.mubr.bf16.mxu0 0
        %3877 = vmatmul.mubr.bf16.gmra.mrb[0].mxu0 %v3746
        %v3878 = vpop.f32.mrb[0].mxu0
        %v3879 = vadd.f32 0.0, %v3878
        %v3880 = vpop.f32.mrb[0].mxu0
        %v3881 = vpop.f32.mrb[0].mxu0
        %v3882 = vadd.f32 0.0, %v3881
        %v3883 = vpop.f32.mrb[0].mxu0
        %3884 = vmatprep.mubr.bf16.mxu0 0
        %3885 = vmatmul.mubr.bf16.gmra.mrb[0].mxu0 %v3749
        %v3886 = vpop.f32.mrb[0].mxu0
        %v3887 = vadd.f32 0.0, %v3886
        %v3888 = vpop.f32.mrb[0].mxu0
        %v3889 = vpop.f32.mrb[0].mxu0
        %v3890 = vadd.f32 0.0, %v3889
        %v3891 = vpop.f32.mrb[0].mxu0
        %3892 = vmatprep.mubr.bf16.mxu0 0
        %3893 = vmatmul.mubr.bf16.gmra.mrb[0].mxu0 %v3752
        %v3894 = vpop.f32.mrb[0].mxu0
        %v3895 = vadd.f32 0.0, %v3894
        %v3896 = vpop.f32.mrb[0].mxu0
        %v3897 = vpop.f32.mrb[0].mxu0
        %v3898 = vadd.f32 0.0, %v3897
        %v3899 = vpop.f32.mrb[0].mxu0
        %3900 = vmatprep.mubr.bf16.mxu0 0
        %3901 = vmatmul.mubr.bf16.gmra.mrb[0].mxu0 %v3755
        %v3902 = vpop.f32.mrb[0].mxu0
        %v3903 = vadd.f32 0.0, %v3902
        %v3904 = vpop.f32.mrb[0].mxu0
        %v3905 = vpop.f32.mrb[0].mxu0
        %v3906 = vadd.f32 0.0, %v3905
        %v3907 = vpop.f32.mrb[0].mxu0
        %3908 = vmatprep.mubr.bf16.mxu0 0
        %3909 = vmatmul.mubr.bf16.gmra.mrb[0].mxu0 %v3758
        %v3910 = vpop.f32.mrb[0].mxu0
        %v3911 = vadd.f32 0.0, %v3910
        %v3912 = vpop.f32.mrb[0].mxu0
        %v3913 = vpop.f32.mrb[0].mxu0
        %v3914 = vadd.f32 0.0, %v3913
        %v3915 = vpop.f32.mrb[0].mxu0
        %3916 = vmatprep.mubr.bf16.mxu0 0
        %3917 = vmatmul.mubr.bf16.gmra.mrb[0].mxu0 %v3761
        %v3918 = vpop.f32.mrb[0].mxu0
        %v3919 = vadd.f32 0.0, %v3918
        %v3920 = vpop.f32.mrb[0].mxu0
        %v3921 = vpop.f32.mrb[0].mxu0
        %v3922 = vadd.f32 0.0, %v3921
        %v3923 = vpop.f32.mrb[0].mxu0
        %3924 = vmatprep.mubr.bf16.mxu0 0
        %3925 = vmatmul.mubr.bf16.gmra.mrb[0].mxu0 %v3764
        %v3926 = vpop.f32.mrb[0].mxu0
        %v3927 = vadd.f32 0.0, %v3926
        %v3928 = vpop.f32.mrb[0].mxu0
        %v3929 = vpop.f32.mrb[0].mxu0
        %v3930 = vadd.f32 0.0, %v3929
        %v3931 = vpop.f32.mrb[0].mxu0
        %3932 = vmatprep.mubr.bf16.mxu0 0
        %3933 = vmatmul.mubr.bf16.gmra.mrb[0].mxu0 %v3767
        %v3934 = vpop.f32.mrb[0].mxu0
        %v3935 = vadd.f32 0.0, %v3934
        %v3936 = vpop.f32.mrb[0].mxu0
        %v3937 = vpop.f32.mrb[0].mxu0
        %v3938 = vadd.f32 0.0, %v3937
        %v3939 = vpop.f32.mrb[0].mxu0
        %3940 = vmatprep.mubr.bf16.mxu0 0
        %3941 = vmatmul.mubr.bf16.gmra.mrb[0].mxu0 %v3770
        %v3942 = vpop.f32.mrb[0].mxu0
        %v3943 = vadd.f32 0.0, %v3942
        %v3944 = vpop.f32.mrb[0].mxu0
        %v3945 = vpop.f32.mrb[0].mxu0
        %v3946 = vadd.f32 0.0, %v3945
        %v3947 = vpop.f32.mrb[0].mxu0
        %3948 = vdwg.mxu0
        %v3949 = vld [vmem:[#allocation2] sm:$0xff]
        %v3950 = vld [vmem:[#allocation2 + $0x8] sm:$0xff]
        %v3951 = vld [vmem:[#allocation2 + $0x10] sm:$0xff]
        %v3952 = vld [vmem:[#allocation2 + $0x18] sm:$0xff]
        %v3953 = vld [vmem:[#allocation2 + $0x20] sm:$0xff]
        %v3954 = vld [vmem:[#allocation2 + $0x28] sm:$0xff]
        %v3955 = vld [vmem:[#allocation2 + $0x30] sm:$0xff]
        %v3956 = vld [vmem:[#allocation2 + $0x38] sm:$0xff]
        %v3957 = vld [vmem:[#allocation2 + $0x40] sm:$0xff]
        %v3958 = vld [vmem:[#allocation2 + $0x48] sm:$0xff]
        %v3959 = vld [vmem:[#allocation2 + $0x50] sm:$0xff]
        %v3960 = vld [vmem:[#allocation2 + $0x58] sm:$0xff]
        %v3961 = vld [vmem:[#allocation2 + $0x60] sm:$0xff]
        %v3962 = vld [vmem:[#allocation2 + $0x68] sm:$0xff]
        %v3963 = vld [vmem:[#allocation2 + $0x70] sm:$0xff]
        %v3964 = vld [vmem:[#allocation2 + $0x78] sm:$0xff]
        %v3965 = vld [vmem:[#allocation2 + $0x80] sm:$0xff]
        %v3966 = vld [vmem:[#allocation2 + $0x88] sm:$0xff]
        %v3967 = vld [vmem:[#allocation2 + $0x90] sm:$0xff]
        %v3968 = vld [vmem:[#allocation2 + $0x98] sm:$0xff]
        %v3969 = vld [vmem:[#allocation2 + $0xa0] sm:$0xff]
        %v3970 = vld [vmem:[#allocation2 + $0xa8] sm:$0xff]
        %v3971 = vld [vmem:[#allocation2 + $0xb0] sm:$0xff]
        %v3972 = vld [vmem:[#allocation2 + $0xb8] sm:$0xff]
        %v3973 = vld [vmem:[#allocation2 + $0xc0] sm:$0xff]
        %v3974 = vld [vmem:[#allocation2 + $0xc8] sm:$0xff]
        %v3975 = vld [vmem:[#allocation2 + $0xd0] sm:$0xff]
        %v3976 = vld [vmem:[#allocation2 + $0xd8] sm:$0xff]
        %v3977 = vld [vmem:[#allocation2 + $0xe0] sm:$0xff]
        %v3978 = vld [vmem:[#allocation2 + $0xe8] sm:$0xff]
        %v3979 = vld [vmem:[#allocation2 + $0xf0] sm:$0xff]
        %v3980 = vld [vmem:[#allocation2 + $0xf8] sm:$0xff]
        %v3981 = vld [vmem:[#allocation2 + $0x100] sm:$0xff]
        %v3982 = vld [vmem:[#allocation2 + $0x108] sm:$0xff]
        %v3983 = vld [vmem:[#allocation2 + $0x110] sm:$0xff]
        %v3984 = vld [vmem:[#allocation2 + $0x118] sm:$0x3f]
        %v3985 = vadd.f32 %v3949, %v3807
        %v3986 = vadd.f32 %v3950, %v3810
        %v3987 = vadd.f32 %v3951, %v3815
        %v3988 = vadd.f32 %v3952, %v3818
        %v3989 = vadd.f32 %v3953, %v3823
        %v3990 = vadd.f32 %v3954, %v3826
        %v3991 = vadd.f32 %v3955, %v3831
        %v3992 = vadd.f32 %v3956, %v3834
        %v3993 = vadd.f32 %v3957, %v3839
        %v3994 = vadd.f32 %v3958, %v3842
        %v3995 = vadd.f32 %v3959, %v3847
        %v3996 = vadd.f32 %v3960, %v3850
        %v3997 = vadd.f32 %v3961, %v3855
        %v3998 = vadd.f32 %v3962, %v3858
        %v3999 = vadd.f32 %v3963, %v3863
        %v4000 = vadd.f32 %v3964, %v3866
        %v4001 = vadd.f32 %v3965, %v3871
        %v4002 = vadd.f32 %v3966, %v3874
        %v4003 = vadd.f32 %v3967, %v3879
        %v4004 = vadd.f32 %v3968, %v3882
        %v4005 = vadd.f32 %v3969, %v3887
        %v4006 = vadd.f32 %v3970, %v3890
        %v4007 = vadd.f32 %v3971, %v3895
        %v4008 = vadd.f32 %v3972, %v3898
        %v4009 = vadd.f32 %v3973, %v3903
        %v4010 = vadd.f32 %v3974, %v3906
        %v4011 = vadd.f32 %v3975, %v3911
        %v4012 = vadd.f32 %v3976, %v3914
        %v4013 = vadd.f32 %v3977, %v3919
        %v4014 = vadd.f32 %v3978, %v3922
        %v4015 = vadd.f32 %v3979, %v3927
        %v4016 = vadd.f32 %v3980, %v3930
        %v4017 = vadd.f32 %v3981, %v3935
        %v4018 = vadd.f32 %v3982, %v3938
        %v4019 = vadd.f32 %v3983, %v3943
        %v4020 = vadd.f32 %v3984, %v3946
        %4021 = vst.msk [vmem:[#allocation2] sm:$0xff] %vm427, %v3985
        %4022 = vst.msk [vmem:[#allocation2 + $0x8] sm:$0xff] %vm427, %v3986
        %4023 = vst.msk [vmem:[#allocation2 + $0x10] sm:$0xff] %vm427, %v3987
        %4024 = vst.msk [vmem:[#allocation2 + $0x18] sm:$0xff] %vm427, %v3988
        %4025 = vst.msk [vmem:[#allocation2 + $0x20] sm:$0xff] %vm427, %v3989
        %4026 = vst.msk [vmem:[#allocation2 + $0x28] sm:$0xff] %vm427, %v3990
        %4027 = vst.msk [vmem:[#allocation2 + $0x30] sm:$0xff] %vm427, %v3991
        %4028 = vst.msk [vmem:[#allocation2 + $0x38] sm:$0xff] %vm427, %v3992
        %4029 = vst.msk [vmem:[#allocation2 + $0x40] sm:$0xff] %vm427, %v3993
        %4030 = vst.msk [vmem:[#allocation2 + $0x48] sm:$0xff] %vm427, %v3994
        %4031 = vst.msk [vmem:[#allocation2 + $0x50] sm:$0xff] %vm427, %v3995
        %4032 = vst.msk [vmem:[#allocation2 + $0x58] sm:$0xff] %vm427, %v3996
        %4033 = vst.msk [vmem:[#allocation2 + $0x60] sm:$0xff] %vm427, %v3997
        %4034 = vst.msk [vmem:[#allocation2 + $0x68] sm:$0xff] %vm427, %v3998
        %4035 = vst.msk [vmem:[#allocation2 + $0x70] sm:$0xff] %vm427, %v3999
        %4036 = vst.msk [vmem:[#allocation2 + $0x78] sm:$0xff] %vm427, %v4000
        %4037 = vst.msk [vmem:[#allocation2 + $0x80] sm:$0xff] %vm427, %v4001
        %4038 = vst.msk [vmem:[#allocation2 + $0x88] sm:$0xff] %vm427, %v4002
        %4039 = vst.msk [vmem:[#allocation2 + $0x90] sm:$0xff] %vm427, %v4003
        %4040 = vst.msk [vmem:[#allocation2 + $0x98] sm:$0xff] %vm427, %v4004
        %4041 = vst.msk [vmem:[#allocation2 + $0xa0] sm:$0xff] %vm427, %v4005
        %4042 = vst.msk [vmem:[#allocation2 + $0xa8] sm:$0xff] %vm427, %v4006
        %4043 = vst.msk [vmem:[#allocation2 + $0xb0] sm:$0xff] %vm427, %v4007
        %4044 = vst.msk [vmem:[#allocation2 + $0xb8] sm:$0xff] %vm427, %v4008
        %4045 = vst.msk [vmem:[#allocation2 + $0xc0] sm:$0xff] %vm427, %v4009
        %4046 = vst.msk [vmem:[#allocation2 + $0xc8] sm:$0xff] %vm427, %v4010
        %4047 = vst.msk [vmem:[#allocation2 + $0xd0] sm:$0xff] %vm427, %v4011
        %4048 = vst.msk [vmem:[#allocation2 + $0xd8] sm:$0xff] %vm427, %v4012
        %4049 = vst.msk [vmem:[#allocation2 + $0xe0] sm:$0xff] %vm427, %v4013
        %4050 = vst.msk [vmem:[#allocation2 + $0xe8] sm:$0xff] %vm427, %v4014
        %4051 = vst.msk [vmem:[#allocation2 + $0xf0] sm:$0xff] %vm427, %v4015
        %4052 = vst.msk [vmem:[#allocation2 + $0xf8] sm:$0xff] %vm427, %v4016
        %4053 = vst.msk [vmem:[#allocation2 + $0x100] sm:$0xff] %vm427, %v4017
        %4054 = vst.msk [vmem:[#allocation2 + $0x108] sm:$0xff] %vm427, %v4018
        %4055 = vst.msk [vmem:[#allocation2 + $0x110] sm:$0xff] %vm427, %v4019
        %4056 = vst.msk [vmem:[#allocation2 + $0x118] sm:$0x3f] %vm694, %v4020
        %v4057 = vld [vmem:[%s276 + $0x10] sm:$0xc]
        %v4058 = vld [vmem:[%s276 + $0x14] sm:$0xf]
        %v4059 = vld [vmem:[%s276 + $0x18] sm:$0xf]
        %v4060 = vld [vmem:[%s276 + $0x1c] sm:$0xf]
        %v4061 = vld [vmem:[%s276 + $0x20] sm:$0xf]
        %v4062 = vld [vmem:[%s276 + $0x24] sm:$0xf]
        %v4063 = vld [vmem:[%s276 + $0x28] sm:$0xf]
        %v4064 = vld [vmem:[%s276 + $0x2c] sm:$0xf]
        %v4065 = vld [vmem:[%s276 + $0x30] sm:$0xf]
        %v4066 = vld [vmem:[%s276 + $0x34] sm:$0xf]
        %v4067 = vld [vmem:[%s276 + $0x38] sm:$0xf]
        %v4068 = vld [vmem:[%s276 + $0x3c] sm:$0xf]
        %v4069 = vld [vmem:[%s276 + $0x40] sm:$0xf]
        %v4070 = vld [vmem:[%s276 + $0x44] sm:$0xf]
        %v4071 = vld [vmem:[%s276 + $0x48] sm:$0xf]
        %v4072 = vld [vmem:[%s276 + $0x4c] sm:$0xf]
        %v4073 = vld [vmem:[%s276 + $0x50] sm:$0xf]
        %v4074 = vld [vmem:[%s276 + $0x54] sm:$0xf]
        %v4075 = vld [vmem:[%s276 + $0x58] sm:$0xf]
        %v4076 = vld [vmem:[%s276 + $0x5c] sm:$0xf]
        %v4077 = vld [vmem:[%s276 + $0x60] sm:$0xf]
        %v4078 = vld [vmem:[%s276 + $0x64] sm:$0xf]
        %v4079 = vld [vmem:[%s276 + $0x68] sm:$0xf]
        %v4080 = vld [vmem:[%s276 + $0x6c] sm:$0xf]
        %v4081 = vld [vmem:[%s276 + $0x70] sm:$0xf]
        %v4082 = vld [vmem:[%s276 + $0x74] sm:$0xf]
        %v4083 = vld [vmem:[%s276 + $0x78] sm:$0xf]
        %v4084 = vld [vmem:[%s276 + $0x7c] sm:$0xf]
        %v4085 = vld [vmem:[%s276 + $0x80] sm:$0xf]
        %v4086 = vld [vmem:[%s276 + $0x84] sm:$0xf]
        %v4087 = vld [vmem:[%s276 + $0x88] sm:$0xf]
        %v4088 = vld [vmem:[%s276 + $0x8c] sm:$0xf]
        %v4089 = vld [vmem:[%s276 + $0x90] sm:$0xf]
        %v4090 = vld [vmem:[%s276 + $0x94] sm:$0xf]
        %v4091 = vld [vmem:[%s276 + $0x98] sm:$0xf]
        %v4092 = vld [vmem:[%s276 + $0x9c] sm:$0xf]
        %v4093 = vld [vmem:[%s276 + $0xa0] sm:$0x3]
        %s4094 = scalar_lea.vmem %s1, 112
        %v4095 = vld [vmem:[%s4094] sm:$0xf]
        %v4096 = vld [vmem:[%s4094 + $0x4] sm:$0xf]
        %v4097 = vld [vmem:[%s4094 + $0x8] sm:$0xf]
        %v4098 = vld [vmem:[%s4094 + $0xc] sm:$0xf]
        %v4136 = vunpack.c.l.b16 %v4057
        %v4137 = vunpack.c.l.b16 %v4058
        %v4138 = vunpack.c.l.b16 %v4059
        %v4139 = vunpack.c.l.b16 %v4060
        %v4140 = vunpack.c.l.b16 %v4061
        %v4141 = vunpack.c.l.b16 %v4062
        %v4142 = vunpack.c.l.b16 %v4063
        %v4143 = vunpack.c.l.b16 %v4064
        %v4144 = vunpack.c.l.b16 %v4065
        %v4145 = vunpack.c.l.b16 %v4066
        %v4146 = vunpack.c.l.b16 %v4067
        %v4147 = vunpack.c.l.b16 %v4068
        %v4148 = vunpack.c.l.b16 %v4069
        %v4149 = vunpack.c.l.b16 %v4070
        %v4150 = vunpack.c.l.b16 %v4071
        %v4151 = vunpack.c.l.b16 %v4072
        %v4152 = vunpack.c.l.b16 %v4073
        %v4153 = vunpack.c.l.b16 %v4074
        %v4154 = vunpack.c.l.b16 %v4075
        %v4155 = vunpack.c.l.b16 %v4076
        %v4156 = vunpack.c.l.b16 %v4077
        %v4157 = vunpack.c.l.b16 %v4078
        %v4158 = vunpack.c.l.b16 %v4079
        %v4159 = vunpack.c.l.b16 %v4080
        %v4160 = vunpack.c.l.b16 %v4081
        %v4161 = vunpack.c.l.b16 %v4082
        %v4162 = vunpack.c.l.b16 %v4083
        %v4163 = vunpack.c.l.b16 %v4084
        %v4164 = vunpack.c.l.b16 %v4085
        %v4165 = vunpack.c.l.b16 %v4086
        %v4166 = vunpack.c.l.b16 %v4087
        %v4167 = vunpack.c.l.b16 %v4088
        %v4168 = vunpack.c.l.b16 %v4089
        %v4169 = vunpack.c.l.b16 %v4090
        %v4170 = vunpack.c.l.b16 %v4091
        %v4171 = vunpack.c.l.b16 %v4092
        %v4172 = vunpack.c.l.b16 %v4093
        %v4173 = vpack.c.b16 %v4137, %v4136
        %v4174 = vpack.c.b16 %v4139, %v4138
        %v4175 = vpack.c.b16 %v4141, %v4140
        %v4176 = vpack.c.b16 %v4143, %v4142
        %v4177 = vpack.c.b16 %v4145, %v4144
        %v4178 = vpack.c.b16 %v4147, %v4146
        %v4179 = vpack.c.b16 %v4149, %v4148
        %v4180 = vpack.c.b16 %v4151, %v4150
        %v4181 = vpack.c.b16 %v4153, %v4152
        %v4182 = vpack.c.b16 %v4155, %v4154
        %v4183 = vpack.c.b16 %v4157, %v4156
        %v4184 = vpack.c.b16 %v4159, %v4158
        %v4185 = vpack.c.b16 %v4161, %v4160
        %v4186 = vpack.c.b16 %v4163, %v4162
        %v4187 = vpack.c.b16 %v4165, %v4164
        %v4188 = vpack.c.b16 %v4167, %v4166
        %v4189 = vpack.c.b16 %v4169, %v4168
        %v4190 = vpack.c.b16 %v4171, %v4170
        %v4191 = vpack.c.b16 %v4172, %v4172
        %vm4192 = vsmask.f32 5376
        %v4194 = vshrl.u32 %v4173, 16
        %v4196 = vrot.slane %v4194, 2
        %v4197 = vshll.u32 %v4173, 16
        %v4199 = vrot.slane %v4197, 3
        %v4200 = vor.u32 %v4196, %v4199
        %v4202 = vshrl.u32 %v4174, 16
        %v4204 = vrot.slane %v4202, 2
        %v4205 = vshll.u32 %v4174, 16
        %v4207 = vrot.slane %v4205, 3
        %v4208 = vor.u32 %v4204, %v4207
        %v4209 = vsel %vm4192, %v4200, %v4208
        %v4211 = vshrl.u32 %v4175, 16
        %v4213 = vrot.slane %v4211, 2
        %v4214 = vshll.u32 %v4175, 16
        %v4216 = vrot.slane %v4214, 3
        %v4217 = vor.u32 %v4213, %v4216
        %v4218 = vsel %vm4192, %v4208, %v4217
        %v4220 = vshrl.u32 %v4176, 16
        %v4222 = vrot.slane %v4220, 2
        %v4223 = vshll.u32 %v4176, 16
        %v4225 = vrot.slane %v4223, 3
        %v4226 = vor.u32 %v4222, %v4225
        %v4227 = vsel %vm4192, %v4217, %v4226
        %v4229 = vshrl.u32 %v4177, 16
        %v4231 = vrot.slane %v4229, 2
        %v4232 = vshll.u32 %v4177, 16
        %v4234 = vrot.slane %v4232, 3
        %v4235 = vor.u32 %v4231, %v4234
        %v4236 = vsel %vm4192, %v4226, %v4235
        %v4238 = vshrl.u32 %v4178, 16
        %v4240 = vrot.slane %v4238, 2
        %v4241 = vshll.u32 %v4178, 16
        %v4243 = vrot.slane %v4241, 3
        %v4244 = vor.u32 %v4240, %v4243
        %v4245 = vsel %vm4192, %v4235, %v4244
        %v4247 = vshrl.u32 %v4179, 16
        %v4249 = vrot.slane %v4247, 2
        %v4250 = vshll.u32 %v4179, 16
        %v4252 = vrot.slane %v4250, 3
        %v4253 = vor.u32 %v4249, %v4252
        %v4254 = vsel %vm4192, %v4244, %v4253
        %v4256 = vshrl.u32 %v4180, 16
        %v4258 = vrot.slane %v4256, 2
        %v4259 = vshll.u32 %v4180, 16
        %v4261 = vrot.slane %v4259, 3
        %v4262 = vor.u32 %v4258, %v4261
        %v4263 = vsel %vm4192, %v4253, %v4262
        %v4265 = vshrl.u32 %v4181, 16
        %v4267 = vrot.slane %v4265, 2
        %v4268 = vshll.u32 %v4181, 16
        %v4270 = vrot.slane %v4268, 3
        %v4271 = vor.u32 %v4267, %v4270
        %v4272 = vsel %vm4192, %v4262, %v4271
        %v4274 = vshrl.u32 %v4182, 16
        %v4276 = vrot.slane %v4274, 2
        %v4277 = vshll.u32 %v4182, 16
        %v4279 = vrot.slane %v4277, 3
        %v4280 = vor.u32 %v4276, %v4279
        %v4281 = vsel %vm4192, %v4271, %v4280
        %v4283 = vshrl.u32 %v4183, 16
        %v4285 = vrot.slane %v4283, 2
        %v4286 = vshll.u32 %v4183, 16
        %v4288 = vrot.slane %v4286, 3
        %v4289 = vor.u32 %v4285, %v4288
        %v4290 = vsel %vm4192, %v4280, %v4289
        %v4292 = vshrl.u32 %v4184, 16
        %v4294 = vrot.slane %v4292, 2
        %v4295 = vshll.u32 %v4184, 16
        %v4297 = vrot.slane %v4295, 3
        %v4298 = vor.u32 %v4294, %v4297
        %v4299 = vsel %vm4192, %v4289, %v4298
        %v4301 = vshrl.u32 %v4185, 16
        %v4303 = vrot.slane %v4301, 2
        %v4304 = vshll.u32 %v4185, 16
        %v4306 = vrot.slane %v4304, 3
        %v4307 = vor.u32 %v4303, %v4306
        %v4308 = vsel %vm4192, %v4298, %v4307
        %v4310 = vshrl.u32 %v4186, 16
        %v4312 = vrot.slane %v4310, 2
        %v4313 = vshll.u32 %v4186, 16
        %v4315 = vrot.slane %v4313, 3
        %v4316 = vor.u32 %v4312, %v4315
        %v4317 = vsel %vm4192, %v4307, %v4316
        %v4319 = vshrl.u32 %v4187, 16
        %v4321 = vrot.slane %v4319, 2
        %v4322 = vshll.u32 %v4187, 16
        %v4324 = vrot.slane %v4322, 3
        %v4325 = vor.u32 %v4321, %v4324
        %v4326 = vsel %vm4192, %v4316, %v4325
        %v4328 = vshrl.u32 %v4188, 16
        %v4330 = vrot.slane %v4328, 2
        %v4331 = vshll.u32 %v4188, 16
        %v4333 = vrot.slane %v4331, 3
        %v4334 = vor.u32 %v4330, %v4333
        %v4335 = vsel %vm4192, %v4325, %v4334
        %v4337 = vshrl.u32 %v4189, 16
        %v4339 = vrot.slane %v4337, 2
        %v4340 = vshll.u32 %v4189, 16
        %v4342 = vrot.slane %v4340, 3
        %v4343 = vor.u32 %v4339, %v4342
        %v4344 = vsel %vm4192, %v4334, %v4343
        %v4346 = vshrl.u32 %v4190, 16
        %v4348 = vrot.slane %v4346, 2
        %v4349 = vshll.u32 %v4190, 16
        %v4351 = vrot.slane %v4349, 3
        %v4352 = vor.u32 %v4348, %v4351
        %v4353 = vsel %vm4192, %v4343, %v4352
        %v4355 = vshrl.u32 %v4191, 16
        %v4357 = vrot.slane %v4355, 2
        %v4358 = vshll.u32 %v4191, 16
        %v4360 = vrot.slane %v4358, 3
        %v4361 = vor.u32 %v4357, %v4360
        %v4362 = vsel %vm4192, %v4352, %v4361
        %v4367 = vunpack.c.l.b16 %v4095
        %v4368 = vunpack.c.l.b16 %v4096
        %v4369 = vunpack.c.l.b16 %v4097
        %v4370 = vunpack.c.l.b16 %v4098
        %v4371 = vpack.c.b16 %v4368, %v4367
        %v4372 = vpack.c.b16 %v4370, %v4369
        %v4376 = vsel %vm427, %v4209, 0
        %v4379 = vsel %vm427, %v4218, 0
        %v4382 = vsel %vm427, %v4227, 0
        %v4385 = vsel %vm427, %v4236, 0
        %v4388 = vsel %vm427, %v4245, 0
        %v4391 = vsel %vm427, %v4254, 0
        %v4394 = vsel %vm427, %v4263, 0
        %v4397 = vsel %vm427, %v4272, 0
        %v4400 = vsel %vm427, %v4281, 0
        %v4403 = vsel %vm427, %v4290, 0
        %v4406 = vsel %vm427, %v4299, 0
        %v4409 = vsel %vm427, %v4308, 0
        %v4412 = vsel %vm427, %v4317, 0
        %v4415 = vsel %vm427, %v4326, 0
        %v4418 = vsel %vm427, %v4335, 0
        %v4421 = vsel %vm427, %v4344, 0
        %v4424 = vsel %vm427, %v4353, 0
        %v4427 = vsel %vm427, %v4362, 0
        %4429 = vmatprep.subr.bf16.mxu0 0
        %4430 = vmatpush1.bf16.msra.mxu0 %v4371
        %4431 = vmatprep.subr.bf16.mxu0 0
        %4432 = vmatpush1.bf16.msra.mxu0 %v4372
        %4433 = vmatprep.subr.bf16.mxu0 0
        %4434 = vmatpush1.bf16.msra.mxu0 0
        %4435 = vmatprep.subr.bf16.mxu0 0
        %4436 = vmatpush1.bf16.msra.mxu0 0
        %4437 = vmatprep.subr.bf16.mxu0 0
        %4438 = vmatpush1.bf16.msra.mxu0 0
        %4439 = vmatprep.subr.bf16.mxu0 0
        %4440 = vmatpush1.bf16.msra.mxu0 0
        %4441 = vmatprep.subr.bf16.mxu0 0
        %4442 = vmatpush1.bf16.msra.mxu0 0
        %4443 = vmatprep.subr.bf16.mxu0 0
        %4444 = vmatpush1.bf16.msra.mxu0 0
        %4445 = vmatprep.subr.bf16.mxu0 0
        %4446 = vmatpush1.bf16.msra.mxu0 0
        %4447 = vmatprep.subr.bf16.mxu0 0
        %4448 = vmatpush1.bf16.msra.mxu0 0
        %4449 = vmatprep.subr.bf16.mxu0 0
        %4450 = vmatpush1.bf16.msra.mxu0 0
        %4451 = vmatprep.subr.bf16.mxu0 0
        %4452 = vmatpush1.bf16.msra.mxu0 0
        %4453 = vmatprep.subr.bf16.mxu0 0
        %4454 = vmatpush1.bf16.msra.mxu0 0
        %4455 = vmatprep.subr.bf16.mxu0 0
        %4456 = vmatpush1.bf16.msra.mxu0 0
        %4457 = vmatprep.subr.bf16.mxu0 0
        %4458 = vmatpush1.bf16.msra.mxu0 0
        %4459 = vmatprep.subr.bf16.mxu0 0
        %4460 = vmatpush1.bf16.msra.mxu0 0
        %4461 = vmatprep.mubr.bf16.mxu0 0
        %4462 = vmatmul.mubr.bf16.gmra.mrb[0].mxu0 %v4376
        %v4463 = vpop.f32.mrb[0].mxu0
        %v4464 = vadd.f32 0.0, %v4463
        %v4465 = vpop.f32.mrb[0].mxu0
        %v4466 = vpop.f32.mrb[0].mxu0
        %v4467 = vadd.f32 0.0, %v4466
        %v4468 = vpop.f32.mrb[0].mxu0
        %4469 = vmatprep.mubr.bf16.mxu0 0
        %4470 = vmatmul.mubr.bf16.gmra.mrb[0].mxu0 %v4379
        %v4471 = vpop.f32.mrb[0].mxu0
        %v4472 = vadd.f32 0.0, %v4471
        %v4473 = vpop.f32.mrb[0].mxu0
        %v4474 = vpop.f32.mrb[0].mxu0
        %v4475 = vadd.f32 0.0, %v4474
        %v4476 = vpop.f32.mrb[0].mxu0
        %4477 = vmatprep.mubr.bf16.mxu0 0
        %4478 = vmatmul.mubr.bf16.gmra.mrb[0].mxu0 %v4382
        %v4479 = vpop.f32.mrb[0].mxu0
        %v4480 = vadd.f32 0.0, %v4479
        %v4481 = vpop.f32.mrb[0].mxu0
        %v4482 = vpop.f32.mrb[0].mxu0
        %v4483 = vadd.f32 0.0, %v4482
        %v4484 = vpop.f32.mrb[0].mxu0
        %4485 = vmatprep.mubr.bf16.mxu0 0
        %4486 = vmatmul.mubr.bf16.gmra.mrb[0].mxu0 %v4385
        %v4487 = vpop.f32.mrb[0].mxu0
        %v4488 = vadd.f32 0.0, %v4487
        %v4489 = vpop.f32.mrb[0].mxu0
        %v4490 = vpop.f32.mrb[0].mxu0
        %v4491 = vadd.f32 0.0, %v4490
        %v4492 = vpop.f32.mrb[0].mxu0
        %4493 = vmatprep.mubr.bf16.mxu0 0
        %4494 = vmatmul.mubr.bf16.gmra.mrb[0].mxu0 %v4388
        %v4495 = vpop.f32.mrb[0].mxu0
        %v4496 = vadd.f32 0.0, %v4495
        %v4497 = vpop.f32.mrb[0].mxu0
        %v4498 = vpop.f32.mrb[0].mxu0
        %v4499 = vadd.f32 0.0, %v4498
        %v4500 = vpop.f32.mrb[0].mxu0
        %4501 = vmatprep.mubr.bf16.mxu0 0
        %4502 = vmatmul.mubr.bf16.gmra.mrb[0].mxu0 %v4391
        %v4503 = vpop.f32.mrb[0].mxu0
        %v4504 = vadd.f32 0.0, %v4503
        %v4505 = vpop.f32.mrb[0].mxu0
        %v4506 = vpop.f32.mrb[0].mxu0
        %v4507 = vadd.f32 0.0, %v4506
        %v4508 = vpop.f32.mrb[0].mxu0
        %4509 = vmatprep.mubr.bf16.mxu0 0
        %4510 = vmatmul.mubr.bf16.gmra.mrb[0].mxu0 %v4394
        %v4511 = vpop.f32.mrb[0].mxu0
        %v4512 = vadd.f32 0.0, %v4511
        %v4513 = vpop.f32.mrb[0].mxu0
        %v4514 = vpop.f32.mrb[0].mxu0
        %v4515 = vadd.f32 0.0, %v4514
        %v4516 = vpop.f32.mrb[0].mxu0
        %4517 = vmatprep.mubr.bf16.mxu0 0
        %4518 = vmatmul.mubr.bf16.gmra.mrb[0].mxu0 %v4397
        %v4519 = vpop.f32.mrb[0].mxu0
        %v4520 = vadd.f32 0.0, %v4519
        %v4521 = vpop.f32.mrb[0].mxu0
        %v4522 = vpop.f32.mrb[0].mxu0
        %v4523 = vadd.f32 0.0, %v4522
        %v4524 = vpop.f32.mrb[0].mxu0
        %4525 = vmatprep.mubr.bf16.mxu0 0
        %4526 = vmatmul.mubr.bf16.gmra.mrb[0].mxu0 %v4400
        %v4527 = vpop.f32.mrb[0].mxu0
        %v4528 = vadd.f32 0.0, %v4527
        %v4529 = vpop.f32.mrb[0].mxu0
        %v4530 = vpop.f32.mrb[0].mxu0
        %v4531 = vadd.f32 0.0, %v4530
        %v4532 = vpop.f32.mrb[0].mxu0
        %4533 = vmatprep.mubr.bf16.mxu0 0
        %4534 = vmatmul.mubr.bf16.gmra.mrb[0].mxu0 %v4403
        %v4535 = vpop.f32.mrb[0].mxu0
        %v4536 = vadd.f32 0.0, %v4535
        %v4537 = vpop.f32.mrb[0].mxu0
        %v4538 = vpop.f32.mrb[0].mxu0
        %v4539 = vadd.f32 0.0, %v4538
        %v4540 = vpop.f32.mrb[0].mxu0
        %4541 = vmatprep.mubr.bf16.mxu0 0
        %4542 = vmatmul.mubr.bf16.gmra.mrb[0].mxu0 %v4406
        %v4543 = vpop.f32.mrb[0].mxu0
        %v4544 = vadd.f32 0.0, %v4543
        %v4545 = vpop.f32.mrb[0].mxu0
        %v4546 = vpop.f32.mrb[0].mxu0
        %v4547 = vadd.f32 0.0, %v4546
        %v4548 = vpop.f32.mrb[0].mxu0
        %4549 = vmatprep.mubr.bf16.mxu0 0
        %4550 = vmatmul.mubr.bf16.gmra.mrb[0].mxu0 %v4409
        %v4551 = vpop.f32.mrb[0].mxu0
        %v4552 = vadd.f32 0.0, %v4551
        %v4553 = vpop.f32.mrb[0].mxu0
        %v4554 = vpop.f32.mrb[0].mxu0
        %v4555 = vadd.f32 0.0, %v4554
        %v4556 = vpop.f32.mrb[0].mxu0
        %4557 = vmatprep.mubr.bf16.mxu0 0
        %4558 = vmatmul.mubr.bf16.gmra.mrb[0].mxu0 %v4412
        %v4559 = vpop.f32.mrb[0].mxu0
        %v4560 = vadd.f32 0.0, %v4559
        %v4561 = vpop.f32.mrb[0].mxu0
        %v4562 = vpop.f32.mrb[0].mxu0
        %v4563 = vadd.f32 0.0, %v4562
        %v4564 = vpop.f32.mrb[0].mxu0
        %4565 = vmatprep.mubr.bf16.mxu0 0
        %4566 = vmatmul.mubr.bf16.gmra.mrb[0].mxu0 %v4415
        %v4567 = vpop.f32.mrb[0].mxu0
        %v4568 = vadd.f32 0.0, %v4567
        %v4569 = vpop.f32.mrb[0].mxu0
        %v4570 = vpop.f32.mrb[0].mxu0
        %v4571 = vadd.f32 0.0, %v4570
        %v4572 = vpop.f32.mrb[0].mxu0
        %4573 = vmatprep.mubr.bf16.mxu0 0
        %4574 = vmatmul.mubr.bf16.gmra.mrb[0].mxu0 %v4418
        %v4575 = vpop.f32.mrb[0].mxu0
        %v4576 = vadd.f32 0.0, %v4575
        %v4577 = vpop.f32.mrb[0].mxu0
        %v4578 = vpop.f32.mrb[0].mxu0
        %v4579 = vadd.f32 0.0, %v4578
        %v4580 = vpop.f32.mrb[0].mxu0
        %4581 = vmatprep.mubr.bf16.mxu0 0
        %4582 = vmatmul.mubr.bf16.gmra.mrb[0].mxu0 %v4421
        %v4583 = vpop.f32.mrb[0].mxu0
        %v4584 = vadd.f32 0.0, %v4583
        %v4585 = vpop.f32.mrb[0].mxu0
        %v4586 = vpop.f32.mrb[0].mxu0
        %v4587 = vadd.f32 0.0, %v4586
        %v4588 = vpop.f32.mrb[0].mxu0
        %4589 = vmatprep.mubr.bf16.mxu0 0
        %4590 = vmatmul.mubr.bf16.gmra.mrb[0].mxu0 %v4424
        %v4591 = vpop.f32.mrb[0].mxu0
        %v4592 = vadd.f32 0.0, %v4591
        %v4593 = vpop.f32.mrb[0].mxu0
        %v4594 = vpop.f32.mrb[0].mxu0
        %v4595 = vadd.f32 0.0, %v4594
        %v4596 = vpop.f32.mrb[0].mxu0
        %4597 = vmatprep.mubr.bf16.mxu0 0
        %4598 = vmatmul.mubr.bf16.gmra.mrb[0].mxu0 %v4427
        %v4599 = vpop.f32.mrb[0].mxu0
        %v4600 = vadd.f32 0.0, %v4599
        %v4601 = vpop.f32.mrb[0].mxu0
        %v4602 = vpop.f32.mrb[0].mxu0
        %v4603 = vadd.f32 0.0, %v4602
        %v4604 = vpop.f32.mrb[0].mxu0
        %4605 = vdwg.mxu0
        %v4606 = vld [vmem:[#allocation2] sm:$0xff]
        %v4607 = vld [vmem:[#allocation2 + $0x8] sm:$0xff]
        %v4608 = vld [vmem:[#allocation2 + $0x10] sm:$0xff]
        %v4609 = vld [vmem:[#allocation2 + $0x18] sm:$0xff]
        %v4610 = vld [vmem:[#allocation2 + $0x20] sm:$0xff]
        %v4611 = vld [vmem:[#allocation2 + $0x28] sm:$0xff]
        %v4612 = vld [vmem:[#allocation2 + $0x30] sm:$0xff]
        %v4613 = vld [vmem:[#allocation2 + $0x38] sm:$0xff]
        %v4614 = vld [vmem:[#allocation2 + $0x40] sm:$0xff]
        %v4615 = vld [vmem:[#allocation2 + $0x48] sm:$0xff]
        %v4616 = vld [vmem:[#allocation2 + $0x50] sm:$0xff]
        %v4617 = vld [vmem:[#allocation2 + $0x58] sm:$0xff]
        %v4618 = vld [vmem:[#allocation2 + $0x60] sm:$0xff]
        %v4619 = vld [vmem:[#allocation2 + $0x68] sm:$0xff]
        %v4620 = vld [vmem:[#allocation2 + $0x70] sm:$0xff]
        %v4621 = vld [vmem:[#allocation2 + $0x78] sm:$0xff]
        %v4622 = vld [vmem:[#allocation2 + $0x80] sm:$0xff]
        %v4623 = vld [vmem:[#allocation2 + $0x88] sm:$0xff]
        %v4624 = vld [vmem:[#allocation2 + $0x90] sm:$0xff]
        %v4625 = vld [vmem:[#allocation2 + $0x98] sm:$0xff]
        %v4626 = vld [vmem:[#allocation2 + $0xa0] sm:$0xff]
        %v4627 = vld [vmem:[#allocation2 + $0xa8] sm:$0xff]
        %v4628 = vld [vmem:[#allocation2 + $0xb0] sm:$0xff]
        %v4629 = vld [vmem:[#allocation2 + $0xb8] sm:$0xff]
        %v4630 = vld [vmem:[#allocation2 + $0xc0] sm:$0xff]
        %v4631 = vld [vmem:[#allocation2 + $0xc8] sm:$0xff]
        %v4632 = vld [vmem:[#allocation2 + $0xd0] sm:$0xff]
        %v4633 = vld [vmem:[#allocation2 + $0xd8] sm:$0xff]
        %v4634 = vld [vmem:[#allocation2 + $0xe0] sm:$0xff]
        %v4635 = vld [vmem:[#allocation2 + $0xe8] sm:$0xff]
        %v4636 = vld [vmem:[#allocation2 + $0xf0] sm:$0xff]
        %v4637 = vld [vmem:[#allocation2 + $0xf8] sm:$0xff]
        %v4638 = vld [vmem:[#allocation2 + $0x100] sm:$0xff]
        %v4639 = vld [vmem:[#allocation2 + $0x108] sm:$0xff]
        %v4640 = vld [vmem:[#allocation2 + $0x110] sm:$0xff]
        %v4641 = vld [vmem:[#allocation2 + $0x118] sm:$0x3f]
        %v4642 = vadd.f32 %v4606, %v4464
        %v4643 = vadd.f32 %v4607, %v4467
        %v4644 = vadd.f32 %v4608, %v4472
        %v4645 = vadd.f32 %v4609, %v4475
        %v4646 = vadd.f32 %v4610, %v4480
        %v4647 = vadd.f32 %v4611, %v4483
        %v4648 = vadd.f32 %v4612, %v4488
        %v4649 = vadd.f32 %v4613, %v4491
        %v4650 = vadd.f32 %v4614, %v4496
        %v4651 = vadd.f32 %v4615, %v4499
        %v4652 = vadd.f32 %v4616, %v4504
        %v4653 = vadd.f32 %v4617, %v4507
        %v4654 = vadd.f32 %v4618, %v4512
        %v4655 = vadd.f32 %v4619, %v4515
        %v4656 = vadd.f32 %v4620, %v4520
        %v4657 = vadd.f32 %v4621, %v4523
        %v4658 = vadd.f32 %v4622, %v4528
        %v4659 = vadd.f32 %v4623, %v4531
        %v4660 = vadd.f32 %v4624, %v4536
        %v4661 = vadd.f32 %v4625, %v4539
        %v4662 = vadd.f32 %v4626, %v4544
        %v4663 = vadd.f32 %v4627, %v4547
        %v4664 = vadd.f32 %v4628, %v4552
        %v4665 = vadd.f32 %v4629, %v4555
        %v4666 = vadd.f32 %v4630, %v4560
        %v4667 = vadd.f32 %v4631, %v4563
        %v4668 = vadd.f32 %v4632, %v4568
        %v4669 = vadd.f32 %v4633, %v4571
        %v4670 = vadd.f32 %v4634, %v4576
        %v4671 = vadd.f32 %v4635, %v4579
        %v4672 = vadd.f32 %v4636, %v4584
        %v4673 = vadd.f32 %v4637, %v4587
        %v4674 = vadd.f32 %v4638, %v4592
        %v4675 = vadd.f32 %v4639, %v4595
        %v4676 = vadd.f32 %v4640, %v4600
        %v4677 = vadd.f32 %v4641, %v4603
        %4678 = vst.msk [vmem:[#allocation2] sm:$0xff] %vm427, %v4642
        %4679 = vst.msk [vmem:[#allocation2 + $0x8] sm:$0xff] %vm427, %v4643
        %4680 = vst.msk [vmem:[#allocation2 + $0x10] sm:$0xff] %vm427, %v4644
        %4681 = vst.msk [vmem:[#allocation2 + $0x18] sm:$0xff] %vm427, %v4645
        %4682 = vst.msk [vmem:[#allocation2 + $0x20] sm:$0xff] %vm427, %v4646
        %4683 = vst.msk [vmem:[#allocation2 + $0x28] sm:$0xff] %vm427, %v4647
        %4684 = vst.msk [vmem:[#allocation2 + $0x30] sm:$0xff] %vm427, %v4648
        %4685 = vst.msk [vmem:[#allocation2 + $0x38] sm:$0xff] %vm427, %v4649
        %4686 = vst.msk [vmem:[#allocation2 + $0x40] sm:$0xff] %vm427, %v4650
        %4687 = vst.msk [vmem:[#allocation2 + $0x48] sm:$0xff] %vm427, %v4651
        %4688 = vst.msk [vmem:[#allocation2 + $0x50] sm:$0xff] %vm427, %v4652
        %4689 = vst.msk [vmem:[#allocation2 + $0x58] sm:$0xff] %vm427, %v4653
        %4690 = vst.msk [vmem:[#allocation2 + $0x60] sm:$0xff] %vm427, %v4654
        %4691 = vst.msk [vmem:[#allocation2 + $0x68] sm:$0xff] %vm427, %v4655
        %4692 = vst.msk [vmem:[#allocation2 + $0x70] sm:$0xff] %vm427, %v4656
        %4693 = vst.msk [vmem:[#allocation2 + $0x78] sm:$0xff] %vm427, %v4657
        %4694 = vst.msk [vmem:[#allocation2 + $0x80] sm:$0xff] %vm427, %v4658
        %4695 = vst.msk [vmem:[#allocation2 + $0x88] sm:$0xff] %vm427, %v4659
        %4696 = vst.msk [vmem:[#allocation2 + $0x90] sm:$0xff] %vm427, %v4660
        %4697 = vst.msk [vmem:[#allocation2 + $0x98] sm:$0xff] %vm427, %v4661
        %4698 = vst.msk [vmem:[#allocation2 + $0xa0] sm:$0xff] %vm427, %v4662
        %4699 = vst.msk [vmem:[#allocation2 + $0xa8] sm:$0xff] %vm427, %v4663
        %4700 = vst.msk [vmem:[#allocation2 + $0xb0] sm:$0xff] %vm427, %v4664
        %4701 = vst.msk [vmem:[#allocation2 + $0xb8] sm:$0xff] %vm427, %v4665
        %4702 = vst.msk [vmem:[#allocation2 + $0xc0] sm:$0xff] %vm427, %v4666
        %4703 = vst.msk [vmem:[#allocation2 + $0xc8] sm:$0xff] %vm427, %v4667
        %4704 = vst.msk [vmem:[#allocation2 + $0xd0] sm:$0xff] %vm427, %v4668
        %4705 = vst.msk [vmem:[#allocation2 + $0xd8] sm:$0xff] %vm427, %v4669
        %4706 = vst.msk [vmem:[#allocation2 + $0xe0] sm:$0xff] %vm427, %v4670
        %4707 = vst.msk [vmem:[#allocation2 + $0xe8] sm:$0xff] %vm427, %v4671
        %4708 = vst.msk [vmem:[#allocation2 + $0xf0] sm:$0xff] %vm427, %v4672
        %4709 = vst.msk [vmem:[#allocation2 + $0xf8] sm:$0xff] %vm427, %v4673
        %4710 = vst.msk [vmem:[#allocation2 + $0x100] sm:$0xff] %vm427, %v4674
        %4711 = vst.msk [vmem:[#allocation2 + $0x108] sm:$0xff] %vm427, %v4675
        %4712 = vst.msk [vmem:[#allocation2 + $0x110] sm:$0xff] %vm427, %v4676
        %4713 = vst.msk [vmem:[#allocation2 + $0x118] sm:$0x3f] %vm694, %v4677
        %v4714 = vld [vmem:[%s276 + $0x10] sm:$0x8]
        %v4715 = vld [vmem:[%s276 + $0x14] sm:$0xf]
        %v4716 = vld [vmem:[%s276 + $0x18] sm:$0xf]
        %v4717 = vld [vmem:[%s276 + $0x1c] sm:$0xf]
        %v4718 = vld [vmem:[%s276 + $0x20] sm:$0xf]
        %v4719 = vld [vmem:[%s276 + $0x24] sm:$0xf]
        %v4720 = vld [vmem:[%s276 + $0x28] sm:$0xf]
        %v4721 = vld [vmem:[%s276 + $0x2c] sm:$0xf]
        %v4722 = vld [vmem:[%s276 + $0x30] sm:$0xf]
        %v4723 = vld [vmem:[%s276 + $0x34] sm:$0xf]
        %v4724 = vld [vmem:[%s276 + $0x38] sm:$0xf]
        %v4725 = vld [vmem:[%s276 + $0x3c] sm:$0xf]
        %v4726 = vld [vmem:[%s276 + $0x40] sm:$0xf]
        %v4727 = vld [vmem:[%s276 + $0x44] sm:$0xf]
        %v4728 = vld [vmem:[%s276 + $0x48] sm:$0xf]
        %v4729 = vld [vmem:[%s276 + $0x4c] sm:$0xf]
        %v4730 = vld [vmem:[%s276 + $0x50] sm:$0xf]
        %v4731 = vld [vmem:[%s276 + $0x54] sm:$0xf]
        %v4732 = vld [vmem:[%s276 + $0x58] sm:$0xf]
        %v4733 = vld [vmem:[%s276 + $0x5c] sm:$0xf]
        %v4734 = vld [vmem:[%s276 + $0x60] sm:$0xf]
        %v4735 = vld [vmem:[%s276 + $0x64] sm:$0xf]
        %v4736 = vld [vmem:[%s276 + $0x68] sm:$0xf]
        %v4737 = vld [vmem:[%s276 + $0x6c] sm:$0xf]
        %v4738 = vld [vmem:[%s276 + $0x70] sm:$0xf]
        %v4739 = vld [vmem:[%s276 + $0x74] sm:$0xf]
        %v4740 = vld [vmem:[%s276 + $0x78] sm:$0xf]
        %v4741 = vld [vmem:[%s276 + $0x7c] sm:$0xf]
        %v4742 = vld [vmem:[%s276 + $0x80] sm:$0xf]
        %v4743 = vld [vmem:[%s276 + $0x84] sm:$0xf]
        %v4744 = vld [vmem:[%s276 + $0x88] sm:$0xf]
        %v4745 = vld [vmem:[%s276 + $0x8c] sm:$0xf]
        %v4746 = vld [vmem:[%s276 + $0x90] sm:$0xf]
        %v4747 = vld [vmem:[%s276 + $0x94] sm:$0xf]
        %v4748 = vld [vmem:[%s276 + $0x98] sm:$0xf]
        %v4749 = vld [vmem:[%s276 + $0x9c] sm:$0xf]
        %v4750 = vld [vmem:[%s276 + $0xa0] sm:$0x3]
        %s4751 = scalar_lea.vmem %s1, 128
        %v4752 = vld [vmem:[%s4751] sm:$0xf]
        %v4753 = vld [vmem:[%s4751 + $0x4] sm:$0xf]
        %v4754 = vld [vmem:[%s4751 + $0x8] sm:$0xf]
        %v4755 = vld [vmem:[%s4751 + $0xc] sm:$0xf]
        %v4793 = vunpack.c.l.b16 %v4714
        %v4794 = vunpack.c.l.b16 %v4715
        %v4795 = vunpack.c.l.b16 %v4716
        %v4796 = vunpack.c.l.b16 %v4717
        %v4797 = vunpack.c.l.b16 %v4718
        %v4798 = vunpack.c.l.b16 %v4719
        %v4799 = vunpack.c.l.b16 %v4720
        %v4800 = vunpack.c.l.b16 %v4721
        %v4801 = vunpack.c.l.b16 %v4722
        %v4802 = vunpack.c.l.b16 %v4723
        %v4803 = vunpack.c.l.b16 %v4724
        %v4804 = vunpack.c.l.b16 %v4725
        %v4805 = vunpack.c.l.b16 %v4726
        %v4806 = vunpack.c.l.b16 %v4727
        %v4807 = vunpack.c.l.b16 %v4728
        %v4808 = vunpack.c.l.b16 %v4729
        %v4809 = vunpack.c.l.b16 %v4730
        %v4810 = vunpack.c.l.b16 %v4731
        %v4811 = vunpack.c.l.b16 %v4732
        %v4812 = vunpack.c.l.b16 %v4733
        %v4813 = vunpack.c.l.b16 %v4734
        %v4814 = vunpack.c.l.b16 %v4735
        %v4815 = vunpack.c.l.b16 %v4736
        %v4816 = vunpack.c.l.b16 %v4737
        %v4817 = vunpack.c.l.b16 %v4738
        %v4818 = vunpack.c.l.b16 %v4739
        %v4819 = vunpack.c.l.b16 %v4740
        %v4820 = vunpack.c.l.b16 %v4741
        %v4821 = vunpack.c.l.b16 %v4742
        %v4822 = vunpack.c.l.b16 %v4743
        %v4823 = vunpack.c.l.b16 %v4744
        %v4824 = vunpack.c.l.b16 %v4745
        %v4825 = vunpack.c.l.b16 %v4746
        %v4826 = vunpack.c.l.b16 %v4747
        %v4827 = vunpack.c.l.b16 %v4748
        %v4828 = vunpack.c.l.b16 %v4749
        %v4829 = vunpack.c.l.b16 %v4750
        %v4830 = vpack.c.b16 %v4794, %v4793
        %v4831 = vpack.c.b16 %v4796, %v4795
        %v4832 = vpack.c.b16 %v4798, %v4797
        %v4833 = vpack.c.b16 %v4800, %v4799
        %v4834 = vpack.c.b16 %v4802, %v4801
        %v4835 = vpack.c.b16 %v4804, %v4803
        %v4836 = vpack.c.b16 %v4806, %v4805
        %v4837 = vpack.c.b16 %v4808, %v4807
        %v4838 = vpack.c.b16 %v4810, %v4809
        %v4839 = vpack.c.b16 %v4812, %v4811
        %v4840 = vpack.c.b16 %v4814, %v4813
        %v4841 = vpack.c.b16 %v4816, %v4815
        %v4842 = vpack.c.b16 %v4818, %v4817
        %v4843 = vpack.c.b16 %v4820, %v4819
        %v4844 = vpack.c.b16 %v4822, %v4821
        %v4845 = vpack.c.b16 %v4824, %v4823
        %v4846 = vpack.c.b16 %v4826, %v4825
        %v4847 = vpack.c.b16 %v4828, %v4827
        %v4848 = vpack.c.b16 %v4829, %v4829
        %vm4849 = vcmask 1044480
        %v4850 = vrot.slane %v4830, 3
        %v4851 = vrot.slane %v4831, 3
        %v4852 = vsel %vm4849, %v4850, %v4851
        %v4853 = vrot.slane %v4832, 3
        %v4854 = vsel %vm4849, %v4851, %v4853
        %v4855 = vrot.slane %v4833, 3
        %v4856 = vsel %vm4849, %v4853, %v4855
        %v4857 = vrot.slane %v4834, 3
        %v4858 = vsel %vm4849, %v4855, %v4857
        %v4859 = vrot.slane %v4835, 3
        %v4860 = vsel %vm4849, %v4857, %v4859
        %v4861 = vrot.slane %v4836, 3
        %v4862 = vsel %vm4849, %v4859, %v4861
        %v4863 = vrot.slane %v4837, 3
        %v4864 = vsel %vm4849, %v4861, %v4863
        %v4865 = vrot.slane %v4838, 3
        %v4866 = vsel %vm4849, %v4863, %v4865
        %v4867 = vrot.slane %v4839, 3
        %v4868 = vsel %vm4849, %v4865, %v4867
        %v4869 = vrot.slane %v4840, 3
        %v4870 = vsel %vm4849, %v4867, %v4869
        %v4871 = vrot.slane %v4841, 3
        %v4872 = vsel %vm4849, %v4869, %v4871
        %v4873 = vrot.slane %v4842, 3
        %v4874 = vsel %vm4849, %v4871, %v4873
        %v4875 = vrot.slane %v4843, 3
        %v4876 = vsel %vm4849, %v4873, %v4875
        %v4877 = vrot.slane %v4844, 3
        %v4878 = vsel %vm4849, %v4875, %v4877
        %v4879 = vrot.slane %v4845, 3
        %v4880 = vsel %vm4849, %v4877, %v4879
        %v4881 = vrot.slane %v4846, 3
        %v4882 = vsel %vm4849, %v4879, %v4881
        %v4883 = vrot.slane %v4847, 3
        %v4884 = vsel %vm4849, %v4881, %v4883
        %v4885 = vrot.slane %v4848, 3
        %v4886 = vsel %vm4849, %v4883, %v4885
        %v4891 = vunpack.c.l.b16 %v4752
        %v4892 = vunpack.c.l.b16 %v4753
        %v4893 = vunpack.c.l.b16 %v4754
        %v4894 = vunpack.c.l.b16 %v4755
        %v4895 = vpack.c.b16 %v4892, %v4891
        %v4896 = vpack.c.b16 %v4894, %v4893
        %v4900 = vsel %vm427, %v4852, 0
        %v4903 = vsel %vm427, %v4854, 0
        %v4906 = vsel %vm427, %v4856, 0
        %v4909 = vsel %vm427, %v4858, 0
        %v4912 = vsel %vm427, %v4860, 0
        %v4915 = vsel %vm427, %v4862, 0
        %v4918 = vsel %vm427, %v4864, 0
        %v4921 = vsel %vm427, %v4866, 0
        %v4924 = vsel %vm427, %v4868, 0
        %v4927 = vsel %vm427, %v4870, 0
        %v4930 = vsel %vm427, %v4872, 0
        %v4933 = vsel %vm427, %v4874, 0
        %v4936 = vsel %vm427, %v4876, 0
        %v4939 = vsel %vm427, %v4878, 0
        %v4942 = vsel %vm427, %v4880, 0
        %v4945 = vsel %vm427, %v4882, 0
        %v4948 = vsel %vm427, %v4884, 0
        %v4951 = vsel %vm427, %v4886, 0
        %4953 = vmatprep.subr.bf16.mxu0 0
        %4954 = vmatpush1.bf16.msra.mxu0 %v4895
        %4955 = vmatprep.subr.bf16.mxu0 0
        %4956 = vmatpush1.bf16.msra.mxu0 %v4896
        %4957 = vmatprep.subr.bf16.mxu0 0
        %4958 = vmatpush1.bf16.msra.mxu0 0
        %4959 = vmatprep.subr.bf16.mxu0 0
        %4960 = vmatpush1.bf16.msra.mxu0 0
        %4961 = vmatprep.subr.bf16.mxu0 0
        %4962 = vmatpush1.bf16.msra.mxu0 0
        %4963 = vmatprep.subr.bf16.mxu0 0
        %4964 = vmatpush1.bf16.msra.mxu0 0
        %4965 = vmatprep.subr.bf16.mxu0 0
        %4966 = vmatpush1.bf16.msra.mxu0 0
        %4967 = vmatprep.subr.bf16.mxu0 0
        %4968 = vmatpush1.bf16.msra.mxu0 0
        %4969 = vmatprep.subr.bf16.mxu0 0
        %4970 = vmatpush1.bf16.msra.mxu0 0
        %4971 = vmatprep.subr.bf16.mxu0 0
        %4972 = vmatpush1.bf16.msra.mxu0 0
        %4973 = vmatprep.subr.bf16.mxu0 0
        %4974 = vmatpush1.bf16.msra.mxu0 0
        %4975 = vmatprep.subr.bf16.mxu0 0
        %4976 = vmatpush1.bf16.msra.mxu0 0
        %4977 = vmatprep.subr.bf16.mxu0 0
        %4978 = vmatpush1.bf16.msra.mxu0 0
        %4979 = vmatprep.subr.bf16.mxu0 0
        %4980 = vmatpush1.bf16.msra.mxu0 0
        %4981 = vmatprep.subr.bf16.mxu0 0
        %4982 = vmatpush1.bf16.msra.mxu0 0
        %4983 = vmatprep.subr.bf16.mxu0 0
        %4984 = vmatpush1.bf16.msra.mxu0 0
        %4985 = vmatprep.mubr.bf16.mxu0 0
        %4986 = vmatmul.mubr.bf16.gmra.mrb[0].mxu0 %v4900
        %v4987 = vpop.f32.mrb[0].mxu0
        %v4988 = vadd.f32 0.0, %v4987
        %v4989 = vpop.f32.mrb[0].mxu0
        %v4990 = vpop.f32.mrb[0].mxu0
        %v4991 = vadd.f32 0.0, %v4990
        %v4992 = vpop.f32.mrb[0].mxu0
        %4993 = vmatprep.mubr.bf16.mxu0 0
        %4994 = vmatmul.mubr.bf16.gmra.mrb[0].mxu0 %v4903
        %v4995 = vpop.f32.mrb[0].mxu0
        %v4996 = vadd.f32 0.0, %v4995
        %v4997 = vpop.f32.mrb[0].mxu0
        %v4998 = vpop.f32.mrb[0].mxu0
        %v4999 = vadd.f32 0.0, %v4998
        %v5000 = vpop.f32.mrb[0].mxu0
        %5001 = vmatprep.mubr.bf16.mxu0 0
        %5002 = vmatmul.mubr.bf16.gmra.mrb[0].mxu0 %v4906
        %v5003 = vpop.f32.mrb[0].mxu0
        %v5004 = vadd.f32 0.0, %v5003
        %v5005 = vpop.f32.mrb[0].mxu0
        %v5006 = vpop.f32.mrb[0].mxu0
        %v5007 = vadd.f32 0.0, %v5006
        %v5008 = vpop.f32.mrb[0].mxu0
        %5009 = vmatprep.mubr.bf16.mxu0 0
        %5010 = vmatmul.mubr.bf16.gmra.mrb[0].mxu0 %v4909
        %v5011 = vpop.f32.mrb[0].mxu0
        %v5012 = vadd.f32 0.0, %v5011
        %v5013 = vpop.f32.mrb[0].mxu0
        %v5014 = vpop.f32.mrb[0].mxu0
        %v5015 = vadd.f32 0.0, %v5014
        %v5016 = vpop.f32.mrb[0].mxu0
        %5017 = vmatprep.mubr.bf16.mxu0 0
        %5018 = vmatmul.mubr.bf16.gmra.mrb[0].mxu0 %v4912
        %v5019 = vpop.f32.mrb[0].mxu0
        %v5020 = vadd.f32 0.0, %v5019
        %v5021 = vpop.f32.mrb[0].mxu0
        %v5022 = vpop.f32.mrb[0].mxu0
        %v5023 = vadd.f32 0.0, %v5022
        %v5024 = vpop.f32.mrb[0].mxu0
        %5025 = vmatprep.mubr.bf16.mxu0 0
        %5026 = vmatmul.mubr.bf16.gmra.mrb[0].mxu0 %v4915
        %v5027 = vpop.f32.mrb[0].mxu0
        %v5028 = vadd.f32 0.0, %v5027
        %v5029 = vpop.f32.mrb[0].mxu0
        %v5030 = vpop.f32.mrb[0].mxu0
        %v5031 = vadd.f32 0.0, %v5030
        %v5032 = vpop.f32.mrb[0].mxu0
        %5033 = vmatprep.mubr.bf16.mxu0 0
        %5034 = vmatmul.mubr.bf16.gmra.mrb[0].mxu0 %v4918
        %v5035 = vpop.f32.mrb[0].mxu0
        %v5036 = vadd.f32 0.0, %v5035
        %v5037 = vpop.f32.mrb[0].mxu0
        %v5038 = vpop.f32.mrb[0].mxu0
        %v5039 = vadd.f32 0.0, %v5038
        %v5040 = vpop.f32.mrb[0].mxu0
        %5041 = vmatprep.mubr.bf16.mxu0 0
        %5042 = vmatmul.mubr.bf16.gmra.mrb[0].mxu0 %v4921
        %v5043 = vpop.f32.mrb[0].mxu0
        %v5044 = vadd.f32 0.0, %v5043
        %v5045 = vpop.f32.mrb[0].mxu0
        %v5046 = vpop.f32.mrb[0].mxu0
        %v5047 = vadd.f32 0.0, %v5046
        %v5048 = vpop.f32.mrb[0].mxu0
        %5049 = vmatprep.mubr.bf16.mxu0 0
        %5050 = vmatmul.mubr.bf16.gmra.mrb[0].mxu0 %v4924
        %v5051 = vpop.f32.mrb[0].mxu0
        %v5052 = vadd.f32 0.0, %v5051
        %v5053 = vpop.f32.mrb[0].mxu0
        %v5054 = vpop.f32.mrb[0].mxu0
        %v5055 = vadd.f32 0.0, %v5054
        %v5056 = vpop.f32.mrb[0].mxu0
        %5057 = vmatprep.mubr.bf16.mxu0 0
        %5058 = vmatmul.mubr.bf16.gmra.mrb[0].mxu0 %v4927
        %v5059 = vpop.f32.mrb[0].mxu0
        %v5060 = vadd.f32 0.0, %v5059
        %v5061 = vpop.f32.mrb[0].mxu0
        %v5062 = vpop.f32.mrb[0].mxu0
        %v5063 = vadd.f32 0.0, %v5062
        %v5064 = vpop.f32.mrb[0].mxu0
        %5065 = vmatprep.mubr.bf16.mxu0 0
        %5066 = vmatmul.mubr.bf16.gmra.mrb[0].mxu0 %v4930
        %v5067 = vpop.f32.mrb[0].mxu0
        %v5068 = vadd.f32 0.0, %v5067
        %v5069 = vpop.f32.mrb[0].mxu0
        %v5070 = vpop.f32.mrb[0].mxu0
        %v5071 = vadd.f32 0.0, %v5070
        %v5072 = vpop.f32.mrb[0].mxu0
        %5073 = vmatprep.mubr.bf16.mxu0 0
        %5074 = vmatmul.mubr.bf16.gmra.mrb[0].mxu0 %v4933
        %v5075 = vpop.f32.mrb[0].mxu0
        %v5076 = vadd.f32 0.0, %v5075
        %v5077 = vpop.f32.mrb[0].mxu0
        %v5078 = vpop.f32.mrb[0].mxu0
        %v5079 = vadd.f32 0.0, %v5078
        %v5080 = vpop.f32.mrb[0].mxu0
        %5081 = vmatprep.mubr.bf16.mxu0 0
        %5082 = vmatmul.mubr.bf16.gmra.mrb[0].mxu0 %v4936
        %v5083 = vpop.f32.mrb[0].mxu0
        %v5084 = vadd.f32 0.0, %v5083
        %v5085 = vpop.f32.mrb[0].mxu0
        %v5086 = vpop.f32.mrb[0].mxu0
        %v5087 = vadd.f32 0.0, %v5086
        %v5088 = vpop.f32.mrb[0].mxu0
        %5089 = vmatprep.mubr.bf16.mxu0 0
        %5090 = vmatmul.mubr.bf16.gmra.mrb[0].mxu0 %v4939
        %v5091 = vpop.f32.mrb[0].mxu0
        %v5092 = vadd.f32 0.0, %v5091
        %v5093 = vpop.f32.mrb[0].mxu0
        %v5094 = vpop.f32.mrb[0].mxu0
        %v5095 = vadd.f32 0.0, %v5094
        %v5096 = vpop.f32.mrb[0].mxu0
        %5097 = vmatprep.mubr.bf16.mxu0 0
        %5098 = vmatmul.mubr.bf16.gmra.mrb[0].mxu0 %v4942
        %v5099 = vpop.f32.mrb[0].mxu0
        %v5100 = vadd.f32 0.0, %v5099
        %v5101 = vpop.f32.mrb[0].mxu0
        %v5102 = vpop.f32.mrb[0].mxu0
        %v5103 = vadd.f32 0.0, %v5102
        %v5104 = vpop.f32.mrb[0].mxu0
        %5105 = vmatprep.mubr.bf16.mxu0 0
        %5106 = vmatmul.mubr.bf16.gmra.mrb[0].mxu0 %v4945
        %v5107 = vpop.f32.mrb[0].mxu0
        %v5108 = vadd.f32 0.0, %v5107
        %v5109 = vpop.f32.mrb[0].mxu0
        %v5110 = vpop.f32.mrb[0].mxu0
        %v5111 = vadd.f32 0.0, %v5110
        %v5112 = vpop.f32.mrb[0].mxu0
        %5113 = vmatprep.mubr.bf16.mxu0 0
        %5114 = vmatmul.mubr.bf16.gmra.mrb[0].mxu0 %v4948
        %v5115 = vpop.f32.mrb[0].mxu0
        %v5116 = vadd.f32 0.0, %v5115
        %v5117 = vpop.f32.mrb[0].mxu0
        %v5118 = vpop.f32.mrb[0].mxu0
        %v5119 = vadd.f32 0.0, %v5118
        %v5120 = vpop.f32.mrb[0].mxu0
        %5121 = vmatprep.mubr.bf16.mxu0 0
        %5122 = vmatmul.mubr.bf16.gmra.mrb[0].mxu0 %v4951
        %v5123 = vpop.f32.mrb[0].mxu0
        %v5124 = vadd.f32 0.0, %v5123
        %v5125 = vpop.f32.mrb[0].mxu0
        %v5126 = vpop.f32.mrb[0].mxu0
        %v5127 = vadd.f32 0.0, %v5126
        %v5128 = vpop.f32.mrb[0].mxu0
        %5129 = vdwg.mxu0
        %v5130 = vld [vmem:[#allocation2] sm:$0xff]
        %v5131 = vld [vmem:[#allocation2 + $0x8] sm:$0xff]
        %v5132 = vld [vmem:[#allocation2 + $0x10] sm:$0xff]
        %v5133 = vld [vmem:[#allocation2 + $0x18] sm:$0xff]
        %v5134 = vld [vmem:[#allocation2 + $0x20] sm:$0xff]
        %v5135 = vld [vmem:[#allocation2 + $0x28] sm:$0xff]
        %v5136 = vld [vmem:[#allocation2 + $0x30] sm:$0xff]
        %v5137 = vld [vmem:[#allocation2 + $0x38] sm:$0xff]
        %v5138 = vld [vmem:[#allocation2 + $0x40] sm:$0xff]
        %v5139 = vld [vmem:[#allocation2 + $0x48] sm:$0xff]
        %v5140 = vld [vmem:[#allocation2 + $0x50] sm:$0xff]
        %v5141 = vld [vmem:[#allocation2 + $0x58] sm:$0xff]
        %v5142 = vld [vmem:[#allocation2 + $0x60] sm:$0xff]
        %v5143 = vld [vmem:[#allocation2 + $0x68] sm:$0xff]
        %v5144 = vld [vmem:[#allocation2 + $0x70] sm:$0xff]
        %v5145 = vld [vmem:[#allocation2 + $0x78] sm:$0xff]
        %v5146 = vld [vmem:[#allocation2 + $0x80] sm:$0xff]
        %v5147 = vld [vmem:[#allocation2 + $0x88] sm:$0xff]
        %v5148 = vld [vmem:[#allocation2 + $0x90] sm:$0xff]
        %v5149 = vld [vmem:[#allocation2 + $0x98] sm:$0xff]
        %v5150 = vld [vmem:[#allocation2 + $0xa0] sm:$0xff]
        %v5151 = vld [vmem:[#allocation2 + $0xa8] sm:$0xff]
        %v5152 = vld [vmem:[#allocation2 + $0xb0] sm:$0xff]
        %v5153 = vld [vmem:[#allocation2 + $0xb8] sm:$0xff]
        %v5154 = vld [vmem:[#allocation2 + $0xc0] sm:$0xff]
        %v5155 = vld [vmem:[#allocation2 + $0xc8] sm:$0xff]
        %v5156 = vld [vmem:[#allocation2 + $0xd0] sm:$0xff]
        %v5157 = vld [vmem:[#allocation2 + $0xd8] sm:$0xff]
        %v5158 = vld [vmem:[#allocation2 + $0xe0] sm:$0xff]
        %v5159 = vld [vmem:[#allocation2 + $0xe8] sm:$0xff]
        %v5160 = vld [vmem:[#allocation2 + $0xf0] sm:$0xff]
        %v5161 = vld [vmem:[#allocation2 + $0xf8] sm:$0xff]
        %v5162 = vld [vmem:[#allocation2 + $0x100] sm:$0xff]
        %v5163 = vld [vmem:[#allocation2 + $0x108] sm:$0xff]
        %v5164 = vld [vmem:[#allocation2 + $0x110] sm:$0xff]
        %v5165 = vld [vmem:[#allocation2 + $0x118] sm:$0x3f]
        %v5166 = vadd.f32 %v5130, %v4988
        %v5167 = vadd.f32 %v5131, %v4991
        %v5168 = vadd.f32 %v5132, %v4996
        %v5169 = vadd.f32 %v5133, %v4999
        %v5170 = vadd.f32 %v5134, %v5004
        %v5171 = vadd.f32 %v5135, %v5007
        %v5172 = vadd.f32 %v5136, %v5012
        %v5173 = vadd.f32 %v5137, %v5015
        %v5174 = vadd.f32 %v5138, %v5020
        %v5175 = vadd.f32 %v5139, %v5023
        %v5176 = vadd.f32 %v5140, %v5028
        %v5177 = vadd.f32 %v5141, %v5031
        %v5178 = vadd.f32 %v5142, %v5036
        %v5179 = vadd.f32 %v5143, %v5039
        %v5180 = vadd.f32 %v5144, %v5044
        %v5181 = vadd.f32 %v5145, %v5047
        %v5182 = vadd.f32 %v5146, %v5052
        %v5183 = vadd.f32 %v5147, %v5055
        %v5184 = vadd.f32 %v5148, %v5060
        %v5185 = vadd.f32 %v5149, %v5063
        %v5186 = vadd.f32 %v5150, %v5068
        %v5187 = vadd.f32 %v5151, %v5071
        %v5188 = vadd.f32 %v5152, %v5076
        %v5189 = vadd.f32 %v5153, %v5079
        %v5190 = vadd.f32 %v5154, %v5084
        %v5191 = vadd.f32 %v5155, %v5087
        %v5192 = vadd.f32 %v5156, %v5092
        %v5193 = vadd.f32 %v5157, %v5095
        %v5194 = vadd.f32 %v5158, %v5100
        %v5195 = vadd.f32 %v5159, %v5103
        %v5196 = vadd.f32 %v5160, %v5108
        %v5197 = vadd.f32 %v5161, %v5111
        %v5198 = vadd.f32 %v5162, %v5116
        %v5199 = vadd.f32 %v5163, %v5119
        %v5200 = vadd.f32 %v5164, %v5124
        %v5201 = vadd.f32 %v5165, %v5127
        %5202 = vst.msk [vmem:[#allocation2] sm:$0xff] %vm427, %v5166
        %5203 = vst.msk [vmem:[#allocation2 + $0x8] sm:$0xff] %vm427, %v5167
        %5204 = vst.msk [vmem:[#allocation2 + $0x10] sm:$0xff] %vm427, %v5168
        %5205 = vst.msk [vmem:[#allocation2 + $0x18] sm:$0xff] %vm427, %v5169
        %5206 = vst.msk [vmem:[#allocation2 + $0x20] sm:$0xff] %vm427, %v5170
        %5207 = vst.msk [vmem:[#allocation2 + $0x28] sm:$0xff] %vm427, %v5171
        %5208 = vst.msk [vmem:[#allocation2 + $0x30] sm:$0xff] %vm427, %v5172
        %5209 = vst.msk [vmem:[#allocation2 + $0x38] sm:$0xff] %vm427, %v5173
        %5210 = vst.msk [vmem:[#allocation2 + $0x40] sm:$0xff] %vm427, %v5174
        %5211 = vst.msk [vmem:[#allocation2 + $0x48] sm:$0xff] %vm427, %v5175
        %5212 = vst.msk [vmem:[#allocation2 + $0x50] sm:$0xff] %vm427, %v5176
        %5213 = vst.msk [vmem:[#allocation2 + $0x58] sm:$0xff] %vm427, %v5177
        %5214 = vst.msk [vmem:[#allocation2 + $0x60] sm:$0xff] %vm427, %v5178
        %5215 = vst.msk [vmem:[#allocation2 + $0x68] sm:$0xff] %vm427, %v5179
        %5216 = vst.msk [vmem:[#allocation2 + $0x70] sm:$0xff] %vm427, %v5180
        %5217 = vst.msk [vmem:[#allocation2 + $0x78] sm:$0xff] %vm427, %v5181
        %5218 = vst.msk [vmem:[#allocation2 + $0x80] sm:$0xff] %vm427, %v5182
        %5219 = vst.msk [vmem:[#allocation2 + $0x88] sm:$0xff] %vm427, %v5183
        %5220 = vst.msk [vmem:[#allocation2 + $0x90] sm:$0xff] %vm427, %v5184
        %5221 = vst.msk [vmem:[#allocation2 + $0x98] sm:$0xff] %vm427, %v5185
        %5222 = vst.msk [vmem:[#allocation2 + $0xa0] sm:$0xff] %vm427, %v5186
        %5223 = vst.msk [vmem:[#allocation2 + $0xa8] sm:$0xff] %vm427, %v5187
        %5224 = vst.msk [vmem:[#allocation2 + $0xb0] sm:$0xff] %vm427, %v5188
        %5225 = vst.msk [vmem:[#allocation2 + $0xb8] sm:$0xff] %vm427, %v5189
        %5226 = vst.msk [vmem:[#allocation2 + $0xc0] sm:$0xff] %vm427, %v5190
        %5227 = vst.msk [vmem:[#allocation2 + $0xc8] sm:$0xff] %vm427, %v5191
        %5228 = vst.msk [vmem:[#allocation2 + $0xd0] sm:$0xff] %vm427, %v5192
        %5229 = vst.msk [vmem:[#allocation2 + $0xd8] sm:$0xff] %vm427, %v5193
        %5230 = vst.msk [vmem:[#allocation2 + $0xe0] sm:$0xff] %vm427, %v5194
        %5231 = vst.msk [vmem:[#allocation2 + $0xe8] sm:$0xff] %vm427, %v5195
        %5232 = vst.msk [vmem:[#allocation2 + $0xf0] sm:$0xff] %vm427, %v5196
        %5233 = vst.msk [vmem:[#allocation2 + $0xf8] sm:$0xff] %vm427, %v5197
        %5234 = vst.msk [vmem:[#allocation2 + $0x100] sm:$0xff] %vm427, %v5198
        %5235 = vst.msk [vmem:[#allocation2 + $0x108] sm:$0xff] %vm427, %v5199
        %5236 = vst.msk [vmem:[#allocation2 + $0x110] sm:$0xff] %vm427, %v5200
        %5237 = vst.msk [vmem:[#allocation2 + $0x118] sm:$0x3f] %vm694, %v5201
        %v5238 = vld [vmem:[#allocation2] sm:$0xff]
        %v5239 = vld [vmem:[#allocation2 + $0x8] sm:$0xff]
        %v5240 = vld [vmem:[#allocation2 + $0x10] sm:$0xff]
        %v5241 = vld [vmem:[#allocation2 + $0x18] sm:$0xff]
        %v5242 = vld [vmem:[#allocation2 + $0x20] sm:$0xff]
        %v5243 = vld [vmem:[#allocation2 + $0x28] sm:$0xff]
        %v5244 = vld [vmem:[#allocation2 + $0x30] sm:$0xff]
        %v5245 = vld [vmem:[#allocation2 + $0x38] sm:$0xff]
        %v5246 = vld [vmem:[#allocation2 + $0x40] sm:$0xff]
        %v5247 = vld [vmem:[#allocation2 + $0x48] sm:$0xff]
        %v5248 = vld [vmem:[#allocation2 + $0x50] sm:$0xff]
        %v5249 = vld [vmem:[#allocation2 + $0x58] sm:$0xff]
        %v5250 = vld [vmem:[#allocation2 + $0x60] sm:$0xff]
        %v5251 = vld [vmem:[#allocation2 + $0x68] sm:$0xff]
        %v5252 = vld [vmem:[#allocation2 + $0x70] sm:$0xff]
        %v5253 = vld [vmem:[#allocation2 + $0x78] sm:$0xff]
        %v5254 = vld [vmem:[#allocation2 + $0x80] sm:$0xff]
        %v5255 = vld [vmem:[#allocation2 + $0x88] sm:$0xff]
        %v5256 = vld [vmem:[#allocation2 + $0x90] sm:$0xff]
        %v5257 = vld [vmem:[#allocation2 + $0x98] sm:$0xff]
        %v5258 = vld [vmem:[#allocation2 + $0xa0] sm:$0xff]
        %v5259 = vld [vmem:[#allocation2 + $0xa8] sm:$0xff]
        %v5260 = vld [vmem:[#allocation2 + $0xb0] sm:$0xff]
        %v5261 = vld [vmem:[#allocation2 + $0xb8] sm:$0xff]
        %v5262 = vld [vmem:[#allocation2 + $0xc0] sm:$0xff]
        %v5263 = vld [vmem:[#allocation2 + $0xc8] sm:$0xff]
        %v5264 = vld [vmem:[#allocation2 + $0xd0] sm:$0xff]
        %v5265 = vld [vmem:[#allocation2 + $0xd8] sm:$0xff]
        %v5266 = vld [vmem:[#allocation2 + $0xe0] sm:$0xff]
        %v5267 = vld [vmem:[#allocation2 + $0xe8] sm:$0xff]
        %v5268 = vld [vmem:[#allocation2 + $0xf0] sm:$0xff]
        %v5269 = vld [vmem:[#allocation2 + $0xf8] sm:$0xff]
        %v5270 = vld [vmem:[#allocation2 + $0x100] sm:$0xff]
        %v5271 = vld [vmem:[#allocation2 + $0x108] sm:$0xff]
        %v5272 = vld [vmem:[#allocation2 + $0x110] sm:$0xff]
        %v5273 = vld [vmem:[#allocation2 + $0x118] sm:$0x3f]
        %v5274 = vsel %vm427, %v5238, 0.0
        %v5275 = vsel %vm427, %v5239, 0.0
        %v5276 = vadd.f32 %v5274, %v5275
        %v5277 = vsel %vm427, %v5240, 0.0
        %v5278 = vadd.f32 %v5276, %v5277
        %v5279 = vsel %vm427, %v5241, 0.0
        %v5280 = vadd.f32 %v5278, %v5279
        %v5281 = vsel %vm427, %v5242, 0.0
        %v5282 = vadd.f32 %v5280, %v5281
        %v5283 = vsel %vm427, %v5243, 0.0
        %v5284 = vadd.f32 %v5282, %v5283
        %v5285 = vsel %vm427, %v5244, 0.0
        %v5286 = vadd.f32 %v5284, %v5285
        %v5287 = vsel %vm427, %v5245, 0.0
        %v5288 = vadd.f32 %v5286, %v5287
        %v5289 = vsel %vm427, %v5246, 0.0
        %v5290 = vadd.f32 %v5288, %v5289
        %v5291 = vsel %vm427, %v5247, 0.0
        %v5292 = vadd.f32 %v5290, %v5291
        %v5293 = vsel %vm427, %v5248, 0.0
        %v5294 = vadd.f32 %v5292, %v5293
        %v5295 = vsel %vm427, %v5249, 0.0
        %v5296 = vadd.f32 %v5294, %v5295
        %v5297 = vsel %vm427, %v5250, 0.0
        %v5298 = vadd.f32 %v5296, %v5297
        %v5299 = vsel %vm427, %v5251, 0.0
        %v5300 = vadd.f32 %v5298, %v5299
        %v5301 = vsel %vm427, %v5252, 0.0
        %v5302 = vadd.f32 %v5300, %v5301
        %v5303 = vsel %vm427, %v5253, 0.0
        %v5304 = vadd.f32 %v5302, %v5303
        %v5305 = vsel %vm427, %v5254, 0.0
        %v5306 = vadd.f32 %v5304, %v5305
        %v5307 = vsel %vm427, %v5255, 0.0
        %v5308 = vadd.f32 %v5306, %v5307
        %v5309 = vsel %vm427, %v5256, 0.0
        %v5310 = vadd.f32 %v5308, %v5309
        %v5311 = vsel %vm427, %v5257, 0.0
        %v5312 = vadd.f32 %v5310, %v5311
        %v5313 = vsel %vm427, %v5258, 0.0
        %v5314 = vadd.f32 %v5312, %v5313
        %v5315 = vsel %vm427, %v5259, 0.0
        %v5316 = vadd.f32 %v5314, %v5315
        %v5317 = vsel %vm427, %v5260, 0.0
        %v5318 = vadd.f32 %v5316, %v5317
        %v5319 = vsel %vm427, %v5261, 0.0
        %v5320 = vadd.f32 %v5318, %v5319
        %v5321 = vsel %vm427, %v5262, 0.0
        %v5322 = vadd.f32 %v5320, %v5321
        %v5323 = vsel %vm427, %v5263, 0.0
        %v5324 = vadd.f32 %v5322, %v5323
        %v5325 = vsel %vm427, %v5264, 0.0
        %v5326 = vadd.f32 %v5324, %v5325
        %v5327 = vsel %vm427, %v5265, 0.0
        %v5328 = vadd.f32 %v5326, %v5327
        %v5329 = vsel %vm427, %v5266, 0.0
        %v5330 = vadd.f32 %v5328, %v5329
        %v5331 = vsel %vm427, %v5267, 0.0
        %v5332 = vadd.f32 %v5330, %v5331
        %v5333 = vsel %vm427, %v5268, 0.0
        %v5334 = vadd.f32 %v5332, %v5333
        %v5335 = vsel %vm427, %v5269, 0.0
        %v5336 = vadd.f32 %v5334, %v5335
        %v5337 = vsel %vm427, %v5270, 0.0
        %v5338 = vadd.f32 %v5336, %v5337
        %v5339 = vsel %vm427, %v5271, 0.0
        %v5340 = vadd.f32 %v5338, %v5339
        %v5341 = vsel %vm427, %v5272, 0.0
        %v5342 = vadd.f32 %v5340, %v5341
        %v5343 = vsel %vm694, %v5273, 0.0
        %v5344 = vadd.f32 %v5342, %v5343
        %v5345 = vrot.slane %v5344, 4
        %v5346 = vadd.f32 %v5344, %v5345
        %v5347 = vrot.slane %v5346, 2
        %v5348 = vadd.f32 %v5346, %v5347
        %v5349 = vrot.slane %v5348, 1
        %v5350 = vadd.f32 %v5348, %v5349
        %v5351 = vld [vmem:[#allocation2 + $0x10] sm:$0x3]
        %vm5352 = vcmask 254976
        %v5353 = vsel %vm5352, %v5351, 0.0
        %v5354 = vrot.slane %v5353, 4
        %v5355 = vadd.f32 %v5353, %v5354
        %v5356 = vrot.slane %v5355, 2
        %v5357 = vadd.f32 %v5355, %v5356
        %v5358 = vrot.slane %v5357, 1
        %v5359 = vadd.f32 %v5357, %v5358
        %v5360 = vadd.f32 %v5359, 0.0
        %v5361 = vld [vmem:[#allocation2 + $0x22] sm:$0x3]
        %v5362 = vsel %vm5352, %v5361, 0.0
        %v5363 = vrot.slane %v5362, 4
        %v5364 = vadd.f32 %v5362, %v5363
        %v5365 = vrot.slane %v5364, 2
        %v5366 = vadd.f32 %v5364, %v5365
        %v5367 = vrot.slane %v5366, 1
        %v5368 = vadd.f32 %v5366, %v5367
        %v5369 = vadd.f32 %v5360, %v5368
        %v5370 = vld [vmem:[#allocation2 + $0x34] sm:$0x3]
        %v5371 = vsel %vm5352, %v5370, 0.0
        %v5372 = vrot.slane %v5371, 4
        %v5373 = vadd.f32 %v5371, %v5372
        %v5374 = vrot.slane %v5373, 2
        %v5375 = vadd.f32 %v5373, %v5374
        %v5376 = vrot.slane %v5375, 1
        %v5377 = vadd.f32 %v5375, %v5376
        %v5378 = vadd.f32 %v5369, %v5377
        %v5379 = vld [vmem:[#allocation2 + $0x46] sm:$0x3]
        %v5380 = vsel %vm5352, %v5379, 0.0
        %v5381 = vrot.slane %v5380, 4
        %v5382 = vadd.f32 %v5380, %v5381
        %v5383 = vrot.slane %v5382, 2
        %v5384 = vadd.f32 %v5382, %v5383
        %v5385 = vrot.slane %v5384, 1
        %v5386 = vadd.f32 %v5384, %v5385
        %v5387 = vadd.f32 %v5378, %v5386
        %v5388 = vld [vmem:[#allocation2 + $0x58] sm:$0x3]
        %v5389 = vsel %vm5352, %v5388, 0.0
        %v5390 = vrot.slane %v5389, 4
        %v5391 = vadd.f32 %v5389, %v5390
        %v5392 = vrot.slane %v5391, 2
        %v5393 = vadd.f32 %v5391, %v5392
        %v5394 = vrot.slane %v5393, 1
        %v5395 = vadd.f32 %v5393, %v5394
        %v5396 = vadd.f32 %v5387, %v5395
        %v5397 = vld [vmem:[#allocation2 + $0x6a] sm:$0x3]
        %v5398 = vsel %vm5352, %v5397, 0.0
        %v5399 = vrot.slane %v5398, 4
        %v5400 = vadd.f32 %v5398, %v5399
        %v5401 = vrot.slane %v5400, 2
        %v5402 = vadd.f32 %v5400, %v5401
        %v5403 = vrot.slane %v5402, 1
        %v5404 = vadd.f32 %v5402, %v5403
        %v5405 = vadd.f32 %v5396, %v5404
        %v5406 = vld [vmem:[#allocation2 + $0x7c] sm:$0x3]
        %v5407 = vsel %vm5352, %v5406, 0.0
        %v5408 = vrot.slane %v5407, 4
        %v5409 = vadd.f32 %v5407, %v5408
        %v5410 = vrot.slane %v5409, 2
        %v5411 = vadd.f32 %v5409, %v5410
        %v5412 = vrot.slane %v5411, 1
        %v5413 = vadd.f32 %v5411, %v5412
        %v5414 = vadd.f32 %v5405, %v5413
        %v5415 = vld [vmem:[#allocation2 + $0x8e] sm:$0x3]
        %v5416 = vsel %vm5352, %v5415, 0.0
        %v5417 = vrot.slane %v5416, 4
        %v5418 = vadd.f32 %v5416, %v5417
        %v5419 = vrot.slane %v5418, 2
        %v5420 = vadd.f32 %v5418, %v5419
        %v5421 = vrot.slane %v5420, 1
        %v5422 = vadd.f32 %v5420, %v5421
        %v5423 = vadd.f32 %v5414, %v5422
        %v5424 = vld [vmem:[#allocation2 + $0xa0] sm:$0x3]
        %v5425 = vsel %vm5352, %v5424, 0.0
        %v5426 = vrot.slane %v5425, 4
        %v5427 = vadd.f32 %v5425, %v5426
        %v5428 = vrot.slane %v5427, 2
        %v5429 = vadd.f32 %v5427, %v5428
        %v5430 = vrot.slane %v5429, 1
        %v5431 = vadd.f32 %v5429, %v5430
        %v5432 = vadd.f32 %v5423, %v5431
        %v5433 = vld [vmem:[#allocation2 + $0xb2] sm:$0x3]
        %v5434 = vsel %vm5352, %v5433, 0.0
        %v5435 = vrot.slane %v5434, 4
        %v5436 = vadd.f32 %v5434, %v5435
        %v5437 = vrot.slane %v5436, 2
        %v5438 = vadd.f32 %v5436, %v5437
        %v5439 = vrot.slane %v5438, 1
        %v5440 = vadd.f32 %v5438, %v5439
        %v5441 = vadd.f32 %v5432, %v5440
        %v5442 = vld [vmem:[#allocation2 + $0xc4] sm:$0x3]
        %v5443 = vsel %vm5352, %v5442, 0.0
        %v5444 = vrot.slane %v5443, 4
        %v5445 = vadd.f32 %v5443, %v5444
        %v5446 = vrot.slane %v5445, 2
        %v5447 = vadd.f32 %v5445, %v5446
        %v5448 = vrot.slane %v5447, 1
        %v5449 = vadd.f32 %v5447, %v5448
        %v5450 = vadd.f32 %v5441, %v5449
        %v5451 = vld [vmem:[#allocation2 + $0xd6] sm:$0x3]
        %v5452 = vsel %vm5352, %v5451, 0.0
        %v5453 = vrot.slane %v5452, 4
        %v5454 = vadd.f32 %v5452, %v5453
        %v5455 = vrot.slane %v5454, 2
        %v5456 = vadd.f32 %v5454, %v5455
        %v5457 = vrot.slane %v5456, 1
        %v5458 = vadd.f32 %v5456, %v5457
        %v5459 = vadd.f32 %v5450, %v5458
        %v5460 = vld [vmem:[#allocation2 + $0xe8] sm:$0x3]
        %v5461 = vsel %vm5352, %v5460, 0.0
        %v5462 = vrot.slane %v5461, 4
        %v5463 = vadd.f32 %v5461, %v5462
        %v5464 = vrot.slane %v5463, 2
        %v5465 = vadd.f32 %v5463, %v5464
        %v5466 = vrot.slane %v5465, 1
        %v5467 = vadd.f32 %v5465, %v5466
        %v5468 = vadd.f32 %v5459, %v5467
        %v5469 = vld [vmem:[#allocation2 + $0xfa] sm:$0x3]
        %v5470 = vsel %vm5352, %v5469, 0.0
        %v5471 = vrot.slane %v5470, 4
        %v5472 = vadd.f32 %v5470, %v5471
        %v5473 = vrot.slane %v5472, 2
        %v5474 = vadd.f32 %v5472, %v5473
        %v5475 = vrot.slane %v5474, 1
        %v5476 = vadd.f32 %v5474, %v5475
        %v5477 = vadd.f32 %v5468, %v5476
        %v5478 = vld [vmem:[#allocation2 + $0x10c] sm:$0x3]
        %v5479 = vsel %vm5352, %v5478, 0.0
        %v5480 = vrot.slane %v5479, 4
        %v5481 = vadd.f32 %v5479, %v5480
        %v5482 = vrot.slane %v5481, 2
        %v5483 = vadd.f32 %v5481, %v5482
        %v5484 = vrot.slane %v5483, 1
        %v5485 = vadd.f32 %v5483, %v5484
        %v5486 = vadd.f32 %v5477, %v5485
        %v5487 = vsub.f32 %v5350, %v5486
        %v5488 = vmul.f32 %v5487, 0.00390625
        %v5489 = vld [vmem:[%s3] sm:$0xff]
        %v5490 = vld [vmem:[%s3 + $0x8] sm:$0xff]
        %v5491 = vld [vmem:[%s3 + $0x10] sm:$0xff]
        %v5492 = vld [vmem:[%s3 + $0x18] sm:$0xff]
        %v5493 = vld [vmem:[%s4] sm:$0x1]
        %v5495 = vsel %vm427, %v5488, 0
        %5497 = vmatprep.subr.mxu0 0.0
        %5498 = vmatpush1.msra.mxu0 %v5489
        %5499 = vmatprep.subr.mxu0 0.0
        %5500 = vmatpush1.msra.mxu0 %v5490
        %5501 = vmatprep.subr.mxu0 0.0
        %5502 = vmatpush1.msra.mxu0 %v5491
        %5503 = vmatprep.subr.mxu0 0.0
        %5504 = vmatpush1.msra.mxu0 %v5492
        %5505 = vmatprep.subr.mxu0 0.0
        %5506 = vmatpush1.msra.mxu0 0.0
        %5507 = vmatprep.subr.mxu0 0.0
        %5508 = vmatpush1.msra.mxu0 0.0
        %5509 = vmatprep.subr.mxu0 0.0
        %5510 = vmatpush1.msra.mxu0 0.0
        %5511 = vmatprep.subr.mxu0 0.0
        %5512 = vmatpush1.msra.mxu0 0.0
        %5513 = vmatprep.subr.mxu0 0.0
        %5514 = vmatpush1.msra.mxu0 0.0
        %5515 = vmatprep.subr.mxu0 0.0
        %5516 = vmatpush1.msra.mxu0 0.0
        %5517 = vmatprep.subr.mxu0 0.0
        %5518 = vmatpush1.msra.mxu0 0.0
        %5519 = vmatprep.subr.mxu0 0.0
        %5520 = vmatpush1.msra.mxu0 0.0
        %5521 = vmatprep.subr.mxu0 0.0
        %5522 = vmatpush1.msra.mxu0 0.0
        %5523 = vmatprep.subr.mxu0 0.0
        %5524 = vmatpush1.msra.mxu0 0.0
        %5525 = vmatprep.subr.mxu0 0.0
        %5526 = vmatpush1.msra.mxu0 0.0
        %5527 = vmatprep.subr.mxu0 0.0
        %5528 = vmatpush1.msra.mxu0 0.0
        %5529 = vmatprep.subr.mxu0 0.0
        %5530 = vmatpush1.msra.mxu0 0.0
        %5531 = vmatprep.subr.mxu0 0.0
        %5532 = vmatpush1.msra.mxu0 0.0
        %5533 = vmatprep.subr.mxu0 0.0
        %5534 = vmatpush1.msra.mxu0 0.0
        %5535 = vmatprep.subr.mxu0 0.0
        %5536 = vmatpush1.msra.mxu0 0.0
        %5537 = vmatprep.subr.mxu0 0.0
        %5538 = vmatpush1.msra.mxu0 0.0
        %5539 = vmatprep.subr.mxu0 0.0
        %5540 = vmatpush1.msra.mxu0 0.0
        %5541 = vmatprep.subr.mxu0 0.0
        %5542 = vmatpush1.msra.mxu0 0.0
        %5543 = vmatprep.subr.mxu0 0.0
        %5544 = vmatpush1.msra.mxu0 0.0
        %5545 = vmatprep.subr.mxu0 0.0
        %5546 = vmatpush1.msra.mxu0 0.0
        %5547 = vmatprep.subr.mxu0 0.0
        %5548 = vmatpush1.msra.mxu0 0.0
        %5549 = vmatprep.subr.mxu0 0.0
        %5550 = vmatpush1.msra.mxu0 0.0
        %5551 = vmatprep.subr.mxu0 0.0
        %5552 = vmatpush1.msra.mxu0 0.0
        %5553 = vmatprep.subr.mxu0 0.0
        %5554 = vmatpush1.msra.mxu0 0.0
        %5555 = vmatprep.subr.mxu0 0.0
        %5556 = vmatpush1.msra.mxu0 0.0
        %5557 = vmatprep.subr.mxu0 0.0
        %5558 = vmatpush1.msra.mxu0 0.0
        %5559 = vmatprep.subr.mxu0 0.0
        %5560 = vmatpush1.msra.mxu0 0.0
        %5561 = vmatprep.mubr.f32.mxu0 0.0
        %5562 = vmatmul.mubr.f32.gmra.mrb[0].mxu0 %v5495
        %v5563 = vpop.f32.mrb[0].mxu0
        %v5564 = vadd.f32 %v5493, %v5563
        %v5565 = vpop.f32.mrb[0].mxu0
        %5566 = vdwg.mxu0
        %v5567 = vmax.f32 %v5564, 0.0
        %v5568 = vld [vmem:[%s5] sm:$0x3]
        %v5569 = vld [vmem:[%s6] sm:$0x1]
        %vm5570 = vcmask 15360
        %v5572 = vsel %vm5570, %v5567, 0
        %vm5574 = vcmask 1041408
        %v5576 = vsel %vm5574, %v5568, 0
        %5578 = vmatprep.subr.mxu0 0.0
        %5579 = vmatpush1.msra.mxu0 %v5576
        %5580 = vmatprep.subr.mxu0 0.0
        %5581 = vmatpush1.msra.mxu0 0.0
        %5582 = vmatprep.subr.mxu0 0.0
        %5583 = vmatpush1.msra.mxu0 0.0
        %5584 = vmatprep.subr.mxu0 0.0
        %5585 = vmatpush1.msra.mxu0 0.0
        %5586 = vmatprep.subr.mxu0 0.0
        %5587 = vmatpush1.msra.mxu0 0.0
        %5588 = vmatprep.subr.mxu0 0.0
        %5589 = vmatpush1.msra.mxu0 0.0
        %5590 = vmatprep.subr.mxu0 0.0
        %5591 = vmatpush1.msra.mxu0 0.0
        %5592 = vmatprep.subr.mxu0 0.0
        %5593 = vmatpush1.msra.mxu0 0.0
        %5594 = vmatprep.subr.mxu0 0.0
        %5595 = vmatpush1.msra.mxu0 0.0
        %5596 = vmatprep.subr.mxu0 0.0
        %5597 = vmatpush1.msra.mxu0 0.0
        %5598 = vmatprep.subr.mxu0 0.0
        %5599 = vmatpush1.msra.mxu0 0.0
        %5600 = vmatprep.subr.mxu0 0.0
        %5601 = vmatpush1.msra.mxu0 0.0
        %5602 = vmatprep.subr.mxu0 0.0
        %5603 = vmatpush1.msra.mxu0 0.0
        %5604 = vmatprep.subr.mxu0 0.0
        %5605 = vmatpush1.msra.mxu0 0.0
        %5606 = vmatprep.subr.mxu0 0.0
        %5607 = vmatpush1.msra.mxu0 0.0
        %5608 = vmatprep.subr.mxu0 0.0
        %5609 = vmatpush1.msra.mxu0 0.0
        %5610 = vmatprep.subr.mxu0 0.0
        %5611 = vmatpush1.msra.mxu0 0.0
        %5612 = vmatprep.subr.mxu0 0.0
        %5613 = vmatpush1.msra.mxu0 0.0
        %5614 = vmatprep.subr.mxu0 0.0
        %5615 = vmatpush1.msra.mxu0 0.0
        %5616 = vmatprep.subr.mxu0 0.0
        %5617 = vmatpush1.msra.mxu0 0.0
        %5618 = vmatprep.subr.mxu0 0.0
        %5619 = vmatpush1.msra.mxu0 0.0
        %5620 = vmatprep.subr.mxu0 0.0
        %5621 = vmatpush1.msra.mxu0 0.0
        %5622 = vmatprep.subr.mxu0 0.0
        %5623 = vmatpush1.msra.mxu0 0.0
        %5624 = vmatprep.subr.mxu0 0.0
        %5625 = vmatpush1.msra.mxu0 0.0
        %5626 = vmatprep.subr.mxu0 0.0
        %5627 = vmatpush1.msra.mxu0 0.0
        %5628 = vmatprep.subr.mxu0 0.0
        %5629 = vmatpush1.msra.mxu0 0.0
        %5630 = vmatprep.subr.mxu0 0.0
        %5631 = vmatpush1.msra.mxu0 0.0
        %5632 = vmatprep.subr.mxu0 0.0
        %5633 = vmatpush1.msra.mxu0 0.0
        %5634 = vmatprep.subr.mxu0 0.0
        %5635 = vmatpush1.msra.mxu0 0.0
        %5636 = vmatprep.subr.mxu0 0.0
        %5637 = vmatpush1.msra.mxu0 0.0
        %5638 = vmatprep.subr.mxu0 0.0
        %5639 = vmatpush1.msra.mxu0 0.0
        %5640 = vmatprep.subr.mxu0 0.0
        %5641 = vmatpush1.msra.mxu0 0.0
        %5642 = vmatprep.mubr.f32.mxu0 0.0
        %5643 = vmatmul.mubr.f32.gmra.mrb[0].mxu0 %v5572
        %v5644 = vpop.f32.mrb[0].mxu0
        %v5645 = vadd.f32 %v5569, %v5644
        %v5646 = vpop.f32.mrb[0].mxu0
        %5647 = vdwg.mxu0
        %v5648 = vsub.f32 0.0, %v5645
        %v5649 = vmul.f32 %v5648, 1.442695
        %v5650 = vpow.pop %v5649
        %v5651 = vadd.f32 %v5650, 1.0
        %v5652 = vrcp.pop %v5651
        %v5653 = vld [vmem:[#allocation2] sm:$0xff]
        %v5654 = vld [vmem:[#allocation2 + $0x8] sm:$0xff]
        %v5655 = vlaneseq
        %v5656 = vshrl.u32 %v5655, 7
        %v5657 = vsub.s32 0, %v5656
        %v5658 = vrot.slane %v5652, %v5657
        %v5659 = vmul.f32 %v5653, %v5658
        %v5660 = vmul.f32 %v5654, %v5658
        %v5661 = vmax.f32 %v5659, 0.0
        %v5662 = vmax.f32 %v5660, 0.0
        %v5663 = vpack.c.bf16 %v5662, %v5661
        %v5665 = vunpack.c.l.b16 %v5663
        %v5666 = vunpack.c.h.b16 %v5663
        %v5667 = vpack.c.b16 %v5665, %v5665
        %v5668 = vpack.c.b16 %v5666, %v5666
        %vm5671 = vcmask 257024
        %5672 = vst.msk [vmem:[%s271] sm:$0xf] %vm5671, %v5667
        %5673 = vst.msk [vmem:[%s271 + $0x4] sm:$0xf] %vm5671, %v5668
        %v5674 = vld [vmem:[#allocation2 + $0x12] sm:$0xff]
        %v5675 = vld [vmem:[#allocation2 + $0x1a] sm:$0xff]
        %v5676 = vmul.f32 %v5674, %v5658
        %v5677 = vmul.f32 %v5675, %v5658
        %v5678 = vmax.f32 %v5676, 0.0
        %v5679 = vmax.f32 %v5677, 0.0
        %v5680 = vpack.c.bf16 %v5679, %v5678
        %v5682 = vunpack.c.l.b16 %v5680
        %v5683 = vunpack.c.h.b16 %v5680
        %v5684 = vpack.c.b16 %v5682, %v5682
        %v5685 = vpack.c.b16 %v5683, %v5683
        %s5688 = scalar_lea.vmem %s271, 8 [#allocation3]
        %5689 = vst.msk [vmem:[%s5688] sm:$0xf] %vm5671, %v5684
        %5690 = vst.msk [vmem:[%s5688 + $0x4] sm:$0xf] %vm5671, %v5685
        %v5691 = vld [vmem:[#allocation2 + $0x24] sm:$0xff]
        %v5692 = vld [vmem:[#allocation2 + $0x2c] sm:$0xff]
        %v5693 = vmul.f32 %v5691, %v5658
        %v5694 = vmul.f32 %v5692, %v5658
        %v5695 = vmax.f32 %v5693, 0.0
        %v5696 = vmax.f32 %v5694, 0.0
        %v5697 = vpack.c.bf16 %v5696, %v5695
        %v5699 = vunpack.c.l.b16 %v5697
        %v5700 = vunpack.c.h.b16 %v5697
        %v5701 = vpack.c.b16 %v5699, %v5699
        %v5702 = vpack.c.b16 %v5700, %v5700
        %s5705 = scalar_lea.vmem %s271, 16 [#allocation3]
        %5706 = vst.msk [vmem:[%s5705] sm:$0xf] %vm5671, %v5701
        %5707 = vst.msk [vmem:[%s5705 + $0x4] sm:$0xf] %vm5671, %v5702
        %v5708 = vld [vmem:[#allocation2 + $0x36] sm:$0xff]
        %v5709 = vld [vmem:[#allocation2 + $0x3e] sm:$0xff]
        %v5710 = vmul.f32 %v5708, %v5658
        %v5711 = vmul.f32 %v5709, %v5658
        %v5712 = vmax.f32 %v5710, 0.0
        %v5713 = vmax.f32 %v5711, 0.0
        %v5714 = vpack.c.bf16 %v5713, %v5712
        %v5716 = vunpack.c.l.b16 %v5714
        %v5717 = vunpack.c.h.b16 %v5714
        %v5718 = vpack.c.b16 %v5716, %v5716
        %v5719 = vpack.c.b16 %v5717, %v5717
        %s5722 = scalar_lea.vmem %s271, 24 [#allocation3]
        %5723 = vst.msk [vmem:[%s5722] sm:$0xf] %vm5671, %v5718
        %5724 = vst.msk [vmem:[%s5722 + $0x4] sm:$0xf] %vm5671, %v5719
        %v5725 = vld [vmem:[#allocation2 + $0x48] sm:$0xff]
        %v5726 = vld [vmem:[#allocation2 + $0x50] sm:$0xff]
        %v5727 = vmul.f32 %v5725, %v5658
        %v5728 = vmul.f32 %v5726, %v5658
        %v5729 = vmax.f32 %v5727, 0.0
        %v5730 = vmax.f32 %v5728, 0.0
        %v5731 = vpack.c.bf16 %v5730, %v5729
        %v5733 = vunpack.c.l.b16 %v5731
        %v5734 = vunpack.c.h.b16 %v5731
        %v5735 = vpack.c.b16 %v5733, %v5733
        %v5736 = vpack.c.b16 %v5734, %v5734
        %s5739 = scalar_lea.vmem %s271, 32 [#allocation3]
        %5740 = vst.msk [vmem:[%s5739] sm:$0xf] %vm5671, %v5735
        %5741 = vst.msk [vmem:[%s5739 + $0x4] sm:$0xf] %vm5671, %v5736
        %v5742 = vld [vmem:[#allocation2 + $0x5a] sm:$0xff]
        %v5743 = vld [vmem:[#allocation2 + $0x62] sm:$0xff]
        %v5744 = vmul.f32 %v5742, %v5658
        %v5745 = vmul.f32 %v5743, %v5658
        %v5746 = vmax.f32 %v5744, 0.0
        %v5747 = vmax.f32 %v5745, 0.0
        %v5748 = vpack.c.bf16 %v5747, %v5746
        %v5750 = vunpack.c.l.b16 %v5748
        %v5751 = vunpack.c.h.b16 %v5748
        %v5752 = vpack.c.b16 %v5750, %v5750
        %v5753 = vpack.c.b16 %v5751, %v5751
        %s5756 = scalar_lea.vmem %s271, 40 [#allocation3]
        %5757 = vst.msk [vmem:[%s5756] sm:$0xf] %vm5671, %v5752
        %5758 = vst.msk [vmem:[%s5756 + $0x4] sm:$0xf] %vm5671, %v5753
        %v5759 = vld [vmem:[#allocation2 + $0x6c] sm:$0xff]
        %v5760 = vld [vmem:[#allocation2 + $0x74] sm:$0xff]
        %v5761 = vmul.f32 %v5759, %v5658
        %v5762 = vmul.f32 %v5760, %v5658
        %v5763 = vmax.f32 %v5761, 0.0
        %v5764 = vmax.f32 %v5762, 0.0
        %v5765 = vpack.c.bf16 %v5764, %v5763
        %v5767 = vunpack.c.l.b16 %v5765
        %v5768 = vunpack.c.h.b16 %v5765
        %v5769 = vpack.c.b16 %v5767, %v5767
        %v5770 = vpack.c.b16 %v5768, %v5768
        %s5773 = scalar_lea.vmem %s271, 48 [#allocation3]
        %5774 = vst.msk [vmem:[%s5773] sm:$0xf] %vm5671, %v5769
        %5775 = vst.msk [vmem:[%s5773 + $0x4] sm:$0xf] %vm5671, %v5770
        %v5776 = vld [vmem:[#allocation2 + $0x7e] sm:$0xff]
        %v5777 = vld [vmem:[#allocation2 + $0x86] sm:$0xff]
        %v5778 = vmul.f32 %v5776, %v5658
        %v5779 = vmul.f32 %v5777, %v5658
        %v5780 = vmax.f32 %v5778, 0.0
        %v5781 = vmax.f32 %v5779, 0.0
        %v5782 = vpack.c.bf16 %v5781, %v5780
        %v5784 = vunpack.c.l.b16 %v5782
        %v5785 = vunpack.c.h.b16 %v5782
        %v5786 = vpack.c.b16 %v5784, %v5784
        %v5787 = vpack.c.b16 %v5785, %v5785
        %s5790 = scalar_lea.vmem %s271, 56 [#allocation3]
        %5791 = vst.msk [vmem:[%s5790] sm:$0xf] %vm5671, %v5786
        %5792 = vst.msk [vmem:[%s5790 + $0x4] sm:$0xf] %vm5671, %v5787
        %v5793 = vld [vmem:[#allocation2 + $0x90] sm:$0xff]
        %v5794 = vld [vmem:[#allocation2 + $0x98] sm:$0xff]
        %v5795 = vmul.f32 %v5793, %v5658
        %v5796 = vmul.f32 %v5794, %v5658
        %v5797 = vmax.f32 %v5795, 0.0
        %v5798 = vmax.f32 %v5796, 0.0
        %v5799 = vpack.c.bf16 %v5798, %v5797
        %v5801 = vunpack.c.l.b16 %v5799
        %v5802 = vunpack.c.h.b16 %v5799
        %v5803 = vpack.c.b16 %v5801, %v5801
        %v5804 = vpack.c.b16 %v5802, %v5802
        %s5807 = scalar_lea.vmem %s271, 64 [#allocation3]
        %5808 = vst.msk [vmem:[%s5807] sm:$0xf] %vm5671, %v5803
        %5809 = vst.msk [vmem:[%s5807 + $0x4] sm:$0xf] %vm5671, %v5804
        %v5810 = vld [vmem:[#allocation2 + $0xa2] sm:$0xff]
        %v5811 = vld [vmem:[#allocation2 + $0xaa] sm:$0xff]
        %v5812 = vmul.f32 %v5810, %v5658
        %v5813 = vmul.f32 %v5811, %v5658
        %v5814 = vmax.f32 %v5812, 0.0
        %v5815 = vmax.f32 %v5813, 0.0
        %v5816 = vpack.c.bf16 %v5815, %v5814
        %v5818 = vunpack.c.l.b16 %v5816
        %v5819 = vunpack.c.h.b16 %v5816
        %v5820 = vpack.c.b16 %v5818, %v5818
        %v5821 = vpack.c.b16 %v5819, %v5819
        %s5824 = scalar_lea.vmem %s271, 72 [#allocation3]
        %5825 = vst.msk [vmem:[%s5824] sm:$0xf] %vm5671, %v5820
        %5826 = vst.msk [vmem:[%s5824 + $0x4] sm:$0xf] %vm5671, %v5821
        %v5827 = vld [vmem:[#allocation2 + $0xb4] sm:$0xff]
        %v5828 = vld [vmem:[#allocation2 + $0xbc] sm:$0xff]
        %v5829 = vmul.f32 %v5827, %v5658
        %v5830 = vmul.f32 %v5828, %v5658
        %v5831 = vmax.f32 %v5829, 0.0
        %v5832 = vmax.f32 %v5830, 0.0
        %v5833 = vpack.c.bf16 %v5832, %v5831
        %v5835 = vunpack.c.l.b16 %v5833
        %v5836 = vunpack.c.h.b16 %v5833
        %v5837 = vpack.c.b16 %v5835, %v5835
        %v5838 = vpack.c.b16 %v5836, %v5836
        %s5841 = scalar_lea.vmem %s271, 80 [#allocation3]
        %5842 = vst.msk [vmem:[%s5841] sm:$0xf] %vm5671, %v5837
        %5843 = vst.msk [vmem:[%s5841 + $0x4] sm:$0xf] %vm5671, %v5838
        %v5844 = vld [vmem:[#allocation2 + $0xc6] sm:$0xff]
        %v5845 = vld [vmem:[#allocation2 + $0xce] sm:$0xff]
        %v5846 = vmul.f32 %v5844, %v5658
        %v5847 = vmul.f32 %v5845, %v5658
        %v5848 = vmax.f32 %v5846, 0.0
        %v5849 = vmax.f32 %v5847, 0.0
        %v5850 = vpack.c.bf16 %v5849, %v5848
        %v5852 = vunpack.c.l.b16 %v5850
        %v5853 = vunpack.c.h.b16 %v5850
        %v5854 = vpack.c.b16 %v5852, %v5852
        %v5855 = vpack.c.b16 %v5853, %v5853
        %s5858 = scalar_lea.vmem %s271, 88 [#allocation3]
        %5859 = vst.msk [vmem:[%s5858] sm:$0xf] %vm5671, %v5854
        %5860 = vst.msk [vmem:[%s5858 + $0x4] sm:$0xf] %vm5671, %v5855
        %v5861 = vld [vmem:[#allocation2 + $0xd8] sm:$0xff]
        %v5862 = vld [vmem:[#allocation2 + $0xe0] sm:$0xff]
        %v5863 = vmul.f32 %v5861, %v5658
        %v5864 = vmul.f32 %v5862, %v5658
        %v5865 = vmax.f32 %v5863, 0.0
        %v5866 = vmax.f32 %v5864, 0.0
        %v5867 = vpack.c.bf16 %v5866, %v5865
        %v5869 = vunpack.c.l.b16 %v5867
        %v5870 = vunpack.c.h.b16 %v5867
        %v5871 = vpack.c.b16 %v5869, %v5869
        %v5872 = vpack.c.b16 %v5870, %v5870
        %s5875 = scalar_lea.vmem %s271, 96 [#allocation3]
        %5876 = vst.msk [vmem:[%s5875] sm:$0xf] %vm5671, %v5871
        %5877 = vst.msk [vmem:[%s5875 + $0x4] sm:$0xf] %vm5671, %v5872
        %v5878 = vld [vmem:[#allocation2 + $0xea] sm:$0xff]
        %v5879 = vld [vmem:[#allocation2 + $0xf2] sm:$0xff]
        %v5880 = vmul.f32 %v5878, %v5658
        %v5881 = vmul.f32 %v5879, %v5658
        %v5882 = vmax.f32 %v5880, 0.0
        %v5883 = vmax.f32 %v5881, 0.0
        %v5884 = vpack.c.bf16 %v5883, %v5882
        %v5886 = vunpack.c.l.b16 %v5884
        %v5887 = vunpack.c.h.b16 %v5884
        %v5888 = vpack.c.b16 %v5886, %v5886
        %v5889 = vpack.c.b16 %v5887, %v5887
        %s5892 = scalar_lea.vmem %s271, 104 [#allocation3]
        %5893 = vst.msk [vmem:[%s5892] sm:$0xf] %vm5671, %v5888
        %5894 = vst.msk [vmem:[%s5892 + $0x4] sm:$0xf] %vm5671, %v5889
        %v5895 = vld [vmem:[#allocation2 + $0xfc] sm:$0xff]
        %v5896 = vld [vmem:[#allocation2 + $0x104] sm:$0xff]
        %v5897 = vmul.f32 %v5895, %v5658
        %v5898 = vmul.f32 %v5896, %v5658
        %v5899 = vmax.f32 %v5897, 0.0
        %v5900 = vmax.f32 %v5898, 0.0
        %v5901 = vpack.c.bf16 %v5900, %v5899
        %v5903 = vunpack.c.l.b16 %v5901
        %v5904 = vunpack.c.h.b16 %v5901
        %v5905 = vpack.c.b16 %v5903, %v5903
        %v5906 = vpack.c.b16 %v5904, %v5904
        %s5909 = scalar_lea.vmem %s271, 112 [#allocation3]
        %5910 = vst.msk [vmem:[%s5909] sm:$0xf] %vm5671, %v5905
        %5911 = vst.msk [vmem:[%s5909 + $0x4] sm:$0xf] %vm5671, %v5906
        %v5912 = vld [vmem:[#allocation2 + $0x10e] sm:$0xff]
        %v5913 = vld [vmem:[#allocation2 + $0x116] sm:$0xff]
        %v5914 = vmul.f32 %v5912, %v5658
        %v5915 = vmul.f32 %v5913, %v5658
        %v5916 = vmax.f32 %v5914, 0.0
        %v5917 = vmax.f32 %v5915, 0.0
        %v5918 = vpack.c.bf16 %v5917, %v5916
        %v5920 = vunpack.c.l.b16 %v5918
        %v5921 = vunpack.c.h.b16 %v5918
        %v5922 = vpack.c.b16 %v5920, %v5920
        %v5923 = vpack.c.b16 %v5921, %v5921
        %s5926 = scalar_lea.vmem %s271, 120 [#allocation3]
        %5927 = vst.msk [vmem:[%s5926] sm:$0xf] %vm5671, %v5922
        %5928 = vst.msk [vmem:[%s5926 + $0x4] sm:$0xf] %vm5671, %v5923
        %s5929 = sand.u32 %s181, 1
        %s5930 = scalar_lea.sflag [#allocation4], %s5929
        %s5931 = sand.u32 %s181, 1
        %s5932 = smul.addr %s5931, 128
        %s5933 = scalar_lea.vmem [#allocation3], %s5932
        // Predicated region
        $region49: #{repvgg_block_se_forward.1} parent=47 // pred_check
          %p5934 = pneg %p191
        $region50: #{repvgg_block_se_forward.1} parent=47 // pred_check_branch
          %5936 = sbr.rel (%p5934) target = $region52
        $region51: #{repvgg_block_se_forward.1} parent=47 // pred_region
          %s5938 = ssub.s32 2048, 2048
          %5939 = vsyncadd %s5930, %s5938
          %s5940 = smul.addr %s21, 32
          %s5941 = smul.addr %s5940, 64
          %s5942 = scalar_lea.hbm %s7, %s5941
          %s5943 = sshll.u32 %s5933, 4
          %s5944 = int_to_ptr.vmem [resolvable:$true] %s5943
          %5949 = dma.vmem_to_hbm [thread:$0]  %s5944, 2048, %s5942, %s5930, 64, 64, 4
        $region52: #{repvgg_block_se_forward.1} parent=47 // pred_fallthru
          _
      $region48: #{repvgg_block_se_forward.1} parent=5 // pred_fallthru
        _
      %p5950 = scmp.le.s32.totalorder 2, %s16
      // Predicated region
      $region53: #{repvgg_block_se_forward.1} parent=5 // pred_check
        %p5951 = pneg %p5950
      $region54: #{repvgg_block_se_forward.1} parent=5 // pred_check_branch
        %5953 = sbr.rel (%p5951) target = $region56
      $region55: #{repvgg_block_se_forward.1} parent=5 // pred_region
        %s5954 = ssub.s32 %s16, 2
        // Predicated region
        $region57: #{repvgg_block_se_forward.1} parent=55 // pred_check
          %p5955 = pneg %p197
        $region58: #{repvgg_block_se_forward.1} parent=55 // pred_check_branch
          %5957 = sbr.rel (%p5955) target = $region60
        $region59: #{repvgg_block_se_forward.1} parent=55 // pred_region
          %s5958 = sand.u32 %s182, 1
          %s5959 = scalar_lea.sflag [#allocation4], %s5958
          %s5960 = sand.u32 %s182, 1
          %s5961 = smul.addr %s5960, 128
          %s5962 = scalar_lea.vmem [#allocation3], %s5961
          %5963 = dma.done %s5959, 2048
        $region60: #{repvgg_block_se_forward.1} parent=55 // pred_fallthru
          _
      $region56: #{repvgg_block_se_forward.1} parent=5 // pred_fallthru
        _
    $region6: #{repvgg_block_se_forward.1} parent=1 // loop_footer
      %s20 = sadd.s32 1, %s16
    $region7: #{repvgg_block_se_forward.1} parent=1 // loop_footer_branch
      %15 = sbr.rel target = $region3
    $region8: #{repvgg_block_se_forward.1} parent=1 // loop_exit
      _
    %5964 = vsyncpa [#allocation4], 1
    %s5965 = scalar_lea.sflag [#allocation4], 1
    %5966 = vsyncpa %s5965, 1

</llo_original>
